<compile_context>
chip_gen: v6e
topology: v6e:2x2x1
jax: 0.10.0
libtpu: 0.0.40
codegen_flags: <defaults>
</compile_context>

<pallas_src>
import functools
import math

import numpy as np

import jax
import jax.numpy as jnp
from jax.experimental import pallas as pl
from jax.experimental.pallas import tpu as pltpu


# ----------------------------------------------------------------------------
# Fused per-layer kernel: one grid step == one seq position (all batches/heads).
# ----------------------------------------------------------------------------
def _fused_mha_layer_kernel(qmask_ref, kmask_ref, xq_ref, xc_ref,
                            wq_ref, bq_ref, wk_ref, bk_ref, wv_ref, bv_ref,
                            wm_ref, bm_ref, w1a_ref, w1b_ref, b1_ref,
                            w2_ref, b2_ref, o_ref, *, n_heads, batch, n_markers):
    d_model = xq_ref.shape[-1]
    dk = d_model // n_heads
    sm_scale = 1.0 / math.sqrt(dk)          # torch: scores / d_k ** 0.5

    xq = xq_ref[0].astype(jnp.float32)       # (B*N, D) query-side activations
    xc = xc_ref[0].astype(jnp.float32)       # (B*N, D) center-frame (key/value) activations

    # Q/K/V projections (1x1 convs) -- MXU matmuls with f32 accumulation.
    q = jnp.dot(xq, wq_ref[0], preferred_element_type=jnp.float32) + bq_ref[0]
    k = jnp.dot(xc, wk_ref[0], preferred_element_type=jnp.float32) + bk_ref[0]
    v = jnp.dot(xc, wv_ref[0], preferred_element_type=jnp.float32) + bv_ref[0]

    qmask = qmask_ref[0]                     # (B*N, 1) query validity (this seq position)
    kmask = kmask_ref[...]                   # (B, N)   key validity (center frame)
    neg_inf = jnp.float32(-1e9)

    batch_outs = []
    for bi in range(batch):                  # batch & heads are static -> fully unrolled
        r0 = bi * n_markers
        qb = q[r0:r0 + n_markers, :]         # (N, D)
        kb = k[r0:r0 + n_markers, :]
        vb = v[r0:r0 + n_markers, :]

        # Score mask built in-kernel: rows = query validity, cols = key validity.
        # Exact masked_fill(mask == 0, -1e9) semantics (fully-masked rows stay uniform).
        qcol = jnp.broadcast_to(qmask[r0:r0 + n_markers, :], (n_markers, n_markers))
        krow = jnp.broadcast_to(kmask[bi:bi + 1, :], (n_markers, n_markers))
        valid = (qcol > 0) & (krow > 0)

        head_outs = []
        for h in range(n_heads):             # heads are contiguous lane slices (host permute)
            c0 = h * dk
            qh = qb[:, c0:c0 + dk]
            kh = kb[:, c0:c0 + dk]
            vh = vb[:, c0:c0 + dk]
            # NOTE: dk under-fills the MXU contraction; at N=16 each score tile is a
            # single vmatmul either way, so per-head dots are the simplest correct form.
            scores = jax.lax.dot_general(
                qh, kh, (((1,), (1,)), ((), ())),
                preferred_element_type=jnp.float32) * sm_scale
            scores = jnp.where(valid, scores, neg_inf)
            scores = scores - jnp.max(scores, axis=-1, keepdims=True)
            p = jnp.exp(scores)
            p = p / jnp.sum(p, axis=-1, keepdims=True)
            head_outs.append(jnp.dot(p, vh, preferred_element_type=jnp.float32))
        batch_outs.append(jnp.concatenate(head_outs, axis=-1))    # (N, D)
    attn = jnp.concatenate(batch_outs, axis=0)                    # (B*N, D)

    # merge conv (weight rows pre-permuted to match contiguous-head channel order).
    merged = jnp.dot(attn, wm_ref[0], preferred_element_type=jnp.float32) + bm_ref[0]

    # post_merge: Conv1d(2D,2D)(cat([merged, init_query])) -> BN(eval) -> ReLU, with the
    # concat split over input channels and BatchNorm folded into w1a/w1b/b1 on the host.
    h1 = jnp.dot(merged, w1a_ref[0], preferred_element_type=jnp.float32)
    h1 = h1 + jnp.dot(xq, w1b_ref[0], preferred_element_type=jnp.float32)
    h1 = jnp.maximum(h1 + b1_ref[0], 0.0)

    out = jnp.dot(h1, w2_ref[0], preferred_element_type=jnp.float32) + b2_ref[0]
    o_ref[0] = out.astype(o_ref.dtype)


# ----------------------------------------------------------------------------
# pallas_call wrapper for one layer: grid over the S seq positions.
# ----------------------------------------------------------------------------
def fused_mha_layer(sp, x, qmask_col, kmask_row, n_heads, center_idx):
    """x: (S, B*N, D); qmask_col: (S, B*N, 1); kmask_row: (B, N) -> (S, B*N, D)."""
    S, M, D = x.shape
    B, N = kmask_row.shape
    dk = D // n_heads

    def per_s(arr):
        return pl.BlockSpec((1,) + arr.shape[1:], lambda s: (s, 0, 0))

    weight_keys = ("wq", "bq", "wk", "bk", "wv", "bv", "wm", "bm",
                   "w1a", "w1b", "b1", "w2", "b2")
    weights = tuple(sp[k] for k in weight_keys)

    in_specs = (
        [per_s(qmask_col),                                         # query-row mask, per s
         pl.BlockSpec((B, N), lambda s: (0, 0)),                   # key-row mask (constant)
         per_s(x),                                                 # query-side slab, per s
         pl.BlockSpec((1, M, D), lambda s: (center_idx, 0, 0))]    # center slab (constant)
        + [per_s(w) for w in weights]                              # per-s stacked weights
    )

    kernel = functools.partial(_fused_mha_layer_kernel,
                               n_heads=n_heads, batch=B, n_markers=N)

    flops = S * (2 * M * D * D * 4                   # q, k, v, merge projections
                 + 4 * B * n_heads * N * N * dk      # QK^T + PV
                 + 2 * M * D * (2 * D) * 2           # post_merge conv (split over inputs)
                 + 2 * M * (2 * D) * D)              # final conv
    operands = (qmask_col, kmask_row, x, x) + weights
    bytes_accessed = (sum(int(a.size) * a.dtype.itemsize for a in operands)
                      + int(x.size) * x.dtype.itemsize)

    return pl.pallas_call(
        kernel,
        out_shape=jax.ShapeDtypeStruct((S, M, D), x.dtype),
        grid_spec=pltpu.PrefetchScalarGridSpec(
            num_scalar_prefetch=0,
            grid=(S,),
            in_specs=in_specs,
            out_specs=pl.BlockSpec((1, M, D), lambda s: (s, 0, 0)),
        ),
        compiler_params=pltpu.CompilerParams(dimension_semantics=("parallel",)),
        cost_estimate=pl.CostEstimate(flops=flops,
                                      transcendentals=S * B * n_heads * N * N,
                                      bytes_accessed=bytes_accessed),
    )(qmask_col, kmask_row, x, x, *weights)


# ----------------------------------------------------------------------------
# LayeredMixedAttention forward
# ----------------------------------------------------------------------------
def layered_mixed_attention_forward(stacked_layers, points, points_mask,
                                    n_heads, center_idx):
    """points: (B, D, N, S); points_mask: (B, S, N) -> (B, D, N, S)."""
    B, D, N, S = points.shape
    # Channel-last, seq-major activation slab: (S, B*N, D).
    x = jnp.transpose(points, (3, 0, 2, 1)).reshape(S, B * N, D)
    # Row masks only; the (N, N) score masks are built in-kernel.
    qmask_col = jnp.transpose(points_mask, (1, 0, 2)).reshape(S, B * N, 1).astype(jnp.float32)
    kmask_row = points_mask[:, center_idx, :].astype(jnp.float32)        # (B, N)
    for sp in stacked_layers:
        x = fused_mha_layer(sp, x, qmask_col, kmask_row, n_heads, center_idx)
    return jnp.transpose(x.reshape(S, B, N, D), (1, 3, 2, 0))            # (B, D, N, S)


# ----------------------------------------------------------------------------
# Parameter init (PyTorch-convention weights as (Cin, Cout); biases as (1, Cout))
# ----------------------------------------------------------------------------
def init_mha_params(key, d_model):
    D = d_model
    keys = jax.random.split(key, 12)

    def w(k, cin, cout):
        return jax.random.normal(k, (cin, cout), jnp.float32) / math.sqrt(cin)

    def b(k, cout):
        return jax.random.normal(k, (1, cout), jnp.float32) * 0.01

    bn_eps = 1e-5
    return {
        "wq": w(keys[0], D, D), "bq": b(keys[1], D),
        "wk": w(keys[2], D, D), "bk": b(keys[3], D),
        "wv": w(keys[4], D, D), "bv": b(keys[5], D),
        "wm": w(keys[6], D, D), "bm": b(keys[7], D),
        # post_merge Conv1d(2D,2D) split over input channels: [merged | init_query]
        "w1a": w(keys[8], D, 2 * D), "w1b": w(keys[9], D, 2 * D),
        "b1": b(keys[10], 2 * D),
        # eval-mode BatchNorm1d(2D): gamma=1, beta=0, mean=0, var=1 -> folded affine
        "bn_scale": jnp.full((1, 2 * D), 1.0 / math.sqrt(1.0 + bn_eps), jnp.float32),
        "bn_shift": jnp.zeros((1, 2 * D), jnp.float32),
        "w2": w(keys[11], 2 * D, D),
        "b2": jnp.zeros((1, D), jnp.float32),  # nn.init.constant_(post_merge[-1].bias, 0)
    }


def stack_layer_params(layer_params, n_heads):
    """Pack the S per-position MHA param dicts of one layer into (S, ...) arrays:
      * Q/K/V output channels (and merge input channels) permuted so head h is the
        contiguous lane slice [h*dk, (h+1)*dk) — PyTorch's view() split is c = d*H + h.
      * eval-mode BatchNorm folded into the post_merge conv weights/bias."""
    D = layer_params[0]["wq"].shape[0]
    dk = D // n_heads
    perm = np.arange(D).reshape(dk, n_heads).T.reshape(-1)   # new ch c'=h*dk+d <- old d*H+h

    def stack(fn):
        return jnp.stack([fn(p) for p in layer_params], axis=0)

    return {
        "wq": stack(lambda p: p["wq"][:, perm]), "bq": stack(lambda p: p["bq"][:, perm]),
        "wk": stack(lambda p: p["wk"][:, perm]), "bk": stack(lambda p: p["bk"][:, perm]),
        "wv": stack(lambda p: p["wv"][:, perm]), "bv": stack(lambda p: p["bv"][:, perm]),
        "wm": stack(lambda p: p["wm"][perm, :]), "bm": stack(lambda p: p["bm"]),
        "w1a": stack(lambda p: p["w1a"] * p["bn_scale"]),
        "w1b": stack(lambda p: p["w1b"] * p["bn_scale"]),
        "b1": stack(lambda p: p["b1"] * p["bn_scale"] + p["bn_shift"]),
        "w2": stack(lambda p: p["w2"]), "b2": stack(lambda p: p["b2"]),
    }


# ----------------------------------------------------------------------------
# Pure-JAX reference (uses the ORIGINAL per-position params and PyTorch's head
# split convention) for correctness checking.
# ----------------------------------------------------------------------------
def _mha_ref(params, x_q, x_kv, mask, n_heads):
    hp = jax.lax.Precision.HIGHEST
    B, N, D = x_q.shape
    dk = D // n_heads
    xq2 = x_q.reshape(B * N, D)
    xkv2 = x_kv.reshape(B * N, D)
    q = jnp.dot(xq2, params["wq"], precision=hp) + params["bq"]
    k = jnp.dot(xkv2, params["wk"], precision=hp) + params["bk"]
    v = jnp.dot(xkv2, params["wv"], precision=hp) + params["bv"]

    def split(t):
        return t.reshape(B, N, dk, n_heads).transpose(0, 3, 1, 2)

    qh, kh, vh = split(q), split(k), split(v)
    scores = jnp.einsum("bhnd,bhmd->bhnm", qh, kh, precision=hp) / math.sqrt(dk)
    scores = jnp.where(mask[:, None, :, :] > 0, scores, -1e9)
    attn = jax.nn.softmax(scores, axis=-1)
    ah = jnp.einsum("bhnm,bhmd->bhnd", attn, vh, precision=hp)
    a = ah.transpose(0, 2, 3, 1).reshape(B * N, D)
    merged = jnp.dot(a, params["wm"], precision=hp) + params["bm"]
    h = (jnp.dot(merged, params["w1a"], precision=hp)
         + jnp.dot(xq2, params["w1b"], precision=hp) + params["b1"])
    h = jnp.maximum(h * params["bn_scale"] + params["bn_shift"], 0.0)
    out = jnp.dot(h, params["w2"], precision=hp) + params["b2"]
    return out.reshape(B, N, D)


def _layered_ref(all_params, points, points_mask, n_heads, center_idx):
    B, D, N, S = points.shape
    kmask = points_mask[:, center_idx, :] != 0
    masks = []
    for idx in range(S):
        qmask = points_mask[:, idx, :] != 0
        masks.append((qmask[:, :, None] & kmask[:, None, :]).astype(jnp.float32))
    x = jnp.transpose(points, (0, 3, 2, 1))
    for layer_params in all_params:
        x_center = x[:, center_idx]
        outs = [_mha_ref(layer_params[i], x[:, i], x_center, masks[i], n_heads)
                for i in range(S)]
        x = jnp.stack(outs, axis=1)
    return jnp.transpose(x, (0, 3, 2, 1))


# ----------------------------------------------------------------------------
if __name__ == "__main__":
    key = jax.random.PRNGKey(0)

    # Small shapes consistent with the module: d_model=32, n_heads=4, seq_len=3,
    # max_markers=16, batch=2, n_layers=2.
    B, D, H, S, N = 2, 32, 4, 3, 16
    n_layers = 2
    center = S // 2

    k_pts, k_mask, k_params = jax.random.split(key, 3)
    points = jax.random.normal(k_pts, (B, D, N, S), jnp.float32)
    points_mask = (jax.random.uniform(k_mask, (B, S, N)) > 0.2).astype(jnp.float32)

    pkeys = jax.random.split(k_params, n_layers * S)
    raw_params = [[init_mha_params(pkeys[l * S + s], D) for s in range(S)]
                  for l in range(n_layers)]
    stacked = [stack_layer_params(lp, H) for lp in raw_params]

    fwd = jax.jit(functools.partial(layered_mixed_attention_forward,
                                    n_heads=H, center_idx=center))
    out = fwd(stacked, points, points_mask)
    jax.block_until_ready(out)

    assert out.shape == (B, D, N, S)
    assert bool(jnp.all(jnp.isfinite(out)))

    ref = _layered_ref(raw_params, points, points_mask, H, center)
    assert jnp.allclose(out, ref, atol=3e-2, rtol=3e-2), "mismatch vs JAX reference"

    print("KERNEL_OK")
</pallas_src>

<mosaic_0001>
module attributes {stable_mosaic.version = 11 : i64} {
  func.func @_fused_mha_layer_kernel(%arg0: i32, %arg1: memref<1x32x1xf32, #tpu.memory_space<vmem>>, %arg2: memref<2x16xf32, #tpu.memory_space<vmem>>, %arg3: memref<1x32x32xf32, #tpu.memory_space<vmem>>, %arg4: memref<1x32x32xf32, #tpu.memory_space<vmem>>, %arg5: memref<1x32x32xf32, #tpu.memory_space<vmem>>, %arg6: memref<1x1x32xf32, #tpu.memory_space<vmem>>, %arg7: memref<1x32x32xf32, #tpu.memory_space<vmem>>, %arg8: memref<1x1x32xf32, #tpu.memory_space<vmem>>, %arg9: memref<1x32x32xf32, #tpu.memory_space<vmem>>, %arg10: memref<1x1x32xf32, #tpu.memory_space<vmem>>, %arg11: memref<1x32x32xf32, #tpu.memory_space<vmem>>, %arg12: memref<1x1x32xf32, #tpu.memory_space<vmem>>, %arg13: memref<1x32x64xf32, #tpu.memory_space<vmem>>, %arg14: memref<1x32x64xf32, #tpu.memory_space<vmem>>, %arg15: memref<1x1x64xf32, #tpu.memory_space<vmem>>, %arg16: memref<1x64x32xf32, #tpu.memory_space<vmem>>, %arg17: memref<1x1x32xf32, #tpu.memory_space<vmem>>, %arg18: memref<1x32x32xf32, #tpu.memory_space<vmem>>) attributes {dimension_semantics = [#tpu.dimension_semantics<parallel>], iteration_bounds = array<i64: 3>, scalar_prefetch = 0 : i64, scratch_operands = 0 : i64, tpu.core_type = #tpu.core_type<tc>, window_params = [{transform_indices = @transform_0, window_bounds = array<i64: 1, 32, 1>}, {pipeline_mode = #tpu.pipeline_mode<synchronous>, transform_indices = @transform_1, window_bounds = array<i64: 2, 16>}, {transform_indices = @transform_2, window_bounds = array<i64: 1, 32, 32>}, {transform_indices = @transform_3, window_bounds = array<i64: 1, 32, 32>}, {transform_indices = @transform_4, window_bounds = array<i64: 1, 32, 32>}, {transform_indices = @transform_5, window_bounds = array<i64: 1, 1, 32>}, {transform_indices = @transform_6, window_bounds = array<i64: 1, 32, 32>}, {transform_indices = @transform_7, window_bounds = array<i64: 1, 1, 32>}, {transform_indices = @transform_8, window_bounds = array<i64: 1, 32, 32>}, {transform_indices = @transform_9, window_bounds = array<i64: 1, 1, 32>}, {transform_indices = @transform_10, window_bounds = array<i64: 1, 32, 32>}, {transform_indices = @transform_11, window_bounds = array<i64: 1, 1, 32>}, {transform_indices = @transform_12, window_bounds = array<i64: 1, 32, 64>}, {transform_indices = @transform_13, window_bounds = array<i64: 1, 32, 64>}, {transform_indices = @transform_14, window_bounds = array<i64: 1, 1, 64>}, {transform_indices = @transform_15, window_bounds = array<i64: 1, 64, 32>}, {transform_indices = @transform_16, window_bounds = array<i64: 1, 1, 32>}, {transform_indices = @transform_17, window_bounds = array<i64: 1, 32, 32>}]} {
    %c0 = arith.constant 0 : index
    %c0_0 = arith.constant 0 : index
    %c0_1 = arith.constant 0 : index
    %0 = vector.load %arg3[%c0, %c0_0, %c0_1] : memref<1x32x32xf32, #tpu.memory_space<vmem>>, vector<1x32x32xf32>
    %1 = vector.shape_cast %0 : vector<1x32x32xf32> to vector<32x32xf32>
    %c0_2 = arith.constant 0 : index
    %c0_3 = arith.constant 0 : index
    %c0_4 = arith.constant 0 : index
    %2 = vector.load %arg4[%c0_2, %c0_3, %c0_4] : memref<1x32x32xf32, #tpu.memory_space<vmem>>, vector<1x32x32xf32>
    %3 = vector.shape_cast %2 : vector<1x32x32xf32> to vector<32x32xf32>
    %c0_5 = arith.constant 0 : index
    %c0_6 = arith.constant 0 : index
    %c0_7 = arith.constant 0 : index
    %4 = vector.load %arg5[%c0_5, %c0_6, %c0_7] : memref<1x32x32xf32, #tpu.memory_space<vmem>>, vector<1x32x32xf32>
    %5 = vector.shape_cast %4 : vector<1x32x32xf32> to vector<32x32xf32>
    %cst = arith.constant dense<0.000000e+00> : vector<32x32xf32>
    %6 = tpu.matmul %1, %5, %cst {dimension_numbers = #tpu.dot_dimension_numbers<[1], [0], [0], [1], [0, 0, 1, 1], [], []>} : vector<32x32xf32>, vector<32x32xf32>, vector<32x32xf32> -> vector<32x32xf32>
    %c0_8 = arith.constant 0 : index
    %c0_9 = arith.constant 0 : index
    %c0_10 = arith.constant 0 : index
    %7 = vector.load %arg6[%c0_8, %c0_9, %c0_10] : memref<1x1x32xf32, #tpu.memory_space<vmem>>, vector<1x1x32xf32>
    %8 = vector.shape_cast %7 : vector<1x1x32xf32> to vector<1x32xf32>
    %9 = vector.broadcast %8 : vector<1x32xf32> to vector<32x32xf32>
    %10 = arith.addf %6, %9 : vector<32x32xf32>
    %c0_11 = arith.constant 0 : index
    %c0_12 = arith.constant 0 : index
    %c0_13 = arith.constant 0 : index
    %11 = vector.load %arg7[%c0_11, %c0_12, %c0_13] : memref<1x32x32xf32, #tpu.memory_space<vmem>>, vector<1x32x32xf32>
    %12 = vector.shape_cast %11 : vector<1x32x32xf32> to vector<32x32xf32>
    %cst_14 = arith.constant dense<0.000000e+00> : vector<32x32xf32>
    %13 = tpu.matmul %3, %12, %cst_14 {dimension_numbers = #tpu.dot_dimension_numbers<[1], [0], [0], [1], [0, 0, 1, 1], [], []>} : vector<32x32xf32>, vector<32x32xf32>, vector<32x32xf32> -> vector<32x32xf32>
    %c0_15 = arith.constant 0 : index
    %c0_16 = arith.constant 0 : index
    %c0_17 = arith.constant 0 : index
    %14 = vector.load %arg8[%c0_15, %c0_16, %c0_17] : memref<1x1x32xf32, #tpu.memory_space<vmem>>, vector<1x1x32xf32>
    %15 = vector.shape_cast %14 : vector<1x1x32xf32> to vector<1x32xf32>
    %16 = vector.broadcast %15 : vector<1x32xf32> to vector<32x32xf32>
    %17 = arith.addf %13, %16 : vector<32x32xf32>
    %c0_18 = arith.constant 0 : index
    %c0_19 = arith.constant 0 : index
    %c0_20 = arith.constant 0 : index
    %18 = vector.load %arg9[%c0_18, %c0_19, %c0_20] : memref<1x32x32xf32, #tpu.memory_space<vmem>>, vector<1x32x32xf32>
    %19 = vector.shape_cast %18 : vector<1x32x32xf32> to vector<32x32xf32>
    %cst_21 = arith.constant dense<0.000000e+00> : vector<32x32xf32>
    %20 = tpu.matmul %3, %19, %cst_21 {dimension_numbers = #tpu.dot_dimension_numbers<[1], [0], [0], [1], [0, 0, 1, 1], [], []>} : vector<32x32xf32>, vector<32x32xf32>, vector<32x32xf32> -> vector<32x32xf32>
    %c0_22 = arith.constant 0 : index
    %c0_23 = arith.constant 0 : index
    %c0_24 = arith.constant 0 : index
    %21 = vector.load %arg10[%c0_22, %c0_23, %c0_24] : memref<1x1x32xf32, #tpu.memory_space<vmem>>, vector<1x1x32xf32>
    %22 = vector.shape_cast %21 : vector<1x1x32xf32> to vector<1x32xf32>
    %23 = vector.broadcast %22 : vector<1x32xf32> to vector<32x32xf32>
    %24 = arith.addf %20, %23 : vector<32x32xf32>
    %c0_25 = arith.constant 0 : index
    %c0_26 = arith.constant 0 : index
    %c0_27 = arith.constant 0 : index
    %25 = vector.load %arg1[%c0_25, %c0_26, %c0_27] : memref<1x32x1xf32, #tpu.memory_space<vmem>>, vector<1x32x1xf32>
    %26 = vector.shape_cast %25 : vector<1x32x1xf32> to vector<32x1xf32>
    %c0_28 = arith.constant 0 : index
    %c0_29 = arith.constant 0 : index
    %27 = vector.load %arg2[%c0_28, %c0_29] : memref<2x16xf32, #tpu.memory_space<vmem>>, vector<2x16xf32>
    %28 = vector.extract_strided_slice %10 {offsets = [0, 0], sizes = [16, 32], strides = [1, 1]} : vector<32x32xf32> to vector<16x32xf32>
    %29 = vector.extract_strided_slice %17 {offsets = [0, 0], sizes = [16, 32], strides = [1, 1]} : vector<32x32xf32> to vector<16x32xf32>
    %30 = vector.extract_strided_slice %24 {offsets = [0, 0], sizes = [16, 32], strides = [1, 1]} : vector<32x32xf32> to vector<16x32xf32>
    %31 = vector.extract_strided_slice %26 {offsets = [0, 0], sizes = [16, 1], strides = [1, 1]} : vector<32x1xf32> to vector<16x1xf32>
    %32 = vector.shape_cast %31 : vector<16x1xf32> to vector<16x1xf32>
    %33 = vector.broadcast %32 : vector<16x1xf32> to vector<16x16xf32>
    %34 = vector.extract_strided_slice %27 {offsets = [0, 0], sizes = [1, 16], strides = [1, 1]} : vector<2x16xf32> to vector<1x16xf32>
    %35 = vector.shape_cast %34 : vector<1x16xf32> to vector<1x16xf32>
    %36 = vector.broadcast %35 : vector<1x16xf32> to vector<16x16xf32>
    %cst_30 = arith.constant 0.000000e+00 : f32
    %37 = vector.broadcast %cst_30 : f32 to vector<16x16xf32>
    %38 = arith.cmpf ogt, %33, %37 : vector<16x16xf32>
    %cst_31 = arith.constant 0.000000e+00 : f32
    %39 = vector.broadcast %cst_31 : f32 to vector<16x16xf32>
    %40 = arith.cmpf ogt, %36, %39 : vector<16x16xf32>
    %41 = arith.andi %38, %40 : vector<16x16xi1>
    %42 = vector.extract_strided_slice %28 {offsets = [0, 0], sizes = [16, 8], strides = [1, 1]} : vector<16x32xf32> to vector<16x8xf32>
    %43 = vector.extract_strided_slice %29 {offsets = [0, 0], sizes = [16, 8], strides = [1, 1]} : vector<16x32xf32> to vector<16x8xf32>
    %44 = vector.extract_strided_slice %30 {offsets = [0, 0], sizes = [16, 8], strides = [1, 1]} : vector<16x32xf32> to vector<16x8xf32>
    %cst_32 = arith.constant dense<0.000000e+00> : vector<16x16xf32>
    %45 = tpu.matmul %42, %43, %cst_32 {dimension_numbers = #tpu.dot_dimension_numbers<[1], [1], [0], [0], [0, 0, 1, 0], [], []>} : vector<16x8xf32>, vector<16x8xf32>, vector<16x16xf32> -> vector<16x16xf32>
    %cst_33 = arith.constant 0.353553385 : f32
    %46 = vector.broadcast %cst_33 : f32 to vector<16x16xf32>
    %47 = arith.mulf %45, %46 : vector<16x16xf32>
    %cst_34 = arith.constant -1.000000e+09 : f32
    %48 = vector.broadcast %cst_34 : f32 to vector<16x16xf32>
    %49 = arith.select %41, %47, %48 : vector<16x16xi1>, vector<16x16xf32>
    %cst_35 = arith.constant dense<0xFF800000> : vector<16xf32>
    %50 = vector.multi_reduction <maximumf>, %49, %cst_35 [1] : vector<16x16xf32> to vector<16xf32>
    %51 = vector.shape_cast %50 : vector<16xf32> to vector<16x1xf32>
    %52 = vector.broadcast %51 : vector<16x1xf32> to vector<16x16xf32>
    %53 = arith.subf %49, %52 : vector<16x16xf32>
    %54 = math.exp %53 : vector<16x16xf32>
    %cst_36 = arith.constant dense<0.000000e+00> : vector<16xf32>
    %55 = vector.multi_reduction <add>, %54, %cst_36 [1] : vector<16x16xf32> to vector<16xf32>
    %56 = vector.shape_cast %55 : vector<16xf32> to vector<16x1xf32>
    %57 = vector.broadcast %56 : vector<16x1xf32> to vector<16x16xf32>
    %58 = arith.divf %54, %57 : vector<16x16xf32>
    %cst_37 = arith.constant dense<0.000000e+00> : vector<16x8xf32>
    %59 = tpu.matmul %58, %44, %cst_37 {dimension_numbers = #tpu.dot_dimension_numbers<[1], [0], [0], [1], [0, 0, 1, 1], [], []>} : vector<16x16xf32>, vector<16x8xf32>, vector<16x8xf32> -> vector<16x8xf32>
    %60 = vector.extract_strided_slice %28 {offsets = [0, 8], sizes = [16, 8], strides = [1, 1]} : vector<16x32xf32> to vector<16x8xf32>
    %61 = vector.extract_strided_slice %29 {offsets = [0, 8], sizes = [16, 8], strides = [1, 1]} : vector<16x32xf32> to vector<16x8xf32>
    %62 = vector.extract_strided_slice %30 {offsets = [0, 8], sizes = [16, 8], strides = [1, 1]} : vector<16x32xf32> to vector<16x8xf32>
    %cst_38 = arith.constant dense<0.000000e+00> : vector<16x16xf32>
    %63 = tpu.matmul %60, %61, %cst_38 {dimension_numbers = #tpu.dot_dimension_numbers<[1], [1], [0], [0], [0, 0, 1, 0], [], []>} : vector<16x8xf32>, vector<16x8xf32>, vector<16x16xf32> -> vector<16x16xf32>
    %cst_39 = arith.constant 0.353553385 : f32
    %64 = vector.broadcast %cst_39 : f32 to vector<16x16xf32>
    %65 = arith.mulf %63, %64 : vector<16x16xf32>
    %cst_40 = arith.constant -1.000000e+09 : f32
    %66 = vector.broadcast %cst_40 : f32 to vector<16x16xf32>
    %67 = arith.select %41, %65, %66 : vector<16x16xi1>, vector<16x16xf32>
    %cst_41 = arith.constant dense<0xFF800000> : vector<16xf32>
    %68 = vector.multi_reduction <maximumf>, %67, %cst_41 [1] : vector<16x16xf32> to vector<16xf32>
    %69 = vector.shape_cast %68 : vector<16xf32> to vector<16x1xf32>
    %70 = vector.broadcast %69 : vector<16x1xf32> to vector<16x16xf32>
    %71 = arith.subf %67, %70 : vector<16x16xf32>
    %72 = math.exp %71 : vector<16x16xf32>
    %cst_42 = arith.constant dense<0.000000e+00> : vector<16xf32>
    %73 = vector.multi_reduction <add>, %72, %cst_42 [1] : vector<16x16xf32> to vector<16xf32>
    %74 = vector.shape_cast %73 : vector<16xf32> to vector<16x1xf32>
    %75 = vector.broadcast %74 : vector<16x1xf32> to vector<16x16xf32>
    %76 = arith.divf %72, %75 : vector<16x16xf32>
    %cst_43 = arith.constant dense<0.000000e+00> : vector<16x8xf32>
    %77 = tpu.matmul %76, %62, %cst_43 {dimension_numbers = #tpu.dot_dimension_numbers<[1], [0], [0], [1], [0, 0, 1, 1], [], []>} : vector<16x16xf32>, vector<16x8xf32>, vector<16x8xf32> -> vector<16x8xf32>
    %78 = vector.extract_strided_slice %28 {offsets = [0, 16], sizes = [16, 8], strides = [1, 1]} : vector<16x32xf32> to vector<16x8xf32>
    %79 = vector.extract_strided_slice %29 {offsets = [0, 16], sizes = [16, 8], strides = [1, 1]} : vector<16x32xf32> to vector<16x8xf32>
    %80 = vector.extract_strided_slice %30 {offsets = [0, 16], sizes = [16, 8], strides = [1, 1]} : vector<16x32xf32> to vector<16x8xf32>
    %cst_44 = arith.constant dense<0.000000e+00> : vector<16x16xf32>
    %81 = tpu.matmul %78, %79, %cst_44 {dimension_numbers = #tpu.dot_dimension_numbers<[1], [1], [0], [0], [0, 0, 1, 0], [], []>} : vector<16x8xf32>, vector<16x8xf32>, vector<16x16xf32> -> vector<16x16xf32>
    %cst_45 = arith.constant 0.353553385 : f32
    %82 = vector.broadcast %cst_45 : f32 to vector<16x16xf32>
    %83 = arith.mulf %81, %82 : vector<16x16xf32>
    %cst_46 = arith.constant -1.000000e+09 : f32
    %84 = vector.broadcast %cst_46 : f32 to vector<16x16xf32>
    %85 = arith.select %41, %83, %84 : vector<16x16xi1>, vector<16x16xf32>
    %cst_47 = arith.constant dense<0xFF800000> : vector<16xf32>
    %86 = vector.multi_reduction <maximumf>, %85, %cst_47 [1] : vector<16x16xf32> to vector<16xf32>
    %87 = vector.shape_cast %86 : vector<16xf32> to vector<16x1xf32>
    %88 = vector.broadcast %87 : vector<16x1xf32> to vector<16x16xf32>
    %89 = arith.subf %85, %88 : vector<16x16xf32>
    %90 = math.exp %89 : vector<16x16xf32>
    %cst_48 = arith.constant dense<0.000000e+00> : vector<16xf32>
    %91 = vector.multi_reduction <add>, %90, %cst_48 [1] : vector<16x16xf32> to vector<16xf32>
    %92 = vector.shape_cast %91 : vector<16xf32> to vector<16x1xf32>
    %93 = vector.broadcast %92 : vector<16x1xf32> to vector<16x16xf32>
    %94 = arith.divf %90, %93 : vector<16x16xf32>
    %cst_49 = arith.constant dense<0.000000e+00> : vector<16x8xf32>
    %95 = tpu.matmul %94, %80, %cst_49 {dimension_numbers = #tpu.dot_dimension_numbers<[1], [0], [0], [1], [0, 0, 1, 1], [], []>} : vector<16x16xf32>, vector<16x8xf32>, vector<16x8xf32> -> vector<16x8xf32>
    %96 = vector.extract_strided_slice %28 {offsets = [0, 24], sizes = [16, 8], strides = [1, 1]} : vector<16x32xf32> to vector<16x8xf32>
    %97 = vector.extract_strided_slice %29 {offsets = [0, 24], sizes = [16, 8], strides = [1, 1]} : vector<16x32xf32> to vector<16x8xf32>
    %98 = vector.extract_strided_slice %30 {offsets = [0, 24], sizes = [16, 8], strides = [1, 1]} : vector<16x32xf32> to vector<16x8xf32>
    %cst_50 = arith.constant dense<0.000000e+00> : vector<16x16xf32>
    %99 = tpu.matmul %96, %97, %cst_50 {dimension_numbers = #tpu.dot_dimension_numbers<[1], [1], [0], [0], [0, 0, 1, 0], [], []>} : vector<16x8xf32>, vector<16x8xf32>, vector<16x16xf32> -> vector<16x16xf32>
    %cst_51 = arith.constant 0.353553385 : f32
    %100 = vector.broadcast %cst_51 : f32 to vector<16x16xf32>
    %101 = arith.mulf %99, %100 : vector<16x16xf32>
    %cst_52 = arith.constant -1.000000e+09 : f32
    %102 = vector.broadcast %cst_52 : f32 to vector<16x16xf32>
    %103 = arith.select %41, %101, %102 : vector<16x16xi1>, vector<16x16xf32>
    %cst_53 = arith.constant dense<0xFF800000> : vector<16xf32>
    %104 = vector.multi_reduction <maximumf>, %103, %cst_53 [1] : vector<16x16xf32> to vector<16xf32>
    %105 = vector.shape_cast %104 : vector<16xf32> to vector<16x1xf32>
    %106 = vector.broadcast %105 : vector<16x1xf32> to vector<16x16xf32>
    %107 = arith.subf %103, %106 : vector<16x16xf32>
    %108 = math.exp %107 : vector<16x16xf32>
    %cst_54 = arith.constant dense<0.000000e+00> : vector<16xf32>
    %109 = vector.multi_reduction <add>, %108, %cst_54 [1] : vector<16x16xf32> to vector<16xf32>
    %110 = vector.shape_cast %109 : vector<16xf32> to vector<16x1xf32>
    %111 = vector.broadcast %110 : vector<16x1xf32> to vector<16x16xf32>
    %112 = arith.divf %108, %111 : vector<16x16xf32>
    %cst_55 = arith.constant dense<0.000000e+00> : vector<16x8xf32>
    %113 = tpu.matmul %112, %98, %cst_55 {dimension_numbers = #tpu.dot_dimension_numbers<[1], [0], [0], [1], [0, 0, 1, 1], [], []>} : vector<16x16xf32>, vector<16x8xf32>, vector<16x8xf32> -> vector<16x8xf32>
    %114 = tpu.concatenate %59, %77, %95, %113 in 1 : vector<16x8xf32>, vector<16x8xf32>, vector<16x8xf32>, vector<16x8xf32> -> vector<16x32xf32>
    %115 = vector.extract_strided_slice %10 {offsets = [16, 0], sizes = [16, 32], strides = [1, 1]} : vector<32x32xf32> to vector<16x32xf32>
    %116 = vector.extract_strided_slice %17 {offsets = [16, 0], sizes = [16, 32], strides = [1, 1]} : vector<32x32xf32> to vector<16x32xf32>
    %117 = vector.extract_strided_slice %24 {offsets = [16, 0], sizes = [16, 32], strides = [1, 1]} : vector<32x32xf32> to vector<16x32xf32>
    %118 = vector.extract_strided_slice %26 {offsets = [16, 0], sizes = [16, 1], strides = [1, 1]} : vector<32x1xf32> to vector<16x1xf32>
    %119 = vector.shape_cast %118 : vector<16x1xf32> to vector<16x1xf32>
    %120 = vector.broadcast %119 : vector<16x1xf32> to vector<16x16xf32>
    %121 = vector.extract_strided_slice %27 {offsets = [1, 0], sizes = [1, 16], strides = [1, 1]} : vector<2x16xf32> to vector<1x16xf32>
    %122 = vector.shape_cast %121 : vector<1x16xf32> to vector<1x16xf32>
    %123 = vector.broadcast %122 : vector<1x16xf32> to vector<16x16xf32>
    %cst_56 = arith.constant 0.000000e+00 : f32
    %124 = vector.broadcast %cst_56 : f32 to vector<16x16xf32>
    %125 = arith.cmpf ogt, %120, %124 : vector<16x16xf32>
    %cst_57 = arith.constant 0.000000e+00 : f32
    %126 = vector.broadcast %cst_57 : f32 to vector<16x16xf32>
    %127 = arith.cmpf ogt, %123, %126 : vector<16x16xf32>
    %128 = arith.andi %125, %127 : vector<16x16xi1>
    %129 = vector.extract_strided_slice %115 {offsets = [0, 0], sizes = [16, 8], strides = [1, 1]} : vector<16x32xf32> to vector<16x8xf32>
    %130 = vector.extract_strided_slice %116 {offsets = [0, 0], sizes = [16, 8], strides = [1, 1]} : vector<16x32xf32> to vector<16x8xf32>
    %131 = vector.extract_strided_slice %117 {offsets = [0, 0], sizes = [16, 8], strides = [1, 1]} : vector<16x32xf32> to vector<16x8xf32>
    %cst_58 = arith.constant dense<0.000000e+00> : vector<16x16xf32>
    %132 = tpu.matmul %129, %130, %cst_58 {dimension_numbers = #tpu.dot_dimension_numbers<[1], [1], [0], [0], [0, 0, 1, 0], [], []>} : vector<16x8xf32>, vector<16x8xf32>, vector<16x16xf32> -> vector<16x16xf32>
    %cst_59 = arith.constant 0.353553385 : f32
    %133 = vector.broadcast %cst_59 : f32 to vector<16x16xf32>
    %134 = arith.mulf %132, %133 : vector<16x16xf32>
    %cst_60 = arith.constant -1.000000e+09 : f32
    %135 = vector.broadcast %cst_60 : f32 to vector<16x16xf32>
    %136 = arith.select %128, %134, %135 : vector<16x16xi1>, vector<16x16xf32>
    %cst_61 = arith.constant dense<0xFF800000> : vector<16xf32>
    %137 = vector.multi_reduction <maximumf>, %136, %cst_61 [1] : vector<16x16xf32> to vector<16xf32>
    %138 = vector.shape_cast %137 : vector<16xf32> to vector<16x1xf32>
    %139 = vector.broadcast %138 : vector<16x1xf32> to vector<16x16xf32>
    %140 = arith.subf %136, %139 : vector<16x16xf32>
    %141 = math.exp %140 : vector<16x16xf32>
    %cst_62 = arith.constant dense<0.000000e+00> : vector<16xf32>
    %142 = vector.multi_reduction <add>, %141, %cst_62 [1] : vector<16x16xf32> to vector<16xf32>
    %143 = vector.shape_cast %142 : vector<16xf32> to vector<16x1xf32>
    %144 = vector.broadcast %143 : vector<16x1xf32> to vector<16x16xf32>
    %145 = arith.divf %141, %144 : vector<16x16xf32>
    %cst_63 = arith.constant dense<0.000000e+00> : vector<16x8xf32>
    %146 = tpu.matmul %145, %131, %cst_63 {dimension_numbers = #tpu.dot_dimension_numbers<[1], [0], [0], [1], [0, 0, 1, 1], [], []>} : vector<16x16xf32>, vector<16x8xf32>, vector<16x8xf32> -> vector<16x8xf32>
    %147 = vector.extract_strided_slice %115 {offsets = [0, 8], sizes = [16, 8], strides = [1, 1]} : vector<16x32xf32> to vector<16x8xf32>
    %148 = vector.extract_strided_slice %116 {offsets = [0, 8], sizes = [16, 8], strides = [1, 1]} : vector<16x32xf32> to vector<16x8xf32>
    %149 = vector.extract_strided_slice %117 {offsets = [0, 8], sizes = [16, 8], strides = [1, 1]} : vector<16x32xf32> to vector<16x8xf32>
    %cst_64 = arith.constant dense<0.000000e+00> : vector<16x16xf32>
    %150 = tpu.matmul %147, %148, %cst_64 {dimension_numbers = #tpu.dot_dimension_numbers<[1], [1], [0], [0], [0, 0, 1, 0], [], []>} : vector<16x8xf32>, vector<16x8xf32>, vector<16x16xf32> -> vector<16x16xf32>
    %cst_65 = arith.constant 0.353553385 : f32
    %151 = vector.broadcast %cst_65 : f32 to vector<16x16xf32>
    %152 = arith.mulf %150, %151 : vector<16x16xf32>
    %cst_66 = arith.constant -1.000000e+09 : f32
    %153 = vector.broadcast %cst_66 : f32 to vector<16x16xf32>
    %154 = arith.select %128, %152, %153 : vector<16x16xi1>, vector<16x16xf32>
    %cst_67 = arith.constant dense<0xFF800000> : vector<16xf32>
    %155 = vector.multi_reduction <maximumf>, %154, %cst_67 [1] : vector<16x16xf32> to vector<16xf32>
    %156 = vector.shape_cast %155 : vector<16xf32> to vector<16x1xf32>
    %157 = vector.broadcast %156 : vector<16x1xf32> to vector<16x16xf32>
    %158 = arith.subf %154, %157 : vector<16x16xf32>
    %159 = math.exp %158 : vector<16x16xf32>
    %cst_68 = arith.constant dense<0.000000e+00> : vector<16xf32>
    %160 = vector.multi_reduction <add>, %159, %cst_68 [1] : vector<16x16xf32> to vector<16xf32>
    %161 = vector.shape_cast %160 : vector<16xf32> to vector<16x1xf32>
    %162 = vector.broadcast %161 : vector<16x1xf32> to vector<16x16xf32>
    %163 = arith.divf %159, %162 : vector<16x16xf32>
    %cst_69 = arith.constant dense<0.000000e+00> : vector<16x8xf32>
    %164 = tpu.matmul %163, %149, %cst_69 {dimension_numbers = #tpu.dot_dimension_numbers<[1], [0], [0], [1], [0, 0, 1, 1], [], []>} : vector<16x16xf32>, vector<16x8xf32>, vector<16x8xf32> -> vector<16x8xf32>
    %165 = vector.extract_strided_slice %115 {offsets = [0, 16], sizes = [16, 8], strides = [1, 1]} : vector<16x32xf32> to vector<16x8xf32>
    %166 = vector.extract_strided_slice %116 {offsets = [0, 16], sizes = [16, 8], strides = [1, 1]} : vector<16x32xf32> to vector<16x8xf32>
    %167 = vector.extract_strided_slice %117 {offsets = [0, 16], sizes = [16, 8], strides = [1, 1]} : vector<16x32xf32> to vector<16x8xf32>
    %cst_70 = arith.constant dense<0.000000e+00> : vector<16x16xf32>
    %168 = tpu.matmul %165, %166, %cst_70 {dimension_numbers = #tpu.dot_dimension_numbers<[1], [1], [0], [0], [0, 0, 1, 0], [], []>} : vector<16x8xf32>, vector<16x8xf32>, vector<16x16xf32> -> vector<16x16xf32>
    %cst_71 = arith.constant 0.353553385 : f32
    %169 = vector.broadcast %cst_71 : f32 to vector<16x16xf32>
    %170 = arith.mulf %168, %169 : vector<16x16xf32>
    %cst_72 = arith.constant -1.000000e+09 : f32
    %171 = vector.broadcast %cst_72 : f32 to vector<16x16xf32>
    %172 = arith.select %128, %170, %171 : vector<16x16xi1>, vector<16x16xf32>
    %cst_73 = arith.constant dense<0xFF800000> : vector<16xf32>
    %173 = vector.multi_reduction <maximumf>, %172, %cst_73 [1] : vector<16x16xf32> to vector<16xf32>
    %174 = vector.shape_cast %173 : vector<16xf32> to vector<16x1xf32>
    %175 = vector.broadcast %174 : vector<16x1xf32> to vector<16x16xf32>
    %176 = arith.subf %172, %175 : vector<16x16xf32>
    %177 = math.exp %176 : vector<16x16xf32>
    %cst_74 = arith.constant dense<0.000000e+00> : vector<16xf32>
    %178 = vector.multi_reduction <add>, %177, %cst_74 [1] : vector<16x16xf32> to vector<16xf32>
    %179 = vector.shape_cast %178 : vector<16xf32> to vector<16x1xf32>
    %180 = vector.broadcast %179 : vector<16x1xf32> to vector<16x16xf32>
    %181 = arith.divf %177, %180 : vector<16x16xf32>
    %cst_75 = arith.constant dense<0.000000e+00> : vector<16x8xf32>
    %182 = tpu.matmul %181, %167, %cst_75 {dimension_numbers = #tpu.dot_dimension_numbers<[1], [0], [0], [1], [0, 0, 1, 1], [], []>} : vector<16x16xf32>, vector<16x8xf32>, vector<16x8xf32> -> vector<16x8xf32>
    %183 = vector.extract_strided_slice %115 {offsets = [0, 24], sizes = [16, 8], strides = [1, 1]} : vector<16x32xf32> to vector<16x8xf32>
    %184 = vector.extract_strided_slice %116 {offsets = [0, 24], sizes = [16, 8], strides = [1, 1]} : vector<16x32xf32> to vector<16x8xf32>
    %185 = vector.extract_strided_slice %117 {offsets = [0, 24], sizes = [16, 8], strides = [1, 1]} : vector<16x32xf32> to vector<16x8xf32>
    %cst_76 = arith.constant dense<0.000000e+00> : vector<16x16xf32>
    %186 = tpu.matmul %183, %184, %cst_76 {dimension_numbers = #tpu.dot_dimension_numbers<[1], [1], [0], [0], [0, 0, 1, 0], [], []>} : vector<16x8xf32>, vector<16x8xf32>, vector<16x16xf32> -> vector<16x16xf32>
    %cst_77 = arith.constant 0.353553385 : f32
    %187 = vector.broadcast %cst_77 : f32 to vector<16x16xf32>
    %188 = arith.mulf %186, %187 : vector<16x16xf32>
    %cst_78 = arith.constant -1.000000e+09 : f32
    %189 = vector.broadcast %cst_78 : f32 to vector<16x16xf32>
    %190 = arith.select %128, %188, %189 : vector<16x16xi1>, vector<16x16xf32>
    %cst_79 = arith.constant dense<0xFF800000> : vector<16xf32>
    %191 = vector.multi_reduction <maximumf>, %190, %cst_79 [1] : vector<16x16xf32> to vector<16xf32>
    %192 = vector.shape_cast %191 : vector<16xf32> to vector<16x1xf32>
    %193 = vector.broadcast %192 : vector<16x1xf32> to vector<16x16xf32>
    %194 = arith.subf %190, %193 : vector<16x16xf32>
    %195 = math.exp %194 : vector<16x16xf32>
    %cst_80 = arith.constant dense<0.000000e+00> : vector<16xf32>
    %196 = vector.multi_reduction <add>, %195, %cst_80 [1] : vector<16x16xf32> to vector<16xf32>
    %197 = vector.shape_cast %196 : vector<16xf32> to vector<16x1xf32>
    %198 = vector.broadcast %197 : vector<16x1xf32> to vector<16x16xf32>
    %199 = arith.divf %195, %198 : vector<16x16xf32>
    %cst_81 = arith.constant dense<0.000000e+00> : vector<16x8xf32>
    %200 = tpu.matmul %199, %185, %cst_81 {dimension_numbers = #tpu.dot_dimension_numbers<[1], [0], [0], [1], [0, 0, 1, 1], [], []>} : vector<16x16xf32>, vector<16x8xf32>, vector<16x8xf32> -> vector<16x8xf32>
    %201 = tpu.concatenate %146, %164, %182, %200 in 1 : vector<16x8xf32>, vector<16x8xf32>, vector<16x8xf32>, vector<16x8xf32> -> vector<16x32xf32>
    %202 = tpu.concatenate %114, %201 in 0 : vector<16x32xf32>, vector<16x32xf32> -> vector<32x32xf32>
    %c0_82 = arith.constant 0 : index
    %c0_83 = arith.constant 0 : index
    %c0_84 = arith.constant 0 : index
    %203 = vector.load %arg11[%c0_82, %c0_83, %c0_84] : memref<1x32x32xf32, #tpu.memory_space<vmem>>, vector<1x32x32xf32>
    %204 = vector.shape_cast %203 : vector<1x32x32xf32> to vector<32x32xf32>
    %cst_85 = arith.constant dense<0.000000e+00> : vector<32x32xf32>
    %205 = tpu.matmul %202, %204, %cst_85 {dimension_numbers = #tpu.dot_dimension_numbers<[1], [0], [0], [1], [0, 0, 1, 1], [], []>} : vector<32x32xf32>, vector<32x32xf32>, vector<32x32xf32> -> vector<32x32xf32>
    %c0_86 = arith.constant 0 : index
    %c0_87 = arith.constant 0 : index
    %c0_88 = arith.constant 0 : index
    %206 = vector.load %arg12[%c0_86, %c0_87, %c0_88] : memref<1x1x32xf32, #tpu.memory_space<vmem>>, vector<1x1x32xf32>
    %207 = vector.shape_cast %206 : vector<1x1x32xf32> to vector<1x32xf32>
    %208 = vector.broadcast %207 : vector<1x32xf32> to vector<32x32xf32>
    %209 = arith.addf %205, %208 : vector<32x32xf32>
    %c0_89 = arith.constant 0 : index
    %c0_90 = arith.constant 0 : index
    %c0_91 = arith.constant 0 : index
    %210 = vector.load %arg13[%c0_89, %c0_90, %c0_91] : memref<1x32x64xf32, #tpu.memory_space<vmem>>, vector<1x32x64xf32>
    %211 = vector.shape_cast %210 : vector<1x32x64xf32> to vector<32x64xf32>
    %cst_92 = arith.constant dense<0.000000e+00> : vector<32x64xf32>
    %212 = tpu.matmul %209, %211, %cst_92 {dimension_numbers = #tpu.dot_dimension_numbers<[1], [0], [0], [1], [0, 0, 1, 1], [], []>} : vector<32x32xf32>, vector<32x64xf32>, vector<32x64xf32> -> vector<32x64xf32>
    %c0_93 = arith.constant 0 : index
    %c0_94 = arith.constant 0 : index
    %c0_95 = arith.constant 0 : index
    %213 = vector.load %arg14[%c0_93, %c0_94, %c0_95] : memref<1x32x64xf32, #tpu.memory_space<vmem>>, vector<1x32x64xf32>
    %214 = vector.shape_cast %213 : vector<1x32x64xf32> to vector<32x64xf32>
    %cst_96 = arith.constant dense<0.000000e+00> : vector<32x64xf32>
    %215 = tpu.matmul %1, %214, %cst_96 {dimension_numbers = #tpu.dot_dimension_numbers<[1], [0], [0], [1], [0, 0, 1, 1], [], []>} : vector<32x32xf32>, vector<32x64xf32>, vector<32x64xf32> -> vector<32x64xf32>
    %216 = arith.addf %212, %215 : vector<32x64xf32>
    %c0_97 = arith.constant 0 : index
    %c0_98 = arith.constant 0 : index
    %c0_99 = arith.constant 0 : index
    %217 = vector.load %arg15[%c0_97, %c0_98, %c0_99] : memref<1x1x64xf32, #tpu.memory_space<vmem>>, vector<1x1x64xf32>
    %218 = vector.shape_cast %217 : vector<1x1x64xf32> to vector<1x64xf32>
    %219 = vector.broadcast %218 : vector<1x64xf32> to vector<32x64xf32>
    %220 = arith.addf %216, %219 : vector<32x64xf32>
    %cst_100 = arith.constant 0.000000e+00 : f32
    %221 = vector.broadcast %cst_100 : f32 to vector<32x64xf32>
    %222 = arith.maximumf %220, %221 : vector<32x64xf32>
    %c0_101 = arith.constant 0 : index
    %c0_102 = arith.constant 0 : index
    %c0_103 = arith.constant 0 : index
    %223 = vector.load %arg16[%c0_101, %c0_102, %c0_103] : memref<1x64x32xf32, #tpu.memory_space<vmem>>, vector<1x64x32xf32>
    %224 = vector.shape_cast %223 : vector<1x64x32xf32> to vector<64x32xf32>
    %cst_104 = arith.constant dense<0.000000e+00> : vector<32x32xf32>
    %225 = tpu.matmul %222, %224, %cst_104 {dimension_numbers = #tpu.dot_dimension_numbers<[1], [0], [0], [1], [0, 0, 1, 1], [], []>} : vector<32x64xf32>, vector<64x32xf32>, vector<32x32xf32> -> vector<32x32xf32>
    %c0_105 = arith.constant 0 : index
    %c0_106 = arith.constant 0 : index
    %c0_107 = arith.constant 0 : index
    %226 = vector.load %arg17[%c0_105, %c0_106, %c0_107] : memref<1x1x32xf32, #tpu.memory_space<vmem>>, vector<1x1x32xf32>
    %227 = vector.shape_cast %226 : vector<1x1x32xf32> to vector<1x32xf32>
    %228 = vector.broadcast %227 : vector<1x32xf32> to vector<32x32xf32>
    %229 = arith.addf %225, %228 : vector<32x32xf32>
    %c0_108 = arith.constant 0 : index
    %c0_109 = arith.constant 0 : index
    %c0_110 = arith.constant 0 : index
    %230 = vector.load %arg18[%c0_108, %c0_109, %c0_110] : memref<1x32x32xf32, #tpu.memory_space<vmem>>, vector<1x32x32xf32>
    %231 = vector.shape_cast %230 : vector<1x32x32xf32> to vector<32x32xf32>
    %232 = vector.shape_cast %229 : vector<32x32xf32> to vector<1x32x32xf32>
    tpu.vector_store %arg18[%c0_108, %c0_109, %c0_110], %232 {strides = array<i32>} : memref<1x32x32xf32, #tpu.memory_space<vmem>>, vector<1x32x32xf32>,
    return
  }
  func.func @transform_0(%arg0: i32) -> (i32, i32, i32) {
    %c0_i32 = arith.constant 0 : i32
    %c0_i32_0 = arith.constant 0 : i32
    %c0_i32_1 = arith.constant 0 : i32
    return %arg0, %c0_i32, %c0_i32_0 : i32, i32, i32
  }
  func.func @transform_1(%arg0: i32) -> (i32, i32) {
    %c0_i32 = arith.constant 0 : i32
    %c0_i32_0 = arith.constant 0 : i32
    %c0_i32_1 = arith.constant 0 : i32
    return %c0_i32, %c0_i32_0 : i32, i32
  }
  func.func @transform_2(%arg0: i32) -> (i32, i32, i32) {
    %c0_i32 = arith.constant 0 : i32
    %c0_i32_0 = arith.constant 0 : i32
    %c0_i32_1 = arith.constant 0 : i32
    return %arg0, %c0_i32, %c0_i32_0 : i32, i32, i32
  }
  func.func @transform_3(%arg0: i32) -> (i32, i32, i32) {
    %c1_i32 = arith.constant 1 : i32
    %c0_i32 = arith.constant 0 : i32
    %c0_i32_0 = arith.constant 0 : i32
    %c0_i32_1 = arith.constant 0 : i32
    return %c1_i32, %c0_i32, %c0_i32_0 : i32, i32, i32
  }
  func.func @transform_4(%arg0: i32) -> (i32, i32, i32) {
    %c0_i32 = arith.constant 0 : i32
    %c0_i32_0 = arith.constant 0 : i32
    %c0_i32_1 = arith.constant 0 : i32
    return %arg0, %c0_i32, %c0_i32_0 : i32, i32, i32
  }
  func.func @transform_5(%arg0: i32) -> (i32, i32, i32) {
    %c0_i32 = arith.constant 0 : i32
    %c0_i32_0 = arith.constant 0 : i32
    %c0_i32_1 = arith.constant 0 : i32
    return %arg0, %c0_i32, %c0_i32_0 : i32, i32, i32
  }
  func.func @transform_6(%arg0: i32) -> (i32, i32, i32) {
    %c0_i32 = arith.constant 0 : i32
    %c0_i32_0 = arith.constant 0 : i32
    %c0_i32_1 = arith.constant 0 : i32
    return %arg0, %c0_i32, %c0_i32_0 : i32, i32, i32
  }
  func.func @transform_7(%arg0: i32) -> (i32, i32, i32) {
    %c0_i32 = arith.constant 0 : i32
    %c0_i32_0 = arith.constant 0 : i32
    %c0_i32_1 = arith.constant 0 : i32
    return %arg0, %c0_i32, %c0_i32_0 : i32, i32, i32
  }
  func.func @transform_8(%arg0: i32) -> (i32, i32, i32) {
    %c0_i32 = arith.constant 0 : i32
    %c0_i32_0 = arith.constant 0 : i32
    %c0_i32_1 = arith.constant 0 : i32
    return %arg0, %c0_i32, %c0_i32_0 : i32, i32, i32
  }
  func.func @transform_9(%arg0: i32) -> (i32, i32, i32) {
    %c0_i32 = arith.constant 0 : i32
    %c0_i32_0 = arith.constant 0 : i32
    %c0_i32_1 = arith.constant 0 : i32
    return %arg0, %c0_i32, %c0_i32_0 : i32, i32, i32
  }
  func.func @transform_10(%arg0: i32) -> (i32, i32, i32) {
    %c0_i32 = arith.constant 0 : i32
    %c0_i32_0 = arith.constant 0 : i32
    %c0_i32_1 = arith.constant 0 : i32
    return %arg0, %c0_i32, %c0_i32_0 : i32, i32, i32
  }
  func.func @transform_11(%arg0: i32) -> (i32, i32, i32) {
    %c0_i32 = arith.constant 0 : i32
    %c0_i32_0 = arith.constant 0 : i32
    %c0_i32_1 = arith.constant 0 : i32
    return %arg0, %c0_i32, %c0_i32_0 : i32, i32, i32
  }
  func.func @transform_12(%arg0: i32) -> (i32, i32, i32) {
    %c0_i32 = arith.constant 0 : i32
    %c0_i32_0 = arith.constant 0 : i32
    %c0_i32_1 = arith.constant 0 : i32
    return %arg0, %c0_i32, %c0_i32_0 : i32, i32, i32
  }
  func.func @transform_13(%arg0: i32) -> (i32, i32, i32) {
    %c0_i32 = arith.constant 0 : i32
    %c0_i32_0 = arith.constant 0 : i32
    %c0_i32_1 = arith.constant 0 : i32
    return %arg0, %c0_i32, %c0_i32_0 : i32, i32, i32
  }
  func.func @transform_14(%arg0: i32) -> (i32, i32, i32) {
    %c0_i32 = arith.constant 0 : i32
    %c0_i32_0 = arith.constant 0 : i32
    %c0_i32_1 = arith.constant 0 : i32
    return %arg0, %c0_i32, %c0_i32_0 : i32, i32, i32
  }
  func.func @transform_15(%arg0: i32) -> (i32, i32, i32) {
    %c0_i32 = arith.constant 0 : i32
    %c0_i32_0 = arith.constant 0 : i32
    %c0_i32_1 = arith.constant 0 : i32
    return %arg0, %c0_i32, %c0_i32_0 : i32, i32, i32
  }
  func.func @transform_16(%arg0: i32) -> (i32, i32, i32) {
    %c0_i32 = arith.constant 0 : i32
    %c0_i32_0 = arith.constant 0 : i32
    %c0_i32_1 = arith.constant 0 : i32
    return %arg0, %c0_i32, %c0_i32_0 : i32, i32, i32
  }
  func.func @transform_17(%arg0: i32) -> (i32, i32, i32) {
    %c0_i32 = arith.constant 0 : i32
    %c0_i32_0 = arith.constant 0 : i32
    %c0_i32_1 = arith.constant 0 : i32
    return %arg0, %c0_i32, %c0_i32_0 : i32, i32, i32
  }
}

module attributes {stable_mosaic.version = 11 : i64} {
  func.func @_fused_mha_layer_kernel(%arg0: i32, %arg1: memref<1x32x1xf32, #tpu.memory_space<vmem>>, %arg2: memref<2x16xf32, #tpu.memory_space<vmem>>, %arg3: memref<1x32x32xf32, #tpu.memory_space<vmem>>, %arg4: memref<1x32x32xf32, #tpu.memory_space<vmem>>, %arg5: memref<1x32x32xf32, #tpu.memory_space<vmem>>, %arg6: memref<1x1x32xf32, #tpu.memory_space<vmem>>, %arg7: memref<1x32x32xf32, #tpu.memory_space<vmem>>, %arg8: memref<1x1x32xf32, #tpu.memory_space<vmem>>, %arg9: memref<1x32x32xf32, #tpu.memory_space<vmem>>, %arg10: memref<1x1x32xf32, #tpu.memory_space<vmem>>, %arg11: memref<1x32x32xf32, #tpu.memory_space<vmem>>, %arg12: memref<1x1x32xf32, #tpu.memory_space<vmem>>, %arg13: memref<1x32x64xf32, #tpu.memory_space<vmem>>, %arg14: memref<1x32x64xf32, #tpu.memory_space<vmem>>, %arg15: memref<1x1x64xf32, #tpu.memory_space<vmem>>, %arg16: memref<1x64x32xf32, #tpu.memory_space<vmem>>, %arg17: memref<1x1x32xf32, #tpu.memory_space<vmem>>, %arg18: memref<1x32x32xf32, #tpu.memory_space<vmem>>) attributes {dimension_semantics = [#tpu.dimension_semantics<parallel>], iteration_bounds = array<i64: 3>, scalar_prefetch = 0 : i64, scratch_operands = 0 : i64, tpu.core_type = #tpu.core_type<tc>, window_params = [{transform_indices = @transform_0, window_bounds = array<i64: 1, 32, 1>}, {pipeline_mode = #tpu.pipeline_mode<synchronous>, transform_indices = @transform_1, window_bounds = array<i64: 2, 16>}, {transform_indices = @transform_2, window_bounds = array<i64: 1, 32, 32>}, {transform_indices = @transform_3, window_bounds = array<i64: 1, 32, 32>}, {transform_indices = @transform_4, window_bounds = array<i64: 1, 32, 32>}, {transform_indices = @transform_5, window_bounds = array<i64: 1, 1, 32>}, {transform_indices = @transform_6, window_bounds = array<i64: 1, 32, 32>}, {transform_indices = @transform_7, window_bounds = array<i64: 1, 1, 32>}, {transform_indices = @transform_8, window_bounds = array<i64: 1, 32, 32>}, {transform_indices = @transform_9, window_bounds = array<i64: 1, 1, 32>}, {transform_indices = @transform_10, window_bounds = array<i64: 1, 32, 32>}, {transform_indices = @transform_11, window_bounds = array<i64: 1, 1, 32>}, {transform_indices = @transform_12, window_bounds = array<i64: 1, 32, 64>}, {transform_indices = @transform_13, window_bounds = array<i64: 1, 32, 64>}, {transform_indices = @transform_14, window_bounds = array<i64: 1, 1, 64>}, {transform_indices = @transform_15, window_bounds = array<i64: 1, 64, 32>}, {transform_indices = @transform_16, window_bounds = array<i64: 1, 1, 32>}, {transform_indices = @transform_17, window_bounds = array<i64: 1, 32, 32>}]} {
    %c0 = arith.constant 0 : index
    %c0_0 = arith.constant 0 : index
    %c0_1 = arith.constant 0 : index
    %0 = vector.load %arg3[%c0, %c0_0, %c0_1] : memref<1x32x32xf32, #tpu.memory_space<vmem>>, vector<1x32x32xf32>
    %1 = vector.shape_cast %0 : vector<1x32x32xf32> to vector<32x32xf32>
    %c0_2 = arith.constant 0 : index
    %c0_3 = arith.constant 0 : index
    %c0_4 = arith.constant 0 : index
    %2 = vector.load %arg4[%c0_2, %c0_3, %c0_4] : memref<1x32x32xf32, #tpu.memory_space<vmem>>, vector<1x32x32xf32>
    %3 = vector.shape_cast %2 : vector<1x32x32xf32> to vector<32x32xf32>
    %c0_5 = arith.constant 0 : index
    %c0_6 = arith.constant 0 : index
    %c0_7 = arith.constant 0 : index
    %4 = vector.load %arg5[%c0_5, %c0_6, %c0_7] : memref<1x32x32xf32, #tpu.memory_space<vmem>>, vector<1x32x32xf32>
    %5 = vector.shape_cast %4 : vector<1x32x32xf32> to vector<32x32xf32>
    %cst = arith.constant dense<0.000000e+00> : vector<32x32xf32>
    %6 = tpu.matmul %1, %5, %cst {dimension_numbers = #tpu.dot_dimension_numbers<[1], [0], [0], [1], [0, 0, 1, 1], [], []>} : vector<32x32xf32>, vector<32x32xf32>, vector<32x32xf32> -> vector<32x32xf32>
    %c0_8 = arith.constant 0 : index
    %c0_9 = arith.constant 0 : index
    %c0_10 = arith.constant 0 : index
    %7 = vector.load %arg6[%c0_8, %c0_9, %c0_10] : memref<1x1x32xf32, #tpu.memory_space<vmem>>, vector<1x1x32xf32>
    %8 = vector.shape_cast %7 : vector<1x1x32xf32> to vector<1x32xf32>
    %9 = vector.broadcast %8 : vector<1x32xf32> to vector<32x32xf32>
    %10 = arith.addf %6, %9 : vector<32x32xf32>
    %c0_11 = arith.constant 0 : index
    %c0_12 = arith.constant 0 : index
    %c0_13 = arith.constant 0 : index
    %11 = vector.load %arg7[%c0_11, %c0_12, %c0_13] : memref<1x32x32xf32, #tpu.memory_space<vmem>>, vector<1x32x32xf32>
    %12 = vector.shape_cast %11 : vector<1x32x32xf32> to vector<32x32xf32>
    %cst_14 = arith.constant dense<0.000000e+00> : vector<32x32xf32>
    %13 = tpu.matmul %3, %12, %cst_14 {dimension_numbers = #tpu.dot_dimension_numbers<[1], [0], [0], [1], [0, 0, 1, 1], [], []>} : vector<32x32xf32>, vector<32x32xf32>, vector<32x32xf32> -> vector<32x32xf32>
    %c0_15 = arith.constant 0 : index
    %c0_16 = arith.constant 0 : index
    %c0_17 = arith.constant 0 : index
    %14 = vector.load %arg8[%c0_15, %c0_16, %c0_17] : memref<1x1x32xf32, #tpu.memory_space<vmem>>, vector<1x1x32xf32>
    %15 = vector.shape_cast %14 : vector<1x1x32xf32> to vector<1x32xf32>
    %16 = vector.broadcast %15 : vector<1x32xf32> to vector<32x32xf32>
    %17 = arith.addf %13, %16 : vector<32x32xf32>
    %c0_18 = arith.constant 0 : index
    %c0_19 = arith.constant 0 : index
    %c0_20 = arith.constant 0 : index
    %18 = vector.load %arg9[%c0_18, %c0_19, %c0_20] : memref<1x32x32xf32, #tpu.memory_space<vmem>>, vector<1x32x32xf32>
    %19 = vector.shape_cast %18 : vector<1x32x32xf32> to vector<32x32xf32>
    %cst_21 = arith.constant dense<0.000000e+00> : vector<32x32xf32>
    %20 = tpu.matmul %3, %19, %cst_21 {dimension_numbers = #tpu.dot_dimension_numbers<[1], [0], [0], [1], [0, 0, 1, 1], [], []>} : vector<32x32xf32>, vector<32x32xf32>, vector<32x32xf32> -> vector<32x32xf32>
    %c0_22 = arith.constant 0 : index
    %c0_23 = arith.constant 0 : index
    %c0_24 = arith.constant 0 : index
    %21 = vector.load %arg10[%c0_22, %c0_23, %c0_24] : memref<1x1x32xf32, #tpu.memory_space<vmem>>, vector<1x1x32xf32>
    %22 = vector.shape_cast %21 : vector<1x1x32xf32> to vector<1x32xf32>
    %23 = vector.broadcast %22 : vector<1x32xf32> to vector<32x32xf32>
    %24 = arith.addf %20, %23 : vector<32x32xf32>
    %c0_25 = arith.constant 0 : index
    %c0_26 = arith.constant 0 : index
    %c0_27 = arith.constant 0 : index
    %25 = vector.load %arg1[%c0_25, %c0_26, %c0_27] : memref<1x32x1xf32, #tpu.memory_space<vmem>>, vector<1x32x1xf32>
    %26 = vector.shape_cast %25 : vector<1x32x1xf32> to vector<32x1xf32>
    %c0_28 = arith.constant 0 : index
    %c0_29 = arith.constant 0 : index
    %27 = vector.load %arg2[%c0_28, %c0_29] : memref<2x16xf32, #tpu.memory_space<vmem>>, vector<2x16xf32>
    %28 = vector.extract_strided_slice %10 {offsets = [0, 0], sizes = [16, 32], strides = [1, 1]} : vector<32x32xf32> to vector<16x32xf32>
    %29 = vector.extract_strided_slice %17 {offsets = [0, 0], sizes = [16, 32], strides = [1, 1]} : vector<32x32xf32> to vector<16x32xf32>
    %30 = vector.extract_strided_slice %24 {offsets = [0, 0], sizes = [16, 32], strides = [1, 1]} : vector<32x32xf32> to vector<16x32xf32>
    %31 = vector.extract_strided_slice %26 {offsets = [0, 0], sizes = [16, 1], strides = [1, 1]} : vector<32x1xf32> to vector<16x1xf32>
    %32 = vector.shape_cast %31 : vector<16x1xf32> to vector<16x1xf32>
    %33 = vector.broadcast %32 : vector<16x1xf32> to vector<16x16xf32>
    %34 = vector.extract_strided_slice %27 {offsets = [0, 0], sizes = [1, 16], strides = [1, 1]} : vector<2x16xf32> to vector<1x16xf32>
    %35 = vector.shape_cast %34 : vector<1x16xf32> to vector<1x16xf32>
    %36 = vector.broadcast %35 : vector<1x16xf32> to vector<16x16xf32>
    %cst_30 = arith.constant 0.000000e+00 : f32
    %37 = vector.broadcast %cst_30 : f32 to vector<16x16xf32>
    %38 = arith.cmpf ogt, %33, %37 : vector<16x16xf32>
    %cst_31 = arith.constant 0.000000e+00 : f32
    %39 = vector.broadcast %cst_31 : f32 to vector<16x16xf32>
    %40 = arith.cmpf ogt, %36, %39 : vector<16x16xf32>
    %41 = arith.andi %38, %40 : vector<16x16xi1>
    %42 = vector.extract_strided_slice %28 {offsets = [0, 0], sizes = [16, 8], strides = [1, 1]} : vector<16x32xf32> to vector<16x8xf32>
    %43 = vector.extract_strided_slice %29 {offsets = [0, 0], sizes = [16, 8], strides = [1, 1]} : vector<16x32xf32> to vector<16x8xf32>
    %44 = vector.extract_strided_slice %30 {offsets = [0, 0], sizes = [16, 8], strides = [1, 1]} : vector<16x32xf32> to vector<16x8xf32>
    %cst_32 = arith.constant dense<0.000000e+00> : vector<16x16xf32>
    %45 = tpu.matmul %42, %43, %cst_32 {dimension_numbers = #tpu.dot_dimension_numbers<[1], [1], [0], [0], [0, 0, 1, 0], [], []>} : vector<16x8xf32>, vector<16x8xf32>, vector<16x16xf32> -> vector<16x16xf32>
    %cst_33 = arith.constant 0.353553385 : f32
    %46 = vector.broadcast %cst_33 : f32 to vector<16x16xf32>
    %47 = arith.mulf %45, %46 : vector<16x16xf32>
    %cst_34 = arith.constant -1.000000e+09 : f32
    %48 = vector.broadcast %cst_34 : f32 to vector<16x16xf32>
    %49 = arith.select %41, %47, %48 : vector<16x16xi1>, vector<16x16xf32>
    %cst_35 = arith.constant dense<0xFF800000> : vector<16xf32>
    %50 = vector.multi_reduction <maximumf>, %49, %cst_35 [1] : vector<16x16xf32> to vector<16xf32>
    %51 = vector.shape_cast %50 : vector<16xf32> to vector<16x1xf32>
    %52 = vector.broadcast %51 : vector<16x1xf32> to vector<16x16xf32>
    %53 = arith.subf %49, %52 : vector<16x16xf32>
    %54 = math.exp %53 : vector<16x16xf32>
    %cst_36 = arith.constant dense<0.000000e+00> : vector<16xf32>
    %55 = vector.multi_reduction <add>, %54, %cst_36 [1] : vector<16x16xf32> to vector<16xf32>
    %56 = vector.shape_cast %55 : vector<16xf32> to vector<16x1xf32>
    %57 = vector.broadcast %56 : vector<16x1xf32> to vector<16x16xf32>
    %58 = arith.divf %54, %57 : vector<16x16xf32>
    %cst_37 = arith.constant dense<0.000000e+00> : vector<16x8xf32>
    %59 = tpu.matmul %58, %44, %cst_37 {dimension_numbers = #tpu.dot_dimension_numbers<[1], [0], [0], [1], [0, 0, 1, 1], [], []>} : vector<16x16xf32>, vector<16x8xf32>, vector<16x8xf32> -> vector<16x8xf32>
    %60 = vector.extract_strided_slice %28 {offsets = [0, 8], sizes = [16, 8], strides = [1, 1]} : vector<16x32xf32> to vector<16x8xf32>
    %61 = vector.extract_strided_slice %29 {offsets = [0, 8], sizes = [16, 8], strides = [1, 1]} : vector<16x32xf32> to vector<16x8xf32>
    %62 = vector.extract_strided_slice %30 {offsets = [0, 8], sizes = [16, 8], strides = [1, 1]} : vector<16x32xf32> to vector<16x8xf32>
    %cst_38 = arith.constant dense<0.000000e+00> : vector<16x16xf32>
    %63 = tpu.matmul %60, %61, %cst_38 {dimension_numbers = #tpu.dot_dimension_numbers<[1], [1], [0], [0], [0, 0, 1, 0], [], []>} : vector<16x8xf32>, vector<16x8xf32>, vector<16x16xf32> -> vector<16x16xf32>
    %cst_39 = arith.constant 0.353553385 : f32
    %64 = vector.broadcast %cst_39 : f32 to vector<16x16xf32>
    %65 = arith.mulf %63, %64 : vector<16x16xf32>
    %cst_40 = arith.constant -1.000000e+09 : f32
    %66 = vector.broadcast %cst_40 : f32 to vector<16x16xf32>
    %67 = arith.select %41, %65, %66 : vector<16x16xi1>, vector<16x16xf32>
    %cst_41 = arith.constant dense<0xFF800000> : vector<16xf32>
    %68 = vector.multi_reduction <maximumf>, %67, %cst_41 [1] : vector<16x16xf32> to vector<16xf32>
    %69 = vector.shape_cast %68 : vector<16xf32> to vector<16x1xf32>
    %70 = vector.broadcast %69 : vector<16x1xf32> to vector<16x16xf32>
    %71 = arith.subf %67, %70 : vector<16x16xf32>
    %72 = math.exp %71 : vector<16x16xf32>
    %cst_42 = arith.constant dense<0.000000e+00> : vector<16xf32>
    %73 = vector.multi_reduction <add>, %72, %cst_42 [1] : vector<16x16xf32> to vector<16xf32>
    %74 = vector.shape_cast %73 : vector<16xf32> to vector<16x1xf32>
    %75 = vector.broadcast %74 : vector<16x1xf32> to vector<16x16xf32>
    %76 = arith.divf %72, %75 : vector<16x16xf32>
    %cst_43 = arith.constant dense<0.000000e+00> : vector<16x8xf32>
    %77 = tpu.matmul %76, %62, %cst_43 {dimension_numbers = #tpu.dot_dimension_numbers<[1], [0], [0], [1], [0, 0, 1, 1], [], []>} : vector<16x16xf32>, vector<16x8xf32>, vector<16x8xf32> -> vector<16x8xf32>
    %78 = vector.extract_strided_slice %28 {offsets = [0, 16], sizes = [16, 8], strides = [1, 1]} : vector<16x32xf32> to vector<16x8xf32>
    %79 = vector.extract_strided_slice %29 {offsets = [0, 16], sizes = [16, 8], strides = [1, 1]} : vector<16x32xf32> to vector<16x8xf32>
    %80 = vector.extract_strided_slice %30 {offsets = [0, 16], sizes = [16, 8], strides = [1, 1]} : vector<16x32xf32> to vector<16x8xf32>
    %cst_44 = arith.constant dense<0.000000e+00> : vector<16x16xf32>
    %81 = tpu.matmul %78, %79, %cst_44 {dimension_numbers = #tpu.dot_dimension_numbers<[1], [1], [0], [0], [0, 0, 1, 0], [], []>} : vector<16x8xf32>, vector<16x8xf32>, vector<16x16xf32> -> vector<16x16xf32>
    %cst_45 = arith.constant 0.353553385 : f32
    %82 = vector.broadcast %cst_45 : f32 to vector<16x16xf32>
    %83 = arith.mulf %81, %82 : vector<16x16xf32>
    %cst_46 = arith.constant -1.000000e+09 : f32
    %84 = vector.broadcast %cst_46 : f32 to vector<16x16xf32>
    %85 = arith.select %41, %83, %84 : vector<16x16xi1>, vector<16x16xf32>
    %cst_47 = arith.constant dense<0xFF800000> : vector<16xf32>
    %86 = vector.multi_reduction <maximumf>, %85, %cst_47 [1] : vector<16x16xf32> to vector<16xf32>
    %87 = vector.shape_cast %86 : vector<16xf32> to vector<16x1xf32>
    %88 = vector.broadcast %87 : vector<16x1xf32> to vector<16x16xf32>
    %89 = arith.subf %85, %88 : vector<16x16xf32>
    %90 = math.exp %89 : vector<16x16xf32>
    %cst_48 = arith.constant dense<0.000000e+00> : vector<16xf32>
    %91 = vector.multi_reduction <add>, %90, %cst_48 [1] : vector<16x16xf32> to vector<16xf32>
    %92 = vector.shape_cast %91 : vector<16xf32> to vector<16x1xf32>
    %93 = vector.broadcast %92 : vector<16x1xf32> to vector<16x16xf32>
    %94 = arith.divf %90, %93 : vector<16x16xf32>
    %cst_49 = arith.constant dense<0.000000e+00> : vector<16x8xf32>
    %95 = tpu.matmul %94, %80, %cst_49 {dimension_numbers = #tpu.dot_dimension_numbers<[1], [0], [0], [1], [0, 0, 1, 1], [], []>} : vector<16x16xf32>, vector<16x8xf32>, vector<16x8xf32> -> vector<16x8xf32>
    %96 = vector.extract_strided_slice %28 {offsets = [0, 24], sizes = [16, 8], strides = [1, 1]} : vector<16x32xf32> to vector<16x8xf32>
    %97 = vector.extract_strided_slice %29 {offsets = [0, 24], sizes = [16, 8], strides = [1, 1]} : vector<16x32xf32> to vector<16x8xf32>
    %98 = vector.extract_strided_slice %30 {offsets = [0, 24], sizes = [16, 8], strides = [1, 1]} : vector<16x32xf32> to vector<16x8xf32>
    %cst_50 = arith.constant dense<0.000000e+00> : vector<16x16xf32>
    %99 = tpu.matmul %96, %97, %cst_50 {dimension_numbers = #tpu.dot_dimension_numbers<[1], [1], [0], [0], [0, 0, 1, 0], [], []>} : vector<16x8xf32>, vector<16x8xf32>, vector<16x16xf32> -> vector<16x16xf32>
    %cst_51 = arith.constant 0.353553385 : f32
    %100 = vector.broadcast %cst_51 : f32 to vector<16x16xf32>
    %101 = arith.mulf %99, %100 : vector<16x16xf32>
    %cst_52 = arith.constant -1.000000e+09 : f32
    %102 = vector.broadcast %cst_52 : f32 to vector<16x16xf32>
    %103 = arith.select %41, %101, %102 : vector<16x16xi1>, vector<16x16xf32>
    %cst_53 = arith.constant dense<0xFF800000> : vector<16xf32>
    %104 = vector.multi_reduction <maximumf>, %103, %cst_53 [1] : vector<16x16xf32> to vector<16xf32>
    %105 = vector.shape_cast %104 : vector<16xf32> to vector<16x1xf32>
    %106 = vector.broadcast %105 : vector<16x1xf32> to vector<16x16xf32>
    %107 = arith.subf %103, %106 : vector<16x16xf32>
    %108 = math.exp %107 : vector<16x16xf32>
    %cst_54 = arith.constant dense<0.000000e+00> : vector<16xf32>
    %109 = vector.multi_reduction <add>, %108, %cst_54 [1] : vector<16x16xf32> to vector<16xf32>
    %110 = vector.shape_cast %109 : vector<16xf32> to vector<16x1xf32>
    %111 = vector.broadcast %110 : vector<16x1xf32> to vector<16x16xf32>
    %112 = arith.divf %108, %111 : vector<16x16xf32>
    %cst_55 = arith.constant dense<0.000000e+00> : vector<16x8xf32>
    %113 = tpu.matmul %112, %98, %cst_55 {dimension_numbers = #tpu.dot_dimension_numbers<[1], [0], [0], [1], [0, 0, 1, 1], [], []>} : vector<16x16xf32>, vector<16x8xf32>, vector<16x8xf32> -> vector<16x8xf32>
    %114 = tpu.concatenate %59, %77, %95, %113 in 1 : vector<16x8xf32>, vector<16x8xf32>, vector<16x8xf32>, vector<16x8xf32> -> vector<16x32xf32>
    %115 = vector.extract_strided_slice %10 {offsets = [16, 0], sizes = [16, 32], strides = [1, 1]} : vector<32x32xf32> to vector<16x32xf32>
    %116 = vector.extract_strided_slice %17 {offsets = [16, 0], sizes = [16, 32], strides = [1, 1]} : vector<32x32xf32> to vector<16x32xf32>
    %117 = vector.extract_strided_slice %24 {offsets = [16, 0], sizes = [16, 32], strides = [1, 1]} : vector<32x32xf32> to vector<16x32xf32>
    %118 = vector.extract_strided_slice %26 {offsets = [16, 0], sizes = [16, 1], strides = [1, 1]} : vector<32x1xf32> to vector<16x1xf32>
    %119 = vector.shape_cast %118 : vector<16x1xf32> to vector<16x1xf32>
    %120 = vector.broadcast %119 : vector<16x1xf32> to vector<16x16xf32>
    %121 = vector.extract_strided_slice %27 {offsets = [1, 0], sizes = [1, 16], strides = [1, 1]} : vector<2x16xf32> to vector<1x16xf32>
    %122 = vector.shape_cast %121 : vector<1x16xf32> to vector<1x16xf32>
    %123 = vector.broadcast %122 : vector<1x16xf32> to vector<16x16xf32>
    %cst_56 = arith.constant 0.000000e+00 : f32
    %124 = vector.broadcast %cst_56 : f32 to vector<16x16xf32>
    %125 = arith.cmpf ogt, %120, %124 : vector<16x16xf32>
    %cst_57 = arith.constant 0.000000e+00 : f32
    %126 = vector.broadcast %cst_57 : f32 to vector<16x16xf32>
    %127 = arith.cmpf ogt, %123, %126 : vector<16x16xf32>
    %128 = arith.andi %125, %127 : vector<16x16xi1>
    %129 = vector.extract_strided_slice %115 {offsets = [0, 0], sizes = [16, 8], strides = [1, 1]} : vector<16x32xf32> to vector<16x8xf32>
    %130 = vector.extract_strided_slice %116 {offsets = [0, 0], sizes = [16, 8], strides = [1, 1]} : vector<16x32xf32> to vector<16x8xf32>
    %131 = vector.extract_strided_slice %117 {offsets = [0, 0], sizes = [16, 8], strides = [1, 1]} : vector<16x32xf32> to vector<16x8xf32>
    %cst_58 = arith.constant dense<0.000000e+00> : vector<16x16xf32>
    %132 = tpu.matmul %129, %130, %cst_58 {dimension_numbers = #tpu.dot_dimension_numbers<[1], [1], [0], [0], [0, 0, 1, 0], [], []>} : vector<16x8xf32>, vector<16x8xf32>, vector<16x16xf32> -> vector<16x16xf32>
    %cst_59 = arith.constant 0.353553385 : f32
    %133 = vector.broadcast %cst_59 : f32 to vector<16x16xf32>
    %134 = arith.mulf %132, %133 : vector<16x16xf32>
    %cst_60 = arith.constant -1.000000e+09 : f32
    %135 = vector.broadcast %cst_60 : f32 to vector<16x16xf32>
    %136 = arith.select %128, %134, %135 : vector<16x16xi1>, vector<16x16xf32>
    %cst_61 = arith.constant dense<0xFF800000> : vector<16xf32>
    %137 = vector.multi_reduction <maximumf>, %136, %cst_61 [1] : vector<16x16xf32> to vector<16xf32>
    %138 = vector.shape_cast %137 : vector<16xf32> to vector<16x1xf32>
    %139 = vector.broadcast %138 : vector<16x1xf32> to vector<16x16xf32>
    %140 = arith.subf %136, %139 : vector<16x16xf32>
    %141 = math.exp %140 : vector<16x16xf32>
    %cst_62 = arith.constant dense<0.000000e+00> : vector<16xf32>
    %142 = vector.multi_reduction <add>, %141, %cst_62 [1] : vector<16x16xf32> to vector<16xf32>
    %143 = vector.shape_cast %142 : vector<16xf32> to vector<16x1xf32>
    %144 = vector.broadcast %143 : vector<16x1xf32> to vector<16x16xf32>
    %145 = arith.divf %141, %144 : vector<16x16xf32>
    %cst_63 = arith.constant dense<0.000000e+00> : vector<16x8xf32>
    %146 = tpu.matmul %145, %131, %cst_63 {dimension_numbers = #tpu.dot_dimension_numbers<[1], [0], [0], [1], [0, 0, 1, 1], [], []>} : vector<16x16xf32>, vector<16x8xf32>, vector<16x8xf32> -> vector<16x8xf32>
    %147 = vector.extract_strided_slice %115 {offsets = [0, 8], sizes = [16, 8], strides = [1, 1]} : vector<16x32xf32> to vector<16x8xf32>
    %148 = vector.extract_strided_slice %116 {offsets = [0, 8], sizes = [16, 8], strides = [1, 1]} : vector<16x32xf32> to vector<16x8xf32>
    %149 = vector.extract_strided_slice %117 {offsets = [0, 8], sizes = [16, 8], strides = [1, 1]} : vector<16x32xf32> to vector<16x8xf32>
    %cst_64 = arith.constant dense<0.000000e+00> : vector<16x16xf32>
    %150 = tpu.matmul %147, %148, %cst_64 {dimension_numbers = #tpu.dot_dimension_numbers<[1], [1], [0], [0], [0, 0, 1, 0], [], []>} : vector<16x8xf32>, vector<16x8xf32>, vector<16x16xf32> -> vector<16x16xf32>
    %cst_65 = arith.constant 0.353553385 : f32
    %151 = vector.broadcast %cst_65 : f32 to vector<16x16xf32>
    %152 = arith.mulf %150, %151 : vector<16x16xf32>
    %cst_66 = arith.constant -1.000000e+09 : f32
    %153 = vector.broadcast %cst_66 : f32 to vector<16x16xf32>
    %154 = arith.select %128, %152, %153 : vector<16x16xi1>, vector<16x16xf32>
    %cst_67 = arith.constant dense<0xFF800000> : vector<16xf32>
    %155 = vector.multi_reduction <maximumf>, %154, %cst_67 [1] : vector<16x16xf32> to vector<16xf32>
    %156 = vector.shape_cast %155 : vector<16xf32> to vector<16x1xf32>
    %157 = vector.broadcast %156 : vector<16x1xf32> to vector<16x16xf32>
    %158 = arith.subf %154, %157 : vector<16x16xf32>
    %159 = math.exp %158 : vector<16x16xf32>
    %cst_68 = arith.constant dense<0.000000e+00> : vector<16xf32>
    %160 = vector.multi_reduction <add>, %159, %cst_68 [1] : vector<16x16xf32> to vector<16xf32>
    %161 = vector.shape_cast %160 : vector<16xf32> to vector<16x1xf32>
    %162 = vector.broadcast %161 : vector<16x1xf32> to vector<16x16xf32>
    %163 = arith.divf %159, %162 : vector<16x16xf32>
    %cst_69 = arith.constant dense<0.000000e+00> : vector<16x8xf32>
    %164 = tpu.matmul %163, %149, %cst_69 {dimension_numbers = #tpu.dot_dimension_numbers<[1], [0], [0], [1], [0, 0, 1, 1], [], []>} : vector<16x16xf32>, vector<16x8xf32>, vector<16x8xf32> -> vector<16x8xf32>
    %165 = vector.extract_strided_slice %115 {offsets = [0, 16], sizes = [16, 8], strides = [1, 1]} : vector<16x32xf32> to vector<16x8xf32>
    %166 = vector.extract_strided_slice %116 {offsets = [0, 16], sizes = [16, 8], strides = [1, 1]} : vector<16x32xf32> to vector<16x8xf32>
    %167 = vector.extract_strided_slice %117 {offsets = [0, 16], sizes = [16, 8], strides = [1, 1]} : vector<16x32xf32> to vector<16x8xf32>
    %cst_70 = arith.constant dense<0.000000e+00> : vector<16x16xf32>
    %168 = tpu.matmul %165, %166, %cst_70 {dimension_numbers = #tpu.dot_dimension_numbers<[1], [1], [0], [0], [0, 0, 1, 0], [], []>} : vector<16x8xf32>, vector<16x8xf32>, vector<16x16xf32> -> vector<16x16xf32>
    %cst_71 = arith.constant 0.353553385 : f32
    %169 = vector.broadcast %cst_71 : f32 to vector<16x16xf32>
    %170 = arith.mulf %168, %169 : vector<16x16xf32>
    %cst_72 = arith.constant -1.000000e+09 : f32
    %171 = vector.broadcast %cst_72 : f32 to vector<16x16xf32>
    %172 = arith.select %128, %170, %171 : vector<16x16xi1>, vector<16x16xf32>
    %cst_73 = arith.constant dense<0xFF800000> : vector<16xf32>
    %173 = vector.multi_reduction <maximumf>, %172, %cst_73 [1] : vector<16x16xf32> to vector<16xf32>
    %174 = vector.shape_cast %173 : vector<16xf32> to vector<16x1xf32>
    %175 = vector.broadcast %174 : vector<16x1xf32> to vector<16x16xf32>
    %176 = arith.subf %172, %175 : vector<16x16xf32>
    %177 = math.exp %176 : vector<16x16xf32>
    %cst_74 = arith.constant dense<0.000000e+00> : vector<16xf32>
    %178 = vector.multi_reduction <add>, %177, %cst_74 [1] : vector<16x16xf32> to vector<16xf32>
    %179 = vector.shape_cast %178 : vector<16xf32> to vector<16x1xf32>
    %180 = vector.broadcast %179 : vector<16x1xf32> to vector<16x16xf32>
    %181 = arith.divf %177, %180 : vector<16x16xf32>
    %cst_75 = arith.constant dense<0.000000e+00> : vector<16x8xf32>
    %182 = tpu.matmul %181, %167, %cst_75 {dimension_numbers = #tpu.dot_dimension_numbers<[1], [0], [0], [1], [0, 0, 1, 1], [], []>} : vector<16x16xf32>, vector<16x8xf32>, vector<16x8xf32> -> vector<16x8xf32>
    %183 = vector.extract_strided_slice %115 {offsets = [0, 24], sizes = [16, 8], strides = [1, 1]} : vector<16x32xf32> to vector<16x8xf32>
    %184 = vector.extract_strided_slice %116 {offsets = [0, 24], sizes = [16, 8], strides = [1, 1]} : vector<16x32xf32> to vector<16x8xf32>
    %185 = vector.extract_strided_slice %117 {offsets = [0, 24], sizes = [16, 8], strides = [1, 1]} : vector<16x32xf32> to vector<16x8xf32>
    %cst_76 = arith.constant dense<0.000000e+00> : vector<16x16xf32>
    %186 = tpu.matmul %183, %184, %cst_76 {dimension_numbers = #tpu.dot_dimension_numbers<[1], [1], [0], [0], [0, 0, 1, 0], [], []>} : vector<16x8xf32>, vector<16x8xf32>, vector<16x16xf32> -> vector<16x16xf32>
    %cst_77 = arith.constant 0.353553385 : f32
    %187 = vector.broadcast %cst_77 : f32 to vector<16x16xf32>
    %188 = arith.mulf %186, %187 : vector<16x16xf32>
    %cst_78 = arith.constant -1.000000e+09 : f32
    %189 = vector.broadcast %cst_78 : f32 to vector<16x16xf32>
    %190 = arith.select %128, %188, %189 : vector<16x16xi1>, vector<16x16xf32>
    %cst_79 = arith.constant dense<0xFF800000> : vector<16xf32>
    %191 = vector.multi_reduction <maximumf>, %190, %cst_79 [1] : vector<16x16xf32> to vector<16xf32>
    %192 = vector.shape_cast %191 : vector<16xf32> to vector<16x1xf32>
    %193 = vector.broadcast %192 : vector<16x1xf32> to vector<16x16xf32>
    %194 = arith.subf %190, %193 : vector<16x16xf32>
    %195 = math.exp %194 : vector<16x16xf32>
    %cst_80 = arith.constant dense<0.000000e+00> : vector<16xf32>
    %196 = vector.multi_reduction <add>, %195, %cst_80 [1] : vector<16x16xf32> to vector<16xf32>
    %197 = vector.shape_cast %196 : vector<16xf32> to vector<16x1xf32>
    %198 = vector.broadcast %197 : vector<16x1xf32> to vector<16x16xf32>
    %199 = arith.divf %195, %198 : vector<16x16xf32>
    %cst_81 = arith.constant dense<0.000000e+00> : vector<16x8xf32>
    %200 = tpu.matmul %199, %185, %cst_81 {dimension_numbers = #tpu.dot_dimension_numbers<[1], [0], [0], [1], [0, 0, 1, 1], [], []>} : vector<16x16xf32>, vector<16x8xf32>, vector<16x8xf32> -> vector<16x8xf32>
    %201 = tpu.concatenate %146, %164, %182, %200 in 1 : vector<16x8xf32>, vector<16x8xf32>, vector<16x8xf32>, vector<16x8xf32> -> vector<16x32xf32>
    %202 = tpu.concatenate %114, %201 in 0 : vector<16x32xf32>, vector<16x32xf32> -> vector<32x32xf32>
    %c0_82 = arith.constant 0 : index
    %c0_83 = arith.constant 0 : index
    %c0_84 = arith.constant 0 : index
    %203 = vector.load %arg11[%c0_82, %c0_83, %c0_84] : memref<1x32x32xf32, #tpu.memory_space<vmem>>, vector<1x32x32xf32>
    %204 = vector.shape_cast %203 : vector<1x32x32xf32> to vector<32x32xf32>
    %cst_85 = arith.constant dense<0.000000e+00> : vector<32x32xf32>
    %205 = tpu.matmul %202, %204, %cst_85 {dimension_numbers = #tpu.dot_dimension_numbers<[1], [0], [0], [1], [0, 0, 1, 1], [], []>} : vector<32x32xf32>, vector<32x32xf32>, vector<32x32xf32> -> vector<32x32xf32>
    %c0_86 = arith.constant 0 : index
    %c0_87 = arith.constant 0 : index
    %c0_88 = arith.constant 0 : index
    %206 = vector.load %arg12[%c0_86, %c0_87, %c0_88] : memref<1x1x32xf32, #tpu.memory_space<vmem>>, vector<1x1x32xf32>
    %207 = vector.shape_cast %206 : vector<1x1x32xf32> to vector<1x32xf32>
    %208 = vector.broadcast %207 : vector<1x32xf32> to vector<32x32xf32>
    %209 = arith.addf %205, %208 : vector<32x32xf32>
    %c0_89 = arith.constant 0 : index
    %c0_90 = arith.constant 0 : index
    %c0_91 = arith.constant 0 : index
    %210 = vector.load %arg13[%c0_89, %c0_90, %c0_91] : memref<1x32x64xf32, #tpu.memory_space<vmem>>, vector<1x32x64xf32>
    %211 = vector.shape_cast %210 : vector<1x32x64xf32> to vector<32x64xf32>
    %cst_92 = arith.constant dense<0.000000e+00> : vector<32x64xf32>
    %212 = tpu.matmul %209, %211, %cst_92 {dimension_numbers = #tpu.dot_dimension_numbers<[1], [0], [0], [1], [0, 0, 1, 1], [], []>} : vector<32x32xf32>, vector<32x64xf32>, vector<32x64xf32> -> vector<32x64xf32>
    %c0_93 = arith.constant 0 : index
    %c0_94 = arith.constant 0 : index
    %c0_95 = arith.constant 0 : index
    %213 = vector.load %arg14[%c0_93, %c0_94, %c0_95] : memref<1x32x64xf32, #tpu.memory_space<vmem>>, vector<1x32x64xf32>
    %214 = vector.shape_cast %213 : vector<1x32x64xf32> to vector<32x64xf32>
    %cst_96 = arith.constant dense<0.000000e+00> : vector<32x64xf32>
    %215 = tpu.matmul %1, %214, %cst_96 {dimension_numbers = #tpu.dot_dimension_numbers<[1], [0], [0], [1], [0, 0, 1, 1], [], []>} : vector<32x32xf32>, vector<32x64xf32>, vector<32x64xf32> -> vector<32x64xf32>
    %216 = arith.addf %212, %215 : vector<32x64xf32>
    %c0_97 = arith.constant 0 : index
    %c0_98 = arith.constant 0 : index
    %c0_99 = arith.constant 0 : index
    %217 = vector.load %arg15[%c0_97, %c0_98, %c0_99] : memref<1x1x64xf32, #tpu.memory_space<vmem>>, vector<1x1x64xf32>
    %218 = vector.shape_cast %217 : vector<1x1x64xf32> to vector<1x64xf32>
    %219 = vector.broadcast %218 : vector<1x64xf32> to vector<32x64xf32>
    %220 = arith.addf %216, %219 : vector<32x64xf32>
    %cst_100 = arith.constant 0.000000e+00 : f32
    %221 = vector.broadcast %cst_100 : f32 to vector<32x64xf32>
    %222 = arith.maximumf %220, %221 : vector<32x64xf32>
    %c0_101 = arith.constant 0 : index
    %c0_102 = arith.constant 0 : index
    %c0_103 = arith.constant 0 : index
    %223 = vector.load %arg16[%c0_101, %c0_102, %c0_103] : memref<1x64x32xf32, #tpu.memory_space<vmem>>, vector<1x64x32xf32>
    %224 = vector.shape_cast %223 : vector<1x64x32xf32> to vector<64x32xf32>
    %cst_104 = arith.constant dense<0.000000e+00> : vector<32x32xf32>
    %225 = tpu.matmul %222, %224, %cst_104 {dimension_numbers = #tpu.dot_dimension_numbers<[1], [0], [0], [1], [0, 0, 1, 1], [], []>} : vector<32x64xf32>, vector<64x32xf32>, vector<32x32xf32> -> vector<32x32xf32>
    %c0_105 = arith.constant 0 : index
    %c0_106 = arith.constant 0 : index
    %c0_107 = arith.constant 0 : index
    %226 = vector.load %arg17[%c0_105, %c0_106, %c0_107] : memref<1x1x32xf32, #tpu.memory_space<vmem>>, vector<1x1x32xf32>
    %227 = vector.shape_cast %226 : vector<1x1x32xf32> to vector<1x32xf32>
    %228 = vector.broadcast %227 : vector<1x32xf32> to vector<32x32xf32>
    %229 = arith.addf %225, %228 : vector<32x32xf32>
    %c0_108 = arith.constant 0 : index
    %c0_109 = arith.constant 0 : index
    %c0_110 = arith.constant 0 : index
    %230 = vector.load %arg18[%c0_108, %c0_109, %c0_110] : memref<1x32x32xf32, #tpu.memory_space<vmem>>, vector<1x32x32xf32>
    %231 = vector.shape_cast %230 : vector<1x32x32xf32> to vector<32x32xf32>
    %232 = vector.shape_cast %229 : vector<32x32xf32> to vector<1x32x32xf32>
    tpu.vector_store %arg18[%c0_108, %c0_109, %c0_110], %232 {strides = array<i32>} : memref<1x32x32xf32, #tpu.memory_space<vmem>>, vector<1x32x32xf32>,
    return
  }
  func.func @transform_0(%arg0: i32) -> (i32, i32, i32) {
    %c0_i32 = arith.constant 0 : i32
    %c0_i32_0 = arith.constant 0 : i32
    %c0_i32_1 = arith.constant 0 : i32
    return %arg0, %c0_i32, %c0_i32_0 : i32, i32, i32
  }
  func.func @transform_1(%arg0: i32) -> (i32, i32) {
    %c0_i32 = arith.constant 0 : i32
    %c0_i32_0 = arith.constant 0 : i32
    %c0_i32_1 = arith.constant 0 : i32
    return %c0_i32, %c0_i32_0 : i32, i32
  }
  func.func @transform_2(%arg0: i32) -> (i32, i32, i32) {
    %c0_i32 = arith.constant 0 : i32
    %c0_i32_0 = arith.constant 0 : i32
    %c0_i32_1 = arith.constant 0 : i32
    return %arg0, %c0_i32, %c0_i32_0 : i32, i32, i32
  }
  func.func @transform_3(%arg0: i32) -> (i32, i32, i32) {
    %c1_i32 = arith.constant 1 : i32
    %c0_i32 = arith.constant 0 : i32
    %c0_i32_0 = arith.constant 0 : i32
    %c0_i32_1 = arith.constant 0 : i32
    return %c1_i32, %c0_i32, %c0_i32_0 : i32, i32, i32
  }
  func.func @transform_4(%arg0: i32) -> (i32, i32, i32) {
    %c0_i32 = arith.constant 0 : i32
    %c0_i32_0 = arith.constant 0 : i32
    %c0_i32_1 = arith.constant 0 : i32
    return %arg0, %c0_i32, %c0_i32_0 : i32, i32, i32
  }
  func.func @transform_5(%arg0: i32) -> (i32, i32, i32) {
    %c0_i32 = arith.constant 0 : i32
    %c0_i32_0 = arith.constant 0 : i32
    %c0_i32_1 = arith.constant 0 : i32
    return %arg0, %c0_i32, %c0_i32_0 : i32, i32, i32
  }
  func.func @transform_6(%arg0: i32) -> (i32, i32, i32) {
    %c0_i32 = arith.constant 0 : i32
    %c0_i32_0 = arith.constant 0 : i32
    %c0_i32_1 = arith.constant 0 : i32
    return %arg0, %c0_i32, %c0_i32_0 : i32, i32, i32
  }
  func.func @transform_7(%arg0: i32) -> (i32, i32, i32) {
    %c0_i32 = arith.constant 0 : i32
    %c0_i32_0 = arith.constant 0 : i32
    %c0_i32_1 = arith.constant 0 : i32
    return %arg0, %c0_i32, %c0_i32_0 : i32, i32, i32
  }
  func.func @transform_8(%arg0: i32) -> (i32, i32, i32) {
    %c0_i32 = arith.constant 0 : i32
    %c0_i32_0 = arith.constant 0 : i32
    %c0_i32_1 = arith.constant 0 : i32
    return %arg0, %c0_i32, %c0_i32_0 : i32, i32, i32
  }
  func.func @transform_9(%arg0: i32) -> (i32, i32, i32) {
    %c0_i32 = arith.constant 0 : i32
    %c0_i32_0 = arith.constant 0 : i32
    %c0_i32_1 = arith.constant 0 : i32
    return %arg0, %c0_i32, %c0_i32_0 : i32, i32, i32
  }
  func.func @transform_10(%arg0: i32) -> (i32, i32, i32) {
    %c0_i32 = arith.constant 0 : i32
    %c0_i32_0 = arith.constant 0 : i32
    %c0_i32_1 = arith.constant 0 : i32
    return %arg0, %c0_i32, %c0_i32_0 : i32, i32, i32
  }
  func.func @transform_11(%arg0: i32) -> (i32, i32, i32) {
    %c0_i32 = arith.constant 0 : i32
    %c0_i32_0 = arith.constant 0 : i32
    %c0_i32_1 = arith.constant 0 : i32
    return %arg0, %c0_i32, %c0_i32_0 : i32, i32, i32
  }
  func.func @transform_12(%arg0: i32) -> (i32, i32, i32) {
    %c0_i32 = arith.constant 0 : i32
    %c0_i32_0 = arith.constant 0 : i32
    %c0_i32_1 = arith.constant 0 : i32
    return %arg0, %c0_i32, %c0_i32_0 : i32, i32, i32
  }
  func.func @transform_13(%arg0: i32) -> (i32, i32, i32) {
    %c0_i32 = arith.constant 0 : i32
    %c0_i32_0 = arith.constant 0 : i32
    %c0_i32_1 = arith.constant 0 : i32
    return %arg0, %c0_i32, %c0_i32_0 : i32, i32, i32
  }
  func.func @transform_14(%arg0: i32) -> (i32, i32, i32) {
    %c0_i32 = arith.constant 0 : i32
    %c0_i32_0 = arith.constant 0 : i32
    %c0_i32_1 = arith.constant 0 : i32
    return %arg0, %c0_i32, %c0_i32_0 : i32, i32, i32
  }
  func.func @transform_15(%arg0: i32) -> (i32, i32, i32) {
    %c0_i32 = arith.constant 0 : i32
    %c0_i32_0 = arith.constant 0 : i32
    %c0_i32_1 = arith.constant 0 : i32
    return %arg0, %c0_i32, %c0_i32_0 : i32, i32, i32
  }
  func.func @transform_16(%arg0: i32) -> (i32, i32, i32) {
    %c0_i32 = arith.constant 0 : i32
    %c0_i32_0 = arith.constant 0 : i32
    %c0_i32_1 = arith.constant 0 : i32
    return %arg0, %c0_i32, %c0_i32_0 : i32, i32, i32
  }
  func.func @transform_17(%arg0: i32) -> (i32, i32, i32) {
    %c0_i32 = arith.constant 0 : i32
    %c0_i32_0 = arith.constant 0 : i32
    %c0_i32_1 = arith.constant 0 : i32
    return %arg0, %c0_i32, %c0_i32_0 : i32, i32, i32
  }
}

</mosaic_0001>

<llo_original>
// kernel: layered_mixed_attention_forward.2
$region0: #{layered_mixed_attention_forward.2}
  #allocation0 [shape = 'u32[]', space=smem, size = 0x4, offset = 0x4, fixed_abs, tag = 'smem constant byte address 0x4 - core index']
  #allocation1 [shape = 'u32[144,128]{1,0:T(1,128)}', space=vmem, size = 0x12000, scoped, tag = 'internal scratch']
  %s0 = inlined_call_operand.vmem [shape: f32[3,32,1], index: 0, kind: input, shape index: {}]
  %s1 = inlined_call_operand.vmem [shape: f32[2,16], index: 1, kind: input, shape index: {}]
  %s2 = inlined_call_operand.vmem [shape: f32[3,32,32], index: 2, kind: input, shape index: {}, may-alias: {2,3}]
  %s3 = inlined_call_operand.vmem [shape: f32[3,32,32], index: 3, kind: input, shape index: {}, may-alias: {2,3}]
  %s4 = inlined_call_operand.vmem [shape: f32[3,32,32], index: 4, kind: input, shape index: {}]
  %s5 = inlined_call_operand.vmem [shape: f32[3,1,32], index: 5, kind: input, shape index: {}]
  %s6 = inlined_call_operand.vmem [shape: f32[3,32,32], index: 6, kind: input, shape index: {}]
  %s7 = inlined_call_operand.vmem [shape: f32[3,1,32], index: 7, kind: input, shape index: {}]
  %s8 = inlined_call_operand.vmem [shape: f32[3,32,32], index: 8, kind: input, shape index: {}]
  %s9 = inlined_call_operand.vmem [shape: f32[3,1,32], index: 9, kind: input, shape index: {}]
  %s10 = inlined_call_operand.vmem [shape: f32[3,32,32], index: 10, kind: input, shape index: {}]
  %s11 = inlined_call_operand.vmem [shape: f32[3,1,32], index: 11, kind: input, shape index: {}]
  %s12 = inlined_call_operand.hbm [shape: f32[3,32,64], index: 12, kind: input, shape index: {}]
  %s13 = inlined_call_operand.hbm [shape: f32[3,32,64], index: 13, kind: input, shape index: {}]
  %s14 = inlined_call_operand.vmem [shape: f32[3,1,64], index: 14, kind: input, shape index: {}]
  %s15 = inlined_call_operand.vmem [shape: f32[3,64,32], index: 15, kind: input, shape index: {}]
  %s16 = inlined_call_operand.vmem [shape: f32[3,1,32], index: 16, kind: input, shape index: {}]
  %s17 = inlined_call_operand.vmem [shape: f32[3,32,32], index: 17, kind: output, shape index: {}]
  %s18 = sld [smem:[#allocation0]]
  $region109: #{layered_mixed_attention_forward.2} parent=0
    _
  %s20 = ssub.s32 1, %s18
  %s21 = scalar_select 0, %s20, %s18
  $region1: #{layered_mixed_attention_forward.2} parent=0
    #allocation2 [shape = 'u8[32768]{0}', space=vmem, size = 0x8000, scoped, tag = 'input window, operand 12']
    #allocation3 [shape = 's32[2]{0}', space=sflag, size = 0x8, scoped, tag = 'scoped memory for layered_mixed_attention_forward.2']
    #allocation4 [shape = 'u8[32768]{0}', space=vmem, size = 0x8000, scoped, tag = 'input window, operand 13']
    #allocation5 [shape = 's32[2]{0}', space=sflag, size = 0x8, scoped, tag = 'scoped memory for layered_mixed_attention_forward.2']
    %22 = vsyncpa [#allocation3], 0
    %s23 = scalar_lea.sflag [#allocation3], 1
    %24 = vsyncpa %s23, 0
    %25 = vsyncpa [#allocation5], 0
    %s26 = scalar_lea.sflag [#allocation5], 1
    %27 = vsyncpa %s26, 0
    loop: start=0, step=1, limit=5
    $region2: #{layered_mixed_attention_forward.2} parent=1 // loop_pre_header
      _
    $region3: #{layered_mixed_attention_forward.2} parent=1 // loop_header
      %s29 = sphi 0, %s33
      %p30 = scmp.ge.s32.totalorder %s29, 5
      %s39 = sphi 0, %s41
      %s42 = sphi 0, %s39
      %s43 = sphi 0, %s42
      %s59 = sphi 0, %s43
      %s63 = sphi 0, %s63
      %s65 = sphi 0, %s63
      %s66 = sphi 0, %s65
      %s80 = sphi 0, %s66
      %s86 = sphi 0, %s88
      %s89 = sphi 0, %s86
      %s90 = sphi 0, %s89
      %s106 = sphi 0, %s90
      %s110 = sphi 0, %s110
      %s112 = sphi 0, %s110
      %s113 = sphi 0, %s112
      %s127 = sphi 0, %s113
      %s133 = sphi 0, %s135
      %s136 = sphi 0, %s133
      %s137 = sphi 0, %s136
      %s153 = sphi 0, %s137
      %s159 = sphi 0, %s161
      %s162 = sphi 0, %s159
      %s163 = sphi 0, %s162
      %s179 = sphi 0, %s163
      %s185 = sphi 0, %s187
      %s188 = sphi 0, %s185
      %s189 = sphi 0, %s188
      %s205 = sphi 0, %s189
      %s211 = sphi 0, %s213
      %s214 = sphi 0, %s211
      %s215 = sphi 0, %s214
      %s231 = sphi 0, %s215
      %s237 = sphi 0, %s239
      %s240 = sphi 0, %s237
      %s241 = sphi 0, %s240
      %s257 = sphi 0, %s241
      %s263 = sphi 0, %s265
      %s266 = sphi 0, %s263
      %s267 = sphi 0, %s266
      %s283 = sphi 0, %s267
      %s289 = sphi 0, %s291
      %s292 = sphi 0, %s289
      %s293 = sphi 0, %s292
      %s309 = sphi 0, %s293
      %s315 = sphi 0, %s317
      %s318 = sphi 0, %s315
      %s319 = sphi 0, %s318
      %s335 = sphi 0, %s319
      %s341 = sphi 0, %s343
      %s344 = sphi 0, %s341
      %s345 = sphi 0, %s344
      %s361 = sphi 0, %s345
      %s367 = sphi 0, %s369
      %s370 = sphi 0, %s367
      %s371 = sphi 0, %s370
      %s387 = sphi 0, %s371
      %s393 = sphi 0, %s395
      %s396 = sphi 0, %s393
      %s397 = sphi 0, %s396
      %s413 = sphi 0, %s397
      %s419 = sphi 0, %s421
      %s422 = sphi 0, %s419
      %s423 = sphi 0, %s422
      %s439 = sphi 0, %s423
      %s445 = sphi 0, %s447
      %s448 = sphi 0, %s445
      %s449 = sphi 0, %s448
      %s465 = sphi 0, %s449
      %s471 = sphi 0, %s473
      %s474 = sphi 0, %s471
      %s475 = sphi 0, %s474
      %s491 = sphi 0, %s475
    $region4: #{layered_mixed_attention_forward.2} parent=1 // loop_header_branch
      %32 = sbr.rel (%p30) target = $region8
    $region5: #{layered_mixed_attention_forward.2} parent=1 // loop_body
      %s34 = ssub.s32 %s29, 1
      %s35 = ssub.s32 %s29, 2
      %s36 = sadd.s32 %s29, 1
      %s37 = ssub.s32 %s29, %s36
      %p38 = scmp.eq.s32.totalorder %s37, 0
      %s40 = sadd.s32 %s39, 1
      %s41 = scalar_select %p38, %s39, %s40
      %p44 = pneg %p38
      %p45 = scmp.eq.s32.totalorder %s29, 2
      %p46 = por %p44, %p45
      %p47 = scmp.ne.s32.totalorder %s39, %s42
      %p48 = scmp.eq.s32.totalorder %s29, 0
      %p49 = por %p47, %p48
      %p50 = scmp.ne.s32.totalorder %s39, %s42
      %p51 = scmp.eq.s32.totalorder %s34, 2
      %p52 = por %p50, %p51
      %p53 = scmp.ne.s32.totalorder %s42, %s43
      %p54 = scmp.eq.s32.totalorder %s34, 0
      %p55 = por %p53, %p54
      %p56 = scmp.ne.s32.totalorder %s42, %s43
      %p57 = scmp.eq.s32.totalorder %s35, 2
      %p58 = por %p56, %p57
      %p60 = scmp.ne.s32.totalorder %s43, %s59
      %p61 = scmp.eq.s32.totalorder %s35, 0
      %p62 = por %p60, %p61
      %s64 = sadd.s32 %s63, 1
      %p67 = scmp.eq.s32.totalorder %s29, 2
      %p68 = scmp.ne.s32.totalorder %s63, %s65
      %p69 = scmp.eq.s32.totalorder %s29, 0
      %p70 = por %p68, %p69
      %p71 = scmp.ne.s32.totalorder %s63, %s65
      %p72 = scmp.eq.s32.totalorder %s34, 2
      %p73 = por %p71, %p72
      %p74 = scmp.ne.s32.totalorder %s65, %s66
      %p75 = scmp.eq.s32.totalorder %s34, 0
      %p76 = por %p74, %p75
      %p77 = scmp.ne.s32.totalorder %s65, %s66
      %p78 = scmp.eq.s32.totalorder %s35, 2
      %p79 = por %p77, %p78
      %p81 = scmp.ne.s32.totalorder %s66, %s80
      %p82 = scmp.eq.s32.totalorder %s35, 0
      %p83 = por %p81, %p82
      %s84 = ssub.s32 %s29, %s36
      %p85 = scmp.eq.s32.totalorder %s84, 0
      %s87 = sadd.s32 %s86, 1
      %s88 = scalar_select %p85, %s86, %s87
      %p91 = pneg %p85
      %p92 = scmp.eq.s32.totalorder %s29, 2
      %p93 = por %p91, %p92
      %p94 = scmp.ne.s32.totalorder %s86, %s89
      %p95 = scmp.eq.s32.totalorder %s29, 0
      %p96 = por %p94, %p95
      %p97 = scmp.ne.s32.totalorder %s86, %s89
      %p98 = scmp.eq.s32.totalorder %s34, 2
      %p99 = por %p97, %p98
      %p100 = scmp.ne.s32.totalorder %s89, %s90
      %p101 = scmp.eq.s32.totalorder %s34, 0
      %p102 = por %p100, %p101
      %p103 = scmp.ne.s32.totalorder %s89, %s90
      %p104 = scmp.eq.s32.totalorder %s35, 2
      %p105 = por %p103, %p104
      %p107 = scmp.ne.s32.totalorder %s90, %s106
      %p108 = scmp.eq.s32.totalorder %s35, 0
      %p109 = por %p107, %p108
      %s111 = sadd.s32 %s110, 1
      %p114 = scmp.eq.s32.totalorder %s29, 2
      %p115 = scmp.ne.s32.totalorder %s110, %s112
      %p116 = scmp.eq.s32.totalorder %s29, 0
      %p117 = por %p115, %p116
      %p118 = scmp.ne.s32.totalorder %s110, %s112
      %p119 = scmp.eq.s32.totalorder %s34, 2
      %p120 = por %p118, %p119
      %p121 = scmp.ne.s32.totalorder %s112, %s113
      %p122 = scmp.eq.s32.totalorder %s34, 0
      %p123 = por %p121, %p122
      %p124 = scmp.ne.s32.totalorder %s112, %s113
      %p125 = scmp.eq.s32.totalorder %s35, 2
      %p126 = por %p124, %p125
      %p128 = scmp.ne.s32.totalorder %s113, %s127
      %p129 = scmp.eq.s32.totalorder %s35, 0
      %p130 = por %p128, %p129
      %s131 = ssub.s32 %s29, %s36
      %p132 = scmp.eq.s32.totalorder %s131, 0
      %s134 = sadd.s32 %s133, 1
      %s135 = scalar_select %p132, %s133, %s134
      %p138 = pneg %p132
      %p139 = scmp.eq.s32.totalorder %s29, 2
      %p140 = por %p138, %p139
      %p141 = scmp.ne.s32.totalorder %s133, %s136
      %p142 = scmp.eq.s32.totalorder %s29, 0
      %p143 = por %p141, %p142
      %p144 = scmp.ne.s32.totalorder %s133, %s136
      %p145 = scmp.eq.s32.totalorder %s34, 2
      %p146 = por %p144, %p145
      %p147 = scmp.ne.s32.totalorder %s136, %s137
      %p148 = scmp.eq.s32.totalorder %s34, 0
      %p149 = por %p147, %p148
      %p150 = scmp.ne.s32.totalorder %s136, %s137
      %p151 = scmp.eq.s32.totalorder %s35, 2
      %p152 = por %p150, %p151
      %p154 = scmp.ne.s32.totalorder %s137, %s153
      %p155 = scmp.eq.s32.totalorder %s35, 0
      %p156 = por %p154, %p155
      %s157 = ssub.s32 %s29, %s36
      %p158 = scmp.eq.s32.totalorder %s157, 0
      %s160 = sadd.s32 %s159, 1
      %s161 = scalar_select %p158, %s159, %s160
      %p164 = pneg %p158
      %p165 = scmp.eq.s32.totalorder %s29, 2
      %p166 = por %p164, %p165
      %p167 = scmp.ne.s32.totalorder %s159, %s162
      %p168 = scmp.eq.s32.totalorder %s29, 0
      %p169 = por %p167, %p168
      %p170 = scmp.ne.s32.totalorder %s159, %s162
      %p171 = scmp.eq.s32.totalorder %s34, 2
      %p172 = por %p170, %p171
      %p173 = scmp.ne.s32.totalorder %s162, %s163
      %p174 = scmp.eq.s32.totalorder %s34, 0
      %p175 = por %p173, %p174
      %p176 = scmp.ne.s32.totalorder %s162, %s163
      %p177 = scmp.eq.s32.totalorder %s35, 2
      %p178 = por %p176, %p177
      %p180 = scmp.ne.s32.totalorder %s163, %s179
      %p181 = scmp.eq.s32.totalorder %s35, 0
      %p182 = por %p180, %p181
      %s183 = ssub.s32 %s29, %s36
      %p184 = scmp.eq.s32.totalorder %s183, 0
      %s186 = sadd.s32 %s185, 1
      %s187 = scalar_select %p184, %s185, %s186
      %p190 = pneg %p184
      %p191 = scmp.eq.s32.totalorder %s29, 2
      %p192 = por %p190, %p191
      %p193 = scmp.ne.s32.totalorder %s185, %s188
      %p194 = scmp.eq.s32.totalorder %s29, 0
      %p195 = por %p193, %p194
      %p196 = scmp.ne.s32.totalorder %s185, %s188
      %p197 = scmp.eq.s32.totalorder %s34, 2
      %p198 = por %p196, %p197
      %p199 = scmp.ne.s32.totalorder %s188, %s189
      %p200 = scmp.eq.s32.totalorder %s34, 0
      %p201 = por %p199, %p200
      %p202 = scmp.ne.s32.totalorder %s188, %s189
      %p203 = scmp.eq.s32.totalorder %s35, 2
      %p204 = por %p202, %p203
      %p206 = scmp.ne.s32.totalorder %s189, %s205
      %p207 = scmp.eq.s32.totalorder %s35, 0
      %p208 = por %p206, %p207
      %s209 = ssub.s32 %s29, %s36
      %p210 = scmp.eq.s32.totalorder %s209, 0
      %s212 = sadd.s32 %s211, 1
      %s213 = scalar_select %p210, %s211, %s212
      %p216 = pneg %p210
      %p217 = scmp.eq.s32.totalorder %s29, 2
      %p218 = por %p216, %p217
      %p219 = scmp.ne.s32.totalorder %s211, %s214
      %p220 = scmp.eq.s32.totalorder %s29, 0
      %p221 = por %p219, %p220
      %p222 = scmp.ne.s32.totalorder %s211, %s214
      %p223 = scmp.eq.s32.totalorder %s34, 2
      %p224 = por %p222, %p223
      %p225 = scmp.ne.s32.totalorder %s214, %s215
      %p226 = scmp.eq.s32.totalorder %s34, 0
      %p227 = por %p225, %p226
      %p228 = scmp.ne.s32.totalorder %s214, %s215
      %p229 = scmp.eq.s32.totalorder %s35, 2
      %p230 = por %p228, %p229
      %p232 = scmp.ne.s32.totalorder %s215, %s231
      %p233 = scmp.eq.s32.totalorder %s35, 0
      %p234 = por %p232, %p233
      %s235 = ssub.s32 %s29, %s36
      %p236 = scmp.eq.s32.totalorder %s235, 0
      %s238 = sadd.s32 %s237, 1
      %s239 = scalar_select %p236, %s237, %s238
      %p242 = pneg %p236
      %p243 = scmp.eq.s32.totalorder %s29, 2
      %p244 = por %p242, %p243
      %p245 = scmp.ne.s32.totalorder %s237, %s240
      %p246 = scmp.eq.s32.totalorder %s29, 0
      %p247 = por %p245, %p246
      %p248 = scmp.ne.s32.totalorder %s237, %s240
      %p249 = scmp.eq.s32.totalorder %s34, 2
      %p250 = por %p248, %p249
      %p251 = scmp.ne.s32.totalorder %s240, %s241
      %p252 = scmp.eq.s32.totalorder %s34, 0
      %p253 = por %p251, %p252
      %p254 = scmp.ne.s32.totalorder %s240, %s241
      %p255 = scmp.eq.s32.totalorder %s35, 2
      %p256 = por %p254, %p255
      %p258 = scmp.ne.s32.totalorder %s241, %s257
      %p259 = scmp.eq.s32.totalorder %s35, 0
      %p260 = por %p258, %p259
      %s261 = ssub.s32 %s29, %s36
      %p262 = scmp.eq.s32.totalorder %s261, 0
      %s264 = sadd.s32 %s263, 1
      %s265 = scalar_select %p262, %s263, %s264
      %p268 = pneg %p262
      %p269 = scmp.eq.s32.totalorder %s29, 2
      %p270 = por %p268, %p269
      %p271 = scmp.ne.s32.totalorder %s263, %s266
      %p272 = scmp.eq.s32.totalorder %s29, 0
      %p273 = por %p271, %p272
      %p274 = scmp.ne.s32.totalorder %s263, %s266
      %p275 = scmp.eq.s32.totalorder %s34, 2
      %p276 = por %p274, %p275
      %p277 = scmp.ne.s32.totalorder %s266, %s267
      %p278 = scmp.eq.s32.totalorder %s34, 0
      %p279 = por %p277, %p278
      %p280 = scmp.ne.s32.totalorder %s266, %s267
      %p281 = scmp.eq.s32.totalorder %s35, 2
      %p282 = por %p280, %p281
      %p284 = scmp.ne.s32.totalorder %s267, %s283
      %p285 = scmp.eq.s32.totalorder %s35, 0
      %p286 = por %p284, %p285
      %s287 = ssub.s32 %s29, %s36
      %p288 = scmp.eq.s32.totalorder %s287, 0
      %s290 = sadd.s32 %s289, 1
      %s291 = scalar_select %p288, %s289, %s290
      %p294 = pneg %p288
      %p295 = scmp.eq.s32.totalorder %s29, 2
      %p296 = por %p294, %p295
      %p297 = scmp.ne.s32.totalorder %s289, %s292
      %p298 = scmp.eq.s32.totalorder %s29, 0
      %p299 = por %p297, %p298
      %p300 = scmp.ne.s32.totalorder %s289, %s292
      %p301 = scmp.eq.s32.totalorder %s34, 2
      %p302 = por %p300, %p301
      %p303 = scmp.ne.s32.totalorder %s292, %s293
      %p304 = scmp.eq.s32.totalorder %s34, 0
      %p305 = por %p303, %p304
      %p306 = scmp.ne.s32.totalorder %s292, %s293
      %p307 = scmp.eq.s32.totalorder %s35, 2
      %p308 = por %p306, %p307
      %p310 = scmp.ne.s32.totalorder %s293, %s309
      %p311 = scmp.eq.s32.totalorder %s35, 0
      %p312 = por %p310, %p311
      %s313 = ssub.s32 %s29, %s36
      %p314 = scmp.eq.s32.totalorder %s313, 0
      %s316 = sadd.s32 %s315, 1
      %s317 = scalar_select %p314, %s315, %s316
      %p320 = pneg %p314
      %p321 = scmp.eq.s32.totalorder %s29, 2
      %p322 = por %p320, %p321
      %p323 = scmp.ne.s32.totalorder %s315, %s318
      %p324 = scmp.eq.s32.totalorder %s29, 0
      %p325 = por %p323, %p324
      %p326 = scmp.ne.s32.totalorder %s315, %s318
      %p327 = scmp.eq.s32.totalorder %s34, 2
      %p328 = por %p326, %p327
      %p329 = scmp.ne.s32.totalorder %s318, %s319
      %p330 = scmp.eq.s32.totalorder %s34, 0
      %p331 = por %p329, %p330
      %p332 = scmp.ne.s32.totalorder %s318, %s319
      %p333 = scmp.eq.s32.totalorder %s35, 2
      %p334 = por %p332, %p333
      %p336 = scmp.ne.s32.totalorder %s319, %s335
      %p337 = scmp.eq.s32.totalorder %s35, 0
      %p338 = por %p336, %p337
      %s339 = ssub.s32 %s29, %s36
      %p340 = scmp.eq.s32.totalorder %s339, 0
      %s342 = sadd.s32 %s341, 1
      %s343 = scalar_select %p340, %s341, %s342
      %p346 = pneg %p340
      %p347 = scmp.eq.s32.totalorder %s29, 2
      %p348 = por %p346, %p347
      %p349 = scmp.ne.s32.totalorder %s341, %s344
      %p350 = scmp.eq.s32.totalorder %s29, 0
      %p351 = por %p349, %p350
      %p352 = scmp.ne.s32.totalorder %s341, %s344
      %p353 = scmp.eq.s32.totalorder %s34, 2
      %p354 = por %p352, %p353
      %p355 = scmp.ne.s32.totalorder %s344, %s345
      %p356 = scmp.eq.s32.totalorder %s34, 0
      %p357 = por %p355, %p356
      %p358 = scmp.ne.s32.totalorder %s344, %s345
      %p359 = scmp.eq.s32.totalorder %s35, 2
      %p360 = por %p358, %p359
      %p362 = scmp.ne.s32.totalorder %s345, %s361
      %p363 = scmp.eq.s32.totalorder %s35, 0
      %p364 = por %p362, %p363
      %s365 = ssub.s32 %s29, %s36
      %p366 = scmp.eq.s32.totalorder %s365, 0
      %s368 = sadd.s32 %s367, 1
      %s369 = scalar_select %p366, %s367, %s368
      %p372 = pneg %p366
      %p373 = scmp.eq.s32.totalorder %s29, 2
      %p374 = por %p372, %p373
      %p375 = scmp.ne.s32.totalorder %s367, %s370
      %p376 = scmp.eq.s32.totalorder %s29, 0
      %p377 = por %p375, %p376
      %p378 = scmp.ne.s32.totalorder %s367, %s370
      %p379 = scmp.eq.s32.totalorder %s34, 2
      %p380 = por %p378, %p379
      %p381 = scmp.ne.s32.totalorder %s370, %s371
      %p382 = scmp.eq.s32.totalorder %s34, 0
      %p383 = por %p381, %p382
      %p384 = scmp.ne.s32.totalorder %s370, %s371
      %p385 = scmp.eq.s32.totalorder %s35, 2
      %p386 = por %p384, %p385
      %p388 = scmp.ne.s32.totalorder %s371, %s387
      %p389 = scmp.eq.s32.totalorder %s35, 0
      %p390 = por %p388, %p389
      %s391 = ssub.s32 %s29, %s36
      %p392 = scmp.eq.s32.totalorder %s391, 0
      %s394 = sadd.s32 %s393, 1
      %s395 = scalar_select %p392, %s393, %s394
      %p398 = pneg %p392
      %p399 = scmp.eq.s32.totalorder %s29, 2
      %p400 = por %p398, %p399
      %p401 = scmp.ne.s32.totalorder %s393, %s396
      %p402 = scmp.eq.s32.totalorder %s29, 0
      %p403 = por %p401, %p402
      %p404 = scmp.ne.s32.totalorder %s393, %s396
      %p405 = scmp.eq.s32.totalorder %s34, 2
      %p406 = por %p404, %p405
      %p407 = scmp.ne.s32.totalorder %s396, %s397
      %p408 = scmp.eq.s32.totalorder %s34, 0
      %p409 = por %p407, %p408
      %p410 = scmp.ne.s32.totalorder %s396, %s397
      %p411 = scmp.eq.s32.totalorder %s35, 2
      %p412 = por %p410, %p411
      %p414 = scmp.ne.s32.totalorder %s397, %s413
      %p415 = scmp.eq.s32.totalorder %s35, 0
      %p416 = por %p414, %p415
      %s417 = ssub.s32 %s29, %s36
      %p418 = scmp.eq.s32.totalorder %s417, 0
      %s420 = sadd.s32 %s419, 1
      %s421 = scalar_select %p418, %s419, %s420
      %p424 = pneg %p418
      %p425 = scmp.eq.s32.totalorder %s29, 2
      %p426 = por %p424, %p425
      %p427 = scmp.ne.s32.totalorder %s419, %s422
      %p428 = scmp.eq.s32.totalorder %s29, 0
      %p429 = por %p427, %p428
      %p430 = scmp.ne.s32.totalorder %s419, %s422
      %p431 = scmp.eq.s32.totalorder %s34, 2
      %p432 = por %p430, %p431
      %p433 = scmp.ne.s32.totalorder %s422, %s423
      %p434 = scmp.eq.s32.totalorder %s34, 0
      %p435 = por %p433, %p434
      %p436 = scmp.ne.s32.totalorder %s422, %s423
      %p437 = scmp.eq.s32.totalorder %s35, 2
      %p438 = por %p436, %p437
      %p440 = scmp.ne.s32.totalorder %s423, %s439
      %p441 = scmp.eq.s32.totalorder %s35, 0
      %p442 = por %p440, %p441
      %s443 = ssub.s32 %s29, %s36
      %p444 = scmp.eq.s32.totalorder %s443, 0
      %s446 = sadd.s32 %s445, 1
      %s447 = scalar_select %p444, %s445, %s446
      %p450 = pneg %p444
      %p451 = scmp.eq.s32.totalorder %s29, 2
      %p452 = por %p450, %p451
      %p453 = scmp.ne.s32.totalorder %s445, %s448
      %p454 = scmp.eq.s32.totalorder %s29, 0
      %p455 = por %p453, %p454
      %p456 = scmp.ne.s32.totalorder %s445, %s448
      %p457 = scmp.eq.s32.totalorder %s34, 2
      %p458 = por %p456, %p457
      %p459 = scmp.ne.s32.totalorder %s448, %s449
      %p460 = scmp.eq.s32.totalorder %s34, 0
      %p461 = por %p459, %p460
      %p462 = scmp.ne.s32.totalorder %s448, %s449
      %p463 = scmp.eq.s32.totalorder %s35, 2
      %p464 = por %p462, %p463
      %p466 = scmp.ne.s32.totalorder %s449, %s465
      %p467 = scmp.eq.s32.totalorder %s35, 0
      %p468 = por %p466, %p467
      %s469 = ssub.s32 %s29, %s36
      %p470 = scmp.eq.s32.totalorder %s469, 0
      %s472 = sadd.s32 %s471, 1
      %s473 = scalar_select %p470, %s471, %s472
      %p476 = pneg %p470
      %p477 = scmp.eq.s32.totalorder %s29, 2
      %p478 = por %p476, %p477
      %p479 = scmp.ne.s32.totalorder %s471, %s474
      %p480 = scmp.eq.s32.totalorder %s29, 0
      %p481 = por %p479, %p480
      %p482 = scmp.ne.s32.totalorder %s471, %s474
      %p483 = scmp.eq.s32.totalorder %s34, 2
      %p484 = por %p482, %p483
      %p485 = scmp.ne.s32.totalorder %s474, %s475
      %p486 = scmp.eq.s32.totalorder %s34, 0
      %p487 = por %p485, %p486
      %p488 = scmp.ne.s32.totalorder %s474, %s475
      %p489 = scmp.eq.s32.totalorder %s35, 2
      %p490 = por %p488, %p489
      %p492 = scmp.ne.s32.totalorder %s475, %s491
      %p493 = scmp.eq.s32.totalorder %s35, 0
      %p494 = por %p492, %p493
      %p495 = scmp.le.s32.totalorder 1, %s29
      %p496 = scmp.lt.s32.totalorder %s29, 4
      %p497 = pnand %p495, %p496
      %p498 = pneg %p497
      // Predicated region
      $region9: #{layered_mixed_attention_forward.2} parent=5 // pred_check
        _
      $region10: #{layered_mixed_attention_forward.2} parent=5 // pred_check_branch
        %500 = sbr.rel (%p497) target = $region12
      $region11: #{layered_mixed_attention_forward.2} parent=5 // pred_region
        %s501 = ssub.s32 %s29, 1
        // Predicated region
        $region13: #{layered_mixed_attention_forward.2} parent=11 // pred_check
          %p502 = pneg %p76
        $region14: #{layered_mixed_attention_forward.2} parent=11 // pred_check_branch
          %504 = sbr.rel (%p502) target = $region16
        $region15: #{layered_mixed_attention_forward.2} parent=11 // pred_region
          _
        $region16: #{layered_mixed_attention_forward.2} parent=11 // pred_fallthru
          _
        // Predicated region
        $region17: #{layered_mixed_attention_forward.2} parent=11 // pred_check
          %p505 = pneg %p123
        $region18: #{layered_mixed_attention_forward.2} parent=11 // pred_check_branch
          %507 = sbr.rel (%p505) target = $region20
        $region19: #{layered_mixed_attention_forward.2} parent=11 // pred_region
          %s508 = scalar_lea.vmem %s3, 32
        $region20: #{layered_mixed_attention_forward.2} parent=11 // pred_fallthru
          _
      $region12: #{layered_mixed_attention_forward.2} parent=5 // pred_fallthru
        _
      %p509 = scmp.lt.s32.totalorder %s29, 3
      // Predicated region
      $region21: #{layered_mixed_attention_forward.2} parent=5 // pred_check
        %p510 = pneg %p509
      $region22: #{layered_mixed_attention_forward.2} parent=5 // pred_check_branch
        %512 = sbr.rel (%p510) target = $region24
      $region23: #{layered_mixed_attention_forward.2} parent=5 // pred_region
        // Predicated region
        $region25: #{layered_mixed_attention_forward.2} parent=23 // pred_check
          %p513 = pneg %p49
        $region26: #{layered_mixed_attention_forward.2} parent=23 // pred_check_branch
          %515 = sbr.rel (%p513) target = $region28
        $region27: #{layered_mixed_attention_forward.2} parent=23 // pred_region
          %p516 = scmp.lt.s32.totalorder %s29, 2
          %s517 = scalar_select %p516, %s29, 2
          %s518 = smul.addr %s517, 4
          %s519 = smul.addr %s518, 8
          %s520 = scalar_lea.vmem %s0, %s519
        $region28: #{layered_mixed_attention_forward.2} parent=23 // pred_fallthru
          _
        // Predicated region
        $region29: #{layered_mixed_attention_forward.2} parent=23 // pred_check
          %p521 = pneg %p96
        $region30: #{layered_mixed_attention_forward.2} parent=23 // pred_check_branch
          %523 = sbr.rel (%p521) target = $region32
        $region31: #{layered_mixed_attention_forward.2} parent=23 // pred_region
          %p524 = scmp.lt.s32.totalorder %s29, 2
          %s525 = scalar_select %p524, %s29, 2
          %s526 = smul.addr %s525, 4
          %s527 = smul.addr %s526, 8
          %s528 = scalar_lea.vmem %s2, %s527
        $region32: #{layered_mixed_attention_forward.2} parent=23 // pred_fallthru
          _
        // Predicated region
        $region33: #{layered_mixed_attention_forward.2} parent=23 // pred_check
          %p529 = pneg %p143
        $region34: #{layered_mixed_attention_forward.2} parent=23 // pred_check_branch
          %531 = sbr.rel (%p529) target = $region36
        $region35: #{layered_mixed_attention_forward.2} parent=23 // pred_region
          %p532 = scmp.lt.s32.totalorder %s29, 2
          %s533 = scalar_select %p532, %s29, 2
          %s534 = smul.addr %s533, 4
          %s535 = smul.addr %s534, 8
          %s536 = scalar_lea.vmem %s4, %s535
        $region36: #{layered_mixed_attention_forward.2} parent=23 // pred_fallthru
          _
        // Predicated region
        $region37: #{layered_mixed_attention_forward.2} parent=23 // pred_check
          %p537 = pneg %p169
        $region38: #{layered_mixed_attention_forward.2} parent=23 // pred_check_branch
          %539 = sbr.rel (%p537) target = $region40
        $region39: #{layered_mixed_attention_forward.2} parent=23 // pred_region
          %p540 = scmp.lt.s32.totalorder %s29, 2
          %s541 = scalar_select %p540, %s29, 2
          %s542 = scalar_lea.vmem %s5, %s541
        $region40: #{layered_mixed_attention_forward.2} parent=23 // pred_fallthru
          _
        // Predicated region
        $region41: #{layered_mixed_attention_forward.2} parent=23 // pred_check
          %p543 = pneg %p195
        $region42: #{layered_mixed_attention_forward.2} parent=23 // pred_check_branch
          %545 = sbr.rel (%p543) target = $region44
        $region43: #{layered_mixed_attention_forward.2} parent=23 // pred_region
          %p546 = scmp.lt.s32.totalorder %s29, 2
          %s547 = scalar_select %p546, %s29, 2
          %s548 = smul.addr %s547, 4
          %s549 = smul.addr %s548, 8
          %s550 = scalar_lea.vmem %s6, %s549
        $region44: #{layered_mixed_attention_forward.2} parent=23 // pred_fallthru
          _
        // Predicated region
        $region45: #{layered_mixed_attention_forward.2} parent=23 // pred_check
          %p551 = pneg %p221
        $region46: #{layered_mixed_attention_forward.2} parent=23 // pred_check_branch
          %553 = sbr.rel (%p551) target = $region48
        $region47: #{layered_mixed_attention_forward.2} parent=23 // pred_region
          %p554 = scmp.lt.s32.totalorder %s29, 2
          %s555 = scalar_select %p554, %s29, 2
          %s556 = scalar_lea.vmem %s7, %s555
        $region48: #{layered_mixed_attention_forward.2} parent=23 // pred_fallthru
          _
        // Predicated region
        $region49: #{layered_mixed_attention_forward.2} parent=23 // pred_check
          %p557 = pneg %p247
        $region50: #{layered_mixed_attention_forward.2} parent=23 // pred_check_branch
          %559 = sbr.rel (%p557) target = $region52
        $region51: #{layered_mixed_attention_forward.2} parent=23 // pred_region
          %p560 = scmp.lt.s32.totalorder %s29, 2
          %s561 = scalar_select %p560, %s29, 2
          %s562 = smul.addr %s561, 4
          %s563 = smul.addr %s562, 8
          %s564 = scalar_lea.vmem %s8, %s563
        $region52: #{layered_mixed_attention_forward.2} parent=23 // pred_fallthru
          _
        // Predicated region
        $region53: #{layered_mixed_attention_forward.2} parent=23 // pred_check
          %p565 = pneg %p273
        $region54: #{layered_mixed_attention_forward.2} parent=23 // pred_check_branch
          %567 = sbr.rel (%p565) target = $region56
        $region55: #{layered_mixed_attention_forward.2} parent=23 // pred_region
          %p568 = scmp.lt.s32.totalorder %s29, 2
          %s569 = scalar_select %p568, %s29, 2
          %s570 = scalar_lea.vmem %s9, %s569
        $region56: #{layered_mixed_attention_forward.2} parent=23 // pred_fallthru
          _
        // Predicated region
        $region57: #{layered_mixed_attention_forward.2} parent=23 // pred_check
          %p571 = pneg %p299
        $region58: #{layered_mixed_attention_forward.2} parent=23 // pred_check_branch
          %573 = sbr.rel (%p571) target = $region60
        $region59: #{layered_mixed_attention_forward.2} parent=23 // pred_region
          %p574 = scmp.lt.s32.totalorder %s29, 2
          %s575 = scalar_select %p574, %s29, 2
          %s576 = smul.addr %s575, 4
          %s577 = smul.addr %s576, 8
          %s578 = scalar_lea.vmem %s10, %s577
        $region60: #{layered_mixed_attention_forward.2} parent=23 // pred_fallthru
          _
        // Predicated region
        $region61: #{layered_mixed_attention_forward.2} parent=23 // pred_check
          %p579 = pneg %p325
        $region62: #{layered_mixed_attention_forward.2} parent=23 // pred_check_branch
          %581 = sbr.rel (%p579) target = $region64
        $region63: #{layered_mixed_attention_forward.2} parent=23 // pred_region
          %p582 = scmp.lt.s32.totalorder %s29, 2
          %s583 = scalar_select %p582, %s29, 2
          %s584 = scalar_lea.vmem %s11, %s583
        $region64: #{layered_mixed_attention_forward.2} parent=23 // pred_fallthru
          _
        // Predicated region
        $region65: #{layered_mixed_attention_forward.2} parent=23 // pred_check
          %p585 = pneg %p351
        $region66: #{layered_mixed_attention_forward.2} parent=23 // pred_check_branch
          %587 = sbr.rel (%p585) target = $region68
        $region67: #{layered_mixed_attention_forward.2} parent=23 // pred_region
          %s588 = sand.u32 %s341, 1
          %s589 = scalar_lea.sflag [#allocation3], %s588
          %s590 = sand.u32 %s341, 1
          %s591 = smul.addr %s590, 32
          %s592 = scalar_lea.vmem [#allocation2], %s591
          %s594 = ssub.s32 512, 512
          %595 = vsyncadd %s589, %s594
          %s596 = smul.addr %s29, 4
          %s597 = smul.addr %s596, 128
          %s598 = scalar_lea.hbm %s12, %s597
          %s599 = sshll.u32 %s592, 4
          %s600 = int_to_ptr.vmem [resolvable:$true] %s599
          %605 = dma.hbm_to_vmem [thread:$0]  %s598, 512, %s600, %s589, 128, 128, 8
        $region68: #{layered_mixed_attention_forward.2} parent=23 // pred_fallthru
          _
        // Predicated region
        $region69: #{layered_mixed_attention_forward.2} parent=23 // pred_check
          %p606 = pneg %p377
        $region70: #{layered_mixed_attention_forward.2} parent=23 // pred_check_branch
          %608 = sbr.rel (%p606) target = $region72
        $region71: #{layered_mixed_attention_forward.2} parent=23 // pred_region
          %s609 = sand.u32 %s367, 1
          %s610 = scalar_lea.sflag [#allocation5], %s609
          %s611 = sand.u32 %s367, 1
          %s612 = smul.addr %s611, 32
          %s613 = scalar_lea.vmem [#allocation4], %s612
          %s615 = ssub.s32 512, 512
          %616 = vsyncadd %s610, %s615
          %s617 = smul.addr %s29, 4
          %s618 = smul.addr %s617, 128
          %s619 = scalar_lea.hbm %s13, %s618
          %s620 = sshll.u32 %s613, 4
          %s621 = int_to_ptr.vmem [resolvable:$true] %s620
          %626 = dma.hbm_to_vmem [thread:$0]  %s619, 512, %s621, %s610, 128, 128, 8
        $region72: #{layered_mixed_attention_forward.2} parent=23 // pred_fallthru
          _
        // Predicated region
        $region73: #{layered_mixed_attention_forward.2} parent=23 // pred_check
          %p627 = pneg %p403
        $region74: #{layered_mixed_attention_forward.2} parent=23 // pred_check_branch
          %629 = sbr.rel (%p627) target = $region76
        $region75: #{layered_mixed_attention_forward.2} parent=23 // pred_region
          %p630 = scmp.lt.s32.totalorder %s29, 2
          %s631 = scalar_select %p630, %s29, 2
          %s632 = scalar_lea.vmem %s14, %s631
        $region76: #{layered_mixed_attention_forward.2} parent=23 // pred_fallthru
          _
        // Predicated region
        $region77: #{layered_mixed_attention_forward.2} parent=23 // pred_check
          %p633 = pneg %p429
        $region78: #{layered_mixed_attention_forward.2} parent=23 // pred_check_branch
          %635 = sbr.rel (%p633) target = $region80
        $region79: #{layered_mixed_attention_forward.2} parent=23 // pred_region
          %p636 = scmp.lt.s32.totalorder %s29, 2
          %s637 = scalar_select %p636, %s29, 2
          %s638 = smul.addr %s637, 8
          %s639 = smul.addr %s638, 8
          %s640 = scalar_lea.vmem %s15, %s639
        $region80: #{layered_mixed_attention_forward.2} parent=23 // pred_fallthru
          _
        // Predicated region
        $region81: #{layered_mixed_attention_forward.2} parent=23 // pred_check
          %p641 = pneg %p455
        $region82: #{layered_mixed_attention_forward.2} parent=23 // pred_check_branch
          %643 = sbr.rel (%p641) target = $region84
        $region83: #{layered_mixed_attention_forward.2} parent=23 // pred_region
          %p644 = scmp.lt.s32.totalorder %s29, 2
          %s645 = scalar_select %p644, %s29, 2
          %s646 = scalar_lea.vmem %s16, %s645
        $region84: #{layered_mixed_attention_forward.2} parent=23 // pred_fallthru
          _
      $region24: #{layered_mixed_attention_forward.2} parent=5 // pred_fallthru
        _
      %p647 = scmp.le.s32.totalorder 1, %s29
      %p648 = scmp.lt.s32.totalorder %s29, 4
      %p649 = pnand %p647, %p648
      %p650 = pneg %p649
      // Predicated region
      $region85: #{layered_mixed_attention_forward.2} parent=5 // pred_check
        _
      $region86: #{layered_mixed_attention_forward.2} parent=5 // pred_check_branch
        %652 = sbr.rel (%p649) target = $region88
      $region87: #{layered_mixed_attention_forward.2} parent=5 // pred_region
        %s653 = ssub.s32 %s29, 1
        %s654 = sand.u32 %s344, 1
        %s655 = scalar_lea.sflag [#allocation3], %s654
        %s656 = sand.u32 %s344, 1
        %s657 = smul.addr %s656, 32
        %s658 = scalar_lea.vmem [#allocation2], %s657
        // Predicated region
        $region89: #{layered_mixed_attention_forward.2} parent=87 // pred_check
          %p659 = pneg %p357
        $region90: #{layered_mixed_attention_forward.2} parent=87 // pred_check_branch
          %661 = sbr.rel (%p659) target = $region92
        $region91: #{layered_mixed_attention_forward.2} parent=87 // pred_region
          %662 = dma.done %s655, 512
        $region92: #{layered_mixed_attention_forward.2} parent=87 // pred_fallthru
          _
        %s663 = sand.u32 %s370, 1
        %s664 = scalar_lea.sflag [#allocation5], %s663
        %s665 = sand.u32 %s370, 1
        %s666 = smul.addr %s665, 32
        %s667 = scalar_lea.vmem [#allocation4], %s666
        // Predicated region
        $region93: #{layered_mixed_attention_forward.2} parent=87 // pred_check
          %p668 = pneg %p383
        $region94: #{layered_mixed_attention_forward.2} parent=87 // pred_check_branch
          %670 = sbr.rel (%p668) target = $region96
        $region95: #{layered_mixed_attention_forward.2} parent=87 // pred_region
          %671 = dma.done %s664, 512
        $region96: #{layered_mixed_attention_forward.2} parent=87 // pred_fallthru
          _
        %p672 = scmp.lt.s32.totalorder %s34, 2
        %s673 = scalar_select %p672, %s34, 2
        %s674 = smul.addr %s673, 4
        %s675 = smul.addr %s674, 8
        %s676 = scalar_lea.vmem %s0, %s675
        %p677 = pneg %p55
        %p678 = pneg %p52
        %p679 = pneg %p76
        %p680 = pneg %p73
        %p681 = scmp.lt.s32.totalorder %s34, 2
        %s682 = scalar_select %p681, %s34, 2
        %s683 = smul.addr %s682, 4
        %s684 = smul.addr %s683, 8
        %s685 = scalar_lea.vmem %s2, %s684
        %p686 = pneg %p102
        %p687 = pneg %p99
        %s688 = scalar_lea.vmem %s3, 32
        %p689 = pneg %p123
        %p690 = pneg %p120
        %p691 = scmp.lt.s32.totalorder %s34, 2
        %s692 = scalar_select %p691, %s34, 2
        %s693 = smul.addr %s692, 4
        %s694 = smul.addr %s693, 8
        %s695 = scalar_lea.vmem %s4, %s694
        %p696 = pneg %p149
        %p697 = pneg %p146
        %p698 = scmp.lt.s32.totalorder %s34, 2
        %s699 = scalar_select %p698, %s34, 2
        %s700 = scalar_lea.vmem %s5, %s699
        %p701 = pneg %p175
        %p702 = pneg %p172
        %p703 = scmp.lt.s32.totalorder %s34, 2
        %s704 = scalar_select %p703, %s34, 2
        %s705 = smul.addr %s704, 4
        %s706 = smul.addr %s705, 8
        %s707 = scalar_lea.vmem %s6, %s706
        %p708 = pneg %p201
        %p709 = pneg %p198
        %p710 = scmp.lt.s32.totalorder %s34, 2
        %s711 = scalar_select %p710, %s34, 2
        %s712 = scalar_lea.vmem %s7, %s711
        %p713 = pneg %p227
        %p714 = pneg %p224
        %p715 = scmp.lt.s32.totalorder %s34, 2
        %s716 = scalar_select %p715, %s34, 2
        %s717 = smul.addr %s716, 4
        %s718 = smul.addr %s717, 8
        %s719 = scalar_lea.vmem %s8, %s718
        %p720 = pneg %p253
        %p721 = pneg %p250
        %p722 = scmp.lt.s32.totalorder %s34, 2
        %s723 = scalar_select %p722, %s34, 2
        %s724 = scalar_lea.vmem %s9, %s723
        %p725 = pneg %p279
        %p726 = pneg %p276
        %p727 = scmp.lt.s32.totalorder %s34, 2
        %s728 = scalar_select %p727, %s34, 2
        %s729 = smul.addr %s728, 4
        %s730 = smul.addr %s729, 8
        %s731 = scalar_lea.vmem %s10, %s730
        %p732 = pneg %p305
        %p733 = pneg %p302
        %p734 = scmp.lt.s32.totalorder %s34, 2
        %s735 = scalar_select %p734, %s34, 2
        %s736 = scalar_lea.vmem %s11, %s735
        %p737 = pneg %p331
        %p738 = pneg %p328
        %s739 = sand.u32 %s344, 1
        %s740 = scalar_lea.sflag [#allocation3], %s739
        %s741 = sand.u32 %s344, 1
        %s742 = smul.addr %s741, 32
        %s743 = scalar_lea.vmem [#allocation2], %s742
        %p744 = pneg %p357
        %p745 = pneg %p354
        %s746 = sand.u32 %s370, 1
        %s747 = scalar_lea.sflag [#allocation5], %s746
        %s748 = sand.u32 %s370, 1
        %s749 = smul.addr %s748, 32
        %s750 = scalar_lea.vmem [#allocation4], %s749
        %p751 = pneg %p383
        %p752 = pneg %p380
        %p753 = scmp.lt.s32.totalorder %s34, 2
        %s754 = scalar_select %p753, %s34, 2
        %s755 = scalar_lea.vmem %s14, %s754
        %p756 = pneg %p409
        %p757 = pneg %p406
        %p758 = scmp.lt.s32.totalorder %s34, 2
        %s759 = scalar_select %p758, %s34, 2
        %s760 = smul.addr %s759, 8
        %s761 = smul.addr %s760, 8
        %s762 = scalar_lea.vmem %s15, %s761
        %p763 = pneg %p435
        %p764 = pneg %p432
        %p765 = scmp.lt.s32.totalorder %s34, 2
        %s766 = scalar_select %p765, %s34, 2
        %s767 = scalar_lea.vmem %s16, %s766
        %p768 = pneg %p461
        %p769 = pneg %p458
        %p770 = pneg %p487
        %p771 = pneg %p484
        %p772 = scmp.lt.s32.totalorder %s34, 2
        %s773 = scalar_select %p772, %s34, 2
        %s774 = smul.addr %s773, 4
        %s775 = smul.addr %s774, 8
        %s776 = scalar_lea.vmem %s17, %s775
        %p777 = scmp.lt.s32.totalorder %s34, 2
        %s778 = scalar_select %p777, %s34, 2
        %s779 = smul.addr %s778, 4
        %s780 = smul.addr %s779, 8
        %s781 = scalar_lea.vmem %s0, %s780
        %p782 = scmp.lt.s32.totalorder %s34, 2
        %s783 = scalar_select %p782, %s34, 2
        %s784 = smul.addr %s783, 4
        %s785 = smul.addr %s784, 8
        %s786 = scalar_lea.vmem %s2, %s785
        %s787 = scalar_lea.vmem %s3, 32
        %p788 = scmp.lt.s32.totalorder %s34, 2
        %s789 = scalar_select %p788, %s34, 2
        %s790 = smul.addr %s789, 4
        %s791 = smul.addr %s790, 8
        %s792 = scalar_lea.vmem %s4, %s791
        %p793 = scmp.lt.s32.totalorder %s34, 2
        %s794 = scalar_select %p793, %s34, 2
        %s795 = scalar_lea.vmem %s5, %s794
        %p796 = scmp.lt.s32.totalorder %s34, 2
        %s797 = scalar_select %p796, %s34, 2
        %s798 = smul.addr %s797, 4
        %s799 = smul.addr %s798, 8
        %s800 = scalar_lea.vmem %s6, %s799
        %p801 = scmp.lt.s32.totalorder %s34, 2
        %s802 = scalar_select %p801, %s34, 2
        %s803 = scalar_lea.vmem %s7, %s802
        %p804 = scmp.lt.s32.totalorder %s34, 2
        %s805 = scalar_select %p804, %s34, 2
        %s806 = smul.addr %s805, 4
        %s807 = smul.addr %s806, 8
        %s808 = scalar_lea.vmem %s8, %s807
        %p809 = scmp.lt.s32.totalorder %s34, 2
        %s810 = scalar_select %p809, %s34, 2
        %s811 = scalar_lea.vmem %s9, %s810
        %p812 = scmp.lt.s32.totalorder %s34, 2
        %s813 = scalar_select %p812, %s34, 2
        %s814 = smul.addr %s813, 4
        %s815 = smul.addr %s814, 8
        %s816 = scalar_lea.vmem %s10, %s815
        %p817 = scmp.lt.s32.totalorder %s34, 2
        %s818 = scalar_select %p817, %s34, 2
        %s819 = scalar_lea.vmem %s11, %s818
        %p820 = scmp.lt.s32.totalorder %s34, 2
        %s821 = scalar_select %p820, %s34, 2
        %s822 = scalar_lea.vmem %s14, %s821
        %p823 = scmp.lt.s32.totalorder %s34, 2
        %s824 = scalar_select %p823, %s34, 2
        %s825 = smul.addr %s824, 8
        %s826 = smul.addr %s825, 8
        %s827 = scalar_lea.vmem %s15, %s826
        %p828 = scmp.lt.s32.totalorder %s34, 2
        %s829 = scalar_select %p828, %s34, 2
        %s830 = scalar_lea.vmem %s16, %s829
        %p831 = scmp.lt.s32.totalorder %s34, 2
        %s832 = scalar_select %p831, %s34, 2
        %s833 = smul.addr %s832, 4
        %s834 = smul.addr %s833, 8
        %s835 = scalar_lea.vmem %s17, %s834
        %v836 = vld [vmem:[%s786] sm:$0xff]
        %v837 = vld [vmem:[%s786 + $0x8] sm:$0xff]
        %v838 = vld [vmem:[%s786 + $0x10] sm:$0xff]
        %v839 = vld [vmem:[%s786 + $0x18] sm:$0xff]
        %v840 = vld [vmem:[%s787] sm:$0xff]
        %v841 = vld [vmem:[%s787 + $0x8] sm:$0xff]
        %v842 = vld [vmem:[%s787 + $0x10] sm:$0xff]
        %v843 = vld [vmem:[%s787 + $0x18] sm:$0xff]
        %v844 = vld [vmem:[%s792] sm:$0xff]
        %v845 = vld [vmem:[%s792 + $0x8] sm:$0xff]
        %v846 = vld [vmem:[%s792 + $0x10] sm:$0xff]
        %v847 = vld [vmem:[%s792 + $0x18] sm:$0xff]
        %v848 = vld [vmem:[%s795] sm:$0x1]
        %v850 = vlaneseq
        %v851 = vshrl.u32 %v850, 7
        %v852 = vsub.s32 0, %v851
        %v853 = vrot.slane %v848, %v852
        %vm855 = vcmask 261120
        %v857 = vsel %vm855, %v836, 0
        %v860 = vsel %vm855, %v837, 0
        %v863 = vsel %vm855, %v838, 0
        %v866 = vsel %vm855, %v839, 0
        %868 = vmatprep.subr.mxu0 0.0
        %869 = vmatpush1.msra.mxu0 0.0
        %870 = vmatprep.subr.mxu0 0.0
        %871 = vmatpush1.msra.mxu0 0.0
        %872 = vmatprep.subr.mxu0 0.0
        %873 = vmatpush1.msra.mxu0 0.0
        %874 = vmatprep.subr.mxu0 0.0
        %875 = vmatpush1.msra.mxu0 0.0
        %876 = vmatprep.subr.mxu0 0.0
        %877 = vmatpush1.msra.mxu0 0.0
        %878 = vmatprep.subr.mxu0 0.0
        %879 = vmatpush1.msra.mxu0 0.0
        %880 = vmatprep.subr.mxu0 0.0
        %881 = vmatpush1.msra.mxu0 0.0
        %882 = vmatprep.subr.mxu0 0.0
        %883 = vmatpush1.msra.mxu0 0.0
        %884 = vmatprep.subr.mxu0 0.0
        %885 = vmatpush1.msra.mxu0 0.0
        %886 = vmatprep.subr.mxu0 0.0
        %887 = vmatpush1.msra.mxu0 0.0
        %888 = vmatprep.subr.mxu0 0.0
        %889 = vmatpush1.msra.mxu0 0.0
        %890 = vmatprep.subr.mxu0 0.0
        %891 = vmatpush1.msra.mxu0 0.0
        %892 = vmatprep.subr.mxu0 0.0
        %893 = vmatpush1.msra.mxu0 %v847
        %894 = vmatprep.subr.mxu0 0.0
        %895 = vmatpush1.msra.mxu0 %v846
        %896 = vmatprep.subr.mxu0 0.0
        %897 = vmatpush1.msra.mxu0 %v845
        %898 = vmatprep.subr.mxu0 0.0
        %899 = vmatpush1.msra.mxu0 %v844
        %900 = vmatprep.subr.mxu0 0.0
        %901 = vmatpush2.msra.mxu0 0.0
        %902 = vmatprep.subr.mxu0 0.0
        %903 = vmatpush2.msra.mxu0 0.0
        %904 = vmatprep.subr.mxu0 0.0
        %905 = vmatpush2.msra.mxu0 0.0
        %906 = vmatprep.subr.mxu0 0.0
        %907 = vmatpush2.msra.mxu0 0.0
        %908 = vmatprep.subr.mxu0 0.0
        %909 = vmatpush2.msra.mxu0 0.0
        %910 = vmatprep.subr.mxu0 0.0
        %911 = vmatpush2.msra.mxu0 0.0
        %912 = vmatprep.subr.mxu0 0.0
        %913 = vmatpush2.msra.mxu0 0.0
        %914 = vmatprep.subr.mxu0 0.0
        %915 = vmatpush2.msra.mxu0 0.0
        %916 = vmatprep.subr.mxu0 0.0
        %917 = vmatpush2.msra.mxu0 0.0
        %918 = vmatprep.subr.mxu0 0.0
        %919 = vmatpush2.msra.mxu0 0.0
        %920 = vmatprep.subr.mxu0 0.0
        %921 = vmatpush2.msra.mxu0 0.0
        %922 = vmatprep.subr.mxu0 0.0
        %923 = vmatpush2.msra.mxu0 0.0
        %924 = vmatprep.subr.mxu0 0.0
        %925 = vmatpush2.msra.mxu0 0.0
        %926 = vmatprep.subr.mxu0 0.0
        %927 = vmatpush2.msra.mxu0 0.0
        %928 = vmatprep.subr.mxu0 0.0
        %929 = vmatpush2.msra.mxu0 0.0
        %930 = vmatprep.subr.mxu0 0.0
        %931 = vmatpush2.msra.mxu0 0.0
        %932 = vmatprep.mubr.f32.mxu0 0.0
        %933 = vmatmul.mubr.f32.gmra.mxu0 %v857
        %v934 = vpop.f32.mrf.mxu0
        %v935 = vadd.f32 %v853, %v934
        %v936 = vpop.f32.mrf.mxu0
        %937 = vmatprep.mubr.f32.mxu0 0.0
        %938 = vmatmul.mubr.f32.gmra.mxu0 %v860
        %v939 = vpop.f32.mrf.mxu0
        %v940 = vadd.f32 %v853, %v939
        %v941 = vpop.f32.mrf.mxu0
        %942 = vmatprep.mubr.f32.mxu0 0.0
        %943 = vmatmul.mubr.f32.gmra.mxu0 %v863
        %v944 = vpop.f32.mrf.mxu0
        %v945 = vadd.f32 %v853, %v944
        %v946 = vpop.f32.mrf.mxu0
        %947 = vmatprep.mubr.f32.mxu0 0.0
        %948 = vmatmul.mubr.f32.gmra.mxu0 %v866
        %v949 = vpop.f32.mrf.mxu0
        %v950 = vadd.f32 %v853, %v949
        %v951 = vpop.f32.mrf.mxu0
        %952 = vdwg.mxu0
        %v953 = vld [vmem:[%s800] sm:$0xff]
        %v954 = vld [vmem:[%s800 + $0x8] sm:$0xff]
        %v955 = vld [vmem:[%s800 + $0x10] sm:$0xff]
        %v956 = vld [vmem:[%s800 + $0x18] sm:$0xff]
        %v957 = vld [vmem:[%s803] sm:$0x1]
        %v959 = vlaneseq
        %v960 = vshrl.u32 %v959, 7
        %v961 = vsub.s32 0, %v960
        %v962 = vrot.slane %v957, %v961
        %v965 = vsel %vm855, %v840, 0
        %v968 = vsel %vm855, %v841, 0
        %v971 = vsel %vm855, %v842, 0
        %v974 = vsel %vm855, %v843, 0
        %976 = vmatprep.subr.mxu0 0.0
        %977 = vmatpush1.msra.mxu0 0.0
        %978 = vmatprep.subr.mxu0 0.0
        %979 = vmatpush1.msra.mxu0 0.0
        %980 = vmatprep.subr.mxu0 0.0
        %981 = vmatpush1.msra.mxu0 0.0
        %982 = vmatprep.subr.mxu0 0.0
        %983 = vmatpush1.msra.mxu0 0.0
        %984 = vmatprep.subr.mxu0 0.0
        %985 = vmatpush1.msra.mxu0 0.0
        %986 = vmatprep.subr.mxu0 0.0
        %987 = vmatpush1.msra.mxu0 0.0
        %988 = vmatprep.subr.mxu0 0.0
        %989 = vmatpush1.msra.mxu0 0.0
        %990 = vmatprep.subr.mxu0 0.0
        %991 = vmatpush1.msra.mxu0 0.0
        %992 = vmatprep.subr.mxu0 0.0
        %993 = vmatpush1.msra.mxu0 0.0
        %994 = vmatprep.subr.mxu0 0.0
        %995 = vmatpush1.msra.mxu0 0.0
        %996 = vmatprep.subr.mxu0 0.0
        %997 = vmatpush1.msra.mxu0 0.0
        %998 = vmatprep.subr.mxu0 0.0
        %999 = vmatpush1.msra.mxu0 0.0
        %1000 = vmatprep.subr.mxu0 0.0
        %1001 = vmatpush1.msra.mxu0 %v956
        %1002 = vmatprep.subr.mxu0 0.0
        %1003 = vmatpush1.msra.mxu0 %v955
        %1004 = vmatprep.subr.mxu0 0.0
        %1005 = vmatpush1.msra.mxu0 %v954
        %1006 = vmatprep.subr.mxu0 0.0
        %1007 = vmatpush1.msra.mxu0 %v953
        %1008 = vmatprep.subr.mxu0 0.0
        %1009 = vmatpush2.msra.mxu0 0.0
        %1010 = vmatprep.subr.mxu0 0.0
        %1011 = vmatpush2.msra.mxu0 0.0
        %1012 = vmatprep.subr.mxu0 0.0
        %1013 = vmatpush2.msra.mxu0 0.0
        %1014 = vmatprep.subr.mxu0 0.0
        %1015 = vmatpush2.msra.mxu0 0.0
        %1016 = vmatprep.subr.mxu0 0.0
        %1017 = vmatpush2.msra.mxu0 0.0
        %1018 = vmatprep.subr.mxu0 0.0
        %1019 = vmatpush2.msra.mxu0 0.0
        %1020 = vmatprep.subr.mxu0 0.0
        %1021 = vmatpush2.msra.mxu0 0.0
        %1022 = vmatprep.subr.mxu0 0.0
        %1023 = vmatpush2.msra.mxu0 0.0
        %1024 = vmatprep.subr.mxu0 0.0
        %1025 = vmatpush2.msra.mxu0 0.0
        %1026 = vmatprep.subr.mxu0 0.0
        %1027 = vmatpush2.msra.mxu0 0.0
        %1028 = vmatprep.subr.mxu0 0.0
        %1029 = vmatpush2.msra.mxu0 0.0
        %1030 = vmatprep.subr.mxu0 0.0
        %1031 = vmatpush2.msra.mxu0 0.0
        %1032 = vmatprep.subr.mxu0 0.0
        %1033 = vmatpush2.msra.mxu0 0.0
        %1034 = vmatprep.subr.mxu0 0.0
        %1035 = vmatpush2.msra.mxu0 0.0
        %1036 = vmatprep.subr.mxu0 0.0
        %1037 = vmatpush2.msra.mxu0 0.0
        %1038 = vmatprep.subr.mxu0 0.0
        %1039 = vmatpush2.msra.mxu0 0.0
        %1040 = vmatprep.mubr.f32.mxu0 0.0
        %1041 = vmatmul.mubr.f32.gmra.mxu0 %v965
        %v1042 = vpop.f32.mrf.mxu0
        %v1043 = vadd.f32 %v962, %v1042
        %v1044 = vpop.f32.mrf.mxu0
        %1045 = vmatprep.mubr.f32.mxu0 0.0
        %1046 = vmatmul.mubr.f32.gmra.mxu0 %v968
        %v1047 = vpop.f32.mrf.mxu0
        %v1048 = vadd.f32 %v962, %v1047
        %v1049 = vpop.f32.mrf.mxu0
        %1050 = vmatprep.mubr.f32.mxu0 0.0
        %1051 = vmatmul.mubr.f32.gmra.mxu0 %v971
        %v1052 = vpop.f32.mrf.mxu0
        %v1053 = vadd.f32 %v962, %v1052
        %v1054 = vpop.f32.mrf.mxu0
        %1055 = vmatprep.mubr.f32.mxu0 0.0
        %1056 = vmatmul.mubr.f32.gmra.mxu0 %v974
        %v1057 = vpop.f32.mrf.mxu0
        %v1058 = vadd.f32 %v962, %v1057
        %v1059 = vpop.f32.mrf.mxu0
        %1060 = vdwg.mxu0
        %v1061 = vld [vmem:[%s808] sm:$0xff]
        %v1062 = vld [vmem:[%s808 + $0x8] sm:$0xff]
        %v1063 = vld [vmem:[%s808 + $0x10] sm:$0xff]
        %v1064 = vld [vmem:[%s808 + $0x18] sm:$0xff]
        %v1065 = vld [vmem:[%s811] sm:$0x1]
        %v1067 = vlaneseq
        %v1068 = vshrl.u32 %v1067, 7
        %v1069 = vsub.s32 0, %v1068
        %v1070 = vrot.slane %v1065, %v1069
        %1072 = vmatprep.subr.mxu0 0.0
        %1073 = vmatpush1.msra.mxu0 0.0
        %1074 = vmatprep.subr.mxu0 0.0
        %1075 = vmatpush1.msra.mxu0 0.0
        %1076 = vmatprep.subr.mxu0 0.0
        %1077 = vmatpush1.msra.mxu0 0.0
        %1078 = vmatprep.subr.mxu0 0.0
        %1079 = vmatpush1.msra.mxu0 0.0
        %1080 = vmatprep.subr.mxu0 0.0
        %1081 = vmatpush1.msra.mxu0 0.0
        %1082 = vmatprep.subr.mxu0 0.0
        %1083 = vmatpush1.msra.mxu0 0.0
        %1084 = vmatprep.subr.mxu0 0.0
        %1085 = vmatpush1.msra.mxu0 0.0
        %1086 = vmatprep.subr.mxu0 0.0
        %1087 = vmatpush1.msra.mxu0 0.0
        %1088 = vmatprep.subr.mxu0 0.0
        %1089 = vmatpush1.msra.mxu0 0.0
        %1090 = vmatprep.subr.mxu0 0.0
        %1091 = vmatpush1.msra.mxu0 0.0
        %1092 = vmatprep.subr.mxu0 0.0
        %1093 = vmatpush1.msra.mxu0 0.0
        %1094 = vmatprep.subr.mxu0 0.0
        %1095 = vmatpush1.msra.mxu0 0.0
        %1096 = vmatprep.subr.mxu0 0.0
        %1097 = vmatpush1.msra.mxu0 %v1064
        %1098 = vmatprep.subr.mxu0 0.0
        %1099 = vmatpush1.msra.mxu0 %v1063
        %1100 = vmatprep.subr.mxu0 0.0
        %1101 = vmatpush1.msra.mxu0 %v1062
        %1102 = vmatprep.subr.mxu0 0.0
        %1103 = vmatpush1.msra.mxu0 %v1061
        %1104 = vmatprep.subr.mxu0 0.0
        %1105 = vmatpush2.msra.mxu0 0.0
        %1106 = vmatprep.subr.mxu0 0.0
        %1107 = vmatpush2.msra.mxu0 0.0
        %1108 = vmatprep.subr.mxu0 0.0
        %1109 = vmatpush2.msra.mxu0 0.0
        %1110 = vmatprep.subr.mxu0 0.0
        %1111 = vmatpush2.msra.mxu0 0.0
        %1112 = vmatprep.subr.mxu0 0.0
        %1113 = vmatpush2.msra.mxu0 0.0
        %1114 = vmatprep.subr.mxu0 0.0
        %1115 = vmatpush2.msra.mxu0 0.0
        %1116 = vmatprep.subr.mxu0 0.0
        %1117 = vmatpush2.msra.mxu0 0.0
        %1118 = vmatprep.subr.mxu0 0.0
        %1119 = vmatpush2.msra.mxu0 0.0
        %1120 = vmatprep.subr.mxu0 0.0
        %1121 = vmatpush2.msra.mxu0 0.0
        %1122 = vmatprep.subr.mxu0 0.0
        %1123 = vmatpush2.msra.mxu0 0.0
        %1124 = vmatprep.subr.mxu0 0.0
        %1125 = vmatpush2.msra.mxu0 0.0
        %1126 = vmatprep.subr.mxu0 0.0
        %1127 = vmatpush2.msra.mxu0 0.0
        %1128 = vmatprep.subr.mxu0 0.0
        %1129 = vmatpush2.msra.mxu0 0.0
        %1130 = vmatprep.subr.mxu0 0.0
        %1131 = vmatpush2.msra.mxu0 0.0
        %1132 = vmatprep.subr.mxu0 0.0
        %1133 = vmatpush2.msra.mxu0 0.0
        %1134 = vmatprep.subr.mxu0 0.0
        %1135 = vmatpush2.msra.mxu0 0.0
        %1136 = vmatprep.mubr.f32.mxu0 0.0
        %1137 = vmatmul.mubr.f32.gmra.mxu0 %v965
        %v1138 = vpop.f32.mrf.mxu0
        %v1139 = vadd.f32 %v1070, %v1138
        %v1140 = vpop.f32.mrf.mxu0
        %1141 = vmatprep.mubr.f32.mxu0 0.0
        %1142 = vmatmul.mubr.f32.gmra.mxu0 %v968
        %v1143 = vpop.f32.mrf.mxu0
        %v1144 = vadd.f32 %v1070, %v1143
        %v1145 = vpop.f32.mrf.mxu0
        %1146 = vmatprep.mubr.f32.mxu0 0.0
        %1147 = vmatmul.mubr.f32.gmra.mxu0 %v971
        %v1148 = vpop.f32.mrf.mxu0
        %v1149 = vadd.f32 %v1070, %v1148
        %v1150 = vpop.f32.mrf.mxu0
        %1151 = vmatprep.mubr.f32.mxu0 0.0
        %1152 = vmatmul.mubr.f32.gmra.mxu0 %v974
        %v1153 = vpop.f32.mrf.mxu0
        %v1154 = vadd.f32 %v1070, %v1153
        %v1155 = vpop.f32.mrf.mxu0
        %1156 = vdwg.mxu0
        %v1157 = vld [vmem:[%s781] sm:$0xff]
        %v1158 = vld [vmem:[%s781 + $0x8] sm:$0xff]
        %v1159 = vld [vmem:[%s781 + $0x10] sm:$0xff]
        %v1160 = vld [vmem:[%s781 + $0x18] sm:$0xff]
        %v1161 = vld [vmem:[%s1] sm:$0x3]
        %1163 = vset.pattern.permute.xlu0 0
        %1164 = vperm.xlu0 %1163, %v1157
        %v1165 = vpop.permute.xlu0 %1164
        %1168 = vset.pattern.permute.xlu0 0
        %1169 = vperm.xlu0 %1168, %v1158
        %v1170 = vpop.permute.xlu0 %1169
        %v1172 = vlaneseq
        %v1173 = vshrl.u32 %v1172, 7
        %v1174 = vsub.s32 0, %v1173
        %v1175 = vrot.slane %v1161, %v1174
        %vm1176 = vcmp.gt.f32.partialorder %v1165, 0.0
        %vm1177 = vcmp.gt.f32.partialorder %v1170, 0.0
        %vm1178 = vcmp.gt.f32.partialorder %v1175, 0.0
        %vm1179 = vmand %vm1176, %vm1178
        %vm1180 = vmand %vm1177, %vm1178
        %vm1181 = vcmask 64512
        %v1183 = vsel %vm1181, %v935, 0
        %v1186 = vsel %vm1181, %v940, 0
        %v1189 = vsel %vm1181, %v1043, 0
        %v1192 = vsel %vm1181, %v1048, 0
        %1194 = vmatprep.subr.mxu0 0.0
        %1195 = vmatpush1.xpose.msra.mxu0 0.0
        %1196 = vmatprep.subr.mxu0 0.0
        %1197 = vmatpush1.xpose.msra.mxu0 0.0
        %1198 = vmatprep.subr.mxu0 0.0
        %1199 = vmatpush1.xpose.msra.mxu0 0.0
        %1200 = vmatprep.subr.mxu0 0.0
        %1201 = vmatpush1.xpose.msra.mxu0 0.0
        %1202 = vmatprep.subr.mxu0 0.0
        %1203 = vmatpush1.xpose.msra.mxu0 0.0
        %1204 = vmatprep.subr.mxu0 0.0
        %1205 = vmatpush1.xpose.msra.mxu0 0.0
        %1206 = vmatprep.subr.mxu0 0.0
        %1207 = vmatpush1.xpose.msra.mxu0 0.0
        %1208 = vmatprep.subr.mxu0 0.0
        %1209 = vmatpush1.xpose.msra.mxu0 0.0
        %1210 = vmatprep.subr.mxu0 0.0
        %1211 = vmatpush1.xpose.msra.mxu0 0.0
        %1212 = vmatprep.subr.mxu0 0.0
        %1213 = vmatpush1.xpose.msra.mxu0 0.0
        %1214 = vmatprep.subr.mxu0 0.0
        %1215 = vmatpush1.xpose.msra.mxu0 0.0
        %1216 = vmatprep.subr.mxu0 0.0
        %1217 = vmatpush1.xpose.msra.mxu0 0.0
        %1218 = vmatprep.subr.mxu0 0.0
        %1219 = vmatpush1.xpose.msra.mxu0 0.0
        %1220 = vmatprep.subr.mxu0 0.0
        %1221 = vmatpush1.xpose.msra.mxu0 0.0
        %1222 = vmatprep.subr.mxu0 0.0
        %1223 = vmatpush1.xpose.msra.mxu0 %v1192
        %1224 = vmatprep.subr.mxu0 0.0
        %1225 = vmatpush1.xpose.msra.mxu0 %v1189
        %1226 = vmatprep.subr.mxu0 0.0
        %1227 = vmatpush2.xpose.msra.mxu0 0.0
        %1228 = vmatprep.subr.mxu0 0.0
        %1229 = vmatpush2.xpose.msra.mxu0 0.0
        %1230 = vmatprep.subr.mxu0 0.0
        %1231 = vmatpush2.xpose.msra.mxu0 0.0
        %1232 = vmatprep.subr.mxu0 0.0
        %1233 = vmatpush2.xpose.msra.mxu0 0.0
        %1234 = vmatprep.subr.mxu0 0.0
        %1235 = vmatpush2.xpose.msra.mxu0 0.0
        %1236 = vmatprep.subr.mxu0 0.0
        %1237 = vmatpush2.xpose.msra.mxu0 0.0
        %1238 = vmatprep.subr.mxu0 0.0
        %1239 = vmatpush2.xpose.msra.mxu0 0.0
        %1240 = vmatprep.subr.mxu0 0.0
        %1241 = vmatpush2.xpose.msra.mxu0 0.0
        %1242 = vmatprep.subr.mxu0 0.0
        %1243 = vmatpush2.xpose.msra.mxu0 0.0
        %1244 = vmatprep.subr.mxu0 0.0
        %1245 = vmatpush2.xpose.msra.mxu0 0.0
        %1246 = vmatprep.subr.mxu0 0.0
        %1247 = vmatpush2.xpose.msra.mxu0 0.0
        %1248 = vmatprep.subr.mxu0 0.0
        %1249 = vmatpush2.xpose.msra.mxu0 0.0
        %1250 = vmatprep.subr.mxu0 0.0
        %1251 = vmatpush2.xpose.msra.mxu0 0.0
        %1252 = vmatprep.subr.mxu0 0.0
        %1253 = vmatpush2.xpose.msra.mxu0 0.0
        %1254 = vmatprep.subr.mxu0 0.0
        %1255 = vmatpush2.xpose.msra.mxu0 0.0
        %1256 = vmatprep.subr.mxu0 0.0
        %1257 = vmatpush2.xpose.msra.mxu0 0.0
        %1258 = vmatprep.mubr.f32.mxu0 0.0
        %1259 = vmatmul.mubr.f32.gmra.mxu0 %v1183
        %v1260 = vpop.f32.mrf.mxu0
        %v1261 = vadd.f32 0.0, %v1260
        %v1262 = vpop.f32.mrf.mxu0
        %1263 = vmatprep.mubr.f32.mxu0 0.0
        %1264 = vmatmul.mubr.f32.gmra.mxu0 %v1186
        %v1265 = vpop.f32.mrf.mxu0
        %v1266 = vadd.f32 0.0, %v1265
        %v1267 = vpop.f32.mrf.mxu0
        %1268 = vdwg.mxu0
        %v1269 = vmul.f32 %v1261, 0.35355338
        %v1270 = vmul.f32 %v1266, 0.35355338
        %v1271 = vsel %vm1179, %v1269, -1e+09
        %v1272 = vsel %vm1180, %v1270, -1e+09
        %vm1273 = vcmask 130048
        %v1274 = vsel %vm1273, %v1271, -inf
        %1275 = vmax.xlane.f32.xlu0 %v1274
        %v1276 = vpop.xlane.xlu0 %1275
        %v1277 = vsel %vm1273, %v1272, -inf
        %1278 = vmax.xlane.f32.xlu0 %v1277
        %v1279 = vpop.xlane.xlu0 %1278
        %v1280 = vsub.f32 %v1271, %v1276
        %v1281 = vsub.f32 %v1272, %v1279
        %v1282 = vmul.f32 %v1280, 1.442695
        %v1283 = vpow.pop %v1282
        %v1284 = vmul.f32 %v1281, 1.442695
        %v1285 = vpow.pop %v1284
        %v1286 = vsel %vm1273, %v1283, 0.0
        %1287 = vadd.xlane.f32.xlu0 %v1286
        %v1288 = vpop.xlane.xlu0 %1287
        %v1289 = vsel %vm1273, %v1285, 0.0
        %1290 = vadd.xlane.f32.xlu0 %v1289
        %v1291 = vpop.xlane.xlu0 %1290
        %v1292 = vrcp.pop %v1288
        %v1293 = vmul.f32 %v1283, %v1292
        %v1294 = vrcp.pop %v1291
        %v1295 = vmul.f32 %v1285, %v1294
        %v1297 = vsel %vm1273, %v1293, 0
        %v1300 = vsel %vm1273, %v1295, 0
        %1302 = vmatprep.subr.mxu0 0.0
        %1303 = vmatpush1.msra.mxu0 0.0
        %1304 = vmatprep.subr.mxu0 0.0
        %1305 = vmatpush1.msra.mxu0 0.0
        %1306 = vmatprep.subr.mxu0 0.0
        %1307 = vmatpush1.msra.mxu0 0.0
        %1308 = vmatprep.subr.mxu0 0.0
        %1309 = vmatpush1.msra.mxu0 0.0
        %1310 = vmatprep.subr.mxu0 0.0
        %1311 = vmatpush1.msra.mxu0 0.0
        %1312 = vmatprep.subr.mxu0 0.0
        %1313 = vmatpush1.msra.mxu0 0.0
        %1314 = vmatprep.subr.mxu0 0.0
        %1315 = vmatpush1.msra.mxu0 0.0
        %1316 = vmatprep.subr.mxu0 0.0
        %1317 = vmatpush1.msra.mxu0 0.0
        %1318 = vmatprep.subr.mxu0 0.0
        %1319 = vmatpush1.msra.mxu0 0.0
        %1320 = vmatprep.subr.mxu0 0.0
        %1321 = vmatpush1.msra.mxu0 0.0
        %1322 = vmatprep.subr.mxu0 0.0
        %1323 = vmatpush1.msra.mxu0 0.0
        %1324 = vmatprep.subr.mxu0 0.0
        %1325 = vmatpush1.msra.mxu0 0.0
        %1326 = vmatprep.subr.mxu0 0.0
        %1327 = vmatpush1.msra.mxu0 0.0
        %1328 = vmatprep.subr.mxu0 0.0
        %1329 = vmatpush1.msra.mxu0 0.0
        %1330 = vmatprep.subr.mxu0 0.0
        %1331 = vmatpush1.msra.mxu0 %v1144
        %1332 = vmatprep.subr.mxu0 0.0
        %1333 = vmatpush1.msra.mxu0 %v1139
        %1334 = vmatprep.subr.mxu0 0.0
        %1335 = vmatpush2.msra.mxu0 0.0
        %1336 = vmatprep.subr.mxu0 0.0
        %1337 = vmatpush2.msra.mxu0 0.0
        %1338 = vmatprep.subr.mxu0 0.0
        %1339 = vmatpush2.msra.mxu0 0.0
        %1340 = vmatprep.subr.mxu0 0.0
        %1341 = vmatpush2.msra.mxu0 0.0
        %1342 = vmatprep.subr.mxu0 0.0
        %1343 = vmatpush2.msra.mxu0 0.0
        %1344 = vmatprep.subr.mxu0 0.0
        %1345 = vmatpush2.msra.mxu0 0.0
        %1346 = vmatprep.subr.mxu0 0.0
        %1347 = vmatpush2.msra.mxu0 0.0
        %1348 = vmatprep.subr.mxu0 0.0
        %1349 = vmatpush2.msra.mxu0 0.0
        %1350 = vmatprep.subr.mxu0 0.0
        %1351 = vmatpush2.msra.mxu0 0.0
        %1352 = vmatprep.subr.mxu0 0.0
        %1353 = vmatpush2.msra.mxu0 0.0
        %1354 = vmatprep.subr.mxu0 0.0
        %1355 = vmatpush2.msra.mxu0 0.0
        %1356 = vmatprep.subr.mxu0 0.0
        %1357 = vmatpush2.msra.mxu0 0.0
        %1358 = vmatprep.subr.mxu0 0.0
        %1359 = vmatpush2.msra.mxu0 0.0
        %1360 = vmatprep.subr.mxu0 0.0
        %1361 = vmatpush2.msra.mxu0 0.0
        %1362 = vmatprep.subr.mxu0 0.0
        %1363 = vmatpush2.msra.mxu0 0.0
        %1364 = vmatprep.subr.mxu0 0.0
        %1365 = vmatpush2.msra.mxu0 0.0
        %1366 = vmatprep.mubr.f32.mxu0 0.0
        %1367 = vmatmul.mubr.f32.gmra.mxu0 %v1297
        %v1368 = vpop.f32.mrf.mxu0
        %v1369 = vadd.f32 0.0, %v1368
        %v1370 = vpop.f32.mrf.mxu0
        %1371 = vmatprep.mubr.f32.mxu0 0.0
        %1372 = vmatmul.mubr.f32.gmra.mxu0 %v1300
        %v1373 = vpop.f32.mrf.mxu0
        %v1374 = vadd.f32 0.0, %v1373
        %v1375 = vpop.f32.mrf.mxu0
        %1376 = vdwg.mxu0
        %1377 = vrot.lane.b32.xlu0 %v935, 120
        %v1378 = vpop.permute.xlu0 %1377
        %1379 = vrot.lane.b32.xlu0 %v940, 120
        %v1380 = vpop.permute.xlu0 %1379
        %1381 = vrot.lane.b32.xlu0 %v1043, 120
        %v1382 = vpop.permute.xlu0 %1381
        %1383 = vrot.lane.b32.xlu0 %v1048, 120
        %v1384 = vpop.permute.xlu0 %1383
        %v1385 = vsel %vm1181, %v1378, 0
        %v1387 = vsel %vm1181, %v1380, 0
        %v1389 = vsel %vm1181, %v1382, 0
        %v1391 = vsel %vm1181, %v1384, 0
        %1393 = vmatprep.subr.mxu0 0.0
        %1394 = vmatpush1.xpose.msra.mxu0 0.0
        %1395 = vmatprep.subr.mxu0 0.0
        %1396 = vmatpush1.xpose.msra.mxu0 0.0
        %1397 = vmatprep.subr.mxu0 0.0
        %1398 = vmatpush1.xpose.msra.mxu0 0.0
        %1399 = vmatprep.subr.mxu0 0.0
        %1400 = vmatpush1.xpose.msra.mxu0 0.0
        %1401 = vmatprep.subr.mxu0 0.0
        %1402 = vmatpush1.xpose.msra.mxu0 0.0
        %1403 = vmatprep.subr.mxu0 0.0
        %1404 = vmatpush1.xpose.msra.mxu0 0.0
        %1405 = vmatprep.subr.mxu0 0.0
        %1406 = vmatpush1.xpose.msra.mxu0 0.0
        %1407 = vmatprep.subr.mxu0 0.0
        %1408 = vmatpush1.xpose.msra.mxu0 0.0
        %1409 = vmatprep.subr.mxu0 0.0
        %1410 = vmatpush1.xpose.msra.mxu0 0.0
        %1411 = vmatprep.subr.mxu0 0.0
        %1412 = vmatpush1.xpose.msra.mxu0 0.0
        %1413 = vmatprep.subr.mxu0 0.0
        %1414 = vmatpush1.xpose.msra.mxu0 0.0
        %1415 = vmatprep.subr.mxu0 0.0
        %1416 = vmatpush1.xpose.msra.mxu0 0.0
        %1417 = vmatprep.subr.mxu0 0.0
        %1418 = vmatpush1.xpose.msra.mxu0 0.0
        %1419 = vmatprep.subr.mxu0 0.0
        %1420 = vmatpush1.xpose.msra.mxu0 0.0
        %1421 = vmatprep.subr.mxu0 0.0
        %1422 = vmatpush1.xpose.msra.mxu0 %v1391
        %1423 = vmatprep.subr.mxu0 0.0
        %1424 = vmatpush1.xpose.msra.mxu0 %v1389
        %1425 = vmatprep.subr.mxu0 0.0
        %1426 = vmatpush2.xpose.msra.mxu0 0.0
        %1427 = vmatprep.subr.mxu0 0.0
        %1428 = vmatpush2.xpose.msra.mxu0 0.0
        %1429 = vmatprep.subr.mxu0 0.0
        %1430 = vmatpush2.xpose.msra.mxu0 0.0
        %1431 = vmatprep.subr.mxu0 0.0
        %1432 = vmatpush2.xpose.msra.mxu0 0.0
        %1433 = vmatprep.subr.mxu0 0.0
        %1434 = vmatpush2.xpose.msra.mxu0 0.0
        %1435 = vmatprep.subr.mxu0 0.0
        %1436 = vmatpush2.xpose.msra.mxu0 0.0
        %1437 = vmatprep.subr.mxu0 0.0
        %1438 = vmatpush2.xpose.msra.mxu0 0.0
        %1439 = vmatprep.subr.mxu0 0.0
        %1440 = vmatpush2.xpose.msra.mxu0 0.0
        %1441 = vmatprep.subr.mxu0 0.0
        %1442 = vmatpush2.xpose.msra.mxu0 0.0
        %1443 = vmatprep.subr.mxu0 0.0
        %1444 = vmatpush2.xpose.msra.mxu0 0.0
        %1445 = vmatprep.subr.mxu0 0.0
        %1446 = vmatpush2.xpose.msra.mxu0 0.0
        %1447 = vmatprep.subr.mxu0 0.0
        %1448 = vmatpush2.xpose.msra.mxu0 0.0
        %1449 = vmatprep.subr.mxu0 0.0
        %1450 = vmatpush2.xpose.msra.mxu0 0.0
        %1451 = vmatprep.subr.mxu0 0.0
        %1452 = vmatpush2.xpose.msra.mxu0 0.0
        %1453 = vmatprep.subr.mxu0 0.0
        %1454 = vmatpush2.xpose.msra.mxu0 0.0
        %1455 = vmatprep.subr.mxu0 0.0
        %1456 = vmatpush2.xpose.msra.mxu0 0.0
        %1457 = vmatprep.mubr.f32.mxu0 0.0
        %1458 = vmatmul.mubr.f32.gmra.mxu0 %v1385
        %v1459 = vpop.f32.mrf.mxu0
        %v1460 = vadd.f32 0.0, %v1459
        %v1461 = vpop.f32.mrf.mxu0
        %1462 = vmatprep.mubr.f32.mxu0 0.0
        %1463 = vmatmul.mubr.f32.gmra.mxu0 %v1387
        %v1464 = vpop.f32.mrf.mxu0
        %v1465 = vadd.f32 0.0, %v1464
        %v1466 = vpop.f32.mrf.mxu0
        %1467 = vdwg.mxu0
        %v1468 = vmul.f32 %v1460, 0.35355338
        %v1469 = vmul.f32 %v1465, 0.35355338
        %v1470 = vsel %vm1179, %v1468, -1e+09
        %v1471 = vsel %vm1180, %v1469, -1e+09
        %v1472 = vsel %vm1273, %v1470, -inf
        %1473 = vmax.xlane.f32.xlu0 %v1472
        %v1474 = vpop.xlane.xlu0 %1473
        %v1475 = vsel %vm1273, %v1471, -inf
        %1476 = vmax.xlane.f32.xlu0 %v1475
        %v1477 = vpop.xlane.xlu0 %1476
        %v1478 = vsub.f32 %v1470, %v1474
        %v1479 = vsub.f32 %v1471, %v1477
        %v1480 = vmul.f32 %v1478, 1.442695
        %v1481 = vpow.pop %v1480
        %v1482 = vmul.f32 %v1479, 1.442695
        %v1483 = vpow.pop %v1482
        %v1484 = vsel %vm1273, %v1481, 0.0
        %1485 = vadd.xlane.f32.xlu0 %v1484
        %v1486 = vpop.xlane.xlu0 %1485
        %v1487 = vsel %vm1273, %v1483, 0.0
        %1488 = vadd.xlane.f32.xlu0 %v1487
        %v1489 = vpop.xlane.xlu0 %1488
        %v1490 = vrcp.pop %v1486
        %v1491 = vmul.f32 %v1481, %v1490
        %v1492 = vrcp.pop %v1489
        %v1493 = vmul.f32 %v1483, %v1492
        %1496 = vrot.lane.b32.xlu0 %v1139, 120
        %v1497 = vpop.permute.xlu0 %1496
        %1498 = vrot.lane.b32.xlu0 %v1144, 120
        %v1499 = vpop.permute.xlu0 %1498
        %v1503 = vsel %vm1273, %v1491, 0
        %v1506 = vsel %vm1273, %v1493, 0
        %1508 = vmatprep.subr.mxu0 0.0
        %1509 = vmatpush1.msra.mxu0 0.0
        %1510 = vmatprep.subr.mxu0 0.0
        %1511 = vmatpush1.msra.mxu0 0.0
        %1512 = vmatprep.subr.mxu0 0.0
        %1513 = vmatpush1.msra.mxu0 0.0
        %1514 = vmatprep.subr.mxu0 0.0
        %1515 = vmatpush1.msra.mxu0 0.0
        %1516 = vmatprep.subr.mxu0 0.0
        %1517 = vmatpush1.msra.mxu0 0.0
        %1518 = vmatprep.subr.mxu0 0.0
        %1519 = vmatpush1.msra.mxu0 0.0
        %1520 = vmatprep.subr.mxu0 0.0
        %1521 = vmatpush1.msra.mxu0 0.0
        %1522 = vmatprep.subr.mxu0 0.0
        %1523 = vmatpush1.msra.mxu0 0.0
        %1524 = vmatprep.subr.mxu0 0.0
        %1525 = vmatpush1.msra.mxu0 0.0
        %1526 = vmatprep.subr.mxu0 0.0
        %1527 = vmatpush1.msra.mxu0 0.0
        %1528 = vmatprep.subr.mxu0 0.0
        %1529 = vmatpush1.msra.mxu0 0.0
        %1530 = vmatprep.subr.mxu0 0.0
        %1531 = vmatpush1.msra.mxu0 0.0
        %1532 = vmatprep.subr.mxu0 0.0
        %1533 = vmatpush1.msra.mxu0 0.0
        %1534 = vmatprep.subr.mxu0 0.0
        %1535 = vmatpush1.msra.mxu0 0.0
        %1536 = vmatprep.subr.mxu0 0.0
        %1537 = vmatpush1.msra.mxu0 %v1499
        %1538 = vmatprep.subr.mxu0 0.0
        %1539 = vmatpush1.msra.mxu0 %v1497
        %1540 = vmatprep.subr.mxu0 0.0
        %1541 = vmatpush2.msra.mxu0 0.0
        %1542 = vmatprep.subr.mxu0 0.0
        %1543 = vmatpush2.msra.mxu0 0.0
        %1544 = vmatprep.subr.mxu0 0.0
        %1545 = vmatpush2.msra.mxu0 0.0
        %1546 = vmatprep.subr.mxu0 0.0
        %1547 = vmatpush2.msra.mxu0 0.0
        %1548 = vmatprep.subr.mxu0 0.0
        %1549 = vmatpush2.msra.mxu0 0.0
        %1550 = vmatprep.subr.mxu0 0.0
        %1551 = vmatpush2.msra.mxu0 0.0
        %1552 = vmatprep.subr.mxu0 0.0
        %1553 = vmatpush2.msra.mxu0 0.0
        %1554 = vmatprep.subr.mxu0 0.0
        %1555 = vmatpush2.msra.mxu0 0.0
        %1556 = vmatprep.subr.mxu0 0.0
        %1557 = vmatpush2.msra.mxu0 0.0
        %1558 = vmatprep.subr.mxu0 0.0
        %1559 = vmatpush2.msra.mxu0 0.0
        %1560 = vmatprep.subr.mxu0 0.0
        %1561 = vmatpush2.msra.mxu0 0.0
        %1562 = vmatprep.subr.mxu0 0.0
        %1563 = vmatpush2.msra.mxu0 0.0
        %1564 = vmatprep.subr.mxu0 0.0
        %1565 = vmatpush2.msra.mxu0 0.0
        %1566 = vmatprep.subr.mxu0 0.0
        %1567 = vmatpush2.msra.mxu0 0.0
        %1568 = vmatprep.subr.mxu0 0.0
        %1569 = vmatpush2.msra.mxu0 0.0
        %1570 = vmatprep.subr.mxu0 0.0
        %1571 = vmatpush2.msra.mxu0 0.0
        %1572 = vmatprep.mubr.f32.mxu0 0.0
        %1573 = vmatmul.mubr.f32.gmra.mxu0 %v1503
        %v1574 = vpop.f32.mrf.mxu0
        %v1575 = vadd.f32 0.0, %v1574
        %v1576 = vpop.f32.mrf.mxu0
        %1577 = vmatprep.mubr.f32.mxu0 0.0
        %1578 = vmatmul.mubr.f32.gmra.mxu0 %v1506
        %v1579 = vpop.f32.mrf.mxu0
        %v1580 = vadd.f32 0.0, %v1579
        %v1581 = vpop.f32.mrf.mxu0
        %1582 = vdwg.mxu0
        %1583 = vrot.lane.b32.xlu0 %v935, 112
        %v1584 = vpop.permute.xlu0 %1583
        %1585 = vrot.lane.b32.xlu0 %v940, 112
        %v1586 = vpop.permute.xlu0 %1585
        %1587 = vrot.lane.b32.xlu0 %v1043, 112
        %v1588 = vpop.permute.xlu0 %1587
        %1589 = vrot.lane.b32.xlu0 %v1048, 112
        %v1590 = vpop.permute.xlu0 %1589
        %v1591 = vsel %vm1181, %v1584, 0
        %v1593 = vsel %vm1181, %v1586, 0
        %v1595 = vsel %vm1181, %v1588, 0
        %v1597 = vsel %vm1181, %v1590, 0
        %1599 = vmatprep.subr.mxu0 0.0
        %1600 = vmatpush1.xpose.msra.mxu0 0.0
        %1601 = vmatprep.subr.mxu0 0.0
        %1602 = vmatpush1.xpose.msra.mxu0 0.0
        %1603 = vmatprep.subr.mxu0 0.0
        %1604 = vmatpush1.xpose.msra.mxu0 0.0
        %1605 = vmatprep.subr.mxu0 0.0
        %1606 = vmatpush1.xpose.msra.mxu0 0.0
        %1607 = vmatprep.subr.mxu0 0.0
        %1608 = vmatpush1.xpose.msra.mxu0 0.0
        %1609 = vmatprep.subr.mxu0 0.0
        %1610 = vmatpush1.xpose.msra.mxu0 0.0
        %1611 = vmatprep.subr.mxu0 0.0
        %1612 = vmatpush1.xpose.msra.mxu0 0.0
        %1613 = vmatprep.subr.mxu0 0.0
        %1614 = vmatpush1.xpose.msra.mxu0 0.0
        %1615 = vmatprep.subr.mxu0 0.0
        %1616 = vmatpush1.xpose.msra.mxu0 0.0
        %1617 = vmatprep.subr.mxu0 0.0
        %1618 = vmatpush1.xpose.msra.mxu0 0.0
        %1619 = vmatprep.subr.mxu0 0.0
        %1620 = vmatpush1.xpose.msra.mxu0 0.0
        %1621 = vmatprep.subr.mxu0 0.0
        %1622 = vmatpush1.xpose.msra.mxu0 0.0
        %1623 = vmatprep.subr.mxu0 0.0
        %1624 = vmatpush1.xpose.msra.mxu0 0.0
        %1625 = vmatprep.subr.mxu0 0.0
        %1626 = vmatpush1.xpose.msra.mxu0 0.0
        %1627 = vmatprep.subr.mxu0 0.0
        %1628 = vmatpush1.xpose.msra.mxu0 %v1597
        %1629 = vmatprep.subr.mxu0 0.0
        %1630 = vmatpush1.xpose.msra.mxu0 %v1595
        %1631 = vmatprep.subr.mxu0 0.0
        %1632 = vmatpush2.xpose.msra.mxu0 0.0
        %1633 = vmatprep.subr.mxu0 0.0
        %1634 = vmatpush2.xpose.msra.mxu0 0.0
        %1635 = vmatprep.subr.mxu0 0.0
        %1636 = vmatpush2.xpose.msra.mxu0 0.0
        %1637 = vmatprep.subr.mxu0 0.0
        %1638 = vmatpush2.xpose.msra.mxu0 0.0
        %1639 = vmatprep.subr.mxu0 0.0
        %1640 = vmatpush2.xpose.msra.mxu0 0.0
        %1641 = vmatprep.subr.mxu0 0.0
        %1642 = vmatpush2.xpose.msra.mxu0 0.0
        %1643 = vmatprep.subr.mxu0 0.0
        %1644 = vmatpush2.xpose.msra.mxu0 0.0
        %1645 = vmatprep.subr.mxu0 0.0
        %1646 = vmatpush2.xpose.msra.mxu0 0.0
        %1647 = vmatprep.subr.mxu0 0.0
        %1648 = vmatpush2.xpose.msra.mxu0 0.0
        %1649 = vmatprep.subr.mxu0 0.0
        %1650 = vmatpush2.xpose.msra.mxu0 0.0
        %1651 = vmatprep.subr.mxu0 0.0
        %1652 = vmatpush2.xpose.msra.mxu0 0.0
        %1653 = vmatprep.subr.mxu0 0.0
        %1654 = vmatpush2.xpose.msra.mxu0 0.0
        %1655 = vmatprep.subr.mxu0 0.0
        %1656 = vmatpush2.xpose.msra.mxu0 0.0
        %1657 = vmatprep.subr.mxu0 0.0
        %1658 = vmatpush2.xpose.msra.mxu0 0.0
        %1659 = vmatprep.subr.mxu0 0.0
        %1660 = vmatpush2.xpose.msra.mxu0 0.0
        %1661 = vmatprep.subr.mxu0 0.0
        %1662 = vmatpush2.xpose.msra.mxu0 0.0
        %1663 = vmatprep.mubr.f32.mxu0 0.0
        %1664 = vmatmul.mubr.f32.gmra.mxu0 %v1591
        %v1665 = vpop.f32.mrf.mxu0
        %v1666 = vadd.f32 0.0, %v1665
        %v1667 = vpop.f32.mrf.mxu0
        %1668 = vmatprep.mubr.f32.mxu0 0.0
        %1669 = vmatmul.mubr.f32.gmra.mxu0 %v1593
        %v1670 = vpop.f32.mrf.mxu0
        %v1671 = vadd.f32 0.0, %v1670
        %v1672 = vpop.f32.mrf.mxu0
        %1673 = vdwg.mxu0
        %v1674 = vmul.f32 %v1666, 0.35355338
        %v1675 = vmul.f32 %v1671, 0.35355338
        %v1676 = vsel %vm1179, %v1674, -1e+09
        %v1677 = vsel %vm1180, %v1675, -1e+09
        %v1678 = vsel %vm1273, %v1676, -inf
        %1679 = vmax.xlane.f32.xlu0 %v1678
        %v1680 = vpop.xlane.xlu0 %1679
        %v1681 = vsel %vm1273, %v1677, -inf
        %1682 = vmax.xlane.f32.xlu0 %v1681
        %v1683 = vpop.xlane.xlu0 %1682
        %v1684 = vsub.f32 %v1676, %v1680
        %v1685 = vsub.f32 %v1677, %v1683
        %v1686 = vmul.f32 %v1684, 1.442695
        %v1687 = vpow.pop %v1686
        %v1688 = vmul.f32 %v1685, 1.442695
        %v1689 = vpow.pop %v1688
        %v1690 = vsel %vm1273, %v1687, 0.0
        %1691 = vadd.xlane.f32.xlu0 %v1690
        %v1692 = vpop.xlane.xlu0 %1691
        %v1693 = vsel %vm1273, %v1689, 0.0
        %1694 = vadd.xlane.f32.xlu0 %v1693
        %v1695 = vpop.xlane.xlu0 %1694
        %v1696 = vrcp.pop %v1692
        %v1697 = vmul.f32 %v1687, %v1696
        %v1698 = vrcp.pop %v1695
        %v1699 = vmul.f32 %v1689, %v1698
        %1700 = vrot.lane.b32.xlu0 %v1139, 112
        %v1701 = vpop.permute.xlu0 %1700
        %1702 = vrot.lane.b32.xlu0 %v1144, 112
        %v1703 = vpop.permute.xlu0 %1702
        %v1707 = vsel %vm1273, %v1697, 0
        %v1710 = vsel %vm1273, %v1699, 0
        %1712 = vmatprep.subr.mxu0 0.0
        %1713 = vmatpush1.msra.mxu0 0.0
        %1714 = vmatprep.subr.mxu0 0.0
        %1715 = vmatpush1.msra.mxu0 0.0
        %1716 = vmatprep.subr.mxu0 0.0
        %1717 = vmatpush1.msra.mxu0 0.0
        %1718 = vmatprep.subr.mxu0 0.0
        %1719 = vmatpush1.msra.mxu0 0.0
        %1720 = vmatprep.subr.mxu0 0.0
        %1721 = vmatpush1.msra.mxu0 0.0
        %1722 = vmatprep.subr.mxu0 0.0
        %1723 = vmatpush1.msra.mxu0 0.0
        %1724 = vmatprep.subr.mxu0 0.0
        %1725 = vmatpush1.msra.mxu0 0.0
        %1726 = vmatprep.subr.mxu0 0.0
        %1727 = vmatpush1.msra.mxu0 0.0
        %1728 = vmatprep.subr.mxu0 0.0
        %1729 = vmatpush1.msra.mxu0 0.0
        %1730 = vmatprep.subr.mxu0 0.0
        %1731 = vmatpush1.msra.mxu0 0.0
        %1732 = vmatprep.subr.mxu0 0.0
        %1733 = vmatpush1.msra.mxu0 0.0
        %1734 = vmatprep.subr.mxu0 0.0
        %1735 = vmatpush1.msra.mxu0 0.0
        %1736 = vmatprep.subr.mxu0 0.0
        %1737 = vmatpush1.msra.mxu0 0.0
        %1738 = vmatprep.subr.mxu0 0.0
        %1739 = vmatpush1.msra.mxu0 0.0
        %1740 = vmatprep.subr.mxu0 0.0
        %1741 = vmatpush1.msra.mxu0 %v1703
        %1742 = vmatprep.subr.mxu0 0.0
        %1743 = vmatpush1.msra.mxu0 %v1701
        %1744 = vmatprep.subr.mxu0 0.0
        %1745 = vmatpush2.msra.mxu0 0.0
        %1746 = vmatprep.subr.mxu0 0.0
        %1747 = vmatpush2.msra.mxu0 0.0
        %1748 = vmatprep.subr.mxu0 0.0
        %1749 = vmatpush2.msra.mxu0 0.0
        %1750 = vmatprep.subr.mxu0 0.0
        %1751 = vmatpush2.msra.mxu0 0.0
        %1752 = vmatprep.subr.mxu0 0.0
        %1753 = vmatpush2.msra.mxu0 0.0
        %1754 = vmatprep.subr.mxu0 0.0
        %1755 = vmatpush2.msra.mxu0 0.0
        %1756 = vmatprep.subr.mxu0 0.0
        %1757 = vmatpush2.msra.mxu0 0.0
        %1758 = vmatprep.subr.mxu0 0.0
        %1759 = vmatpush2.msra.mxu0 0.0
        %1760 = vmatprep.subr.mxu0 0.0
        %1761 = vmatpush2.msra.mxu0 0.0
        %1762 = vmatprep.subr.mxu0 0.0
        %1763 = vmatpush2.msra.mxu0 0.0
        %1764 = vmatprep.subr.mxu0 0.0
        %1765 = vmatpush2.msra.mxu0 0.0
        %1766 = vmatprep.subr.mxu0 0.0
        %1767 = vmatpush2.msra.mxu0 0.0
        %1768 = vmatprep.subr.mxu0 0.0
        %1769 = vmatpush2.msra.mxu0 0.0
        %1770 = vmatprep.subr.mxu0 0.0
        %1771 = vmatpush2.msra.mxu0 0.0
        %1772 = vmatprep.subr.mxu0 0.0
        %1773 = vmatpush2.msra.mxu0 0.0
        %1774 = vmatprep.subr.mxu0 0.0
        %1775 = vmatpush2.msra.mxu0 0.0
        %1776 = vmatprep.mubr.f32.mxu0 0.0
        %1777 = vmatmul.mubr.f32.gmra.mxu0 %v1707
        %v1778 = vpop.f32.mrf.mxu0
        %v1779 = vadd.f32 0.0, %v1778
        %v1780 = vpop.f32.mrf.mxu0
        %1781 = vmatprep.mubr.f32.mxu0 0.0
        %1782 = vmatmul.mubr.f32.gmra.mxu0 %v1710
        %v1783 = vpop.f32.mrf.mxu0
        %v1784 = vadd.f32 0.0, %v1783
        %v1785 = vpop.f32.mrf.mxu0
        %1786 = vdwg.mxu0
        %1787 = vrot.lane.b32.xlu0 %v935, 104
        %v1788 = vpop.permute.xlu0 %1787
        %1789 = vrot.lane.b32.xlu0 %v940, 104
        %v1790 = vpop.permute.xlu0 %1789
        %1791 = vrot.lane.b32.xlu0 %v1043, 104
        %v1792 = vpop.permute.xlu0 %1791
        %1793 = vrot.lane.b32.xlu0 %v1048, 104
        %v1794 = vpop.permute.xlu0 %1793
        %v1795 = vsel %vm1181, %v1788, 0
        %v1797 = vsel %vm1181, %v1790, 0
        %v1799 = vsel %vm1181, %v1792, 0
        %v1801 = vsel %vm1181, %v1794, 0
        %1803 = vmatprep.subr.mxu0 0.0
        %1804 = vmatpush1.xpose.msra.mxu0 0.0
        %1805 = vmatprep.subr.mxu0 0.0
        %1806 = vmatpush1.xpose.msra.mxu0 0.0
        %1807 = vmatprep.subr.mxu0 0.0
        %1808 = vmatpush1.xpose.msra.mxu0 0.0
        %1809 = vmatprep.subr.mxu0 0.0
        %1810 = vmatpush1.xpose.msra.mxu0 0.0
        %1811 = vmatprep.subr.mxu0 0.0
        %1812 = vmatpush1.xpose.msra.mxu0 0.0
        %1813 = vmatprep.subr.mxu0 0.0
        %1814 = vmatpush1.xpose.msra.mxu0 0.0
        %1815 = vmatprep.subr.mxu0 0.0
        %1816 = vmatpush1.xpose.msra.mxu0 0.0
        %1817 = vmatprep.subr.mxu0 0.0
        %1818 = vmatpush1.xpose.msra.mxu0 0.0
        %1819 = vmatprep.subr.mxu0 0.0
        %1820 = vmatpush1.xpose.msra.mxu0 0.0
        %1821 = vmatprep.subr.mxu0 0.0
        %1822 = vmatpush1.xpose.msra.mxu0 0.0
        %1823 = vmatprep.subr.mxu0 0.0
        %1824 = vmatpush1.xpose.msra.mxu0 0.0
        %1825 = vmatprep.subr.mxu0 0.0
        %1826 = vmatpush1.xpose.msra.mxu0 0.0
        %1827 = vmatprep.subr.mxu0 0.0
        %1828 = vmatpush1.xpose.msra.mxu0 0.0
        %1829 = vmatprep.subr.mxu0 0.0
        %1830 = vmatpush1.xpose.msra.mxu0 0.0
        %1831 = vmatprep.subr.mxu0 0.0
        %1832 = vmatpush1.xpose.msra.mxu0 %v1801
        %1833 = vmatprep.subr.mxu0 0.0
        %1834 = vmatpush1.xpose.msra.mxu0 %v1799
        %1835 = vmatprep.subr.mxu0 0.0
        %1836 = vmatpush2.xpose.msra.mxu0 0.0
        %1837 = vmatprep.subr.mxu0 0.0
        %1838 = vmatpush2.xpose.msra.mxu0 0.0
        %1839 = vmatprep.subr.mxu0 0.0
        %1840 = vmatpush2.xpose.msra.mxu0 0.0
        %1841 = vmatprep.subr.mxu0 0.0
        %1842 = vmatpush2.xpose.msra.mxu0 0.0
        %1843 = vmatprep.subr.mxu0 0.0
        %1844 = vmatpush2.xpose.msra.mxu0 0.0
        %1845 = vmatprep.subr.mxu0 0.0
        %1846 = vmatpush2.xpose.msra.mxu0 0.0
        %1847 = vmatprep.subr.mxu0 0.0
        %1848 = vmatpush2.xpose.msra.mxu0 0.0
        %1849 = vmatprep.subr.mxu0 0.0
        %1850 = vmatpush2.xpose.msra.mxu0 0.0
        %1851 = vmatprep.subr.mxu0 0.0
        %1852 = vmatpush2.xpose.msra.mxu0 0.0
        %1853 = vmatprep.subr.mxu0 0.0
        %1854 = vmatpush2.xpose.msra.mxu0 0.0
        %1855 = vmatprep.subr.mxu0 0.0
        %1856 = vmatpush2.xpose.msra.mxu0 0.0
        %1857 = vmatprep.subr.mxu0 0.0
        %1858 = vmatpush2.xpose.msra.mxu0 0.0
        %1859 = vmatprep.subr.mxu0 0.0
        %1860 = vmatpush2.xpose.msra.mxu0 0.0
        %1861 = vmatprep.subr.mxu0 0.0
        %1862 = vmatpush2.xpose.msra.mxu0 0.0
        %1863 = vmatprep.subr.mxu0 0.0
        %1864 = vmatpush2.xpose.msra.mxu0 0.0
        %1865 = vmatprep.subr.mxu0 0.0
        %1866 = vmatpush2.xpose.msra.mxu0 0.0
        %1867 = vmatprep.mubr.f32.mxu0 0.0
        %1868 = vmatmul.mubr.f32.gmra.mxu0 %v1795
        %v1869 = vpop.f32.mrf.mxu0
        %v1870 = vadd.f32 0.0, %v1869
        %v1871 = vpop.f32.mrf.mxu0
        %1872 = vmatprep.mubr.f32.mxu0 0.0
        %1873 = vmatmul.mubr.f32.gmra.mxu0 %v1797
        %v1874 = vpop.f32.mrf.mxu0
        %v1875 = vadd.f32 0.0, %v1874
        %v1876 = vpop.f32.mrf.mxu0
        %1877 = vdwg.mxu0
        %v1878 = vmul.f32 %v1870, 0.35355338
        %v1879 = vmul.f32 %v1875, 0.35355338
        %v1880 = vsel %vm1179, %v1878, -1e+09
        %v1881 = vsel %vm1180, %v1879, -1e+09
        %v1882 = vsel %vm1273, %v1880, -inf
        %1883 = vmax.xlane.f32.xlu0 %v1882
        %v1884 = vpop.xlane.xlu0 %1883
        %v1885 = vsel %vm1273, %v1881, -inf
        %1886 = vmax.xlane.f32.xlu0 %v1885
        %v1887 = vpop.xlane.xlu0 %1886
        %v1888 = vsub.f32 %v1880, %v1884
        %v1889 = vsub.f32 %v1881, %v1887
        %v1890 = vmul.f32 %v1888, 1.442695
        %v1891 = vpow.pop %v1890
        %v1892 = vmul.f32 %v1889, 1.442695
        %v1893 = vpow.pop %v1892
        %v1894 = vsel %vm1273, %v1891, 0.0
        %1895 = vadd.xlane.f32.xlu0 %v1894
        %v1896 = vpop.xlane.xlu0 %1895
        %v1897 = vsel %vm1273, %v1893, 0.0
        %1898 = vadd.xlane.f32.xlu0 %v1897
        %v1899 = vpop.xlane.xlu0 %1898
        %v1900 = vrcp.pop %v1896
        %v1901 = vmul.f32 %v1891, %v1900
        %v1902 = vrcp.pop %v1899
        %v1903 = vmul.f32 %v1893, %v1902
        %1904 = vrot.lane.b32.xlu0 %v1139, 104
        %v1905 = vpop.permute.xlu0 %1904
        %1906 = vrot.lane.b32.xlu0 %v1144, 104
        %v1907 = vpop.permute.xlu0 %1906
        %v1911 = vsel %vm1273, %v1901, 0
        %v1914 = vsel %vm1273, %v1903, 0
        %1916 = vmatprep.subr.mxu0 0.0
        %1917 = vmatpush1.msra.mxu0 0.0
        %1918 = vmatprep.subr.mxu0 0.0
        %1919 = vmatpush1.msra.mxu0 0.0
        %1920 = vmatprep.subr.mxu0 0.0
        %1921 = vmatpush1.msra.mxu0 0.0
        %1922 = vmatprep.subr.mxu0 0.0
        %1923 = vmatpush1.msra.mxu0 0.0
        %1924 = vmatprep.subr.mxu0 0.0
        %1925 = vmatpush1.msra.mxu0 0.0
        %1926 = vmatprep.subr.mxu0 0.0
        %1927 = vmatpush1.msra.mxu0 0.0
        %1928 = vmatprep.subr.mxu0 0.0
        %1929 = vmatpush1.msra.mxu0 0.0
        %1930 = vmatprep.subr.mxu0 0.0
        %1931 = vmatpush1.msra.mxu0 0.0
        %1932 = vmatprep.subr.mxu0 0.0
        %1933 = vmatpush1.msra.mxu0 0.0
        %1934 = vmatprep.subr.mxu0 0.0
        %1935 = vmatpush1.msra.mxu0 0.0
        %1936 = vmatprep.subr.mxu0 0.0
        %1937 = vmatpush1.msra.mxu0 0.0
        %1938 = vmatprep.subr.mxu0 0.0
        %1939 = vmatpush1.msra.mxu0 0.0
        %1940 = vmatprep.subr.mxu0 0.0
        %1941 = vmatpush1.msra.mxu0 0.0
        %1942 = vmatprep.subr.mxu0 0.0
        %1943 = vmatpush1.msra.mxu0 0.0
        %1944 = vmatprep.subr.mxu0 0.0
        %1945 = vmatpush1.msra.mxu0 %v1907
        %1946 = vmatprep.subr.mxu0 0.0
        %1947 = vmatpush1.msra.mxu0 %v1905
        %1948 = vmatprep.subr.mxu0 0.0
        %1949 = vmatpush2.msra.mxu0 0.0
        %1950 = vmatprep.subr.mxu0 0.0
        %1951 = vmatpush2.msra.mxu0 0.0
        %1952 = vmatprep.subr.mxu0 0.0
        %1953 = vmatpush2.msra.mxu0 0.0
        %1954 = vmatprep.subr.mxu0 0.0
        %1955 = vmatpush2.msra.mxu0 0.0
        %1956 = vmatprep.subr.mxu0 0.0
        %1957 = vmatpush2.msra.mxu0 0.0
        %1958 = vmatprep.subr.mxu0 0.0
        %1959 = vmatpush2.msra.mxu0 0.0
        %1960 = vmatprep.subr.mxu0 0.0
        %1961 = vmatpush2.msra.mxu0 0.0
        %1962 = vmatprep.subr.mxu0 0.0
        %1963 = vmatpush2.msra.mxu0 0.0
        %1964 = vmatprep.subr.mxu0 0.0
        %1965 = vmatpush2.msra.mxu0 0.0
        %1966 = vmatprep.subr.mxu0 0.0
        %1967 = vmatpush2.msra.mxu0 0.0
        %1968 = vmatprep.subr.mxu0 0.0
        %1969 = vmatpush2.msra.mxu0 0.0
        %1970 = vmatprep.subr.mxu0 0.0
        %1971 = vmatpush2.msra.mxu0 0.0
        %1972 = vmatprep.subr.mxu0 0.0
        %1973 = vmatpush2.msra.mxu0 0.0
        %1974 = vmatprep.subr.mxu0 0.0
        %1975 = vmatpush2.msra.mxu0 0.0
        %1976 = vmatprep.subr.mxu0 0.0
        %1977 = vmatpush2.msra.mxu0 0.0
        %1978 = vmatprep.subr.mxu0 0.0
        %1979 = vmatpush2.msra.mxu0 0.0
        %1980 = vmatprep.mubr.f32.mxu0 0.0
        %1981 = vmatmul.mubr.f32.gmra.mxu0 %v1911
        %v1982 = vpop.f32.mrf.mxu0
        %v1983 = vadd.f32 0.0, %v1982
        %v1984 = vpop.f32.mrf.mxu0
        %1985 = vmatprep.mubr.f32.mxu0 0.0
        %1986 = vmatmul.mubr.f32.gmra.mxu0 %v1914
        %v1987 = vpop.f32.mrf.mxu0
        %v1988 = vadd.f32 0.0, %v1987
        %v1989 = vpop.f32.mrf.mxu0
        %1990 = vdwg.mxu0
        %1993 = vrot.lane.b32.xlu0 %v1575, 8
        %v1994 = vpop.permute.xlu0 %1993
        %1995 = vrot.lane.b32.xlu0 %v1580, 8
        %v1996 = vpop.permute.xlu0 %1995
        %2001 = vrot.lane.b32.xlu0 %v1779, 16
        %v2002 = vpop.permute.xlu0 %2001
        %2003 = vrot.lane.b32.xlu0 %v1784, 16
        %v2004 = vpop.permute.xlu0 %2003
        %2009 = vrot.lane.b32.xlu0 %v1983, 24
        %v2010 = vpop.permute.xlu0 %2009
        %2011 = vrot.lane.b32.xlu0 %v1988, 24
        %v2012 = vpop.permute.xlu0 %2011
        %v2015 = vsel %vm1181, %v1369, %v1994
        %v2016 = vsel %vm1181, %v1374, %v1996
        %v2017 = vsel %vm1273, %v2015, %v2002
        %v2018 = vsel %vm1273, %v2016, %v2004
        %vm2019 = vcmask 195584
        %v2020 = vsel %vm2019, %v2017, %v2010
        %v2021 = vsel %vm2019, %v2018, %v2012
        %2023 = vset.pattern.permute.xlu0 0
        %2024 = vperm.xlu0 %2023, %v1159
        %v2025 = vpop.permute.xlu0 %2024
        %2028 = vset.pattern.permute.xlu0 0
        %2029 = vperm.xlu0 %2028, %v1160
        %v2030 = vpop.permute.xlu0 %2029
        %v2032 = vlaneseq
        %v2033 = vshrl.u32 %v2032, 7
        %v2034 = vsub.s32 1, %v2033
        %v2035 = vrot.slane %v1161, %v2034
        %vm2036 = vcmp.gt.f32.partialorder %v2025, 0.0
        %vm2037 = vcmp.gt.f32.partialorder %v2030, 0.0
        %vm2038 = vcmp.gt.f32.partialorder %v2035, 0.0
        %vm2039 = vmand %vm2036, %vm2038
        %vm2040 = vmand %vm2037, %vm2038
        %v2042 = vsel %vm1181, %v945, 0
        %v2045 = vsel %vm1181, %v950, 0
        %v2048 = vsel %vm1181, %v1053, 0
        %v2051 = vsel %vm1181, %v1058, 0
        %2053 = vmatprep.subr.mxu0 0.0
        %2054 = vmatpush1.xpose.msra.mxu0 0.0
        %2055 = vmatprep.subr.mxu0 0.0
        %2056 = vmatpush1.xpose.msra.mxu0 0.0
        %2057 = vmatprep.subr.mxu0 0.0
        %2058 = vmatpush1.xpose.msra.mxu0 0.0
        %2059 = vmatprep.subr.mxu0 0.0
        %2060 = vmatpush1.xpose.msra.mxu0 0.0
        %2061 = vmatprep.subr.mxu0 0.0
        %2062 = vmatpush1.xpose.msra.mxu0 0.0
        %2063 = vmatprep.subr.mxu0 0.0
        %2064 = vmatpush1.xpose.msra.mxu0 0.0
        %2065 = vmatprep.subr.mxu0 0.0
        %2066 = vmatpush1.xpose.msra.mxu0 0.0
        %2067 = vmatprep.subr.mxu0 0.0
        %2068 = vmatpush1.xpose.msra.mxu0 0.0
        %2069 = vmatprep.subr.mxu0 0.0
        %2070 = vmatpush1.xpose.msra.mxu0 0.0
        %2071 = vmatprep.subr.mxu0 0.0
        %2072 = vmatpush1.xpose.msra.mxu0 0.0
        %2073 = vmatprep.subr.mxu0 0.0
        %2074 = vmatpush1.xpose.msra.mxu0 0.0
        %2075 = vmatprep.subr.mxu0 0.0
        %2076 = vmatpush1.xpose.msra.mxu0 0.0
        %2077 = vmatprep.subr.mxu0 0.0
        %2078 = vmatpush1.xpose.msra.mxu0 0.0
        %2079 = vmatprep.subr.mxu0 0.0
        %2080 = vmatpush1.xpose.msra.mxu0 0.0
        %2081 = vmatprep.subr.mxu0 0.0
        %2082 = vmatpush1.xpose.msra.mxu0 %v2051
        %2083 = vmatprep.subr.mxu0 0.0
        %2084 = vmatpush1.xpose.msra.mxu0 %v2048
        %2085 = vmatprep.subr.mxu0 0.0
        %2086 = vmatpush2.xpose.msra.mxu0 0.0
        %2087 = vmatprep.subr.mxu0 0.0
        %2088 = vmatpush2.xpose.msra.mxu0 0.0
        %2089 = vmatprep.subr.mxu0 0.0
        %2090 = vmatpush2.xpose.msra.mxu0 0.0
        %2091 = vmatprep.subr.mxu0 0.0
        %2092 = vmatpush2.xpose.msra.mxu0 0.0
        %2093 = vmatprep.subr.mxu0 0.0
        %2094 = vmatpush2.xpose.msra.mxu0 0.0
        %2095 = vmatprep.subr.mxu0 0.0
        %2096 = vmatpush2.xpose.msra.mxu0 0.0
        %2097 = vmatprep.subr.mxu0 0.0
        %2098 = vmatpush2.xpose.msra.mxu0 0.0
        %2099 = vmatprep.subr.mxu0 0.0
        %2100 = vmatpush2.xpose.msra.mxu0 0.0
        %2101 = vmatprep.subr.mxu0 0.0
        %2102 = vmatpush2.xpose.msra.mxu0 0.0
        %2103 = vmatprep.subr.mxu0 0.0
        %2104 = vmatpush2.xpose.msra.mxu0 0.0
        %2105 = vmatprep.subr.mxu0 0.0
        %2106 = vmatpush2.xpose.msra.mxu0 0.0
        %2107 = vmatprep.subr.mxu0 0.0
        %2108 = vmatpush2.xpose.msra.mxu0 0.0
        %2109 = vmatprep.subr.mxu0 0.0
        %2110 = vmatpush2.xpose.msra.mxu0 0.0
        %2111 = vmatprep.subr.mxu0 0.0
        %2112 = vmatpush2.xpose.msra.mxu0 0.0
        %2113 = vmatprep.subr.mxu0 0.0
        %2114 = vmatpush2.xpose.msra.mxu0 0.0
        %2115 = vmatprep.subr.mxu0 0.0
        %2116 = vmatpush2.xpose.msra.mxu0 0.0
        %2117 = vmatprep.mubr.f32.mxu0 0.0
        %2118 = vmatmul.mubr.f32.gmra.mxu0 %v2042
        %v2119 = vpop.f32.mrf.mxu0
        %v2120 = vadd.f32 0.0, %v2119
        %v2121 = vpop.f32.mrf.mxu0
        %2122 = vmatprep.mubr.f32.mxu0 0.0
        %2123 = vmatmul.mubr.f32.gmra.mxu0 %v2045
        %v2124 = vpop.f32.mrf.mxu0
        %v2125 = vadd.f32 0.0, %v2124
        %v2126 = vpop.f32.mrf.mxu0
        %2127 = vdwg.mxu0
        %v2128 = vmul.f32 %v2120, 0.35355338
        %v2129 = vmul.f32 %v2125, 0.35355338
        %v2130 = vsel %vm2039, %v2128, -1e+09
        %v2131 = vsel %vm2040, %v2129, -1e+09
        %v2132 = vsel %vm1273, %v2130, -inf
        %2133 = vmax.xlane.f32.xlu0 %v2132
        %v2134 = vpop.xlane.xlu0 %2133
        %v2135 = vsel %vm1273, %v2131, -inf
        %2136 = vmax.xlane.f32.xlu0 %v2135
        %v2137 = vpop.xlane.xlu0 %2136
        %v2138 = vsub.f32 %v2130, %v2134
        %v2139 = vsub.f32 %v2131, %v2137
        %v2140 = vmul.f32 %v2138, 1.442695
        %v2141 = vpow.pop %v2140
        %v2142 = vmul.f32 %v2139, 1.442695
        %v2143 = vpow.pop %v2142
        %v2144 = vsel %vm1273, %v2141, 0.0
        %2145 = vadd.xlane.f32.xlu0 %v2144
        %v2146 = vpop.xlane.xlu0 %2145
        %v2147 = vsel %vm1273, %v2143, 0.0
        %2148 = vadd.xlane.f32.xlu0 %v2147
        %v2149 = vpop.xlane.xlu0 %2148
        %v2150 = vrcp.pop %v2146
        %v2151 = vmul.f32 %v2141, %v2150
        %v2152 = vrcp.pop %v2149
        %v2153 = vmul.f32 %v2143, %v2152
        %v2155 = vsel %vm1273, %v2151, 0
        %v2158 = vsel %vm1273, %v2153, 0
        %2160 = vmatprep.subr.mxu0 0.0
        %2161 = vmatpush1.msra.mxu0 0.0
        %2162 = vmatprep.subr.mxu0 0.0
        %2163 = vmatpush1.msra.mxu0 0.0
        %2164 = vmatprep.subr.mxu0 0.0
        %2165 = vmatpush1.msra.mxu0 0.0
        %2166 = vmatprep.subr.mxu0 0.0
        %2167 = vmatpush1.msra.mxu0 0.0
        %2168 = vmatprep.subr.mxu0 0.0
        %2169 = vmatpush1.msra.mxu0 0.0
        %2170 = vmatprep.subr.mxu0 0.0
        %2171 = vmatpush1.msra.mxu0 0.0
        %2172 = vmatprep.subr.mxu0 0.0
        %2173 = vmatpush1.msra.mxu0 0.0
        %2174 = vmatprep.subr.mxu0 0.0
        %2175 = vmatpush1.msra.mxu0 0.0
        %2176 = vmatprep.subr.mxu0 0.0
        %2177 = vmatpush1.msra.mxu0 0.0
        %2178 = vmatprep.subr.mxu0 0.0
        %2179 = vmatpush1.msra.mxu0 0.0
        %2180 = vmatprep.subr.mxu0 0.0
        %2181 = vmatpush1.msra.mxu0 0.0
        %2182 = vmatprep.subr.mxu0 0.0
        %2183 = vmatpush1.msra.mxu0 0.0
        %2184 = vmatprep.subr.mxu0 0.0
        %2185 = vmatpush1.msra.mxu0 0.0
        %2186 = vmatprep.subr.mxu0 0.0
        %2187 = vmatpush1.msra.mxu0 0.0
        %2188 = vmatprep.subr.mxu0 0.0
        %2189 = vmatpush1.msra.mxu0 %v1154
        %2190 = vmatprep.subr.mxu0 0.0
        %2191 = vmatpush1.msra.mxu0 %v1149
        %2192 = vmatprep.subr.mxu0 0.0
        %2193 = vmatpush2.msra.mxu0 0.0
        %2194 = vmatprep.subr.mxu0 0.0
        %2195 = vmatpush2.msra.mxu0 0.0
        %2196 = vmatprep.subr.mxu0 0.0
        %2197 = vmatpush2.msra.mxu0 0.0
        %2198 = vmatprep.subr.mxu0 0.0
        %2199 = vmatpush2.msra.mxu0 0.0
        %2200 = vmatprep.subr.mxu0 0.0
        %2201 = vmatpush2.msra.mxu0 0.0
        %2202 = vmatprep.subr.mxu0 0.0
        %2203 = vmatpush2.msra.mxu0 0.0
        %2204 = vmatprep.subr.mxu0 0.0
        %2205 = vmatpush2.msra.mxu0 0.0
        %2206 = vmatprep.subr.mxu0 0.0
        %2207 = vmatpush2.msra.mxu0 0.0
        %2208 = vmatprep.subr.mxu0 0.0
        %2209 = vmatpush2.msra.mxu0 0.0
        %2210 = vmatprep.subr.mxu0 0.0
        %2211 = vmatpush2.msra.mxu0 0.0
        %2212 = vmatprep.subr.mxu0 0.0
        %2213 = vmatpush2.msra.mxu0 0.0
        %2214 = vmatprep.subr.mxu0 0.0
        %2215 = vmatpush2.msra.mxu0 0.0
        %2216 = vmatprep.subr.mxu0 0.0
        %2217 = vmatpush2.msra.mxu0 0.0
        %2218 = vmatprep.subr.mxu0 0.0
        %2219 = vmatpush2.msra.mxu0 0.0
        %2220 = vmatprep.subr.mxu0 0.0
        %2221 = vmatpush2.msra.mxu0 0.0
        %2222 = vmatprep.subr.mxu0 0.0
        %2223 = vmatpush2.msra.mxu0 0.0
        %2224 = vmatprep.mubr.f32.mxu0 0.0
        %2225 = vmatmul.mubr.f32.gmra.mxu0 %v2155
        %v2226 = vpop.f32.mrf.mxu0
        %v2227 = vadd.f32 0.0, %v2226
        %v2228 = vpop.f32.mrf.mxu0
        %2229 = vmatprep.mubr.f32.mxu0 0.0
        %2230 = vmatmul.mubr.f32.gmra.mxu0 %v2158
        %v2231 = vpop.f32.mrf.mxu0
        %v2232 = vadd.f32 0.0, %v2231
        %v2233 = vpop.f32.mrf.mxu0
        %2234 = vdwg.mxu0
        %2235 = vrot.lane.b32.xlu0 %v945, 120
        %v2236 = vpop.permute.xlu0 %2235
        %2237 = vrot.lane.b32.xlu0 %v950, 120
        %v2238 = vpop.permute.xlu0 %2237
        %2239 = vrot.lane.b32.xlu0 %v1053, 120
        %v2240 = vpop.permute.xlu0 %2239
        %2241 = vrot.lane.b32.xlu0 %v1058, 120
        %v2242 = vpop.permute.xlu0 %2241
        %v2243 = vsel %vm1181, %v2236, 0
        %v2245 = vsel %vm1181, %v2238, 0
        %v2247 = vsel %vm1181, %v2240, 0
        %v2249 = vsel %vm1181, %v2242, 0
        %2251 = vmatprep.subr.mxu0 0.0
        %2252 = vmatpush1.xpose.msra.mxu0 0.0
        %2253 = vmatprep.subr.mxu0 0.0
        %2254 = vmatpush1.xpose.msra.mxu0 0.0
        %2255 = vmatprep.subr.mxu0 0.0
        %2256 = vmatpush1.xpose.msra.mxu0 0.0
        %2257 = vmatprep.subr.mxu0 0.0
        %2258 = vmatpush1.xpose.msra.mxu0 0.0
        %2259 = vmatprep.subr.mxu0 0.0
        %2260 = vmatpush1.xpose.msra.mxu0 0.0
        %2261 = vmatprep.subr.mxu0 0.0
        %2262 = vmatpush1.xpose.msra.mxu0 0.0
        %2263 = vmatprep.subr.mxu0 0.0
        %2264 = vmatpush1.xpose.msra.mxu0 0.0
        %2265 = vmatprep.subr.mxu0 0.0
        %2266 = vmatpush1.xpose.msra.mxu0 0.0
        %2267 = vmatprep.subr.mxu0 0.0
        %2268 = vmatpush1.xpose.msra.mxu0 0.0
        %2269 = vmatprep.subr.mxu0 0.0
        %2270 = vmatpush1.xpose.msra.mxu0 0.0
        %2271 = vmatprep.subr.mxu0 0.0
        %2272 = vmatpush1.xpose.msra.mxu0 0.0
        %2273 = vmatprep.subr.mxu0 0.0
        %2274 = vmatpush1.xpose.msra.mxu0 0.0
        %2275 = vmatprep.subr.mxu0 0.0
        %2276 = vmatpush1.xpose.msra.mxu0 0.0
        %2277 = vmatprep.subr.mxu0 0.0
        %2278 = vmatpush1.xpose.msra.mxu0 0.0
        %2279 = vmatprep.subr.mxu0 0.0
        %2280 = vmatpush1.xpose.msra.mxu0 %v2249
        %2281 = vmatprep.subr.mxu0 0.0
        %2282 = vmatpush1.xpose.msra.mxu0 %v2247
        %2283 = vmatprep.subr.mxu0 0.0
        %2284 = vmatpush2.xpose.msra.mxu0 0.0
        %2285 = vmatprep.subr.mxu0 0.0
        %2286 = vmatpush2.xpose.msra.mxu0 0.0
        %2287 = vmatprep.subr.mxu0 0.0
        %2288 = vmatpush2.xpose.msra.mxu0 0.0
        %2289 = vmatprep.subr.mxu0 0.0
        %2290 = vmatpush2.xpose.msra.mxu0 0.0
        %2291 = vmatprep.subr.mxu0 0.0
        %2292 = vmatpush2.xpose.msra.mxu0 0.0
        %2293 = vmatprep.subr.mxu0 0.0
        %2294 = vmatpush2.xpose.msra.mxu0 0.0
        %2295 = vmatprep.subr.mxu0 0.0
        %2296 = vmatpush2.xpose.msra.mxu0 0.0
        %2297 = vmatprep.subr.mxu0 0.0
        %2298 = vmatpush2.xpose.msra.mxu0 0.0
        %2299 = vmatprep.subr.mxu0 0.0
        %2300 = vmatpush2.xpose.msra.mxu0 0.0
        %2301 = vmatprep.subr.mxu0 0.0
        %2302 = vmatpush2.xpose.msra.mxu0 0.0
        %2303 = vmatprep.subr.mxu0 0.0
        %2304 = vmatpush2.xpose.msra.mxu0 0.0
        %2305 = vmatprep.subr.mxu0 0.0
        %2306 = vmatpush2.xpose.msra.mxu0 0.0
        %2307 = vmatprep.subr.mxu0 0.0
        %2308 = vmatpush2.xpose.msra.mxu0 0.0
        %2309 = vmatprep.subr.mxu0 0.0
        %2310 = vmatpush2.xpose.msra.mxu0 0.0
        %2311 = vmatprep.subr.mxu0 0.0
        %2312 = vmatpush2.xpose.msra.mxu0 0.0
        %2313 = vmatprep.subr.mxu0 0.0
        %2314 = vmatpush2.xpose.msra.mxu0 0.0
        %2315 = vmatprep.mubr.f32.mxu0 0.0
        %2316 = vmatmul.mubr.f32.gmra.mxu0 %v2243
        %v2317 = vpop.f32.mrf.mxu0
        %v2318 = vadd.f32 0.0, %v2317
        %v2319 = vpop.f32.mrf.mxu0
        %2320 = vmatprep.mubr.f32.mxu0 0.0
        %2321 = vmatmul.mubr.f32.gmra.mxu0 %v2245
        %v2322 = vpop.f32.mrf.mxu0
        %v2323 = vadd.f32 0.0, %v2322
        %v2324 = vpop.f32.mrf.mxu0
        %2325 = vdwg.mxu0
        %v2326 = vmul.f32 %v2318, 0.35355338
        %v2327 = vmul.f32 %v2323, 0.35355338
        %v2328 = vsel %vm2039, %v2326, -1e+09
        %v2329 = vsel %vm2040, %v2327, -1e+09
        %v2330 = vsel %vm1273, %v2328, -inf
        %2331 = vmax.xlane.f32.xlu0 %v2330
        %v2332 = vpop.xlane.xlu0 %2331
        %v2333 = vsel %vm1273, %v2329, -inf
        %2334 = vmax.xlane.f32.xlu0 %v2333
        %v2335 = vpop.xlane.xlu0 %2334
        %v2336 = vsub.f32 %v2328, %v2332
        %v2337 = vsub.f32 %v2329, %v2335
        %v2338 = vmul.f32 %v2336, 1.442695
        %v2339 = vpow.pop %v2338
        %v2340 = vmul.f32 %v2337, 1.442695
        %v2341 = vpow.pop %v2340
        %v2342 = vsel %vm1273, %v2339, 0.0
        %2343 = vadd.xlane.f32.xlu0 %v2342
        %v2344 = vpop.xlane.xlu0 %2343
        %v2345 = vsel %vm1273, %v2341, 0.0
        %2346 = vadd.xlane.f32.xlu0 %v2345
        %v2347 = vpop.xlane.xlu0 %2346
        %v2348 = vrcp.pop %v2344
        %v2349 = vmul.f32 %v2339, %v2348
        %v2350 = vrcp.pop %v2347
        %v2351 = vmul.f32 %v2341, %v2350
        %2354 = vrot.lane.b32.xlu0 %v1149, 120
        %v2355 = vpop.permute.xlu0 %2354
        %2356 = vrot.lane.b32.xlu0 %v1154, 120
        %v2357 = vpop.permute.xlu0 %2356
        %v2361 = vsel %vm1273, %v2349, 0
        %v2364 = vsel %vm1273, %v2351, 0
        %2366 = vmatprep.subr.mxu0 0.0
        %2367 = vmatpush1.msra.mxu0 0.0
        %2368 = vmatprep.subr.mxu0 0.0
        %2369 = vmatpush1.msra.mxu0 0.0
        %2370 = vmatprep.subr.mxu0 0.0
        %2371 = vmatpush1.msra.mxu0 0.0
        %2372 = vmatprep.subr.mxu0 0.0
        %2373 = vmatpush1.msra.mxu0 0.0
        %2374 = vmatprep.subr.mxu0 0.0
        %2375 = vmatpush1.msra.mxu0 0.0
        %2376 = vmatprep.subr.mxu0 0.0
        %2377 = vmatpush1.msra.mxu0 0.0
        %2378 = vmatprep.subr.mxu0 0.0
        %2379 = vmatpush1.msra.mxu0 0.0
        %2380 = vmatprep.subr.mxu0 0.0
        %2381 = vmatpush1.msra.mxu0 0.0
        %2382 = vmatprep.subr.mxu0 0.0
        %2383 = vmatpush1.msra.mxu0 0.0
        %2384 = vmatprep.subr.mxu0 0.0
        %2385 = vmatpush1.msra.mxu0 0.0
        %2386 = vmatprep.subr.mxu0 0.0
        %2387 = vmatpush1.msra.mxu0 0.0
        %2388 = vmatprep.subr.mxu0 0.0
        %2389 = vmatpush1.msra.mxu0 0.0
        %2390 = vmatprep.subr.mxu0 0.0
        %2391 = vmatpush1.msra.mxu0 0.0
        %2392 = vmatprep.subr.mxu0 0.0
        %2393 = vmatpush1.msra.mxu0 0.0
        %2394 = vmatprep.subr.mxu0 0.0
        %2395 = vmatpush1.msra.mxu0 %v2357
        %2396 = vmatprep.subr.mxu0 0.0
        %2397 = vmatpush1.msra.mxu0 %v2355
        %2398 = vmatprep.subr.mxu0 0.0
        %2399 = vmatpush2.msra.mxu0 0.0
        %2400 = vmatprep.subr.mxu0 0.0
        %2401 = vmatpush2.msra.mxu0 0.0
        %2402 = vmatprep.subr.mxu0 0.0
        %2403 = vmatpush2.msra.mxu0 0.0
        %2404 = vmatprep.subr.mxu0 0.0
        %2405 = vmatpush2.msra.mxu0 0.0
        %2406 = vmatprep.subr.mxu0 0.0
        %2407 = vmatpush2.msra.mxu0 0.0
        %2408 = vmatprep.subr.mxu0 0.0
        %2409 = vmatpush2.msra.mxu0 0.0
        %2410 = vmatprep.subr.mxu0 0.0
        %2411 = vmatpush2.msra.mxu0 0.0
        %2412 = vmatprep.subr.mxu0 0.0
        %2413 = vmatpush2.msra.mxu0 0.0
        %2414 = vmatprep.subr.mxu0 0.0
        %2415 = vmatpush2.msra.mxu0 0.0
        %2416 = vmatprep.subr.mxu0 0.0
        %2417 = vmatpush2.msra.mxu0 0.0
        %2418 = vmatprep.subr.mxu0 0.0
        %2419 = vmatpush2.msra.mxu0 0.0
        %2420 = vmatprep.subr.mxu0 0.0
        %2421 = vmatpush2.msra.mxu0 0.0
        %2422 = vmatprep.subr.mxu0 0.0
        %2423 = vmatpush2.msra.mxu0 0.0
        %2424 = vmatprep.subr.mxu0 0.0
        %2425 = vmatpush2.msra.mxu0 0.0
        %2426 = vmatprep.subr.mxu0 0.0
        %2427 = vmatpush2.msra.mxu0 0.0
        %2428 = vmatprep.subr.mxu0 0.0
        %2429 = vmatpush2.msra.mxu0 0.0
        %2430 = vmatprep.mubr.f32.mxu0 0.0
        %2431 = vmatmul.mubr.f32.gmra.mxu0 %v2361
        %v2432 = vpop.f32.mrf.mxu0
        %v2433 = vadd.f32 0.0, %v2432
        %v2434 = vpop.f32.mrf.mxu0
        %2435 = vmatprep.mubr.f32.mxu0 0.0
        %2436 = vmatmul.mubr.f32.gmra.mxu0 %v2364
        %v2437 = vpop.f32.mrf.mxu0
        %v2438 = vadd.f32 0.0, %v2437
        %v2439 = vpop.f32.mrf.mxu0
        %2440 = vdwg.mxu0
        %2441 = vrot.lane.b32.xlu0 %v945, 112
        %v2442 = vpop.permute.xlu0 %2441
        %2443 = vrot.lane.b32.xlu0 %v950, 112
        %v2444 = vpop.permute.xlu0 %2443
        %2445 = vrot.lane.b32.xlu0 %v1053, 112
        %v2446 = vpop.permute.xlu0 %2445
        %2447 = vrot.lane.b32.xlu0 %v1058, 112
        %v2448 = vpop.permute.xlu0 %2447
        %v2449 = vsel %vm1181, %v2442, 0
        %v2451 = vsel %vm1181, %v2444, 0
        %v2453 = vsel %vm1181, %v2446, 0
        %v2455 = vsel %vm1181, %v2448, 0
        %2457 = vmatprep.subr.mxu0 0.0
        %2458 = vmatpush1.xpose.msra.mxu0 0.0
        %2459 = vmatprep.subr.mxu0 0.0
        %2460 = vmatpush1.xpose.msra.mxu0 0.0
        %2461 = vmatprep.subr.mxu0 0.0
        %2462 = vmatpush1.xpose.msra.mxu0 0.0
        %2463 = vmatprep.subr.mxu0 0.0
        %2464 = vmatpush1.xpose.msra.mxu0 0.0
        %2465 = vmatprep.subr.mxu0 0.0
        %2466 = vmatpush1.xpose.msra.mxu0 0.0
        %2467 = vmatprep.subr.mxu0 0.0
        %2468 = vmatpush1.xpose.msra.mxu0 0.0
        %2469 = vmatprep.subr.mxu0 0.0
        %2470 = vmatpush1.xpose.msra.mxu0 0.0
        %2471 = vmatprep.subr.mxu0 0.0
        %2472 = vmatpush1.xpose.msra.mxu0 0.0
        %2473 = vmatprep.subr.mxu0 0.0
        %2474 = vmatpush1.xpose.msra.mxu0 0.0
        %2475 = vmatprep.subr.mxu0 0.0
        %2476 = vmatpush1.xpose.msra.mxu0 0.0
        %2477 = vmatprep.subr.mxu0 0.0
        %2478 = vmatpush1.xpose.msra.mxu0 0.0
        %2479 = vmatprep.subr.mxu0 0.0
        %2480 = vmatpush1.xpose.msra.mxu0 0.0
        %2481 = vmatprep.subr.mxu0 0.0
        %2482 = vmatpush1.xpose.msra.mxu0 0.0
        %2483 = vmatprep.subr.mxu0 0.0
        %2484 = vmatpush1.xpose.msra.mxu0 0.0
        %2485 = vmatprep.subr.mxu0 0.0
        %2486 = vmatpush1.xpose.msra.mxu0 %v2455
        %2487 = vmatprep.subr.mxu0 0.0
        %2488 = vmatpush1.xpose.msra.mxu0 %v2453
        %2489 = vmatprep.subr.mxu0 0.0
        %2490 = vmatpush2.xpose.msra.mxu0 0.0
        %2491 = vmatprep.subr.mxu0 0.0
        %2492 = vmatpush2.xpose.msra.mxu0 0.0
        %2493 = vmatprep.subr.mxu0 0.0
        %2494 = vmatpush2.xpose.msra.mxu0 0.0
        %2495 = vmatprep.subr.mxu0 0.0
        %2496 = vmatpush2.xpose.msra.mxu0 0.0
        %2497 = vmatprep.subr.mxu0 0.0
        %2498 = vmatpush2.xpose.msra.mxu0 0.0
        %2499 = vmatprep.subr.mxu0 0.0
        %2500 = vmatpush2.xpose.msra.mxu0 0.0
        %2501 = vmatprep.subr.mxu0 0.0
        %2502 = vmatpush2.xpose.msra.mxu0 0.0
        %2503 = vmatprep.subr.mxu0 0.0
        %2504 = vmatpush2.xpose.msra.mxu0 0.0
        %2505 = vmatprep.subr.mxu0 0.0
        %2506 = vmatpush2.xpose.msra.mxu0 0.0
        %2507 = vmatprep.subr.mxu0 0.0
        %2508 = vmatpush2.xpose.msra.mxu0 0.0
        %2509 = vmatprep.subr.mxu0 0.0
        %2510 = vmatpush2.xpose.msra.mxu0 0.0
        %2511 = vmatprep.subr.mxu0 0.0
        %2512 = vmatpush2.xpose.msra.mxu0 0.0
        %2513 = vmatprep.subr.mxu0 0.0
        %2514 = vmatpush2.xpose.msra.mxu0 0.0
        %2515 = vmatprep.subr.mxu0 0.0
        %2516 = vmatpush2.xpose.msra.mxu0 0.0
        %2517 = vmatprep.subr.mxu0 0.0
        %2518 = vmatpush2.xpose.msra.mxu0 0.0
        %2519 = vmatprep.subr.mxu0 0.0
        %2520 = vmatpush2.xpose.msra.mxu0 0.0
        %2521 = vmatprep.mubr.f32.mxu0 0.0
        %2522 = vmatmul.mubr.f32.gmra.mxu0 %v2449
        %v2523 = vpop.f32.mrf.mxu0
        %v2524 = vadd.f32 0.0, %v2523
        %v2525 = vpop.f32.mrf.mxu0
        %2526 = vmatprep.mubr.f32.mxu0 0.0
        %2527 = vmatmul.mubr.f32.gmra.mxu0 %v2451
        %v2528 = vpop.f32.mrf.mxu0
        %v2529 = vadd.f32 0.0, %v2528
        %v2530 = vpop.f32.mrf.mxu0
        %2531 = vdwg.mxu0
        %v2532 = vmul.f32 %v2524, 0.35355338
        %v2533 = vmul.f32 %v2529, 0.35355338
        %v2534 = vsel %vm2039, %v2532, -1e+09
        %v2535 = vsel %vm2040, %v2533, -1e+09
        %v2536 = vsel %vm1273, %v2534, -inf
        %2537 = vmax.xlane.f32.xlu0 %v2536
        %v2538 = vpop.xlane.xlu0 %2537
        %v2539 = vsel %vm1273, %v2535, -inf
        %2540 = vmax.xlane.f32.xlu0 %v2539
        %v2541 = vpop.xlane.xlu0 %2540
        %v2542 = vsub.f32 %v2534, %v2538
        %v2543 = vsub.f32 %v2535, %v2541
        %v2544 = vmul.f32 %v2542, 1.442695
        %v2545 = vpow.pop %v2544
        %v2546 = vmul.f32 %v2543, 1.442695
        %v2547 = vpow.pop %v2546
        %v2548 = vsel %vm1273, %v2545, 0.0
        %2549 = vadd.xlane.f32.xlu0 %v2548
        %v2550 = vpop.xlane.xlu0 %2549
        %v2551 = vsel %vm1273, %v2547, 0.0
        %2552 = vadd.xlane.f32.xlu0 %v2551
        %v2553 = vpop.xlane.xlu0 %2552
        %v2554 = vrcp.pop %v2550
        %v2555 = vmul.f32 %v2545, %v2554
        %v2556 = vrcp.pop %v2553
        %v2557 = vmul.f32 %v2547, %v2556
        %2558 = vrot.lane.b32.xlu0 %v1149, 112
        %v2559 = vpop.permute.xlu0 %2558
        %2560 = vrot.lane.b32.xlu0 %v1154, 112
        %v2561 = vpop.permute.xlu0 %2560
        %v2565 = vsel %vm1273, %v2555, 0
        %v2568 = vsel %vm1273, %v2557, 0
        %2570 = vmatprep.subr.mxu0 0.0
        %2571 = vmatpush1.msra.mxu0 0.0
        %2572 = vmatprep.subr.mxu0 0.0
        %2573 = vmatpush1.msra.mxu0 0.0
        %2574 = vmatprep.subr.mxu0 0.0
        %2575 = vmatpush1.msra.mxu0 0.0
        %2576 = vmatprep.subr.mxu0 0.0
        %2577 = vmatpush1.msra.mxu0 0.0
        %2578 = vmatprep.subr.mxu0 0.0
        %2579 = vmatpush1.msra.mxu0 0.0
        %2580 = vmatprep.subr.mxu0 0.0
        %2581 = vmatpush1.msra.mxu0 0.0
        %2582 = vmatprep.subr.mxu0 0.0
        %2583 = vmatpush1.msra.mxu0 0.0
        %2584 = vmatprep.subr.mxu0 0.0
        %2585 = vmatpush1.msra.mxu0 0.0
        %2586 = vmatprep.subr.mxu0 0.0
        %2587 = vmatpush1.msra.mxu0 0.0
        %2588 = vmatprep.subr.mxu0 0.0
        %2589 = vmatpush1.msra.mxu0 0.0
        %2590 = vmatprep.subr.mxu0 0.0
        %2591 = vmatpush1.msra.mxu0 0.0
        %2592 = vmatprep.subr.mxu0 0.0
        %2593 = vmatpush1.msra.mxu0 0.0
        %2594 = vmatprep.subr.mxu0 0.0
        %2595 = vmatpush1.msra.mxu0 0.0
        %2596 = vmatprep.subr.mxu0 0.0
        %2597 = vmatpush1.msra.mxu0 0.0
        %2598 = vmatprep.subr.mxu0 0.0
        %2599 = vmatpush1.msra.mxu0 %v2561
        %2600 = vmatprep.subr.mxu0 0.0
        %2601 = vmatpush1.msra.mxu0 %v2559
        %2602 = vmatprep.subr.mxu0 0.0
        %2603 = vmatpush2.msra.mxu0 0.0
        %2604 = vmatprep.subr.mxu0 0.0
        %2605 = vmatpush2.msra.mxu0 0.0
        %2606 = vmatprep.subr.mxu0 0.0
        %2607 = vmatpush2.msra.mxu0 0.0
        %2608 = vmatprep.subr.mxu0 0.0
        %2609 = vmatpush2.msra.mxu0 0.0
        %2610 = vmatprep.subr.mxu0 0.0
        %2611 = vmatpush2.msra.mxu0 0.0
        %2612 = vmatprep.subr.mxu0 0.0
        %2613 = vmatpush2.msra.mxu0 0.0
        %2614 = vmatprep.subr.mxu0 0.0
        %2615 = vmatpush2.msra.mxu0 0.0
        %2616 = vmatprep.subr.mxu0 0.0
        %2617 = vmatpush2.msra.mxu0 0.0
        %2618 = vmatprep.subr.mxu0 0.0
        %2619 = vmatpush2.msra.mxu0 0.0
        %2620 = vmatprep.subr.mxu0 0.0
        %2621 = vmatpush2.msra.mxu0 0.0
        %2622 = vmatprep.subr.mxu0 0.0
        %2623 = vmatpush2.msra.mxu0 0.0
        %2624 = vmatprep.subr.mxu0 0.0
        %2625 = vmatpush2.msra.mxu0 0.0
        %2626 = vmatprep.subr.mxu0 0.0
        %2627 = vmatpush2.msra.mxu0 0.0
        %2628 = vmatprep.subr.mxu0 0.0
        %2629 = vmatpush2.msra.mxu0 0.0
        %2630 = vmatprep.subr.mxu0 0.0
        %2631 = vmatpush2.msra.mxu0 0.0
        %2632 = vmatprep.subr.mxu0 0.0
        %2633 = vmatpush2.msra.mxu0 0.0
        %2634 = vmatprep.mubr.f32.mxu0 0.0
        %2635 = vmatmul.mubr.f32.gmra.mxu0 %v2565
        %v2636 = vpop.f32.mrf.mxu0
        %v2637 = vadd.f32 0.0, %v2636
        %v2638 = vpop.f32.mrf.mxu0
        %2639 = vmatprep.mubr.f32.mxu0 0.0
        %2640 = vmatmul.mubr.f32.gmra.mxu0 %v2568
        %v2641 = vpop.f32.mrf.mxu0
        %v2642 = vadd.f32 0.0, %v2641
        %v2643 = vpop.f32.mrf.mxu0
        %2644 = vdwg.mxu0
        %2645 = vrot.lane.b32.xlu0 %v945, 104
        %v2646 = vpop.permute.xlu0 %2645
        %2647 = vrot.lane.b32.xlu0 %v950, 104
        %v2648 = vpop.permute.xlu0 %2647
        %2649 = vrot.lane.b32.xlu0 %v1053, 104
        %v2650 = vpop.permute.xlu0 %2649
        %2651 = vrot.lane.b32.xlu0 %v1058, 104
        %v2652 = vpop.permute.xlu0 %2651
        %v2653 = vsel %vm1181, %v2646, 0
        %v2655 = vsel %vm1181, %v2648, 0
        %v2657 = vsel %vm1181, %v2650, 0
        %v2659 = vsel %vm1181, %v2652, 0
        %2661 = vmatprep.subr.mxu0 0.0
        %2662 = vmatpush1.xpose.msra.mxu0 0.0
        %2663 = vmatprep.subr.mxu0 0.0
        %2664 = vmatpush1.xpose.msra.mxu0 0.0
        %2665 = vmatprep.subr.mxu0 0.0
        %2666 = vmatpush1.xpose.msra.mxu0 0.0
        %2667 = vmatprep.subr.mxu0 0.0
        %2668 = vmatpush1.xpose.msra.mxu0 0.0
        %2669 = vmatprep.subr.mxu0 0.0
        %2670 = vmatpush1.xpose.msra.mxu0 0.0
        %2671 = vmatprep.subr.mxu0 0.0
        %2672 = vmatpush1.xpose.msra.mxu0 0.0
        %2673 = vmatprep.subr.mxu0 0.0
        %2674 = vmatpush1.xpose.msra.mxu0 0.0
        %2675 = vmatprep.subr.mxu0 0.0
        %2676 = vmatpush1.xpose.msra.mxu0 0.0
        %2677 = vmatprep.subr.mxu0 0.0
        %2678 = vmatpush1.xpose.msra.mxu0 0.0
        %2679 = vmatprep.subr.mxu0 0.0
        %2680 = vmatpush1.xpose.msra.mxu0 0.0
        %2681 = vmatprep.subr.mxu0 0.0
        %2682 = vmatpush1.xpose.msra.mxu0 0.0
        %2683 = vmatprep.subr.mxu0 0.0
        %2684 = vmatpush1.xpose.msra.mxu0 0.0
        %2685 = vmatprep.subr.mxu0 0.0
        %2686 = vmatpush1.xpose.msra.mxu0 0.0
        %2687 = vmatprep.subr.mxu0 0.0
        %2688 = vmatpush1.xpose.msra.mxu0 0.0
        %2689 = vmatprep.subr.mxu0 0.0
        %2690 = vmatpush1.xpose.msra.mxu0 %v2659
        %2691 = vmatprep.subr.mxu0 0.0
        %2692 = vmatpush1.xpose.msra.mxu0 %v2657
        %2693 = vmatprep.subr.mxu0 0.0
        %2694 = vmatpush2.xpose.msra.mxu0 0.0
        %2695 = vmatprep.subr.mxu0 0.0
        %2696 = vmatpush2.xpose.msra.mxu0 0.0
        %2697 = vmatprep.subr.mxu0 0.0
        %2698 = vmatpush2.xpose.msra.mxu0 0.0
        %2699 = vmatprep.subr.mxu0 0.0
        %2700 = vmatpush2.xpose.msra.mxu0 0.0
        %2701 = vmatprep.subr.mxu0 0.0
        %2702 = vmatpush2.xpose.msra.mxu0 0.0
        %2703 = vmatprep.subr.mxu0 0.0
        %2704 = vmatpush2.xpose.msra.mxu0 0.0
        %2705 = vmatprep.subr.mxu0 0.0
        %2706 = vmatpush2.xpose.msra.mxu0 0.0
        %2707 = vmatprep.subr.mxu0 0.0
        %2708 = vmatpush2.xpose.msra.mxu0 0.0
        %2709 = vmatprep.subr.mxu0 0.0
        %2710 = vmatpush2.xpose.msra.mxu0 0.0
        %2711 = vmatprep.subr.mxu0 0.0
        %2712 = vmatpush2.xpose.msra.mxu0 0.0
        %2713 = vmatprep.subr.mxu0 0.0
        %2714 = vmatpush2.xpose.msra.mxu0 0.0
        %2715 = vmatprep.subr.mxu0 0.0
        %2716 = vmatpush2.xpose.msra.mxu0 0.0
        %2717 = vmatprep.subr.mxu0 0.0
        %2718 = vmatpush2.xpose.msra.mxu0 0.0
        %2719 = vmatprep.subr.mxu0 0.0
        %2720 = vmatpush2.xpose.msra.mxu0 0.0
        %2721 = vmatprep.subr.mxu0 0.0
        %2722 = vmatpush2.xpose.msra.mxu0 0.0
        %2723 = vmatprep.subr.mxu0 0.0
        %2724 = vmatpush2.xpose.msra.mxu0 0.0
        %2725 = vmatprep.mubr.f32.mxu0 0.0
        %2726 = vmatmul.mubr.f32.gmra.mxu0 %v2653
        %v2727 = vpop.f32.mrf.mxu0
        %v2728 = vadd.f32 0.0, %v2727
        %v2729 = vpop.f32.mrf.mxu0
        %2730 = vmatprep.mubr.f32.mxu0 0.0
        %2731 = vmatmul.mubr.f32.gmra.mxu0 %v2655
        %v2732 = vpop.f32.mrf.mxu0
        %v2733 = vadd.f32 0.0, %v2732
        %v2734 = vpop.f32.mrf.mxu0
        %2735 = vdwg.mxu0
        %v2736 = vmul.f32 %v2728, 0.35355338
        %v2737 = vmul.f32 %v2733, 0.35355338
        %v2738 = vsel %vm2039, %v2736, -1e+09
        %v2739 = vsel %vm2040, %v2737, -1e+09
        %v2740 = vsel %vm1273, %v2738, -inf
        %2741 = vmax.xlane.f32.xlu0 %v2740
        %v2742 = vpop.xlane.xlu0 %2741
        %v2743 = vsel %vm1273, %v2739, -inf
        %2744 = vmax.xlane.f32.xlu0 %v2743
        %v2745 = vpop.xlane.xlu0 %2744
        %v2746 = vsub.f32 %v2738, %v2742
        %v2747 = vsub.f32 %v2739, %v2745
        %v2748 = vmul.f32 %v2746, 1.442695
        %v2749 = vpow.pop %v2748
        %v2750 = vmul.f32 %v2747, 1.442695
        %v2751 = vpow.pop %v2750
        %v2752 = vsel %vm1273, %v2749, 0.0
        %2753 = vadd.xlane.f32.xlu0 %v2752
        %v2754 = vpop.xlane.xlu0 %2753
        %v2755 = vsel %vm1273, %v2751, 0.0
        %2756 = vadd.xlane.f32.xlu0 %v2755
        %v2757 = vpop.xlane.xlu0 %2756
        %v2758 = vrcp.pop %v2754
        %v2759 = vmul.f32 %v2749, %v2758
        %v2760 = vrcp.pop %v2757
        %v2761 = vmul.f32 %v2751, %v2760
        %2762 = vrot.lane.b32.xlu0 %v1149, 104
        %v2763 = vpop.permute.xlu0 %2762
        %2764 = vrot.lane.b32.xlu0 %v1154, 104
        %v2765 = vpop.permute.xlu0 %2764
        %v2769 = vsel %vm1273, %v2759, 0
        %v2772 = vsel %vm1273, %v2761, 0
        %2774 = vmatprep.subr.mxu0 0.0
        %2775 = vmatpush1.msra.mxu0 0.0
        %2776 = vmatprep.subr.mxu0 0.0
        %2777 = vmatpush1.msra.mxu0 0.0
        %2778 = vmatprep.subr.mxu0 0.0
        %2779 = vmatpush1.msra.mxu0 0.0
        %2780 = vmatprep.subr.mxu0 0.0
        %2781 = vmatpush1.msra.mxu0 0.0
        %2782 = vmatprep.subr.mxu0 0.0
        %2783 = vmatpush1.msra.mxu0 0.0
        %2784 = vmatprep.subr.mxu0 0.0
        %2785 = vmatpush1.msra.mxu0 0.0
        %2786 = vmatprep.subr.mxu0 0.0
        %2787 = vmatpush1.msra.mxu0 0.0
        %2788 = vmatprep.subr.mxu0 0.0
        %2789 = vmatpush1.msra.mxu0 0.0
        %2790 = vmatprep.subr.mxu0 0.0
        %2791 = vmatpush1.msra.mxu0 0.0
        %2792 = vmatprep.subr.mxu0 0.0
        %2793 = vmatpush1.msra.mxu0 0.0
        %2794 = vmatprep.subr.mxu0 0.0
        %2795 = vmatpush1.msra.mxu0 0.0
        %2796 = vmatprep.subr.mxu0 0.0
        %2797 = vmatpush1.msra.mxu0 0.0
        %2798 = vmatprep.subr.mxu0 0.0
        %2799 = vmatpush1.msra.mxu0 0.0
        %2800 = vmatprep.subr.mxu0 0.0
        %2801 = vmatpush1.msra.mxu0 0.0
        %2802 = vmatprep.subr.mxu0 0.0
        %2803 = vmatpush1.msra.mxu0 %v2765
        %2804 = vmatprep.subr.mxu0 0.0
        %2805 = vmatpush1.msra.mxu0 %v2763
        %2806 = vmatprep.subr.mxu0 0.0
        %2807 = vmatpush2.msra.mxu0 0.0
        %2808 = vmatprep.subr.mxu0 0.0
        %2809 = vmatpush2.msra.mxu0 0.0
        %2810 = vmatprep.subr.mxu0 0.0
        %2811 = vmatpush2.msra.mxu0 0.0
        %2812 = vmatprep.subr.mxu0 0.0
        %2813 = vmatpush2.msra.mxu0 0.0
        %2814 = vmatprep.subr.mxu0 0.0
        %2815 = vmatpush2.msra.mxu0 0.0
        %2816 = vmatprep.subr.mxu0 0.0
        %2817 = vmatpush2.msra.mxu0 0.0
        %2818 = vmatprep.subr.mxu0 0.0
        %2819 = vmatpush2.msra.mxu0 0.0
        %2820 = vmatprep.subr.mxu0 0.0
        %2821 = vmatpush2.msra.mxu0 0.0
        %2822 = vmatprep.subr.mxu0 0.0
        %2823 = vmatpush2.msra.mxu0 0.0
        %2824 = vmatprep.subr.mxu0 0.0
        %2825 = vmatpush2.msra.mxu0 0.0
        %2826 = vmatprep.subr.mxu0 0.0
        %2827 = vmatpush2.msra.mxu0 0.0
        %2828 = vmatprep.subr.mxu0 0.0
        %2829 = vmatpush2.msra.mxu0 0.0
        %2830 = vmatprep.subr.mxu0 0.0
        %2831 = vmatpush2.msra.mxu0 0.0
        %2832 = vmatprep.subr.mxu0 0.0
        %2833 = vmatpush2.msra.mxu0 0.0
        %2834 = vmatprep.subr.mxu0 0.0
        %2835 = vmatpush2.msra.mxu0 0.0
        %2836 = vmatprep.subr.mxu0 0.0
        %2837 = vmatpush2.msra.mxu0 0.0
        %2838 = vmatprep.mubr.f32.mxu0 0.0
        %2839 = vmatmul.mubr.f32.gmra.mxu0 %v2769
        %v2840 = vpop.f32.mrf.mxu0
        %v2841 = vadd.f32 0.0, %v2840
        %v2842 = vpop.f32.mrf.mxu0
        %2843 = vmatprep.mubr.f32.mxu0 0.0
        %2844 = vmatmul.mubr.f32.gmra.mxu0 %v2772
        %v2845 = vpop.f32.mrf.mxu0
        %v2846 = vadd.f32 0.0, %v2845
        %v2847 = vpop.f32.mrf.mxu0
        %2848 = vdwg.mxu0
        %2851 = vrot.lane.b32.xlu0 %v2433, 8
        %v2852 = vpop.permute.xlu0 %2851
        %2853 = vrot.lane.b32.xlu0 %v2438, 8
        %v2854 = vpop.permute.xlu0 %2853
        %2859 = vrot.lane.b32.xlu0 %v2637, 16
        %v2860 = vpop.permute.xlu0 %2859
        %2861 = vrot.lane.b32.xlu0 %v2642, 16
        %v2862 = vpop.permute.xlu0 %2861
        %2867 = vrot.lane.b32.xlu0 %v2841, 24
        %v2868 = vpop.permute.xlu0 %2867
        %2869 = vrot.lane.b32.xlu0 %v2846, 24
        %v2870 = vpop.permute.xlu0 %2869
        %v2873 = vsel %vm1181, %v2227, %v2852
        %v2874 = vsel %vm1181, %v2232, %v2854
        %v2875 = vsel %vm1273, %v2873, %v2860
        %v2876 = vsel %vm1273, %v2874, %v2862
        %v2877 = vsel %vm2019, %v2875, %v2868
        %v2878 = vsel %vm2019, %v2876, %v2870
        %v2879 = vld [vmem:[%s816] sm:$0xff]
        %v2880 = vld [vmem:[%s816 + $0x8] sm:$0xff]
        %v2881 = vld [vmem:[%s816 + $0x10] sm:$0xff]
        %v2882 = vld [vmem:[%s816 + $0x18] sm:$0xff]
        %v2883 = vld [vmem:[%s819] sm:$0x1]
        %v2885 = vlaneseq
        %v2886 = vshrl.u32 %v2885, 7
        %v2887 = vsub.s32 0, %v2886
        %v2888 = vrot.slane %v2883, %v2887
        %v2891 = vsel %vm855, %v2020, 0
        %v2894 = vsel %vm855, %v2021, 0
        %v2897 = vsel %vm855, %v2877, 0
        %v2900 = vsel %vm855, %v2878, 0
        %2902 = vmatprep.subr.mxu0 0.0
        %2903 = vmatpush1.msra.mxu0 0.0
        %2904 = vmatprep.subr.mxu0 0.0
        %2905 = vmatpush1.msra.mxu0 0.0
        %2906 = vmatprep.subr.mxu0 0.0
        %2907 = vmatpush1.msra.mxu0 0.0
        %2908 = vmatprep.subr.mxu0 0.0
        %2909 = vmatpush1.msra.mxu0 0.0
        %2910 = vmatprep.subr.mxu0 0.0
        %2911 = vmatpush1.msra.mxu0 0.0
        %2912 = vmatprep.subr.mxu0 0.0
        %2913 = vmatpush1.msra.mxu0 0.0
        %2914 = vmatprep.subr.mxu0 0.0
        %2915 = vmatpush1.msra.mxu0 0.0
        %2916 = vmatprep.subr.mxu0 0.0
        %2917 = vmatpush1.msra.mxu0 0.0
        %2918 = vmatprep.subr.mxu0 0.0
        %2919 = vmatpush1.msra.mxu0 0.0
        %2920 = vmatprep.subr.mxu0 0.0
        %2921 = vmatpush1.msra.mxu0 0.0
        %2922 = vmatprep.subr.mxu0 0.0
        %2923 = vmatpush1.msra.mxu0 0.0
        %2924 = vmatprep.subr.mxu0 0.0
        %2925 = vmatpush1.msra.mxu0 0.0
        %2926 = vmatprep.subr.mxu0 0.0
        %2927 = vmatpush1.msra.mxu0 %v2882
        %2928 = vmatprep.subr.mxu0 0.0
        %2929 = vmatpush1.msra.mxu0 %v2881
        %2930 = vmatprep.subr.mxu0 0.0
        %2931 = vmatpush1.msra.mxu0 %v2880
        %2932 = vmatprep.subr.mxu0 0.0
        %2933 = vmatpush1.msra.mxu0 %v2879
        %2934 = vmatprep.subr.mxu0 0.0
        %2935 = vmatpush2.msra.mxu0 0.0
        %2936 = vmatprep.subr.mxu0 0.0
        %2937 = vmatpush2.msra.mxu0 0.0
        %2938 = vmatprep.subr.mxu0 0.0
        %2939 = vmatpush2.msra.mxu0 0.0
        %2940 = vmatprep.subr.mxu0 0.0
        %2941 = vmatpush2.msra.mxu0 0.0
        %2942 = vmatprep.subr.mxu0 0.0
        %2943 = vmatpush2.msra.mxu0 0.0
        %2944 = vmatprep.subr.mxu0 0.0
        %2945 = vmatpush2.msra.mxu0 0.0
        %2946 = vmatprep.subr.mxu0 0.0
        %2947 = vmatpush2.msra.mxu0 0.0
        %2948 = vmatprep.subr.mxu0 0.0
        %2949 = vmatpush2.msra.mxu0 0.0
        %2950 = vmatprep.subr.mxu0 0.0
        %2951 = vmatpush2.msra.mxu0 0.0
        %2952 = vmatprep.subr.mxu0 0.0
        %2953 = vmatpush2.msra.mxu0 0.0
        %2954 = vmatprep.subr.mxu0 0.0
        %2955 = vmatpush2.msra.mxu0 0.0
        %2956 = vmatprep.subr.mxu0 0.0
        %2957 = vmatpush2.msra.mxu0 0.0
        %2958 = vmatprep.subr.mxu0 0.0
        %2959 = vmatpush2.msra.mxu0 0.0
        %2960 = vmatprep.subr.mxu0 0.0
        %2961 = vmatpush2.msra.mxu0 0.0
        %2962 = vmatprep.subr.mxu0 0.0
        %2963 = vmatpush2.msra.mxu0 0.0
        %2964 = vmatprep.subr.mxu0 0.0
        %2965 = vmatpush2.msra.mxu0 0.0
        %2966 = vmatprep.mubr.f32.mxu0 0.0
        %2967 = vmatmul.mubr.f32.gmra.mxu0 %v2891
        %v2968 = vpop.f32.mrf.mxu0
        %v2969 = vadd.f32 %v2888, %v2968
        %v2970 = vpop.f32.mrf.mxu0
        %2971 = vmatprep.mubr.f32.mxu0 0.0
        %2972 = vmatmul.mubr.f32.gmra.mxu0 %v2894
        %v2973 = vpop.f32.mrf.mxu0
        %v2974 = vadd.f32 %v2888, %v2973
        %v2975 = vpop.f32.mrf.mxu0
        %2976 = vmatprep.mubr.f32.mxu0 0.0
        %2977 = vmatmul.mubr.f32.gmra.mxu0 %v2897
        %v2978 = vpop.f32.mrf.mxu0
        %v2979 = vadd.f32 %v2888, %v2978
        %v2980 = vpop.f32.mrf.mxu0
        %2981 = vmatprep.mubr.f32.mxu0 0.0
        %2982 = vmatmul.mubr.f32.gmra.mxu0 %v2900
        %v2983 = vpop.f32.mrf.mxu0
        %v2984 = vadd.f32 %v2888, %v2983
        %v2985 = vpop.f32.mrf.mxu0
        %2986 = vdwg.mxu0
        %v2987 = vld [vmem:[%s658] sm:$0xff]
        %v2988 = vld [vmem:[%s658 + $0x8] sm:$0xff]
        %v2989 = vld [vmem:[%s658 + $0x10] sm:$0xff]
        %v2990 = vld [vmem:[%s658 + $0x18] sm:$0xff]
        %v2991 = vld [vmem:[%s667] sm:$0xff]
        %v2992 = vld [vmem:[%s667 + $0x8] sm:$0xff]
        %v2993 = vld [vmem:[%s667 + $0x10] sm:$0xff]
        %v2994 = vld [vmem:[%s667 + $0x18] sm:$0xff]
        %2995 = vmatprep.subr.mxu0 0.0
        %2996 = vmatpush1.msra.mxu0 0.0
        %2997 = vmatprep.subr.mxu0 0.0
        %2998 = vmatpush1.msra.mxu0 0.0
        %2999 = vmatprep.subr.mxu0 0.0
        %3000 = vmatpush1.msra.mxu0 0.0
        %3001 = vmatprep.subr.mxu0 0.0
        %3002 = vmatpush1.msra.mxu0 0.0
        %3003 = vmatprep.subr.mxu0 0.0
        %3004 = vmatpush1.msra.mxu0 0.0
        %3005 = vmatprep.subr.mxu0 0.0
        %3006 = vmatpush1.msra.mxu0 0.0
        %3007 = vmatprep.subr.mxu0 0.0
        %3008 = vmatpush1.msra.mxu0 0.0
        %3009 = vmatprep.subr.mxu0 0.0
        %3010 = vmatpush1.msra.mxu0 0.0
        %3011 = vmatprep.subr.mxu0 0.0
        %3012 = vmatpush1.msra.mxu0 0.0
        %3013 = vmatprep.subr.mxu0 0.0
        %3014 = vmatpush1.msra.mxu0 0.0
        %3015 = vmatprep.subr.mxu0 0.0
        %3016 = vmatpush1.msra.mxu0 0.0
        %3017 = vmatprep.subr.mxu0 0.0
        %3018 = vmatpush1.msra.mxu0 0.0
        %3019 = vmatprep.subr.mxu0 0.0
        %3020 = vmatpush1.msra.mxu0 %v2994
        %3021 = vmatprep.subr.mxu0 0.0
        %3022 = vmatpush1.msra.mxu0 %v2993
        %3023 = vmatprep.subr.mxu0 0.0
        %3024 = vmatpush1.msra.mxu0 %v2992
        %3025 = vmatprep.subr.mxu0 0.0
        %3026 = vmatpush1.msra.mxu0 %v2991
        %3027 = vmatprep.subr.mxu0 0.0
        %3028 = vmatpush2.msra.mxu0 0.0
        %3029 = vmatprep.subr.mxu0 0.0
        %3030 = vmatpush2.msra.mxu0 0.0
        %3031 = vmatprep.subr.mxu0 0.0
        %3032 = vmatpush2.msra.mxu0 0.0
        %3033 = vmatprep.subr.mxu0 0.0
        %3034 = vmatpush2.msra.mxu0 0.0
        %3035 = vmatprep.subr.mxu0 0.0
        %3036 = vmatpush2.msra.mxu0 0.0
        %3037 = vmatprep.subr.mxu0 0.0
        %3038 = vmatpush2.msra.mxu0 0.0
        %3039 = vmatprep.subr.mxu0 0.0
        %3040 = vmatpush2.msra.mxu0 0.0
        %3041 = vmatprep.subr.mxu0 0.0
        %3042 = vmatpush2.msra.mxu0 0.0
        %3043 = vmatprep.subr.mxu0 0.0
        %3044 = vmatpush2.msra.mxu0 0.0
        %3045 = vmatprep.subr.mxu0 0.0
        %3046 = vmatpush2.msra.mxu0 0.0
        %3047 = vmatprep.subr.mxu0 0.0
        %3048 = vmatpush2.msra.mxu0 0.0
        %3049 = vmatprep.subr.mxu0 0.0
        %3050 = vmatpush2.msra.mxu0 0.0
        %3051 = vmatprep.subr.mxu0 0.0
        %3052 = vmatpush2.msra.mxu0 0.0
        %3053 = vmatprep.subr.mxu0 0.0
        %3054 = vmatpush2.msra.mxu0 0.0
        %3055 = vmatprep.subr.mxu0 0.0
        %3056 = vmatpush2.msra.mxu0 0.0
        %3057 = vmatprep.subr.mxu0 0.0
        %3058 = vmatpush2.msra.mxu0 0.0
        %3059 = vmatprep.mubr.f32.mxu0 0.0
        %3060 = vmatmul.mubr.f32.gmra.mxu0 %v857
        %v3061 = vpop.f32.mrf.mxu0
        %v3062 = vadd.f32 0.0, %v3061
        %v3063 = vpop.f32.mrf.mxu0
        %3064 = vmatprep.mubr.f32.mxu0 0.0
        %3065 = vmatmul.mubr.f32.gmra.mxu0 %v860
        %v3066 = vpop.f32.mrf.mxu0
        %v3067 = vadd.f32 0.0, %v3066
        %v3068 = vpop.f32.mrf.mxu0
        %3069 = vmatprep.mubr.f32.mxu0 0.0
        %3070 = vmatmul.mubr.f32.gmra.mxu0 %v863
        %v3071 = vpop.f32.mrf.mxu0
        %v3072 = vadd.f32 0.0, %v3071
        %v3073 = vpop.f32.mrf.mxu0
        %3074 = vmatprep.mubr.f32.mxu0 0.0
        %3075 = vmatmul.mubr.f32.gmra.mxu0 %v866
        %v3076 = vpop.f32.mrf.mxu0
        %v3077 = vadd.f32 0.0, %v3076
        %v3078 = vpop.f32.mrf.mxu0
        %3079 = vdwg.mxu0
        %v3081 = vsel %vm855, %v2969, 0
        %v3084 = vsel %vm855, %v2974, 0
        %v3087 = vsel %vm855, %v2979, 0
        %v3090 = vsel %vm855, %v2984, 0
        %3092 = vmatprep.subr.mxu0 0.0
        %3093 = vmatpush1.msra.mxu0 0.0
        %3094 = vmatprep.subr.mxu0 0.0
        %3095 = vmatpush1.msra.mxu0 0.0
        %3096 = vmatprep.subr.mxu0 0.0
        %3097 = vmatpush1.msra.mxu0 0.0
        %3098 = vmatprep.subr.mxu0 0.0
        %3099 = vmatpush1.msra.mxu0 0.0
        %3100 = vmatprep.subr.mxu0 0.0
        %3101 = vmatpush1.msra.mxu0 0.0
        %3102 = vmatprep.subr.mxu0 0.0
        %3103 = vmatpush1.msra.mxu0 0.0
        %3104 = vmatprep.subr.mxu0 0.0
        %3105 = vmatpush1.msra.mxu0 0.0
        %3106 = vmatprep.subr.mxu0 0.0
        %3107 = vmatpush1.msra.mxu0 0.0
        %3108 = vmatprep.subr.mxu0 0.0
        %3109 = vmatpush1.msra.mxu0 0.0
        %3110 = vmatprep.subr.mxu0 0.0
        %3111 = vmatpush1.msra.mxu0 0.0
        %3112 = vmatprep.subr.mxu0 0.0
        %3113 = vmatpush1.msra.mxu0 0.0
        %3114 = vmatprep.subr.mxu0 0.0
        %3115 = vmatpush1.msra.mxu0 0.0
        %3116 = vmatprep.subr.mxu0 0.0
        %3117 = vmatpush1.msra.mxu0 %v2990
        %3118 = vmatprep.subr.mxu0 0.0
        %3119 = vmatpush1.msra.mxu0 %v2989
        %3120 = vmatprep.subr.mxu0 0.0
        %3121 = vmatpush1.msra.mxu0 %v2988
        %3122 = vmatprep.subr.mxu0 0.0
        %3123 = vmatpush1.msra.mxu0 %v2987
        %3124 = vmatprep.subr.mxu0 0.0
        %3125 = vmatpush2.msra.mxu0 0.0
        %3126 = vmatprep.subr.mxu0 0.0
        %3127 = vmatpush2.msra.mxu0 0.0
        %3128 = vmatprep.subr.mxu0 0.0
        %3129 = vmatpush2.msra.mxu0 0.0
        %3130 = vmatprep.subr.mxu0 0.0
        %3131 = vmatpush2.msra.mxu0 0.0
        %3132 = vmatprep.subr.mxu0 0.0
        %3133 = vmatpush2.msra.mxu0 0.0
        %3134 = vmatprep.subr.mxu0 0.0
        %3135 = vmatpush2.msra.mxu0 0.0
        %3136 = vmatprep.subr.mxu0 0.0
        %3137 = vmatpush2.msra.mxu0 0.0
        %3138 = vmatprep.subr.mxu0 0.0
        %3139 = vmatpush2.msra.mxu0 0.0
        %3140 = vmatprep.subr.mxu0 0.0
        %3141 = vmatpush2.msra.mxu0 0.0
        %3142 = vmatprep.subr.mxu0 0.0
        %3143 = vmatpush2.msra.mxu0 0.0
        %3144 = vmatprep.subr.mxu0 0.0
        %3145 = vmatpush2.msra.mxu0 0.0
        %3146 = vmatprep.subr.mxu0 0.0
        %3147 = vmatpush2.msra.mxu0 0.0
        %3148 = vmatprep.subr.mxu0 0.0
        %3149 = vmatpush2.msra.mxu0 0.0
        %3150 = vmatprep.subr.mxu0 0.0
        %3151 = vmatpush2.msra.mxu0 0.0
        %3152 = vmatprep.subr.mxu0 0.0
        %3153 = vmatpush2.msra.mxu0 0.0
        %3154 = vmatprep.subr.mxu0 0.0
        %3155 = vmatpush2.msra.mxu0 0.0
        %3156 = vmatprep.mubr.f32.mxu0 0.0
        %3157 = vmatmul.mubr.f32.gmra.mxu0 %v3081
        %v3158 = vpop.f32.mrf.mxu0
        %v3159 = vadd.f32 %v3062, %v3158
        %v3160 = vpop.f32.mrf.mxu0
        %3161 = vmatprep.mubr.f32.mxu0 0.0
        %3162 = vmatmul.mubr.f32.gmra.mxu0 %v3084
        %v3163 = vpop.f32.mrf.mxu0
        %v3164 = vadd.f32 %v3067, %v3163
        %v3165 = vpop.f32.mrf.mxu0
        %3166 = vmatprep.mubr.f32.mxu0 0.0
        %3167 = vmatmul.mubr.f32.gmra.mxu0 %v3087
        %v3168 = vpop.f32.mrf.mxu0
        %v3169 = vadd.f32 %v3072, %v3168
        %v3170 = vpop.f32.mrf.mxu0
        %3171 = vmatprep.mubr.f32.mxu0 0.0
        %3172 = vmatmul.mubr.f32.gmra.mxu0 %v3090
        %v3173 = vpop.f32.mrf.mxu0
        %v3174 = vadd.f32 %v3077, %v3173
        %v3175 = vpop.f32.mrf.mxu0
        %3176 = vdwg.mxu0
        %v3177 = vld [vmem:[%s822] sm:$0x1]
        %v3179 = vlaneseq
        %v3180 = vshrl.u32 %v3179, 7
        %v3181 = vsub.s32 0, %v3180
        %v3182 = vrot.slane %v3177, %v3181
        %v3184 = vadd.f32 %v3159, %v3182
        %v3185 = vadd.f32 %v3164, %v3182
        %v3186 = vadd.f32 %v3169, %v3182
        %v3187 = vadd.f32 %v3174, %v3182
        %v3188 = vmax.f32 %v3184, 0.0
        %v3189 = vmax.f32 %v3185, 0.0
        %v3190 = vmax.f32 %v3186, 0.0
        %v3191 = vmax.f32 %v3187, 0.0
        %v3192 = vld [vmem:[%s827] sm:$0xff]
        %v3193 = vld [vmem:[%s827 + $0x8] sm:$0xff]
        %v3194 = vld [vmem:[%s827 + $0x10] sm:$0xff]
        %v3195 = vld [vmem:[%s827 + $0x18] sm:$0xff]
        %v3196 = vld [vmem:[%s827 + $0x20] sm:$0xff]
        %v3197 = vld [vmem:[%s827 + $0x28] sm:$0xff]
        %v3198 = vld [vmem:[%s827 + $0x30] sm:$0xff]
        %v3199 = vld [vmem:[%s827 + $0x38] sm:$0xff]
        %v3200 = vld [vmem:[%s830] sm:$0x1]
        %v3202 = vlaneseq
        %v3203 = vshrl.u32 %v3202, 7
        %v3204 = vsub.s32 0, %v3203
        %v3205 = vrot.slane %v3200, %v3204
        %vm3207 = vcmask 523264
        %v3209 = vsel %vm3207, %v3188, 0
        %v3212 = vsel %vm3207, %v3189, 0
        %v3215 = vsel %vm3207, %v3190, 0
        %v3218 = vsel %vm3207, %v3191, 0
        %3220 = vmatprep.subr.mxu0 0.0
        %3221 = vmatpush1.msra.mxu0 0.0
        %3222 = vmatprep.subr.mxu0 0.0
        %3223 = vmatpush1.msra.mxu0 0.0
        %3224 = vmatprep.subr.mxu0 0.0
        %3225 = vmatpush1.msra.mxu0 0.0
        %3226 = vmatprep.subr.mxu0 0.0
        %3227 = vmatpush1.msra.mxu0 0.0
        %3228 = vmatprep.subr.mxu0 0.0
        %3229 = vmatpush1.msra.mxu0 0.0
        %3230 = vmatprep.subr.mxu0 0.0
        %3231 = vmatpush1.msra.mxu0 0.0
        %3232 = vmatprep.subr.mxu0 0.0
        %3233 = vmatpush1.msra.mxu0 0.0
        %3234 = vmatprep.subr.mxu0 0.0
        %3235 = vmatpush1.msra.mxu0 0.0
        %3236 = vmatprep.subr.mxu0 0.0
        %3237 = vmatpush1.msra.mxu0 %v3199
        %3238 = vmatprep.subr.mxu0 0.0
        %3239 = vmatpush1.msra.mxu0 %v3198
        %3240 = vmatprep.subr.mxu0 0.0
        %3241 = vmatpush1.msra.mxu0 %v3197
        %3242 = vmatprep.subr.mxu0 0.0
        %3243 = vmatpush1.msra.mxu0 %v3196
        %3244 = vmatprep.subr.mxu0 0.0
        %3245 = vmatpush1.msra.mxu0 %v3195
        %3246 = vmatprep.subr.mxu0 0.0
        %3247 = vmatpush1.msra.mxu0 %v3194
        %3248 = vmatprep.subr.mxu0 0.0
        %3249 = vmatpush1.msra.mxu0 %v3193
        %3250 = vmatprep.subr.mxu0 0.0
        %3251 = vmatpush1.msra.mxu0 %v3192
        %3252 = vmatprep.subr.mxu0 0.0
        %3253 = vmatpush2.msra.mxu0 0.0
        %3254 = vmatprep.subr.mxu0 0.0
        %3255 = vmatpush2.msra.mxu0 0.0
        %3256 = vmatprep.subr.mxu0 0.0
        %3257 = vmatpush2.msra.mxu0 0.0
        %3258 = vmatprep.subr.mxu0 0.0
        %3259 = vmatpush2.msra.mxu0 0.0
        %3260 = vmatprep.subr.mxu0 0.0
        %3261 = vmatpush2.msra.mxu0 0.0
        %3262 = vmatprep.subr.mxu0 0.0
        %3263 = vmatpush2.msra.mxu0 0.0
        %3264 = vmatprep.subr.mxu0 0.0
        %3265 = vmatpush2.msra.mxu0 0.0
        %3266 = vmatprep.subr.mxu0 0.0
        %3267 = vmatpush2.msra.mxu0 0.0
        %3268 = vmatprep.subr.mxu0 0.0
        %3269 = vmatpush2.msra.mxu0 0.0
        %3270 = vmatprep.subr.mxu0 0.0
        %3271 = vmatpush2.msra.mxu0 0.0
        %3272 = vmatprep.subr.mxu0 0.0
        %3273 = vmatpush2.msra.mxu0 0.0
        %3274 = vmatprep.subr.mxu0 0.0
        %3275 = vmatpush2.msra.mxu0 0.0
        %3276 = vmatprep.subr.mxu0 0.0
        %3277 = vmatpush2.msra.mxu0 0.0
        %3278 = vmatprep.subr.mxu0 0.0
        %3279 = vmatpush2.msra.mxu0 0.0
        %3280 = vmatprep.subr.mxu0 0.0
        %3281 = vmatpush2.msra.mxu0 0.0
        %3282 = vmatprep.subr.mxu0 0.0
        %3283 = vmatpush2.msra.mxu0 0.0
        %3284 = vmatprep.mubr.f32.mxu0 0.0
        %3285 = vmatmul.mubr.f32.gmra.mxu0 %v3209
        %v3286 = vpop.f32.mrf.mxu0
        %v3287 = vadd.f32 %v3205, %v3286
        %v3288 = vpop.f32.mrf.mxu0
        %3289 = vmatprep.mubr.f32.mxu0 0.0
        %3290 = vmatmul.mubr.f32.gmra.mxu0 %v3212
        %v3291 = vpop.f32.mrf.mxu0
        %v3292 = vadd.f32 %v3205, %v3291
        %v3293 = vpop.f32.mrf.mxu0
        %3294 = vmatprep.mubr.f32.mxu0 0.0
        %3295 = vmatmul.mubr.f32.gmra.mxu0 %v3215
        %v3296 = vpop.f32.mrf.mxu0
        %v3297 = vadd.f32 %v3205, %v3296
        %v3298 = vpop.f32.mrf.mxu0
        %3299 = vmatprep.mubr.f32.mxu0 0.0
        %3300 = vmatmul.mubr.f32.gmra.mxu0 %v3218
        %v3301 = vpop.f32.mrf.mxu0
        %v3302 = vadd.f32 %v3205, %v3301
        %v3303 = vpop.f32.mrf.mxu0
        %3304 = vdwg.mxu0
        %3305 = vst.msk [vmem:[%s835] sm:$0xff] %vm855, %v3287
        %3306 = vst.msk [vmem:[%s835 + $0x8] sm:$0xff] %vm855, %v3292
        %3307 = vst.msk [vmem:[%s835 + $0x10] sm:$0xff] %vm855, %v3297
        %3308 = vst.msk [vmem:[%s835 + $0x18] sm:$0xff] %vm855, %v3302
        %p3309 = scmp.lt.s32.totalorder %s34, 2
        %s3310 = scalar_select %p3309, %s34, 2
        %s3311 = smul.addr %s3310, 4
        %s3312 = smul.addr %s3311, 8
        %s3313 = scalar_lea.vmem %s17, %s3312
        // Predicated region
        $region97: #{layered_mixed_attention_forward.2} parent=87 // pred_check
          %p3314 = pneg %p484
        $region98: #{layered_mixed_attention_forward.2} parent=87 // pred_check_branch
          %3316 = sbr.rel (%p3314) target = $region100
        $region99: #{layered_mixed_attention_forward.2} parent=87 // pred_region
          _
        $region100: #{layered_mixed_attention_forward.2} parent=87 // pred_fallthru
          _
      $region88: #{layered_mixed_attention_forward.2} parent=5 // pred_fallthru
        _
      %p3317 = scmp.le.s32.totalorder 2, %s29
      // Predicated region
      $region101: #{layered_mixed_attention_forward.2} parent=5 // pred_check
        %p3318 = pneg %p3317
      $region102: #{layered_mixed_attention_forward.2} parent=5 // pred_check_branch
        %3320 = sbr.rel (%p3318) target = $region104
      $region103: #{layered_mixed_attention_forward.2} parent=5 // pred_region
        %s3321 = ssub.s32 %s29, 2
        // Predicated region
        $region105: #{layered_mixed_attention_forward.2} parent=103 // pred_check
          %p3322 = pneg %p490
        $region106: #{layered_mixed_attention_forward.2} parent=103 // pred_check_branch
          %3324 = sbr.rel (%p3322) target = $region108
        $region107: #{layered_mixed_attention_forward.2} parent=103 // pred_region
          %p3325 = scmp.lt.s32.totalorder %s35, 2
          %s3326 = scalar_select %p3325, %s35, 2
          %s3327 = smul.addr %s3326, 4
          %s3328 = smul.addr %s3327, 8
          %s3329 = scalar_lea.vmem %s17, %s3328
        $region108: #{layered_mixed_attention_forward.2} parent=103 // pred_fallthru
          _
      $region104: #{layered_mixed_attention_forward.2} parent=5 // pred_fallthru
        _
    $region6: #{layered_mixed_attention_forward.2} parent=1 // loop_footer
      %s33 = sadd.s32 1, %s29
    $region7: #{layered_mixed_attention_forward.2} parent=1 // loop_footer_branch
      %28 = sbr.rel target = $region3
    $region8: #{layered_mixed_attention_forward.2} parent=1 // loop_exit
      _
    %3330 = vsyncpa [#allocation3], 1
    %s3331 = scalar_lea.sflag [#allocation3], 1
    %3332 = vsyncpa %s3331, 1
    %3333 = vsyncpa [#allocation5], 1
    %s3334 = scalar_lea.sflag [#allocation5], 1
    %3335 = vsyncpa %s3334, 1

// kernel: layered_mixed_attention_forward.3
$region0: #{layered_mixed_attention_forward.3}
  #allocation0 [shape = 'u32[]', space=smem, size = 0x4, offset = 0x4, fixed_abs, tag = 'smem constant byte address 0x4 - core index']
  #allocation1 [shape = 'u32[144,128]{1,0:T(1,128)}', space=vmem, size = 0x12000, scoped, tag = 'internal scratch']
  %s0 = inlined_call_operand.vmem [shape: f32[3,32,1], index: 0, kind: input, shape index: {}]
  %s1 = inlined_call_operand.vmem [shape: f32[2,16], index: 1, kind: input, shape index: {}]
  %s2 = inlined_call_operand.vmem [shape: f32[3,32,32], index: 2, kind: input, shape index: {}, may-alias: {2,3}]
  %s3 = inlined_call_operand.vmem [shape: f32[3,32,32], index: 3, kind: input, shape index: {}, may-alias: {2,3}]
  %s4 = inlined_call_operand.vmem [shape: f32[3,32,32], index: 4, kind: input, shape index: {}]
  %s5 = inlined_call_operand.vmem [shape: f32[3,1,32], index: 5, kind: input, shape index: {}]
  %s6 = inlined_call_operand.vmem [shape: f32[3,32,32], index: 6, kind: input, shape index: {}]
  %s7 = inlined_call_operand.vmem [shape: f32[3,1,32], index: 7, kind: input, shape index: {}]
  %s8 = inlined_call_operand.vmem [shape: f32[3,32,32], index: 8, kind: input, shape index: {}]
  %s9 = inlined_call_operand.vmem [shape: f32[3,1,32], index: 9, kind: input, shape index: {}]
  %s10 = inlined_call_operand.vmem [shape: f32[3,32,32], index: 10, kind: input, shape index: {}]
  %s11 = inlined_call_operand.vmem [shape: f32[3,1,32], index: 11, kind: input, shape index: {}]
  %s12 = inlined_call_operand.vmem [shape: f32[3,32,64], index: 12, kind: input, shape index: {}]
  %s13 = inlined_call_operand.vmem [shape: f32[3,32,64], index: 13, kind: input, shape index: {}]
  %s14 = inlined_call_operand.vmem [shape: f32[3,1,64], index: 14, kind: input, shape index: {}]
  %s15 = inlined_call_operand.vmem [shape: f32[3,64,32], index: 15, kind: input, shape index: {}]
  %s16 = inlined_call_operand.vmem [shape: f32[3,1,32], index: 16, kind: input, shape index: {}]
  %s17 = inlined_call_operand.vmem [shape: f32[3,32,32], index: 17, kind: output, shape index: {}]
  %s18 = sld [smem:[#allocation0]]
  $region101: #{layered_mixed_attention_forward.3} parent=0
    _
  %s20 = ssub.s32 1, %s18
  %s21 = scalar_select 0, %s20, %s18
  loop: start=0, step=1, limit=5
  $region2: #{layered_mixed_attention_forward.3} parent=0 // loop_pre_header
    _
  $region3: #{layered_mixed_attention_forward.3} parent=0 // loop_header
    %s23 = sphi 0, %s27
    %p24 = scmp.ge.s32.totalorder %s23, 5
    %s33 = sphi 0, %s35
    %s36 = sphi 0, %s33
    %s37 = sphi 0, %s36
    %s53 = sphi 0, %s37
    %s57 = sphi 0, %s57
    %s59 = sphi 0, %s57
    %s60 = sphi 0, %s59
    %s74 = sphi 0, %s60
    %s80 = sphi 0, %s82
    %s83 = sphi 0, %s80
    %s84 = sphi 0, %s83
    %s100 = sphi 0, %s84
    %s104 = sphi 0, %s104
    %s106 = sphi 0, %s104
    %s107 = sphi 0, %s106
    %s121 = sphi 0, %s107
    %s127 = sphi 0, %s129
    %s130 = sphi 0, %s127
    %s131 = sphi 0, %s130
    %s147 = sphi 0, %s131
    %s153 = sphi 0, %s155
    %s156 = sphi 0, %s153
    %s157 = sphi 0, %s156
    %s173 = sphi 0, %s157
    %s179 = sphi 0, %s181
    %s182 = sphi 0, %s179
    %s183 = sphi 0, %s182
    %s199 = sphi 0, %s183
    %s205 = sphi 0, %s207
    %s208 = sphi 0, %s205
    %s209 = sphi 0, %s208
    %s225 = sphi 0, %s209
    %s231 = sphi 0, %s233
    %s234 = sphi 0, %s231
    %s235 = sphi 0, %s234
    %s251 = sphi 0, %s235
    %s257 = sphi 0, %s259
    %s260 = sphi 0, %s257
    %s261 = sphi 0, %s260
    %s277 = sphi 0, %s261
    %s283 = sphi 0, %s285
    %s286 = sphi 0, %s283
    %s287 = sphi 0, %s286
    %s303 = sphi 0, %s287
    %s309 = sphi 0, %s311
    %s312 = sphi 0, %s309
    %s313 = sphi 0, %s312
    %s329 = sphi 0, %s313
    %s335 = sphi 0, %s337
    %s338 = sphi 0, %s335
    %s339 = sphi 0, %s338
    %s355 = sphi 0, %s339
    %s361 = sphi 0, %s363
    %s364 = sphi 0, %s361
    %s365 = sphi 0, %s364
    %s381 = sphi 0, %s365
    %s387 = sphi 0, %s389
    %s390 = sphi 0, %s387
    %s391 = sphi 0, %s390
    %s407 = sphi 0, %s391
    %s413 = sphi 0, %s415
    %s416 = sphi 0, %s413
    %s417 = sphi 0, %s416
    %s433 = sphi 0, %s417
    %s439 = sphi 0, %s441
    %s442 = sphi 0, %s439
    %s443 = sphi 0, %s442
    %s459 = sphi 0, %s443
    %s465 = sphi 0, %s467
    %s468 = sphi 0, %s465
    %s469 = sphi 0, %s468
    %s485 = sphi 0, %s469
  $region4: #{layered_mixed_attention_forward.3} parent=0 // loop_header_branch
    %26 = sbr.rel (%p24) target = $region8
  $region5: #{layered_mixed_attention_forward.3} parent=0 // loop_body
    %s28 = ssub.s32 %s23, 1
    %s29 = ssub.s32 %s23, 2
    %s30 = sadd.s32 %s23, 1
    %s31 = ssub.s32 %s23, %s30
    %p32 = scmp.eq.s32.totalorder %s31, 0
    %s34 = sadd.s32 %s33, 1
    %s35 = scalar_select %p32, %s33, %s34
    %p38 = pneg %p32
    %p39 = scmp.eq.s32.totalorder %s23, 2
    %p40 = por %p38, %p39
    %p41 = scmp.ne.s32.totalorder %s33, %s36
    %p42 = scmp.eq.s32.totalorder %s23, 0
    %p43 = por %p41, %p42
    %p44 = scmp.ne.s32.totalorder %s33, %s36
    %p45 = scmp.eq.s32.totalorder %s28, 2
    %p46 = por %p44, %p45
    %p47 = scmp.ne.s32.totalorder %s36, %s37
    %p48 = scmp.eq.s32.totalorder %s28, 0
    %p49 = por %p47, %p48
    %p50 = scmp.ne.s32.totalorder %s36, %s37
    %p51 = scmp.eq.s32.totalorder %s29, 2
    %p52 = por %p50, %p51
    %p54 = scmp.ne.s32.totalorder %s37, %s53
    %p55 = scmp.eq.s32.totalorder %s29, 0
    %p56 = por %p54, %p55
    %s58 = sadd.s32 %s57, 1
    %p61 = scmp.eq.s32.totalorder %s23, 2
    %p62 = scmp.ne.s32.totalorder %s57, %s59
    %p63 = scmp.eq.s32.totalorder %s23, 0
    %p64 = por %p62, %p63
    %p65 = scmp.ne.s32.totalorder %s57, %s59
    %p66 = scmp.eq.s32.totalorder %s28, 2
    %p67 = por %p65, %p66
    %p68 = scmp.ne.s32.totalorder %s59, %s60
    %p69 = scmp.eq.s32.totalorder %s28, 0
    %p70 = por %p68, %p69
    %p71 = scmp.ne.s32.totalorder %s59, %s60
    %p72 = scmp.eq.s32.totalorder %s29, 2
    %p73 = por %p71, %p72
    %p75 = scmp.ne.s32.totalorder %s60, %s74
    %p76 = scmp.eq.s32.totalorder %s29, 0
    %p77 = por %p75, %p76
    %s78 = ssub.s32 %s23, %s30
    %p79 = scmp.eq.s32.totalorder %s78, 0
    %s81 = sadd.s32 %s80, 1
    %s82 = scalar_select %p79, %s80, %s81
    %p85 = pneg %p79
    %p86 = scmp.eq.s32.totalorder %s23, 2
    %p87 = por %p85, %p86
    %p88 = scmp.ne.s32.totalorder %s80, %s83
    %p89 = scmp.eq.s32.totalorder %s23, 0
    %p90 = por %p88, %p89
    %p91 = scmp.ne.s32.totalorder %s80, %s83
    %p92 = scmp.eq.s32.totalorder %s28, 2
    %p93 = por %p91, %p92
    %p94 = scmp.ne.s32.totalorder %s83, %s84
    %p95 = scmp.eq.s32.totalorder %s28, 0
    %p96 = por %p94, %p95
    %p97 = scmp.ne.s32.totalorder %s83, %s84
    %p98 = scmp.eq.s32.totalorder %s29, 2
    %p99 = por %p97, %p98
    %p101 = scmp.ne.s32.totalorder %s84, %s100
    %p102 = scmp.eq.s32.totalorder %s29, 0
    %p103 = por %p101, %p102
    %s105 = sadd.s32 %s104, 1
    %p108 = scmp.eq.s32.totalorder %s23, 2
    %p109 = scmp.ne.s32.totalorder %s104, %s106
    %p110 = scmp.eq.s32.totalorder %s23, 0
    %p111 = por %p109, %p110
    %p112 = scmp.ne.s32.totalorder %s104, %s106
    %p113 = scmp.eq.s32.totalorder %s28, 2
    %p114 = por %p112, %p113
    %p115 = scmp.ne.s32.totalorder %s106, %s107
    %p116 = scmp.eq.s32.totalorder %s28, 0
    %p117 = por %p115, %p116
    %p118 = scmp.ne.s32.totalorder %s106, %s107
    %p119 = scmp.eq.s32.totalorder %s29, 2
    %p120 = por %p118, %p119
    %p122 = scmp.ne.s32.totalorder %s107, %s121
    %p123 = scmp.eq.s32.totalorder %s29, 0
    %p124 = por %p122, %p123
    %s125 = ssub.s32 %s23, %s30
    %p126 = scmp.eq.s32.totalorder %s125, 0
    %s128 = sadd.s32 %s127, 1
    %s129 = scalar_select %p126, %s127, %s128
    %p132 = pneg %p126
    %p133 = scmp.eq.s32.totalorder %s23, 2
    %p134 = por %p132, %p133
    %p135 = scmp.ne.s32.totalorder %s127, %s130
    %p136 = scmp.eq.s32.totalorder %s23, 0
    %p137 = por %p135, %p136
    %p138 = scmp.ne.s32.totalorder %s127, %s130
    %p139 = scmp.eq.s32.totalorder %s28, 2
    %p140 = por %p138, %p139
    %p141 = scmp.ne.s32.totalorder %s130, %s131
    %p142 = scmp.eq.s32.totalorder %s28, 0
    %p143 = por %p141, %p142
    %p144 = scmp.ne.s32.totalorder %s130, %s131
    %p145 = scmp.eq.s32.totalorder %s29, 2
    %p146 = por %p144, %p145
    %p148 = scmp.ne.s32.totalorder %s131, %s147
    %p149 = scmp.eq.s32.totalorder %s29, 0
    %p150 = por %p148, %p149
    %s151 = ssub.s32 %s23, %s30
    %p152 = scmp.eq.s32.totalorder %s151, 0
    %s154 = sadd.s32 %s153, 1
    %s155 = scalar_select %p152, %s153, %s154
    %p158 = pneg %p152
    %p159 = scmp.eq.s32.totalorder %s23, 2
    %p160 = por %p158, %p159
    %p161 = scmp.ne.s32.totalorder %s153, %s156
    %p162 = scmp.eq.s32.totalorder %s23, 0
    %p163 = por %p161, %p162
    %p164 = scmp.ne.s32.totalorder %s153, %s156
    %p165 = scmp.eq.s32.totalorder %s28, 2
    %p166 = por %p164, %p165
    %p167 = scmp.ne.s32.totalorder %s156, %s157
    %p168 = scmp.eq.s32.totalorder %s28, 0
    %p169 = por %p167, %p168
    %p170 = scmp.ne.s32.totalorder %s156, %s157
    %p171 = scmp.eq.s32.totalorder %s29, 2
    %p172 = por %p170, %p171
    %p174 = scmp.ne.s32.totalorder %s157, %s173
    %p175 = scmp.eq.s32.totalorder %s29, 0
    %p176 = por %p174, %p175
    %s177 = ssub.s32 %s23, %s30
    %p178 = scmp.eq.s32.totalorder %s177, 0
    %s180 = sadd.s32 %s179, 1
    %s181 = scalar_select %p178, %s179, %s180
    %p184 = pneg %p178
    %p185 = scmp.eq.s32.totalorder %s23, 2
    %p186 = por %p184, %p185
    %p187 = scmp.ne.s32.totalorder %s179, %s182
    %p188 = scmp.eq.s32.totalorder %s23, 0
    %p189 = por %p187, %p188
    %p190 = scmp.ne.s32.totalorder %s179, %s182
    %p191 = scmp.eq.s32.totalorder %s28, 2
    %p192 = por %p190, %p191
    %p193 = scmp.ne.s32.totalorder %s182, %s183
    %p194 = scmp.eq.s32.totalorder %s28, 0
    %p195 = por %p193, %p194
    %p196 = scmp.ne.s32.totalorder %s182, %s183
    %p197 = scmp.eq.s32.totalorder %s29, 2
    %p198 = por %p196, %p197
    %p200 = scmp.ne.s32.totalorder %s183, %s199
    %p201 = scmp.eq.s32.totalorder %s29, 0
    %p202 = por %p200, %p201
    %s203 = ssub.s32 %s23, %s30
    %p204 = scmp.eq.s32.totalorder %s203, 0
    %s206 = sadd.s32 %s205, 1
    %s207 = scalar_select %p204, %s205, %s206
    %p210 = pneg %p204
    %p211 = scmp.eq.s32.totalorder %s23, 2
    %p212 = por %p210, %p211
    %p213 = scmp.ne.s32.totalorder %s205, %s208
    %p214 = scmp.eq.s32.totalorder %s23, 0
    %p215 = por %p213, %p214
    %p216 = scmp.ne.s32.totalorder %s205, %s208
    %p217 = scmp.eq.s32.totalorder %s28, 2
    %p218 = por %p216, %p217
    %p219 = scmp.ne.s32.totalorder %s208, %s209
    %p220 = scmp.eq.s32.totalorder %s28, 0
    %p221 = por %p219, %p220
    %p222 = scmp.ne.s32.totalorder %s208, %s209
    %p223 = scmp.eq.s32.totalorder %s29, 2
    %p224 = por %p222, %p223
    %p226 = scmp.ne.s32.totalorder %s209, %s225
    %p227 = scmp.eq.s32.totalorder %s29, 0
    %p228 = por %p226, %p227
    %s229 = ssub.s32 %s23, %s30
    %p230 = scmp.eq.s32.totalorder %s229, 0
    %s232 = sadd.s32 %s231, 1
    %s233 = scalar_select %p230, %s231, %s232
    %p236 = pneg %p230
    %p237 = scmp.eq.s32.totalorder %s23, 2
    %p238 = por %p236, %p237
    %p239 = scmp.ne.s32.totalorder %s231, %s234
    %p240 = scmp.eq.s32.totalorder %s23, 0
    %p241 = por %p239, %p240
    %p242 = scmp.ne.s32.totalorder %s231, %s234
    %p243 = scmp.eq.s32.totalorder %s28, 2
    %p244 = por %p242, %p243
    %p245 = scmp.ne.s32.totalorder %s234, %s235
    %p246 = scmp.eq.s32.totalorder %s28, 0
    %p247 = por %p245, %p246
    %p248 = scmp.ne.s32.totalorder %s234, %s235
    %p249 = scmp.eq.s32.totalorder %s29, 2
    %p250 = por %p248, %p249
    %p252 = scmp.ne.s32.totalorder %s235, %s251
    %p253 = scmp.eq.s32.totalorder %s29, 0
    %p254 = por %p252, %p253
    %s255 = ssub.s32 %s23, %s30
    %p256 = scmp.eq.s32.totalorder %s255, 0
    %s258 = sadd.s32 %s257, 1
    %s259 = scalar_select %p256, %s257, %s258
    %p262 = pneg %p256
    %p263 = scmp.eq.s32.totalorder %s23, 2
    %p264 = por %p262, %p263
    %p265 = scmp.ne.s32.totalorder %s257, %s260
    %p266 = scmp.eq.s32.totalorder %s23, 0
    %p267 = por %p265, %p266
    %p268 = scmp.ne.s32.totalorder %s257, %s260
    %p269 = scmp.eq.s32.totalorder %s28, 2
    %p270 = por %p268, %p269
    %p271 = scmp.ne.s32.totalorder %s260, %s261
    %p272 = scmp.eq.s32.totalorder %s28, 0
    %p273 = por %p271, %p272
    %p274 = scmp.ne.s32.totalorder %s260, %s261
    %p275 = scmp.eq.s32.totalorder %s29, 2
    %p276 = por %p274, %p275
    %p278 = scmp.ne.s32.totalorder %s261, %s277
    %p279 = scmp.eq.s32.totalorder %s29, 0
    %p280 = por %p278, %p279
    %s281 = ssub.s32 %s23, %s30
    %p282 = scmp.eq.s32.totalorder %s281, 0
    %s284 = sadd.s32 %s283, 1
    %s285 = scalar_select %p282, %s283, %s284
    %p288 = pneg %p282
    %p289 = scmp.eq.s32.totalorder %s23, 2
    %p290 = por %p288, %p289
    %p291 = scmp.ne.s32.totalorder %s283, %s286
    %p292 = scmp.eq.s32.totalorder %s23, 0
    %p293 = por %p291, %p292
    %p294 = scmp.ne.s32.totalorder %s283, %s286
    %p295 = scmp.eq.s32.totalorder %s28, 2
    %p296 = por %p294, %p295
    %p297 = scmp.ne.s32.totalorder %s286, %s287
    %p298 = scmp.eq.s32.totalorder %s28, 0
    %p299 = por %p297, %p298
    %p300 = scmp.ne.s32.totalorder %s286, %s287
    %p301 = scmp.eq.s32.totalorder %s29, 2
    %p302 = por %p300, %p301
    %p304 = scmp.ne.s32.totalorder %s287, %s303
    %p305 = scmp.eq.s32.totalorder %s29, 0
    %p306 = por %p304, %p305
    %s307 = ssub.s32 %s23, %s30
    %p308 = scmp.eq.s32.totalorder %s307, 0
    %s310 = sadd.s32 %s309, 1
    %s311 = scalar_select %p308, %s309, %s310
    %p314 = pneg %p308
    %p315 = scmp.eq.s32.totalorder %s23, 2
    %p316 = por %p314, %p315
    %p317 = scmp.ne.s32.totalorder %s309, %s312
    %p318 = scmp.eq.s32.totalorder %s23, 0
    %p319 = por %p317, %p318
    %p320 = scmp.ne.s32.totalorder %s309, %s312
    %p321 = scmp.eq.s32.totalorder %s28, 2
    %p322 = por %p320, %p321
    %p323 = scmp.ne.s32.totalorder %s312, %s313
    %p324 = scmp.eq.s32.totalorder %s28, 0
    %p325 = por %p323, %p324
    %p326 = scmp.ne.s32.totalorder %s312, %s313
    %p327 = scmp.eq.s32.totalorder %s29, 2
    %p328 = por %p326, %p327
    %p330 = scmp.ne.s32.totalorder %s313, %s329
    %p331 = scmp.eq.s32.totalorder %s29, 0
    %p332 = por %p330, %p331
    %s333 = ssub.s32 %s23, %s30
    %p334 = scmp.eq.s32.totalorder %s333, 0
    %s336 = sadd.s32 %s335, 1
    %s337 = scalar_select %p334, %s335, %s336
    %p340 = pneg %p334
    %p341 = scmp.eq.s32.totalorder %s23, 2
    %p342 = por %p340, %p341
    %p343 = scmp.ne.s32.totalorder %s335, %s338
    %p344 = scmp.eq.s32.totalorder %s23, 0
    %p345 = por %p343, %p344
    %p346 = scmp.ne.s32.totalorder %s335, %s338
    %p347 = scmp.eq.s32.totalorder %s28, 2
    %p348 = por %p346, %p347
    %p349 = scmp.ne.s32.totalorder %s338, %s339
    %p350 = scmp.eq.s32.totalorder %s28, 0
    %p351 = por %p349, %p350
    %p352 = scmp.ne.s32.totalorder %s338, %s339
    %p353 = scmp.eq.s32.totalorder %s29, 2
    %p354 = por %p352, %p353
    %p356 = scmp.ne.s32.totalorder %s339, %s355
    %p357 = scmp.eq.s32.totalorder %s29, 0
    %p358 = por %p356, %p357
    %s359 = ssub.s32 %s23, %s30
    %p360 = scmp.eq.s32.totalorder %s359, 0
    %s362 = sadd.s32 %s361, 1
    %s363 = scalar_select %p360, %s361, %s362
    %p366 = pneg %p360
    %p367 = scmp.eq.s32.totalorder %s23, 2
    %p368 = por %p366, %p367
    %p369 = scmp.ne.s32.totalorder %s361, %s364
    %p370 = scmp.eq.s32.totalorder %s23, 0
    %p371 = por %p369, %p370
    %p372 = scmp.ne.s32.totalorder %s361, %s364
    %p373 = scmp.eq.s32.totalorder %s28, 2
    %p374 = por %p372, %p373
    %p375 = scmp.ne.s32.totalorder %s364, %s365
    %p376 = scmp.eq.s32.totalorder %s28, 0
    %p377 = por %p375, %p376
    %p378 = scmp.ne.s32.totalorder %s364, %s365
    %p379 = scmp.eq.s32.totalorder %s29, 2
    %p380 = por %p378, %p379
    %p382 = scmp.ne.s32.totalorder %s365, %s381
    %p383 = scmp.eq.s32.totalorder %s29, 0
    %p384 = por %p382, %p383
    %s385 = ssub.s32 %s23, %s30
    %p386 = scmp.eq.s32.totalorder %s385, 0
    %s388 = sadd.s32 %s387, 1
    %s389 = scalar_select %p386, %s387, %s388
    %p392 = pneg %p386
    %p393 = scmp.eq.s32.totalorder %s23, 2
    %p394 = por %p392, %p393
    %p395 = scmp.ne.s32.totalorder %s387, %s390
    %p396 = scmp.eq.s32.totalorder %s23, 0
    %p397 = por %p395, %p396
    %p398 = scmp.ne.s32.totalorder %s387, %s390
    %p399 = scmp.eq.s32.totalorder %s28, 2
    %p400 = por %p398, %p399
    %p401 = scmp.ne.s32.totalorder %s390, %s391
    %p402 = scmp.eq.s32.totalorder %s28, 0
    %p403 = por %p401, %p402
    %p404 = scmp.ne.s32.totalorder %s390, %s391
    %p405 = scmp.eq.s32.totalorder %s29, 2
    %p406 = por %p404, %p405
    %p408 = scmp.ne.s32.totalorder %s391, %s407
    %p409 = scmp.eq.s32.totalorder %s29, 0
    %p410 = por %p408, %p409
    %s411 = ssub.s32 %s23, %s30
    %p412 = scmp.eq.s32.totalorder %s411, 0
    %s414 = sadd.s32 %s413, 1
    %s415 = scalar_select %p412, %s413, %s414
    %p418 = pneg %p412
    %p419 = scmp.eq.s32.totalorder %s23, 2
    %p420 = por %p418, %p419
    %p421 = scmp.ne.s32.totalorder %s413, %s416
    %p422 = scmp.eq.s32.totalorder %s23, 0
    %p423 = por %p421, %p422
    %p424 = scmp.ne.s32.totalorder %s413, %s416
    %p425 = scmp.eq.s32.totalorder %s28, 2
    %p426 = por %p424, %p425
    %p427 = scmp.ne.s32.totalorder %s416, %s417
    %p428 = scmp.eq.s32.totalorder %s28, 0
    %p429 = por %p427, %p428
    %p430 = scmp.ne.s32.totalorder %s416, %s417
    %p431 = scmp.eq.s32.totalorder %s29, 2
    %p432 = por %p430, %p431
    %p434 = scmp.ne.s32.totalorder %s417, %s433
    %p435 = scmp.eq.s32.totalorder %s29, 0
    %p436 = por %p434, %p435
    %s437 = ssub.s32 %s23, %s30
    %p438 = scmp.eq.s32.totalorder %s437, 0
    %s440 = sadd.s32 %s439, 1
    %s441 = scalar_select %p438, %s439, %s440
    %p444 = pneg %p438
    %p445 = scmp.eq.s32.totalorder %s23, 2
    %p446 = por %p444, %p445
    %p447 = scmp.ne.s32.totalorder %s439, %s442
    %p448 = scmp.eq.s32.totalorder %s23, 0
    %p449 = por %p447, %p448
    %p450 = scmp.ne.s32.totalorder %s439, %s442
    %p451 = scmp.eq.s32.totalorder %s28, 2
    %p452 = por %p450, %p451
    %p453 = scmp.ne.s32.totalorder %s442, %s443
    %p454 = scmp.eq.s32.totalorder %s28, 0
    %p455 = por %p453, %p454
    %p456 = scmp.ne.s32.totalorder %s442, %s443
    %p457 = scmp.eq.s32.totalorder %s29, 2
    %p458 = por %p456, %p457
    %p460 = scmp.ne.s32.totalorder %s443, %s459
    %p461 = scmp.eq.s32.totalorder %s29, 0
    %p462 = por %p460, %p461
    %s463 = ssub.s32 %s23, %s30
    %p464 = scmp.eq.s32.totalorder %s463, 0
    %s466 = sadd.s32 %s465, 1
    %s467 = scalar_select %p464, %s465, %s466
    %p470 = pneg %p464
    %p471 = scmp.eq.s32.totalorder %s23, 2
    %p472 = por %p470, %p471
    %p473 = scmp.ne.s32.totalorder %s465, %s468
    %p474 = scmp.eq.s32.totalorder %s23, 0
    %p475 = por %p473, %p474
    %p476 = scmp.ne.s32.totalorder %s465, %s468
    %p477 = scmp.eq.s32.totalorder %s28, 2
    %p478 = por %p476, %p477
    %p479 = scmp.ne.s32.totalorder %s468, %s469
    %p480 = scmp.eq.s32.totalorder %s28, 0
    %p481 = por %p479, %p480
    %p482 = scmp.ne.s32.totalorder %s468, %s469
    %p483 = scmp.eq.s32.totalorder %s29, 2
    %p484 = por %p482, %p483
    %p486 = scmp.ne.s32.totalorder %s469, %s485
    %p487 = scmp.eq.s32.totalorder %s29, 0
    %p488 = por %p486, %p487
    %p489 = scmp.le.s32.totalorder 1, %s23
    %p490 = scmp.lt.s32.totalorder %s23, 4
    %p491 = pnand %p489, %p490
    %p492 = pneg %p491
    // Predicated region
    $region9: #{layered_mixed_attention_forward.3} parent=5 // pred_check
      _
    $region10: #{layered_mixed_attention_forward.3} parent=5 // pred_check_branch
      %494 = sbr.rel (%p491) target = $region12
    $region11: #{layered_mixed_attention_forward.3} parent=5 // pred_region
      %s495 = ssub.s32 %s23, 1
      // Predicated region
      $region13: #{layered_mixed_attention_forward.3} parent=11 // pred_check
        %p496 = pneg %p70
      $region14: #{layered_mixed_attention_forward.3} parent=11 // pred_check_branch
        %498 = sbr.rel (%p496) target = $region16
      $region15: #{layered_mixed_attention_forward.3} parent=11 // pred_region
        _
      $region16: #{layered_mixed_attention_forward.3} parent=11 // pred_fallthru
        _
      // Predicated region
      $region17: #{layered_mixed_attention_forward.3} parent=11 // pred_check
        %p499 = pneg %p117
      $region18: #{layered_mixed_attention_forward.3} parent=11 // pred_check_branch
        %501 = sbr.rel (%p499) target = $region20
      $region19: #{layered_mixed_attention_forward.3} parent=11 // pred_region
        %s502 = scalar_lea.vmem %s3, 32
      $region20: #{layered_mixed_attention_forward.3} parent=11 // pred_fallthru
        _
    $region12: #{layered_mixed_attention_forward.3} parent=5 // pred_fallthru
      _
    %p503 = scmp.lt.s32.totalorder %s23, 3
    // Predicated region
    $region21: #{layered_mixed_attention_forward.3} parent=5 // pred_check
      %p504 = pneg %p503
    $region22: #{layered_mixed_attention_forward.3} parent=5 // pred_check_branch
      %506 = sbr.rel (%p504) target = $region24
    $region23: #{layered_mixed_attention_forward.3} parent=5 // pred_region
      // Predicated region
      $region25: #{layered_mixed_attention_forward.3} parent=23 // pred_check
        %p507 = pneg %p43
      $region26: #{layered_mixed_attention_forward.3} parent=23 // pred_check_branch
        %509 = sbr.rel (%p507) target = $region28
      $region27: #{layered_mixed_attention_forward.3} parent=23 // pred_region
        %p510 = scmp.lt.s32.totalorder %s23, 2
        %s511 = scalar_select %p510, %s23, 2
        %s512 = smul.addr %s511, 4
        %s513 = smul.addr %s512, 8
        %s514 = scalar_lea.vmem %s0, %s513
      $region28: #{layered_mixed_attention_forward.3} parent=23 // pred_fallthru
        _
      // Predicated region
      $region29: #{layered_mixed_attention_forward.3} parent=23 // pred_check
        %p515 = pneg %p90
      $region30: #{layered_mixed_attention_forward.3} parent=23 // pred_check_branch
        %517 = sbr.rel (%p515) target = $region32
      $region31: #{layered_mixed_attention_forward.3} parent=23 // pred_region
        %p518 = scmp.lt.s32.totalorder %s23, 2
        %s519 = scalar_select %p518, %s23, 2
        %s520 = smul.addr %s519, 4
        %s521 = smul.addr %s520, 8
        %s522 = scalar_lea.vmem %s2, %s521
      $region32: #{layered_mixed_attention_forward.3} parent=23 // pred_fallthru
        _
      // Predicated region
      $region33: #{layered_mixed_attention_forward.3} parent=23 // pred_check
        %p523 = pneg %p137
      $region34: #{layered_mixed_attention_forward.3} parent=23 // pred_check_branch
        %525 = sbr.rel (%p523) target = $region36
      $region35: #{layered_mixed_attention_forward.3} parent=23 // pred_region
        %p526 = scmp.lt.s32.totalorder %s23, 2
        %s527 = scalar_select %p526, %s23, 2
        %s528 = smul.addr %s527, 4
        %s529 = smul.addr %s528, 8
        %s530 = scalar_lea.vmem %s4, %s529
      $region36: #{layered_mixed_attention_forward.3} parent=23 // pred_fallthru
        _
      // Predicated region
      $region37: #{layered_mixed_attention_forward.3} parent=23 // pred_check
        %p531 = pneg %p163
      $region38: #{layered_mixed_attention_forward.3} parent=23 // pred_check_branch
        %533 = sbr.rel (%p531) target = $region40
      $region39: #{layered_mixed_attention_forward.3} parent=23 // pred_region
        %p534 = scmp.lt.s32.totalorder %s23, 2
        %s535 = scalar_select %p534, %s23, 2
        %s536 = scalar_lea.vmem %s5, %s535
      $region40: #{layered_mixed_attention_forward.3} parent=23 // pred_fallthru
        _
      // Predicated region
      $region41: #{layered_mixed_attention_forward.3} parent=23 // pred_check
        %p537 = pneg %p189
      $region42: #{layered_mixed_attention_forward.3} parent=23 // pred_check_branch
        %539 = sbr.rel (%p537) target = $region44
      $region43: #{layered_mixed_attention_forward.3} parent=23 // pred_region
        %p540 = scmp.lt.s32.totalorder %s23, 2
        %s541 = scalar_select %p540, %s23, 2
        %s542 = smul.addr %s541, 4
        %s543 = smul.addr %s542, 8
        %s544 = scalar_lea.vmem %s6, %s543
      $region44: #{layered_mixed_attention_forward.3} parent=23 // pred_fallthru
        _
      // Predicated region
      $region45: #{layered_mixed_attention_forward.3} parent=23 // pred_check
        %p545 = pneg %p215
      $region46: #{layered_mixed_attention_forward.3} parent=23 // pred_check_branch
        %547 = sbr.rel (%p545) target = $region48
      $region47: #{layered_mixed_attention_forward.3} parent=23 // pred_region
        %p548 = scmp.lt.s32.totalorder %s23, 2
        %s549 = scalar_select %p548, %s23, 2
        %s550 = scalar_lea.vmem %s7, %s549
      $region48: #{layered_mixed_attention_forward.3} parent=23 // pred_fallthru
        _
      // Predicated region
      $region49: #{layered_mixed_attention_forward.3} parent=23 // pred_check
        %p551 = pneg %p241
      $region50: #{layered_mixed_attention_forward.3} parent=23 // pred_check_branch
        %553 = sbr.rel (%p551) target = $region52
      $region51: #{layered_mixed_attention_forward.3} parent=23 // pred_region
        %p554 = scmp.lt.s32.totalorder %s23, 2
        %s555 = scalar_select %p554, %s23, 2
        %s556 = smul.addr %s555, 4
        %s557 = smul.addr %s556, 8
        %s558 = scalar_lea.vmem %s8, %s557
      $region52: #{layered_mixed_attention_forward.3} parent=23 // pred_fallthru
        _
      // Predicated region
      $region53: #{layered_mixed_attention_forward.3} parent=23 // pred_check
        %p559 = pneg %p267
      $region54: #{layered_mixed_attention_forward.3} parent=23 // pred_check_branch
        %561 = sbr.rel (%p559) target = $region56
      $region55: #{layered_mixed_attention_forward.3} parent=23 // pred_region
        %p562 = scmp.lt.s32.totalorder %s23, 2
        %s563 = scalar_select %p562, %s23, 2
        %s564 = scalar_lea.vmem %s9, %s563
      $region56: #{layered_mixed_attention_forward.3} parent=23 // pred_fallthru
        _
      // Predicated region
      $region57: #{layered_mixed_attention_forward.3} parent=23 // pred_check
        %p565 = pneg %p293
      $region58: #{layered_mixed_attention_forward.3} parent=23 // pred_check_branch
        %567 = sbr.rel (%p565) target = $region60
      $region59: #{layered_mixed_attention_forward.3} parent=23 // pred_region
        %p568 = scmp.lt.s32.totalorder %s23, 2
        %s569 = scalar_select %p568, %s23, 2
        %s570 = smul.addr %s569, 4
        %s571 = smul.addr %s570, 8
        %s572 = scalar_lea.vmem %s10, %s571
      $region60: #{layered_mixed_attention_forward.3} parent=23 // pred_fallthru
        _
      // Predicated region
      $region61: #{layered_mixed_attention_forward.3} parent=23 // pred_check
        %p573 = pneg %p319
      $region62: #{layered_mixed_attention_forward.3} parent=23 // pred_check_branch
        %575 = sbr.rel (%p573) target = $region64
      $region63: #{layered_mixed_attention_forward.3} parent=23 // pred_region
        %p576 = scmp.lt.s32.totalorder %s23, 2
        %s577 = scalar_select %p576, %s23, 2
        %s578 = scalar_lea.vmem %s11, %s577
      $region64: #{layered_mixed_attention_forward.3} parent=23 // pred_fallthru
        _
      // Predicated region
      $region65: #{layered_mixed_attention_forward.3} parent=23 // pred_check
        %p579 = pneg %p345
      $region66: #{layered_mixed_attention_forward.3} parent=23 // pred_check_branch
        %581 = sbr.rel (%p579) target = $region68
      $region67: #{layered_mixed_attention_forward.3} parent=23 // pred_region
        %p582 = scmp.lt.s32.totalorder %s23, 2
        %s583 = scalar_select %p582, %s23, 2
        %s584 = smul.addr %s583, 4
        %s585 = smul.addr %s584, 8
        %s586 = scalar_lea.vmem %s12, %s585
      $region68: #{layered_mixed_attention_forward.3} parent=23 // pred_fallthru
        _
      // Predicated region
      $region69: #{layered_mixed_attention_forward.3} parent=23 // pred_check
        %p587 = pneg %p371
      $region70: #{layered_mixed_attention_forward.3} parent=23 // pred_check_branch
        %589 = sbr.rel (%p587) target = $region72
      $region71: #{layered_mixed_attention_forward.3} parent=23 // pred_region
        %p590 = scmp.lt.s32.totalorder %s23, 2
        %s591 = scalar_select %p590, %s23, 2
        %s592 = smul.addr %s591, 4
        %s593 = smul.addr %s592, 8
        %s594 = scalar_lea.vmem %s13, %s593
      $region72: #{layered_mixed_attention_forward.3} parent=23 // pred_fallthru
        _
      // Predicated region
      $region73: #{layered_mixed_attention_forward.3} parent=23 // pred_check
        %p595 = pneg %p397
      $region74: #{layered_mixed_attention_forward.3} parent=23 // pred_check_branch
        %597 = sbr.rel (%p595) target = $region76
      $region75: #{layered_mixed_attention_forward.3} parent=23 // pred_region
        %p598 = scmp.lt.s32.totalorder %s23, 2
        %s599 = scalar_select %p598, %s23, 2
        %s600 = scalar_lea.vmem %s14, %s599
      $region76: #{layered_mixed_attention_forward.3} parent=23 // pred_fallthru
        _
      // Predicated region
      $region77: #{layered_mixed_attention_forward.3} parent=23 // pred_check
        %p601 = pneg %p423
      $region78: #{layered_mixed_attention_forward.3} parent=23 // pred_check_branch
        %603 = sbr.rel (%p601) target = $region80
      $region79: #{layered_mixed_attention_forward.3} parent=23 // pred_region
        %p604 = scmp.lt.s32.totalorder %s23, 2
        %s605 = scalar_select %p604, %s23, 2
        %s606 = smul.addr %s605, 8
        %s607 = smul.addr %s606, 8
        %s608 = scalar_lea.vmem %s15, %s607
      $region80: #{layered_mixed_attention_forward.3} parent=23 // pred_fallthru
        _
      // Predicated region
      $region81: #{layered_mixed_attention_forward.3} parent=23 // pred_check
        %p609 = pneg %p449
      $region82: #{layered_mixed_attention_forward.3} parent=23 // pred_check_branch
        %611 = sbr.rel (%p609) target = $region84
      $region83: #{layered_mixed_attention_forward.3} parent=23 // pred_region
        %p612 = scmp.lt.s32.totalorder %s23, 2
        %s613 = scalar_select %p612, %s23, 2
        %s614 = scalar_lea.vmem %s16, %s613
      $region84: #{layered_mixed_attention_forward.3} parent=23 // pred_fallthru
        _
    $region24: #{layered_mixed_attention_forward.3} parent=5 // pred_fallthru
      _
    %p615 = scmp.le.s32.totalorder 1, %s23
    %p616 = scmp.lt.s32.totalorder %s23, 4
    %p617 = pnand %p615, %p616
    %p618 = pneg %p617
    // Predicated region
    $region85: #{layered_mixed_attention_forward.3} parent=5 // pred_check
      _
    $region86: #{layered_mixed_attention_forward.3} parent=5 // pred_check_branch
      %620 = sbr.rel (%p617) target = $region88
    $region87: #{layered_mixed_attention_forward.3} parent=5 // pred_region
      %s621 = ssub.s32 %s23, 1
      %p622 = scmp.lt.s32.totalorder %s28, 2
      %s623 = scalar_select %p622, %s28, 2
      %s624 = smul.addr %s623, 4
      %s625 = smul.addr %s624, 8
      %s626 = scalar_lea.vmem %s0, %s625
      %p627 = pneg %p49
      %p628 = pneg %p46
      %p629 = pneg %p70
      %p630 = pneg %p67
      %p631 = scmp.lt.s32.totalorder %s28, 2
      %s632 = scalar_select %p631, %s28, 2
      %s633 = smul.addr %s632, 4
      %s634 = smul.addr %s633, 8
      %s635 = scalar_lea.vmem %s2, %s634
      %p636 = pneg %p96
      %p637 = pneg %p93
      %s638 = scalar_lea.vmem %s3, 32
      %p639 = pneg %p117
      %p640 = pneg %p114
      %p641 = scmp.lt.s32.totalorder %s28, 2
      %s642 = scalar_select %p641, %s28, 2
      %s643 = smul.addr %s642, 4
      %s644 = smul.addr %s643, 8
      %s645 = scalar_lea.vmem %s4, %s644
      %p646 = pneg %p143
      %p647 = pneg %p140
      %p648 = scmp.lt.s32.totalorder %s28, 2
      %s649 = scalar_select %p648, %s28, 2
      %s650 = scalar_lea.vmem %s5, %s649
      %p651 = pneg %p169
      %p652 = pneg %p166
      %p653 = scmp.lt.s32.totalorder %s28, 2
      %s654 = scalar_select %p653, %s28, 2
      %s655 = smul.addr %s654, 4
      %s656 = smul.addr %s655, 8
      %s657 = scalar_lea.vmem %s6, %s656
      %p658 = pneg %p195
      %p659 = pneg %p192
      %p660 = scmp.lt.s32.totalorder %s28, 2
      %s661 = scalar_select %p660, %s28, 2
      %s662 = scalar_lea.vmem %s7, %s661
      %p663 = pneg %p221
      %p664 = pneg %p218
      %p665 = scmp.lt.s32.totalorder %s28, 2
      %s666 = scalar_select %p665, %s28, 2
      %s667 = smul.addr %s666, 4
      %s668 = smul.addr %s667, 8
      %s669 = scalar_lea.vmem %s8, %s668
      %p670 = pneg %p247
      %p671 = pneg %p244
      %p672 = scmp.lt.s32.totalorder %s28, 2
      %s673 = scalar_select %p672, %s28, 2
      %s674 = scalar_lea.vmem %s9, %s673
      %p675 = pneg %p273
      %p676 = pneg %p270
      %p677 = scmp.lt.s32.totalorder %s28, 2
      %s678 = scalar_select %p677, %s28, 2
      %s679 = smul.addr %s678, 4
      %s680 = smul.addr %s679, 8
      %s681 = scalar_lea.vmem %s10, %s680
      %p682 = pneg %p299
      %p683 = pneg %p296
      %p684 = scmp.lt.s32.totalorder %s28, 2
      %s685 = scalar_select %p684, %s28, 2
      %s686 = scalar_lea.vmem %s11, %s685
      %p687 = pneg %p325
      %p688 = pneg %p322
      %p689 = scmp.lt.s32.totalorder %s28, 2
      %s690 = scalar_select %p689, %s28, 2
      %s691 = smul.addr %s690, 4
      %s692 = smul.addr %s691, 8
      %s693 = scalar_lea.vmem %s12, %s692
      %p694 = pneg %p351
      %p695 = pneg %p348
      %p696 = scmp.lt.s32.totalorder %s28, 2
      %s697 = scalar_select %p696, %s28, 2
      %s698 = smul.addr %s697, 4
      %s699 = smul.addr %s698, 8
      %s700 = scalar_lea.vmem %s13, %s699
      %p701 = pneg %p377
      %p702 = pneg %p374
      %p703 = scmp.lt.s32.totalorder %s28, 2
      %s704 = scalar_select %p703, %s28, 2
      %s705 = scalar_lea.vmem %s14, %s704
      %p706 = pneg %p403
      %p707 = pneg %p400
      %p708 = scmp.lt.s32.totalorder %s28, 2
      %s709 = scalar_select %p708, %s28, 2
      %s710 = smul.addr %s709, 8
      %s711 = smul.addr %s710, 8
      %s712 = scalar_lea.vmem %s15, %s711
      %p713 = pneg %p429
      %p714 = pneg %p426
      %p715 = scmp.lt.s32.totalorder %s28, 2
      %s716 = scalar_select %p715, %s28, 2
      %s717 = scalar_lea.vmem %s16, %s716
      %p718 = pneg %p455
      %p719 = pneg %p452
      %p720 = pneg %p481
      %p721 = pneg %p478
      %p722 = scmp.lt.s32.totalorder %s28, 2
      %s723 = scalar_select %p722, %s28, 2
      %s724 = smul.addr %s723, 4
      %s725 = smul.addr %s724, 8
      %s726 = scalar_lea.vmem %s17, %s725
      %p727 = scmp.lt.s32.totalorder %s28, 2
      %s728 = scalar_select %p727, %s28, 2
      %s729 = smul.addr %s728, 4
      %s730 = smul.addr %s729, 8
      %s731 = scalar_lea.vmem %s0, %s730
      %p732 = scmp.lt.s32.totalorder %s28, 2
      %s733 = scalar_select %p732, %s28, 2
      %s734 = smul.addr %s733, 4
      %s735 = smul.addr %s734, 8
      %s736 = scalar_lea.vmem %s2, %s735
      %s737 = scalar_lea.vmem %s3, 32
      %p738 = scmp.lt.s32.totalorder %s28, 2
      %s739 = scalar_select %p738, %s28, 2
      %s740 = smul.addr %s739, 4
      %s741 = smul.addr %s740, 8
      %s742 = scalar_lea.vmem %s4, %s741
      %p743 = scmp.lt.s32.totalorder %s28, 2
      %s744 = scalar_select %p743, %s28, 2
      %s745 = scalar_lea.vmem %s5, %s744
      %p746 = scmp.lt.s32.totalorder %s28, 2
      %s747 = scalar_select %p746, %s28, 2
      %s748 = smul.addr %s747, 4
      %s749 = smul.addr %s748, 8
      %s750 = scalar_lea.vmem %s6, %s749
      %p751 = scmp.lt.s32.totalorder %s28, 2
      %s752 = scalar_select %p751, %s28, 2
      %s753 = scalar_lea.vmem %s7, %s752
      %p754 = scmp.lt.s32.totalorder %s28, 2
      %s755 = scalar_select %p754, %s28, 2
      %s756 = smul.addr %s755, 4
      %s757 = smul.addr %s756, 8
      %s758 = scalar_lea.vmem %s8, %s757
      %p759 = scmp.lt.s32.totalorder %s28, 2
      %s760 = scalar_select %p759, %s28, 2
      %s761 = scalar_lea.vmem %s9, %s760
      %p762 = scmp.lt.s32.totalorder %s28, 2
      %s763 = scalar_select %p762, %s28, 2
      %s764 = smul.addr %s763, 4
      %s765 = smul.addr %s764, 8
      %s766 = scalar_lea.vmem %s10, %s765
      %p767 = scmp.lt.s32.totalorder %s28, 2
      %s768 = scalar_select %p767, %s28, 2
      %s769 = scalar_lea.vmem %s11, %s768
      %p770 = scmp.lt.s32.totalorder %s28, 2
      %s771 = scalar_select %p770, %s28, 2
      %s772 = smul.addr %s771, 4
      %s773 = smul.addr %s772, 8
      %s774 = scalar_lea.vmem %s12, %s773
      %p775 = scmp.lt.s32.totalorder %s28, 2
      %s776 = scalar_select %p775, %s28, 2
      %s777 = smul.addr %s776, 4
      %s778 = smul.addr %s777, 8
      %s779 = scalar_lea.vmem %s13, %s778
      %p780 = scmp.lt.s32.totalorder %s28, 2
      %s781 = scalar_select %p780, %s28, 2
      %s782 = scalar_lea.vmem %s14, %s781
      %p783 = scmp.lt.s32.totalorder %s28, 2
      %s784 = scalar_select %p783, %s28, 2
      %s785 = smul.addr %s784, 8
      %s786 = smul.addr %s785, 8
      %s787 = scalar_lea.vmem %s15, %s786
      %p788 = scmp.lt.s32.totalorder %s28, 2
      %s789 = scalar_select %p788, %s28, 2
      %s790 = scalar_lea.vmem %s16, %s789
      %p791 = scmp.lt.s32.totalorder %s28, 2
      %s792 = scalar_select %p791, %s28, 2
      %s793 = smul.addr %s792, 4
      %s794 = smul.addr %s793, 8
      %s795 = scalar_lea.vmem %s17, %s794
      %v796 = vld [vmem:[%s736] sm:$0xff]
      %v797 = vld [vmem:[%s736 + $0x8] sm:$0xff]
      %v798 = vld [vmem:[%s736 + $0x10] sm:$0xff]
      %v799 = vld [vmem:[%s736 + $0x18] sm:$0xff]
      %v800 = vld [vmem:[%s737] sm:$0xff]
      %v801 = vld [vmem:[%s737 + $0x8] sm:$0xff]
      %v802 = vld [vmem:[%s737 + $0x10] sm:$0xff]
      %v803 = vld [vmem:[%s737 + $0x18] sm:$0xff]
      %v804 = vld [vmem:[%s742] sm:$0xff]
      %v805 = vld [vmem:[%s742 + $0x8] sm:$0xff]
      %v806 = vld [vmem:[%s742 + $0x10] sm:$0xff]
      %v807 = vld [vmem:[%s742 + $0x18] sm:$0xff]
      %v808 = vld [vmem:[%s745] sm:$0x1]
      %v810 = vlaneseq
      %v811 = vshrl.u32 %v810, 7
      %v812 = vsub.s32 0, %v811
      %v813 = vrot.slane %v808, %v812
      %vm815 = vcmask 261120
      %v817 = vsel %vm815, %v796, 0
      %v820 = vsel %vm815, %v797, 0
      %v823 = vsel %vm815, %v798, 0
      %v826 = vsel %vm815, %v799, 0
      %828 = vmatprep.subr.mxu0 0.0
      %829 = vmatpush1.msra.mxu0 0.0
      %830 = vmatprep.subr.mxu0 0.0
      %831 = vmatpush1.msra.mxu0 0.0
      %832 = vmatprep.subr.mxu0 0.0
      %833 = vmatpush1.msra.mxu0 0.0
      %834 = vmatprep.subr.mxu0 0.0
      %835 = vmatpush1.msra.mxu0 0.0
      %836 = vmatprep.subr.mxu0 0.0
      %837 = vmatpush1.msra.mxu0 0.0
      %838 = vmatprep.subr.mxu0 0.0
      %839 = vmatpush1.msra.mxu0 0.0
      %840 = vmatprep.subr.mxu0 0.0
      %841 = vmatpush1.msra.mxu0 0.0
      %842 = vmatprep.subr.mxu0 0.0
      %843 = vmatpush1.msra.mxu0 0.0
      %844 = vmatprep.subr.mxu0 0.0
      %845 = vmatpush1.msra.mxu0 0.0
      %846 = vmatprep.subr.mxu0 0.0
      %847 = vmatpush1.msra.mxu0 0.0
      %848 = vmatprep.subr.mxu0 0.0
      %849 = vmatpush1.msra.mxu0 0.0
      %850 = vmatprep.subr.mxu0 0.0
      %851 = vmatpush1.msra.mxu0 0.0
      %852 = vmatprep.subr.mxu0 0.0
      %853 = vmatpush1.msra.mxu0 %v807
      %854 = vmatprep.subr.mxu0 0.0
      %855 = vmatpush1.msra.mxu0 %v806
      %856 = vmatprep.subr.mxu0 0.0
      %857 = vmatpush1.msra.mxu0 %v805
      %858 = vmatprep.subr.mxu0 0.0
      %859 = vmatpush1.msra.mxu0 %v804
      %860 = vmatprep.subr.mxu0 0.0
      %861 = vmatpush2.msra.mxu0 0.0
      %862 = vmatprep.subr.mxu0 0.0
      %863 = vmatpush2.msra.mxu0 0.0
      %864 = vmatprep.subr.mxu0 0.0
      %865 = vmatpush2.msra.mxu0 0.0
      %866 = vmatprep.subr.mxu0 0.0
      %867 = vmatpush2.msra.mxu0 0.0
      %868 = vmatprep.subr.mxu0 0.0
      %869 = vmatpush2.msra.mxu0 0.0
      %870 = vmatprep.subr.mxu0 0.0
      %871 = vmatpush2.msra.mxu0 0.0
      %872 = vmatprep.subr.mxu0 0.0
      %873 = vmatpush2.msra.mxu0 0.0
      %874 = vmatprep.subr.mxu0 0.0
      %875 = vmatpush2.msra.mxu0 0.0
      %876 = vmatprep.subr.mxu0 0.0
      %877 = vmatpush2.msra.mxu0 0.0
      %878 = vmatprep.subr.mxu0 0.0
      %879 = vmatpush2.msra.mxu0 0.0
      %880 = vmatprep.subr.mxu0 0.0
      %881 = vmatpush2.msra.mxu0 0.0
      %882 = vmatprep.subr.mxu0 0.0
      %883 = vmatpush2.msra.mxu0 0.0
      %884 = vmatprep.subr.mxu0 0.0
      %885 = vmatpush2.msra.mxu0 0.0
      %886 = vmatprep.subr.mxu0 0.0
      %887 = vmatpush2.msra.mxu0 0.0
      %888 = vmatprep.subr.mxu0 0.0
      %889 = vmatpush2.msra.mxu0 0.0
      %890 = vmatprep.subr.mxu0 0.0
      %891 = vmatpush2.msra.mxu0 0.0
      %892 = vmatprep.mubr.f32.mxu0 0.0
      %893 = vmatmul.mubr.f32.gmra.mxu0 %v817
      %v894 = vpop.f32.mrf.mxu0
      %v895 = vadd.f32 %v813, %v894
      %v896 = vpop.f32.mrf.mxu0
      %897 = vmatprep.mubr.f32.mxu0 0.0
      %898 = vmatmul.mubr.f32.gmra.mxu0 %v820
      %v899 = vpop.f32.mrf.mxu0
      %v900 = vadd.f32 %v813, %v899
      %v901 = vpop.f32.mrf.mxu0
      %902 = vmatprep.mubr.f32.mxu0 0.0
      %903 = vmatmul.mubr.f32.gmra.mxu0 %v823
      %v904 = vpop.f32.mrf.mxu0
      %v905 = vadd.f32 %v813, %v904
      %v906 = vpop.f32.mrf.mxu0
      %907 = vmatprep.mubr.f32.mxu0 0.0
      %908 = vmatmul.mubr.f32.gmra.mxu0 %v826
      %v909 = vpop.f32.mrf.mxu0
      %v910 = vadd.f32 %v813, %v909
      %v911 = vpop.f32.mrf.mxu0
      %912 = vdwg.mxu0
      %v913 = vld [vmem:[%s750] sm:$0xff]
      %v914 = vld [vmem:[%s750 + $0x8] sm:$0xff]
      %v915 = vld [vmem:[%s750 + $0x10] sm:$0xff]
      %v916 = vld [vmem:[%s750 + $0x18] sm:$0xff]
      %v917 = vld [vmem:[%s753] sm:$0x1]
      %v919 = vlaneseq
      %v920 = vshrl.u32 %v919, 7
      %v921 = vsub.s32 0, %v920
      %v922 = vrot.slane %v917, %v921
      %v925 = vsel %vm815, %v800, 0
      %v928 = vsel %vm815, %v801, 0
      %v931 = vsel %vm815, %v802, 0
      %v934 = vsel %vm815, %v803, 0
      %936 = vmatprep.subr.mxu0 0.0
      %937 = vmatpush1.msra.mxu0 0.0
      %938 = vmatprep.subr.mxu0 0.0
      %939 = vmatpush1.msra.mxu0 0.0
      %940 = vmatprep.subr.mxu0 0.0
      %941 = vmatpush1.msra.mxu0 0.0
      %942 = vmatprep.subr.mxu0 0.0
      %943 = vmatpush1.msra.mxu0 0.0
      %944 = vmatprep.subr.mxu0 0.0
      %945 = vmatpush1.msra.mxu0 0.0
      %946 = vmatprep.subr.mxu0 0.0
      %947 = vmatpush1.msra.mxu0 0.0
      %948 = vmatprep.subr.mxu0 0.0
      %949 = vmatpush1.msra.mxu0 0.0
      %950 = vmatprep.subr.mxu0 0.0
      %951 = vmatpush1.msra.mxu0 0.0
      %952 = vmatprep.subr.mxu0 0.0
      %953 = vmatpush1.msra.mxu0 0.0
      %954 = vmatprep.subr.mxu0 0.0
      %955 = vmatpush1.msra.mxu0 0.0
      %956 = vmatprep.subr.mxu0 0.0
      %957 = vmatpush1.msra.mxu0 0.0
      %958 = vmatprep.subr.mxu0 0.0
      %959 = vmatpush1.msra.mxu0 0.0
      %960 = vmatprep.subr.mxu0 0.0
      %961 = vmatpush1.msra.mxu0 %v916
      %962 = vmatprep.subr.mxu0 0.0
      %963 = vmatpush1.msra.mxu0 %v915
      %964 = vmatprep.subr.mxu0 0.0
      %965 = vmatpush1.msra.mxu0 %v914
      %966 = vmatprep.subr.mxu0 0.0
      %967 = vmatpush1.msra.mxu0 %v913
      %968 = vmatprep.subr.mxu0 0.0
      %969 = vmatpush2.msra.mxu0 0.0
      %970 = vmatprep.subr.mxu0 0.0
      %971 = vmatpush2.msra.mxu0 0.0
      %972 = vmatprep.subr.mxu0 0.0
      %973 = vmatpush2.msra.mxu0 0.0
      %974 = vmatprep.subr.mxu0 0.0
      %975 = vmatpush2.msra.mxu0 0.0
      %976 = vmatprep.subr.mxu0 0.0
      %977 = vmatpush2.msra.mxu0 0.0
      %978 = vmatprep.subr.mxu0 0.0
      %979 = vmatpush2.msra.mxu0 0.0
      %980 = vmatprep.subr.mxu0 0.0
      %981 = vmatpush2.msra.mxu0 0.0
      %982 = vmatprep.subr.mxu0 0.0
      %983 = vmatpush2.msra.mxu0 0.0
      %984 = vmatprep.subr.mxu0 0.0
      %985 = vmatpush2.msra.mxu0 0.0
      %986 = vmatprep.subr.mxu0 0.0
      %987 = vmatpush2.msra.mxu0 0.0
      %988 = vmatprep.subr.mxu0 0.0
      %989 = vmatpush2.msra.mxu0 0.0
      %990 = vmatprep.subr.mxu0 0.0
      %991 = vmatpush2.msra.mxu0 0.0
      %992 = vmatprep.subr.mxu0 0.0
      %993 = vmatpush2.msra.mxu0 0.0
      %994 = vmatprep.subr.mxu0 0.0
      %995 = vmatpush2.msra.mxu0 0.0
      %996 = vmatprep.subr.mxu0 0.0
      %997 = vmatpush2.msra.mxu0 0.0
      %998 = vmatprep.subr.mxu0 0.0
      %999 = vmatpush2.msra.mxu0 0.0
      %1000 = vmatprep.mubr.f32.mxu0 0.0
      %1001 = vmatmul.mubr.f32.gmra.mxu0 %v925
      %v1002 = vpop.f32.mrf.mxu0
      %v1003 = vadd.f32 %v922, %v1002
      %v1004 = vpop.f32.mrf.mxu0
      %1005 = vmatprep.mubr.f32.mxu0 0.0
      %1006 = vmatmul.mubr.f32.gmra.mxu0 %v928
      %v1007 = vpop.f32.mrf.mxu0
      %v1008 = vadd.f32 %v922, %v1007
      %v1009 = vpop.f32.mrf.mxu0
      %1010 = vmatprep.mubr.f32.mxu0 0.0
      %1011 = vmatmul.mubr.f32.gmra.mxu0 %v931
      %v1012 = vpop.f32.mrf.mxu0
      %v1013 = vadd.f32 %v922, %v1012
      %v1014 = vpop.f32.mrf.mxu0
      %1015 = vmatprep.mubr.f32.mxu0 0.0
      %1016 = vmatmul.mubr.f32.gmra.mxu0 %v934
      %v1017 = vpop.f32.mrf.mxu0
      %v1018 = vadd.f32 %v922, %v1017
      %v1019 = vpop.f32.mrf.mxu0
      %1020 = vdwg.mxu0
      %v1021 = vld [vmem:[%s758] sm:$0xff]
      %v1022 = vld [vmem:[%s758 + $0x8] sm:$0xff]
      %v1023 = vld [vmem:[%s758 + $0x10] sm:$0xff]
      %v1024 = vld [vmem:[%s758 + $0x18] sm:$0xff]
      %v1025 = vld [vmem:[%s761] sm:$0x1]
      %v1027 = vlaneseq
      %v1028 = vshrl.u32 %v1027, 7
      %v1029 = vsub.s32 0, %v1028
      %v1030 = vrot.slane %v1025, %v1029
      %1032 = vmatprep.subr.mxu0 0.0
      %1033 = vmatpush1.msra.mxu0 0.0
      %1034 = vmatprep.subr.mxu0 0.0
      %1035 = vmatpush1.msra.mxu0 0.0
      %1036 = vmatprep.subr.mxu0 0.0
      %1037 = vmatpush1.msra.mxu0 0.0
      %1038 = vmatprep.subr.mxu0 0.0
      %1039 = vmatpush1.msra.mxu0 0.0
      %1040 = vmatprep.subr.mxu0 0.0
      %1041 = vmatpush1.msra.mxu0 0.0
      %1042 = vmatprep.subr.mxu0 0.0
      %1043 = vmatpush1.msra.mxu0 0.0
      %1044 = vmatprep.subr.mxu0 0.0
      %1045 = vmatpush1.msra.mxu0 0.0
      %1046 = vmatprep.subr.mxu0 0.0
      %1047 = vmatpush1.msra.mxu0 0.0
      %1048 = vmatprep.subr.mxu0 0.0
      %1049 = vmatpush1.msra.mxu0 0.0
      %1050 = vmatprep.subr.mxu0 0.0
      %1051 = vmatpush1.msra.mxu0 0.0
      %1052 = vmatprep.subr.mxu0 0.0
      %1053 = vmatpush1.msra.mxu0 0.0
      %1054 = vmatprep.subr.mxu0 0.0
      %1055 = vmatpush1.msra.mxu0 0.0
      %1056 = vmatprep.subr.mxu0 0.0
      %1057 = vmatpush1.msra.mxu0 %v1024
      %1058 = vmatprep.subr.mxu0 0.0
      %1059 = vmatpush1.msra.mxu0 %v1023
      %1060 = vmatprep.subr.mxu0 0.0
      %1061 = vmatpush1.msra.mxu0 %v1022
      %1062 = vmatprep.subr.mxu0 0.0
      %1063 = vmatpush1.msra.mxu0 %v1021
      %1064 = vmatprep.subr.mxu0 0.0
      %1065 = vmatpush2.msra.mxu0 0.0
      %1066 = vmatprep.subr.mxu0 0.0
      %1067 = vmatpush2.msra.mxu0 0.0
      %1068 = vmatprep.subr.mxu0 0.0
      %1069 = vmatpush2.msra.mxu0 0.0
      %1070 = vmatprep.subr.mxu0 0.0
      %1071 = vmatpush2.msra.mxu0 0.0
      %1072 = vmatprep.subr.mxu0 0.0
      %1073 = vmatpush2.msra.mxu0 0.0
      %1074 = vmatprep.subr.mxu0 0.0
      %1075 = vmatpush2.msra.mxu0 0.0
      %1076 = vmatprep.subr.mxu0 0.0
      %1077 = vmatpush2.msra.mxu0 0.0
      %1078 = vmatprep.subr.mxu0 0.0
      %1079 = vmatpush2.msra.mxu0 0.0
      %1080 = vmatprep.subr.mxu0 0.0
      %1081 = vmatpush2.msra.mxu0 0.0
      %1082 = vmatprep.subr.mxu0 0.0
      %1083 = vmatpush2.msra.mxu0 0.0
      %1084 = vmatprep.subr.mxu0 0.0
      %1085 = vmatpush2.msra.mxu0 0.0
      %1086 = vmatprep.subr.mxu0 0.0
      %1087 = vmatpush2.msra.mxu0 0.0
      %1088 = vmatprep.subr.mxu0 0.0
      %1089 = vmatpush2.msra.mxu0 0.0
      %1090 = vmatprep.subr.mxu0 0.0
      %1091 = vmatpush2.msra.mxu0 0.0
      %1092 = vmatprep.subr.mxu0 0.0
      %1093 = vmatpush2.msra.mxu0 0.0
      %1094 = vmatprep.subr.mxu0 0.0
      %1095 = vmatpush2.msra.mxu0 0.0
      %1096 = vmatprep.mubr.f32.mxu0 0.0
      %1097 = vmatmul.mubr.f32.gmra.mxu0 %v925
      %v1098 = vpop.f32.mrf.mxu0
      %v1099 = vadd.f32 %v1030, %v1098
      %v1100 = vpop.f32.mrf.mxu0
      %1101 = vmatprep.mubr.f32.mxu0 0.0
      %1102 = vmatmul.mubr.f32.gmra.mxu0 %v928
      %v1103 = vpop.f32.mrf.mxu0
      %v1104 = vadd.f32 %v1030, %v1103
      %v1105 = vpop.f32.mrf.mxu0
      %1106 = vmatprep.mubr.f32.mxu0 0.0
      %1107 = vmatmul.mubr.f32.gmra.mxu0 %v931
      %v1108 = vpop.f32.mrf.mxu0
      %v1109 = vadd.f32 %v1030, %v1108
      %v1110 = vpop.f32.mrf.mxu0
      %1111 = vmatprep.mubr.f32.mxu0 0.0
      %1112 = vmatmul.mubr.f32.gmra.mxu0 %v934
      %v1113 = vpop.f32.mrf.mxu0
      %v1114 = vadd.f32 %v1030, %v1113
      %v1115 = vpop.f32.mrf.mxu0
      %1116 = vdwg.mxu0
      %v1117 = vld [vmem:[%s731] sm:$0xff]
      %v1118 = vld [vmem:[%s731 + $0x8] sm:$0xff]
      %v1119 = vld [vmem:[%s731 + $0x10] sm:$0xff]
      %v1120 = vld [vmem:[%s731 + $0x18] sm:$0xff]
      %v1121 = vld [vmem:[%s1] sm:$0x3]
      %1123 = vset.pattern.permute.xlu0 0
      %1124 = vperm.xlu0 %1123, %v1117
      %v1125 = vpop.permute.xlu0 %1124
      %1128 = vset.pattern.permute.xlu0 0
      %1129 = vperm.xlu0 %1128, %v1118
      %v1130 = vpop.permute.xlu0 %1129
      %v1132 = vlaneseq
      %v1133 = vshrl.u32 %v1132, 7
      %v1134 = vsub.s32 0, %v1133
      %v1135 = vrot.slane %v1121, %v1134
      %vm1136 = vcmp.gt.f32.partialorder %v1125, 0.0
      %vm1137 = vcmp.gt.f32.partialorder %v1130, 0.0
      %vm1138 = vcmp.gt.f32.partialorder %v1135, 0.0
      %vm1139 = vmand %vm1136, %vm1138
      %vm1140 = vmand %vm1137, %vm1138
      %vm1141 = vcmask 64512
      %v1143 = vsel %vm1141, %v895, 0
      %v1146 = vsel %vm1141, %v900, 0
      %v1149 = vsel %vm1141, %v1003, 0
      %v1152 = vsel %vm1141, %v1008, 0
      %1154 = vmatprep.subr.mxu0 0.0
      %1155 = vmatpush1.xpose.msra.mxu0 0.0
      %1156 = vmatprep.subr.mxu0 0.0
      %1157 = vmatpush1.xpose.msra.mxu0 0.0
      %1158 = vmatprep.subr.mxu0 0.0
      %1159 = vmatpush1.xpose.msra.mxu0 0.0
      %1160 = vmatprep.subr.mxu0 0.0
      %1161 = vmatpush1.xpose.msra.mxu0 0.0
      %1162 = vmatprep.subr.mxu0 0.0
      %1163 = vmatpush1.xpose.msra.mxu0 0.0
      %1164 = vmatprep.subr.mxu0 0.0
      %1165 = vmatpush1.xpose.msra.mxu0 0.0
      %1166 = vmatprep.subr.mxu0 0.0
      %1167 = vmatpush1.xpose.msra.mxu0 0.0
      %1168 = vmatprep.subr.mxu0 0.0
      %1169 = vmatpush1.xpose.msra.mxu0 0.0
      %1170 = vmatprep.subr.mxu0 0.0
      %1171 = vmatpush1.xpose.msra.mxu0 0.0
      %1172 = vmatprep.subr.mxu0 0.0
      %1173 = vmatpush1.xpose.msra.mxu0 0.0
      %1174 = vmatprep.subr.mxu0 0.0
      %1175 = vmatpush1.xpose.msra.mxu0 0.0
      %1176 = vmatprep.subr.mxu0 0.0
      %1177 = vmatpush1.xpose.msra.mxu0 0.0
      %1178 = vmatprep.subr.mxu0 0.0
      %1179 = vmatpush1.xpose.msra.mxu0 0.0
      %1180 = vmatprep.subr.mxu0 0.0
      %1181 = vmatpush1.xpose.msra.mxu0 0.0
      %1182 = vmatprep.subr.mxu0 0.0
      %1183 = vmatpush1.xpose.msra.mxu0 %v1152
      %1184 = vmatprep.subr.mxu0 0.0
      %1185 = vmatpush1.xpose.msra.mxu0 %v1149
      %1186 = vmatprep.subr.mxu0 0.0
      %1187 = vmatpush2.xpose.msra.mxu0 0.0
      %1188 = vmatprep.subr.mxu0 0.0
      %1189 = vmatpush2.xpose.msra.mxu0 0.0
      %1190 = vmatprep.subr.mxu0 0.0
      %1191 = vmatpush2.xpose.msra.mxu0 0.0
      %1192 = vmatprep.subr.mxu0 0.0
      %1193 = vmatpush2.xpose.msra.mxu0 0.0
      %1194 = vmatprep.subr.mxu0 0.0
      %1195 = vmatpush2.xpose.msra.mxu0 0.0
      %1196 = vmatprep.subr.mxu0 0.0
      %1197 = vmatpush2.xpose.msra.mxu0 0.0
      %1198 = vmatprep.subr.mxu0 0.0
      %1199 = vmatpush2.xpose.msra.mxu0 0.0
      %1200 = vmatprep.subr.mxu0 0.0
      %1201 = vmatpush2.xpose.msra.mxu0 0.0
      %1202 = vmatprep.subr.mxu0 0.0
      %1203 = vmatpush2.xpose.msra.mxu0 0.0
      %1204 = vmatprep.subr.mxu0 0.0
      %1205 = vmatpush2.xpose.msra.mxu0 0.0
      %1206 = vmatprep.subr.mxu0 0.0
      %1207 = vmatpush2.xpose.msra.mxu0 0.0
      %1208 = vmatprep.subr.mxu0 0.0
      %1209 = vmatpush2.xpose.msra.mxu0 0.0
      %1210 = vmatprep.subr.mxu0 0.0
      %1211 = vmatpush2.xpose.msra.mxu0 0.0
      %1212 = vmatprep.subr.mxu0 0.0
      %1213 = vmatpush2.xpose.msra.mxu0 0.0
      %1214 = vmatprep.subr.mxu0 0.0
      %1215 = vmatpush2.xpose.msra.mxu0 0.0
      %1216 = vmatprep.subr.mxu0 0.0
      %1217 = vmatpush2.xpose.msra.mxu0 0.0
      %1218 = vmatprep.mubr.f32.mxu0 0.0
      %1219 = vmatmul.mubr.f32.gmra.mxu0 %v1143
      %v1220 = vpop.f32.mrf.mxu0
      %v1221 = vadd.f32 0.0, %v1220
      %v1222 = vpop.f32.mrf.mxu0
      %1223 = vmatprep.mubr.f32.mxu0 0.0
      %1224 = vmatmul.mubr.f32.gmra.mxu0 %v1146
      %v1225 = vpop.f32.mrf.mxu0
      %v1226 = vadd.f32 0.0, %v1225
      %v1227 = vpop.f32.mrf.mxu0
      %1228 = vdwg.mxu0
      %v1229 = vmul.f32 %v1221, 0.35355338
      %v1230 = vmul.f32 %v1226, 0.35355338
      %v1231 = vsel %vm1139, %v1229, -1e+09
      %v1232 = vsel %vm1140, %v1230, -1e+09
      %vm1233 = vcmask 130048
      %v1234 = vsel %vm1233, %v1231, -inf
      %1235 = vmax.xlane.f32.xlu0 %v1234
      %v1236 = vpop.xlane.xlu0 %1235
      %v1237 = vsel %vm1233, %v1232, -inf
      %1238 = vmax.xlane.f32.xlu0 %v1237
      %v1239 = vpop.xlane.xlu0 %1238
      %v1240 = vsub.f32 %v1231, %v1236
      %v1241 = vsub.f32 %v1232, %v1239
      %v1242 = vmul.f32 %v1240, 1.442695
      %v1243 = vpow.pop %v1242
      %v1244 = vmul.f32 %v1241, 1.442695
      %v1245 = vpow.pop %v1244
      %v1246 = vsel %vm1233, %v1243, 0.0
      %1247 = vadd.xlane.f32.xlu0 %v1246
      %v1248 = vpop.xlane.xlu0 %1247
      %v1249 = vsel %vm1233, %v1245, 0.0
      %1250 = vadd.xlane.f32.xlu0 %v1249
      %v1251 = vpop.xlane.xlu0 %1250
      %v1252 = vrcp.pop %v1248
      %v1253 = vmul.f32 %v1243, %v1252
      %v1254 = vrcp.pop %v1251
      %v1255 = vmul.f32 %v1245, %v1254
      %v1257 = vsel %vm1233, %v1253, 0
      %v1260 = vsel %vm1233, %v1255, 0
      %1262 = vmatprep.subr.mxu0 0.0
      %1263 = vmatpush1.msra.mxu0 0.0
      %1264 = vmatprep.subr.mxu0 0.0
      %1265 = vmatpush1.msra.mxu0 0.0
      %1266 = vmatprep.subr.mxu0 0.0
      %1267 = vmatpush1.msra.mxu0 0.0
      %1268 = vmatprep.subr.mxu0 0.0
      %1269 = vmatpush1.msra.mxu0 0.0
      %1270 = vmatprep.subr.mxu0 0.0
      %1271 = vmatpush1.msra.mxu0 0.0
      %1272 = vmatprep.subr.mxu0 0.0
      %1273 = vmatpush1.msra.mxu0 0.0
      %1274 = vmatprep.subr.mxu0 0.0
      %1275 = vmatpush1.msra.mxu0 0.0
      %1276 = vmatprep.subr.mxu0 0.0
      %1277 = vmatpush1.msra.mxu0 0.0
      %1278 = vmatprep.subr.mxu0 0.0
      %1279 = vmatpush1.msra.mxu0 0.0
      %1280 = vmatprep.subr.mxu0 0.0
      %1281 = vmatpush1.msra.mxu0 0.0
      %1282 = vmatprep.subr.mxu0 0.0
      %1283 = vmatpush1.msra.mxu0 0.0
      %1284 = vmatprep.subr.mxu0 0.0
      %1285 = vmatpush1.msra.mxu0 0.0
      %1286 = vmatprep.subr.mxu0 0.0
      %1287 = vmatpush1.msra.mxu0 0.0
      %1288 = vmatprep.subr.mxu0 0.0
      %1289 = vmatpush1.msra.mxu0 0.0
      %1290 = vmatprep.subr.mxu0 0.0
      %1291 = vmatpush1.msra.mxu0 %v1104
      %1292 = vmatprep.subr.mxu0 0.0
      %1293 = vmatpush1.msra.mxu0 %v1099
      %1294 = vmatprep.subr.mxu0 0.0
      %1295 = vmatpush2.msra.mxu0 0.0
      %1296 = vmatprep.subr.mxu0 0.0
      %1297 = vmatpush2.msra.mxu0 0.0
      %1298 = vmatprep.subr.mxu0 0.0
      %1299 = vmatpush2.msra.mxu0 0.0
      %1300 = vmatprep.subr.mxu0 0.0
      %1301 = vmatpush2.msra.mxu0 0.0
      %1302 = vmatprep.subr.mxu0 0.0
      %1303 = vmatpush2.msra.mxu0 0.0
      %1304 = vmatprep.subr.mxu0 0.0
      %1305 = vmatpush2.msra.mxu0 0.0
      %1306 = vmatprep.subr.mxu0 0.0
      %1307 = vmatpush2.msra.mxu0 0.0
      %1308 = vmatprep.subr.mxu0 0.0
      %1309 = vmatpush2.msra.mxu0 0.0
      %1310 = vmatprep.subr.mxu0 0.0
      %1311 = vmatpush2.msra.mxu0 0.0
      %1312 = vmatprep.subr.mxu0 0.0
      %1313 = vmatpush2.msra.mxu0 0.0
      %1314 = vmatprep.subr.mxu0 0.0
      %1315 = vmatpush2.msra.mxu0 0.0
      %1316 = vmatprep.subr.mxu0 0.0
      %1317 = vmatpush2.msra.mxu0 0.0
      %1318 = vmatprep.subr.mxu0 0.0
      %1319 = vmatpush2.msra.mxu0 0.0
      %1320 = vmatprep.subr.mxu0 0.0
      %1321 = vmatpush2.msra.mxu0 0.0
      %1322 = vmatprep.subr.mxu0 0.0
      %1323 = vmatpush2.msra.mxu0 0.0
      %1324 = vmatprep.subr.mxu0 0.0
      %1325 = vmatpush2.msra.mxu0 0.0
      %1326 = vmatprep.mubr.f32.mxu0 0.0
      %1327 = vmatmul.mubr.f32.gmra.mxu0 %v1257
      %v1328 = vpop.f32.mrf.mxu0
      %v1329 = vadd.f32 0.0, %v1328
      %v1330 = vpop.f32.mrf.mxu0
      %1331 = vmatprep.mubr.f32.mxu0 0.0
      %1332 = vmatmul.mubr.f32.gmra.mxu0 %v1260
      %v1333 = vpop.f32.mrf.mxu0
      %v1334 = vadd.f32 0.0, %v1333
      %v1335 = vpop.f32.mrf.mxu0
      %1336 = vdwg.mxu0
      %1337 = vrot.lane.b32.xlu0 %v895, 120
      %v1338 = vpop.permute.xlu0 %1337
      %1339 = vrot.lane.b32.xlu0 %v900, 120
      %v1340 = vpop.permute.xlu0 %1339
      %1341 = vrot.lane.b32.xlu0 %v1003, 120
      %v1342 = vpop.permute.xlu0 %1341
      %1343 = vrot.lane.b32.xlu0 %v1008, 120
      %v1344 = vpop.permute.xlu0 %1343
      %v1345 = vsel %vm1141, %v1338, 0
      %v1347 = vsel %vm1141, %v1340, 0
      %v1349 = vsel %vm1141, %v1342, 0
      %v1351 = vsel %vm1141, %v1344, 0
      %1353 = vmatprep.subr.mxu0 0.0
      %1354 = vmatpush1.xpose.msra.mxu0 0.0
      %1355 = vmatprep.subr.mxu0 0.0
      %1356 = vmatpush1.xpose.msra.mxu0 0.0
      %1357 = vmatprep.subr.mxu0 0.0
      %1358 = vmatpush1.xpose.msra.mxu0 0.0
      %1359 = vmatprep.subr.mxu0 0.0
      %1360 = vmatpush1.xpose.msra.mxu0 0.0
      %1361 = vmatprep.subr.mxu0 0.0
      %1362 = vmatpush1.xpose.msra.mxu0 0.0
      %1363 = vmatprep.subr.mxu0 0.0
      %1364 = vmatpush1.xpose.msra.mxu0 0.0
      %1365 = vmatprep.subr.mxu0 0.0
      %1366 = vmatpush1.xpose.msra.mxu0 0.0
      %1367 = vmatprep.subr.mxu0 0.0
      %1368 = vmatpush1.xpose.msra.mxu0 0.0
      %1369 = vmatprep.subr.mxu0 0.0
      %1370 = vmatpush1.xpose.msra.mxu0 0.0
      %1371 = vmatprep.subr.mxu0 0.0
      %1372 = vmatpush1.xpose.msra.mxu0 0.0
      %1373 = vmatprep.subr.mxu0 0.0
      %1374 = vmatpush1.xpose.msra.mxu0 0.0
      %1375 = vmatprep.subr.mxu0 0.0
      %1376 = vmatpush1.xpose.msra.mxu0 0.0
      %1377 = vmatprep.subr.mxu0 0.0
      %1378 = vmatpush1.xpose.msra.mxu0 0.0
      %1379 = vmatprep.subr.mxu0 0.0
      %1380 = vmatpush1.xpose.msra.mxu0 0.0
      %1381 = vmatprep.subr.mxu0 0.0
      %1382 = vmatpush1.xpose.msra.mxu0 %v1351
      %1383 = vmatprep.subr.mxu0 0.0
      %1384 = vmatpush1.xpose.msra.mxu0 %v1349
      %1385 = vmatprep.subr.mxu0 0.0
      %1386 = vmatpush2.xpose.msra.mxu0 0.0
      %1387 = vmatprep.subr.mxu0 0.0
      %1388 = vmatpush2.xpose.msra.mxu0 0.0
      %1389 = vmatprep.subr.mxu0 0.0
      %1390 = vmatpush2.xpose.msra.mxu0 0.0
      %1391 = vmatprep.subr.mxu0 0.0
      %1392 = vmatpush2.xpose.msra.mxu0 0.0
      %1393 = vmatprep.subr.mxu0 0.0
      %1394 = vmatpush2.xpose.msra.mxu0 0.0
      %1395 = vmatprep.subr.mxu0 0.0
      %1396 = vmatpush2.xpose.msra.mxu0 0.0
      %1397 = vmatprep.subr.mxu0 0.0
      %1398 = vmatpush2.xpose.msra.mxu0 0.0
      %1399 = vmatprep.subr.mxu0 0.0
      %1400 = vmatpush2.xpose.msra.mxu0 0.0
      %1401 = vmatprep.subr.mxu0 0.0
      %1402 = vmatpush2.xpose.msra.mxu0 0.0
      %1403 = vmatprep.subr.mxu0 0.0
      %1404 = vmatpush2.xpose.msra.mxu0 0.0
      %1405 = vmatprep.subr.mxu0 0.0
      %1406 = vmatpush2.xpose.msra.mxu0 0.0
      %1407 = vmatprep.subr.mxu0 0.0
      %1408 = vmatpush2.xpose.msra.mxu0 0.0
      %1409 = vmatprep.subr.mxu0 0.0
      %1410 = vmatpush2.xpose.msra.mxu0 0.0
      %1411 = vmatprep.subr.mxu0 0.0
      %1412 = vmatpush2.xpose.msra.mxu0 0.0
      %1413 = vmatprep.subr.mxu0 0.0
      %1414 = vmatpush2.xpose.msra.mxu0 0.0
      %1415 = vmatprep.subr.mxu0 0.0
      %1416 = vmatpush2.xpose.msra.mxu0 0.0
      %1417 = vmatprep.mubr.f32.mxu0 0.0
      %1418 = vmatmul.mubr.f32.gmra.mxu0 %v1345
      %v1419 = vpop.f32.mrf.mxu0
      %v1420 = vadd.f32 0.0, %v1419
      %v1421 = vpop.f32.mrf.mxu0
      %1422 = vmatprep.mubr.f32.mxu0 0.0
      %1423 = vmatmul.mubr.f32.gmra.mxu0 %v1347
      %v1424 = vpop.f32.mrf.mxu0
      %v1425 = vadd.f32 0.0, %v1424
      %v1426 = vpop.f32.mrf.mxu0
      %1427 = vdwg.mxu0
      %v1428 = vmul.f32 %v1420, 0.35355338
      %v1429 = vmul.f32 %v1425, 0.35355338
      %v1430 = vsel %vm1139, %v1428, -1e+09
      %v1431 = vsel %vm1140, %v1429, -1e+09
      %v1432 = vsel %vm1233, %v1430, -inf
      %1433 = vmax.xlane.f32.xlu0 %v1432
      %v1434 = vpop.xlane.xlu0 %1433
      %v1435 = vsel %vm1233, %v1431, -inf
      %1436 = vmax.xlane.f32.xlu0 %v1435
      %v1437 = vpop.xlane.xlu0 %1436
      %v1438 = vsub.f32 %v1430, %v1434
      %v1439 = vsub.f32 %v1431, %v1437
      %v1440 = vmul.f32 %v1438, 1.442695
      %v1441 = vpow.pop %v1440
      %v1442 = vmul.f32 %v1439, 1.442695
      %v1443 = vpow.pop %v1442
      %v1444 = vsel %vm1233, %v1441, 0.0
      %1445 = vadd.xlane.f32.xlu0 %v1444
      %v1446 = vpop.xlane.xlu0 %1445
      %v1447 = vsel %vm1233, %v1443, 0.0
      %1448 = vadd.xlane.f32.xlu0 %v1447
      %v1449 = vpop.xlane.xlu0 %1448
      %v1450 = vrcp.pop %v1446
      %v1451 = vmul.f32 %v1441, %v1450
      %v1452 = vrcp.pop %v1449
      %v1453 = vmul.f32 %v1443, %v1452
      %1456 = vrot.lane.b32.xlu0 %v1099, 120
      %v1457 = vpop.permute.xlu0 %1456
      %1458 = vrot.lane.b32.xlu0 %v1104, 120
      %v1459 = vpop.permute.xlu0 %1458
      %v1463 = vsel %vm1233, %v1451, 0
      %v1466 = vsel %vm1233, %v1453, 0
      %1468 = vmatprep.subr.mxu0 0.0
      %1469 = vmatpush1.msra.mxu0 0.0
      %1470 = vmatprep.subr.mxu0 0.0
      %1471 = vmatpush1.msra.mxu0 0.0
      %1472 = vmatprep.subr.mxu0 0.0
      %1473 = vmatpush1.msra.mxu0 0.0
      %1474 = vmatprep.subr.mxu0 0.0
      %1475 = vmatpush1.msra.mxu0 0.0
      %1476 = vmatprep.subr.mxu0 0.0
      %1477 = vmatpush1.msra.mxu0 0.0
      %1478 = vmatprep.subr.mxu0 0.0
      %1479 = vmatpush1.msra.mxu0 0.0
      %1480 = vmatprep.subr.mxu0 0.0
      %1481 = vmatpush1.msra.mxu0 0.0
      %1482 = vmatprep.subr.mxu0 0.0
      %1483 = vmatpush1.msra.mxu0 0.0
      %1484 = vmatprep.subr.mxu0 0.0
      %1485 = vmatpush1.msra.mxu0 0.0
      %1486 = vmatprep.subr.mxu0 0.0
      %1487 = vmatpush1.msra.mxu0 0.0
      %1488 = vmatprep.subr.mxu0 0.0
      %1489 = vmatpush1.msra.mxu0 0.0
      %1490 = vmatprep.subr.mxu0 0.0
      %1491 = vmatpush1.msra.mxu0 0.0
      %1492 = vmatprep.subr.mxu0 0.0
      %1493 = vmatpush1.msra.mxu0 0.0
      %1494 = vmatprep.subr.mxu0 0.0
      %1495 = vmatpush1.msra.mxu0 0.0
      %1496 = vmatprep.subr.mxu0 0.0
      %1497 = vmatpush1.msra.mxu0 %v1459
      %1498 = vmatprep.subr.mxu0 0.0
      %1499 = vmatpush1.msra.mxu0 %v1457
      %1500 = vmatprep.subr.mxu0 0.0
      %1501 = vmatpush2.msra.mxu0 0.0
      %1502 = vmatprep.subr.mxu0 0.0
      %1503 = vmatpush2.msra.mxu0 0.0
      %1504 = vmatprep.subr.mxu0 0.0
      %1505 = vmatpush2.msra.mxu0 0.0
      %1506 = vmatprep.subr.mxu0 0.0
      %1507 = vmatpush2.msra.mxu0 0.0
      %1508 = vmatprep.subr.mxu0 0.0
      %1509 = vmatpush2.msra.mxu0 0.0
      %1510 = vmatprep.subr.mxu0 0.0
      %1511 = vmatpush2.msra.mxu0 0.0
      %1512 = vmatprep.subr.mxu0 0.0
      %1513 = vmatpush2.msra.mxu0 0.0
      %1514 = vmatprep.subr.mxu0 0.0
      %1515 = vmatpush2.msra.mxu0 0.0
      %1516 = vmatprep.subr.mxu0 0.0
      %1517 = vmatpush2.msra.mxu0 0.0
      %1518 = vmatprep.subr.mxu0 0.0
      %1519 = vmatpush2.msra.mxu0 0.0
      %1520 = vmatprep.subr.mxu0 0.0
      %1521 = vmatpush2.msra.mxu0 0.0
      %1522 = vmatprep.subr.mxu0 0.0
      %1523 = vmatpush2.msra.mxu0 0.0
      %1524 = vmatprep.subr.mxu0 0.0
      %1525 = vmatpush2.msra.mxu0 0.0
      %1526 = vmatprep.subr.mxu0 0.0
      %1527 = vmatpush2.msra.mxu0 0.0
      %1528 = vmatprep.subr.mxu0 0.0
      %1529 = vmatpush2.msra.mxu0 0.0
      %1530 = vmatprep.subr.mxu0 0.0
      %1531 = vmatpush2.msra.mxu0 0.0
      %1532 = vmatprep.mubr.f32.mxu0 0.0
      %1533 = vmatmul.mubr.f32.gmra.mxu0 %v1463
      %v1534 = vpop.f32.mrf.mxu0
      %v1535 = vadd.f32 0.0, %v1534
      %v1536 = vpop.f32.mrf.mxu0
      %1537 = vmatprep.mubr.f32.mxu0 0.0
      %1538 = vmatmul.mubr.f32.gmra.mxu0 %v1466
      %v1539 = vpop.f32.mrf.mxu0
      %v1540 = vadd.f32 0.0, %v1539
      %v1541 = vpop.f32.mrf.mxu0
      %1542 = vdwg.mxu0
      %1543 = vrot.lane.b32.xlu0 %v895, 112
      %v1544 = vpop.permute.xlu0 %1543
      %1545 = vrot.lane.b32.xlu0 %v900, 112
      %v1546 = vpop.permute.xlu0 %1545
      %1547 = vrot.lane.b32.xlu0 %v1003, 112
      %v1548 = vpop.permute.xlu0 %1547
      %1549 = vrot.lane.b32.xlu0 %v1008, 112
      %v1550 = vpop.permute.xlu0 %1549
      %v1551 = vsel %vm1141, %v1544, 0
      %v1553 = vsel %vm1141, %v1546, 0
      %v1555 = vsel %vm1141, %v1548, 0
      %v1557 = vsel %vm1141, %v1550, 0
      %1559 = vmatprep.subr.mxu0 0.0
      %1560 = vmatpush1.xpose.msra.mxu0 0.0
      %1561 = vmatprep.subr.mxu0 0.0
      %1562 = vmatpush1.xpose.msra.mxu0 0.0
      %1563 = vmatprep.subr.mxu0 0.0
      %1564 = vmatpush1.xpose.msra.mxu0 0.0
      %1565 = vmatprep.subr.mxu0 0.0
      %1566 = vmatpush1.xpose.msra.mxu0 0.0
      %1567 = vmatprep.subr.mxu0 0.0
      %1568 = vmatpush1.xpose.msra.mxu0 0.0
      %1569 = vmatprep.subr.mxu0 0.0
      %1570 = vmatpush1.xpose.msra.mxu0 0.0
      %1571 = vmatprep.subr.mxu0 0.0
      %1572 = vmatpush1.xpose.msra.mxu0 0.0
      %1573 = vmatprep.subr.mxu0 0.0
      %1574 = vmatpush1.xpose.msra.mxu0 0.0
      %1575 = vmatprep.subr.mxu0 0.0
      %1576 = vmatpush1.xpose.msra.mxu0 0.0
      %1577 = vmatprep.subr.mxu0 0.0
      %1578 = vmatpush1.xpose.msra.mxu0 0.0
      %1579 = vmatprep.subr.mxu0 0.0
      %1580 = vmatpush1.xpose.msra.mxu0 0.0
      %1581 = vmatprep.subr.mxu0 0.0
      %1582 = vmatpush1.xpose.msra.mxu0 0.0
      %1583 = vmatprep.subr.mxu0 0.0
      %1584 = vmatpush1.xpose.msra.mxu0 0.0
      %1585 = vmatprep.subr.mxu0 0.0
      %1586 = vmatpush1.xpose.msra.mxu0 0.0
      %1587 = vmatprep.subr.mxu0 0.0
      %1588 = vmatpush1.xpose.msra.mxu0 %v1557
      %1589 = vmatprep.subr.mxu0 0.0
      %1590 = vmatpush1.xpose.msra.mxu0 %v1555
      %1591 = vmatprep.subr.mxu0 0.0
      %1592 = vmatpush2.xpose.msra.mxu0 0.0
      %1593 = vmatprep.subr.mxu0 0.0
      %1594 = vmatpush2.xpose.msra.mxu0 0.0
      %1595 = vmatprep.subr.mxu0 0.0
      %1596 = vmatpush2.xpose.msra.mxu0 0.0
      %1597 = vmatprep.subr.mxu0 0.0
      %1598 = vmatpush2.xpose.msra.mxu0 0.0
      %1599 = vmatprep.subr.mxu0 0.0
      %1600 = vmatpush2.xpose.msra.mxu0 0.0
      %1601 = vmatprep.subr.mxu0 0.0
      %1602 = vmatpush2.xpose.msra.mxu0 0.0
      %1603 = vmatprep.subr.mxu0 0.0
      %1604 = vmatpush2.xpose.msra.mxu0 0.0
      %1605 = vmatprep.subr.mxu0 0.0
      %1606 = vmatpush2.xpose.msra.mxu0 0.0
      %1607 = vmatprep.subr.mxu0 0.0
      %1608 = vmatpush2.xpose.msra.mxu0 0.0
      %1609 = vmatprep.subr.mxu0 0.0
      %1610 = vmatpush2.xpose.msra.mxu0 0.0
      %1611 = vmatprep.subr.mxu0 0.0
      %1612 = vmatpush2.xpose.msra.mxu0 0.0
      %1613 = vmatprep.subr.mxu0 0.0
      %1614 = vmatpush2.xpose.msra.mxu0 0.0
      %1615 = vmatprep.subr.mxu0 0.0
      %1616 = vmatpush2.xpose.msra.mxu0 0.0
      %1617 = vmatprep.subr.mxu0 0.0
      %1618 = vmatpush2.xpose.msra.mxu0 0.0
      %1619 = vmatprep.subr.mxu0 0.0
      %1620 = vmatpush2.xpose.msra.mxu0 0.0
      %1621 = vmatprep.subr.mxu0 0.0
      %1622 = vmatpush2.xpose.msra.mxu0 0.0
      %1623 = vmatprep.mubr.f32.mxu0 0.0
      %1624 = vmatmul.mubr.f32.gmra.mxu0 %v1551
      %v1625 = vpop.f32.mrf.mxu0
      %v1626 = vadd.f32 0.0, %v1625
      %v1627 = vpop.f32.mrf.mxu0
      %1628 = vmatprep.mubr.f32.mxu0 0.0
      %1629 = vmatmul.mubr.f32.gmra.mxu0 %v1553
      %v1630 = vpop.f32.mrf.mxu0
      %v1631 = vadd.f32 0.0, %v1630
      %v1632 = vpop.f32.mrf.mxu0
      %1633 = vdwg.mxu0
      %v1634 = vmul.f32 %v1626, 0.35355338
      %v1635 = vmul.f32 %v1631, 0.35355338
      %v1636 = vsel %vm1139, %v1634, -1e+09
      %v1637 = vsel %vm1140, %v1635, -1e+09
      %v1638 = vsel %vm1233, %v1636, -inf
      %1639 = vmax.xlane.f32.xlu0 %v1638
      %v1640 = vpop.xlane.xlu0 %1639
      %v1641 = vsel %vm1233, %v1637, -inf
      %1642 = vmax.xlane.f32.xlu0 %v1641
      %v1643 = vpop.xlane.xlu0 %1642
      %v1644 = vsub.f32 %v1636, %v1640
      %v1645 = vsub.f32 %v1637, %v1643
      %v1646 = vmul.f32 %v1644, 1.442695
      %v1647 = vpow.pop %v1646
      %v1648 = vmul.f32 %v1645, 1.442695
      %v1649 = vpow.pop %v1648
      %v1650 = vsel %vm1233, %v1647, 0.0
      %1651 = vadd.xlane.f32.xlu0 %v1650
      %v1652 = vpop.xlane.xlu0 %1651
      %v1653 = vsel %vm1233, %v1649, 0.0
      %1654 = vadd.xlane.f32.xlu0 %v1653
      %v1655 = vpop.xlane.xlu0 %1654
      %v1656 = vrcp.pop %v1652
      %v1657 = vmul.f32 %v1647, %v1656
      %v1658 = vrcp.pop %v1655
      %v1659 = vmul.f32 %v1649, %v1658
      %1660 = vrot.lane.b32.xlu0 %v1099, 112
      %v1661 = vpop.permute.xlu0 %1660
      %1662 = vrot.lane.b32.xlu0 %v1104, 112
      %v1663 = vpop.permute.xlu0 %1662
      %v1667 = vsel %vm1233, %v1657, 0
      %v1670 = vsel %vm1233, %v1659, 0
      %1672 = vmatprep.subr.mxu0 0.0
      %1673 = vmatpush1.msra.mxu0 0.0
      %1674 = vmatprep.subr.mxu0 0.0
      %1675 = vmatpush1.msra.mxu0 0.0
      %1676 = vmatprep.subr.mxu0 0.0
      %1677 = vmatpush1.msra.mxu0 0.0
      %1678 = vmatprep.subr.mxu0 0.0
      %1679 = vmatpush1.msra.mxu0 0.0
      %1680 = vmatprep.subr.mxu0 0.0
      %1681 = vmatpush1.msra.mxu0 0.0
      %1682 = vmatprep.subr.mxu0 0.0
      %1683 = vmatpush1.msra.mxu0 0.0
      %1684 = vmatprep.subr.mxu0 0.0
      %1685 = vmatpush1.msra.mxu0 0.0
      %1686 = vmatprep.subr.mxu0 0.0
      %1687 = vmatpush1.msra.mxu0 0.0
      %1688 = vmatprep.subr.mxu0 0.0
      %1689 = vmatpush1.msra.mxu0 0.0
      %1690 = vmatprep.subr.mxu0 0.0
      %1691 = vmatpush1.msra.mxu0 0.0
      %1692 = vmatprep.subr.mxu0 0.0
      %1693 = vmatpush1.msra.mxu0 0.0
      %1694 = vmatprep.subr.mxu0 0.0
      %1695 = vmatpush1.msra.mxu0 0.0
      %1696 = vmatprep.subr.mxu0 0.0
      %1697 = vmatpush1.msra.mxu0 0.0
      %1698 = vmatprep.subr.mxu0 0.0
      %1699 = vmatpush1.msra.mxu0 0.0
      %1700 = vmatprep.subr.mxu0 0.0
      %1701 = vmatpush1.msra.mxu0 %v1663
      %1702 = vmatprep.subr.mxu0 0.0
      %1703 = vmatpush1.msra.mxu0 %v1661
      %1704 = vmatprep.subr.mxu0 0.0
      %1705 = vmatpush2.msra.mxu0 0.0
      %1706 = vmatprep.subr.mxu0 0.0
      %1707 = vmatpush2.msra.mxu0 0.0
      %1708 = vmatprep.subr.mxu0 0.0
      %1709 = vmatpush2.msra.mxu0 0.0
      %1710 = vmatprep.subr.mxu0 0.0
      %1711 = vmatpush2.msra.mxu0 0.0
      %1712 = vmatprep.subr.mxu0 0.0
      %1713 = vmatpush2.msra.mxu0 0.0
      %1714 = vmatprep.subr.mxu0 0.0
      %1715 = vmatpush2.msra.mxu0 0.0
      %1716 = vmatprep.subr.mxu0 0.0
      %1717 = vmatpush2.msra.mxu0 0.0
      %1718 = vmatprep.subr.mxu0 0.0
      %1719 = vmatpush2.msra.mxu0 0.0
      %1720 = vmatprep.subr.mxu0 0.0
      %1721 = vmatpush2.msra.mxu0 0.0
      %1722 = vmatprep.subr.mxu0 0.0
      %1723 = vmatpush2.msra.mxu0 0.0
      %1724 = vmatprep.subr.mxu0 0.0
      %1725 = vmatpush2.msra.mxu0 0.0
      %1726 = vmatprep.subr.mxu0 0.0
      %1727 = vmatpush2.msra.mxu0 0.0
      %1728 = vmatprep.subr.mxu0 0.0
      %1729 = vmatpush2.msra.mxu0 0.0
      %1730 = vmatprep.subr.mxu0 0.0
      %1731 = vmatpush2.msra.mxu0 0.0
      %1732 = vmatprep.subr.mxu0 0.0
      %1733 = vmatpush2.msra.mxu0 0.0
      %1734 = vmatprep.subr.mxu0 0.0
      %1735 = vmatpush2.msra.mxu0 0.0
      %1736 = vmatprep.mubr.f32.mxu0 0.0
      %1737 = vmatmul.mubr.f32.gmra.mxu0 %v1667
      %v1738 = vpop.f32.mrf.mxu0
      %v1739 = vadd.f32 0.0, %v1738
      %v1740 = vpop.f32.mrf.mxu0
      %1741 = vmatprep.mubr.f32.mxu0 0.0
      %1742 = vmatmul.mubr.f32.gmra.mxu0 %v1670
      %v1743 = vpop.f32.mrf.mxu0
      %v1744 = vadd.f32 0.0, %v1743
      %v1745 = vpop.f32.mrf.mxu0
      %1746 = vdwg.mxu0
      %1747 = vrot.lane.b32.xlu0 %v895, 104
      %v1748 = vpop.permute.xlu0 %1747
      %1749 = vrot.lane.b32.xlu0 %v900, 104
      %v1750 = vpop.permute.xlu0 %1749
      %1751 = vrot.lane.b32.xlu0 %v1003, 104
      %v1752 = vpop.permute.xlu0 %1751
      %1753 = vrot.lane.b32.xlu0 %v1008, 104
      %v1754 = vpop.permute.xlu0 %1753
      %v1755 = vsel %vm1141, %v1748, 0
      %v1757 = vsel %vm1141, %v1750, 0
      %v1759 = vsel %vm1141, %v1752, 0
      %v1761 = vsel %vm1141, %v1754, 0
      %1763 = vmatprep.subr.mxu0 0.0
      %1764 = vmatpush1.xpose.msra.mxu0 0.0
      %1765 = vmatprep.subr.mxu0 0.0
      %1766 = vmatpush1.xpose.msra.mxu0 0.0
      %1767 = vmatprep.subr.mxu0 0.0
      %1768 = vmatpush1.xpose.msra.mxu0 0.0
      %1769 = vmatprep.subr.mxu0 0.0
      %1770 = vmatpush1.xpose.msra.mxu0 0.0
      %1771 = vmatprep.subr.mxu0 0.0
      %1772 = vmatpush1.xpose.msra.mxu0 0.0
      %1773 = vmatprep.subr.mxu0 0.0
      %1774 = vmatpush1.xpose.msra.mxu0 0.0
      %1775 = vmatprep.subr.mxu0 0.0
      %1776 = vmatpush1.xpose.msra.mxu0 0.0
      %1777 = vmatprep.subr.mxu0 0.0
      %1778 = vmatpush1.xpose.msra.mxu0 0.0
      %1779 = vmatprep.subr.mxu0 0.0
      %1780 = vmatpush1.xpose.msra.mxu0 0.0
      %1781 = vmatprep.subr.mxu0 0.0
      %1782 = vmatpush1.xpose.msra.mxu0 0.0
      %1783 = vmatprep.subr.mxu0 0.0
      %1784 = vmatpush1.xpose.msra.mxu0 0.0
      %1785 = vmatprep.subr.mxu0 0.0
      %1786 = vmatpush1.xpose.msra.mxu0 0.0
      %1787 = vmatprep.subr.mxu0 0.0
      %1788 = vmatpush1.xpose.msra.mxu0 0.0
      %1789 = vmatprep.subr.mxu0 0.0
      %1790 = vmatpush1.xpose.msra.mxu0 0.0
      %1791 = vmatprep.subr.mxu0 0.0
      %1792 = vmatpush1.xpose.msra.mxu0 %v1761
      %1793 = vmatprep.subr.mxu0 0.0
      %1794 = vmatpush1.xpose.msra.mxu0 %v1759
      %1795 = vmatprep.subr.mxu0 0.0
      %1796 = vmatpush2.xpose.msra.mxu0 0.0
      %1797 = vmatprep.subr.mxu0 0.0
      %1798 = vmatpush2.xpose.msra.mxu0 0.0
      %1799 = vmatprep.subr.mxu0 0.0
      %1800 = vmatpush2.xpose.msra.mxu0 0.0
      %1801 = vmatprep.subr.mxu0 0.0
      %1802 = vmatpush2.xpose.msra.mxu0 0.0
      %1803 = vmatprep.subr.mxu0 0.0
      %1804 = vmatpush2.xpose.msra.mxu0 0.0
      %1805 = vmatprep.subr.mxu0 0.0
      %1806 = vmatpush2.xpose.msra.mxu0 0.0
      %1807 = vmatprep.subr.mxu0 0.0
      %1808 = vmatpush2.xpose.msra.mxu0 0.0
      %1809 = vmatprep.subr.mxu0 0.0
      %1810 = vmatpush2.xpose.msra.mxu0 0.0
      %1811 = vmatprep.subr.mxu0 0.0
      %1812 = vmatpush2.xpose.msra.mxu0 0.0
      %1813 = vmatprep.subr.mxu0 0.0
      %1814 = vmatpush2.xpose.msra.mxu0 0.0
      %1815 = vmatprep.subr.mxu0 0.0
      %1816 = vmatpush2.xpose.msra.mxu0 0.0
      %1817 = vmatprep.subr.mxu0 0.0
      %1818 = vmatpush2.xpose.msra.mxu0 0.0
      %1819 = vmatprep.subr.mxu0 0.0
      %1820 = vmatpush2.xpose.msra.mxu0 0.0
      %1821 = vmatprep.subr.mxu0 0.0
      %1822 = vmatpush2.xpose.msra.mxu0 0.0
      %1823 = vmatprep.subr.mxu0 0.0
      %1824 = vmatpush2.xpose.msra.mxu0 0.0
      %1825 = vmatprep.subr.mxu0 0.0
      %1826 = vmatpush2.xpose.msra.mxu0 0.0
      %1827 = vmatprep.mubr.f32.mxu0 0.0
      %1828 = vmatmul.mubr.f32.gmra.mxu0 %v1755
      %v1829 = vpop.f32.mrf.mxu0
      %v1830 = vadd.f32 0.0, %v1829
      %v1831 = vpop.f32.mrf.mxu0
      %1832 = vmatprep.mubr.f32.mxu0 0.0
      %1833 = vmatmul.mubr.f32.gmra.mxu0 %v1757
      %v1834 = vpop.f32.mrf.mxu0
      %v1835 = vadd.f32 0.0, %v1834
      %v1836 = vpop.f32.mrf.mxu0
      %1837 = vdwg.mxu0
      %v1838 = vmul.f32 %v1830, 0.35355338
      %v1839 = vmul.f32 %v1835, 0.35355338
      %v1840 = vsel %vm1139, %v1838, -1e+09
      %v1841 = vsel %vm1140, %v1839, -1e+09
      %v1842 = vsel %vm1233, %v1840, -inf
      %1843 = vmax.xlane.f32.xlu0 %v1842
      %v1844 = vpop.xlane.xlu0 %1843
      %v1845 = vsel %vm1233, %v1841, -inf
      %1846 = vmax.xlane.f32.xlu0 %v1845
      %v1847 = vpop.xlane.xlu0 %1846
      %v1848 = vsub.f32 %v1840, %v1844
      %v1849 = vsub.f32 %v1841, %v1847
      %v1850 = vmul.f32 %v1848, 1.442695
      %v1851 = vpow.pop %v1850
      %v1852 = vmul.f32 %v1849, 1.442695
      %v1853 = vpow.pop %v1852
      %v1854 = vsel %vm1233, %v1851, 0.0
      %1855 = vadd.xlane.f32.xlu0 %v1854
      %v1856 = vpop.xlane.xlu0 %1855
      %v1857 = vsel %vm1233, %v1853, 0.0
      %1858 = vadd.xlane.f32.xlu0 %v1857
      %v1859 = vpop.xlane.xlu0 %1858
      %v1860 = vrcp.pop %v1856
      %v1861 = vmul.f32 %v1851, %v1860
      %v1862 = vrcp.pop %v1859
      %v1863 = vmul.f32 %v1853, %v1862
      %1864 = vrot.lane.b32.xlu0 %v1099, 104
      %v1865 = vpop.permute.xlu0 %1864
      %1866 = vrot.lane.b32.xlu0 %v1104, 104
      %v1867 = vpop.permute.xlu0 %1866
      %v1871 = vsel %vm1233, %v1861, 0
      %v1874 = vsel %vm1233, %v1863, 0
      %1876 = vmatprep.subr.mxu0 0.0
      %1877 = vmatpush1.msra.mxu0 0.0
      %1878 = vmatprep.subr.mxu0 0.0
      %1879 = vmatpush1.msra.mxu0 0.0
      %1880 = vmatprep.subr.mxu0 0.0
      %1881 = vmatpush1.msra.mxu0 0.0
      %1882 = vmatprep.subr.mxu0 0.0
      %1883 = vmatpush1.msra.mxu0 0.0
      %1884 = vmatprep.subr.mxu0 0.0
      %1885 = vmatpush1.msra.mxu0 0.0
      %1886 = vmatprep.subr.mxu0 0.0
      %1887 = vmatpush1.msra.mxu0 0.0
      %1888 = vmatprep.subr.mxu0 0.0
      %1889 = vmatpush1.msra.mxu0 0.0
      %1890 = vmatprep.subr.mxu0 0.0
      %1891 = vmatpush1.msra.mxu0 0.0
      %1892 = vmatprep.subr.mxu0 0.0
      %1893 = vmatpush1.msra.mxu0 0.0
      %1894 = vmatprep.subr.mxu0 0.0
      %1895 = vmatpush1.msra.mxu0 0.0
      %1896 = vmatprep.subr.mxu0 0.0
      %1897 = vmatpush1.msra.mxu0 0.0
      %1898 = vmatprep.subr.mxu0 0.0
      %1899 = vmatpush1.msra.mxu0 0.0
      %1900 = vmatprep.subr.mxu0 0.0
      %1901 = vmatpush1.msra.mxu0 0.0
      %1902 = vmatprep.subr.mxu0 0.0
      %1903 = vmatpush1.msra.mxu0 0.0
      %1904 = vmatprep.subr.mxu0 0.0
      %1905 = vmatpush1.msra.mxu0 %v1867
      %1906 = vmatprep.subr.mxu0 0.0
      %1907 = vmatpush1.msra.mxu0 %v1865
      %1908 = vmatprep.subr.mxu0 0.0
      %1909 = vmatpush2.msra.mxu0 0.0
      %1910 = vmatprep.subr.mxu0 0.0
      %1911 = vmatpush2.msra.mxu0 0.0
      %1912 = vmatprep.subr.mxu0 0.0
      %1913 = vmatpush2.msra.mxu0 0.0
      %1914 = vmatprep.subr.mxu0 0.0
      %1915 = vmatpush2.msra.mxu0 0.0
      %1916 = vmatprep.subr.mxu0 0.0
      %1917 = vmatpush2.msra.mxu0 0.0
      %1918 = vmatprep.subr.mxu0 0.0
      %1919 = vmatpush2.msra.mxu0 0.0
      %1920 = vmatprep.subr.mxu0 0.0
      %1921 = vmatpush2.msra.mxu0 0.0
      %1922 = vmatprep.subr.mxu0 0.0
      %1923 = vmatpush2.msra.mxu0 0.0
      %1924 = vmatprep.subr.mxu0 0.0
      %1925 = vmatpush2.msra.mxu0 0.0
      %1926 = vmatprep.subr.mxu0 0.0
      %1927 = vmatpush2.msra.mxu0 0.0
      %1928 = vmatprep.subr.mxu0 0.0
      %1929 = vmatpush2.msra.mxu0 0.0
      %1930 = vmatprep.subr.mxu0 0.0
      %1931 = vmatpush2.msra.mxu0 0.0
      %1932 = vmatprep.subr.mxu0 0.0
      %1933 = vmatpush2.msra.mxu0 0.0
      %1934 = vmatprep.subr.mxu0 0.0
      %1935 = vmatpush2.msra.mxu0 0.0
      %1936 = vmatprep.subr.mxu0 0.0
      %1937 = vmatpush2.msra.mxu0 0.0
      %1938 = vmatprep.subr.mxu0 0.0
      %1939 = vmatpush2.msra.mxu0 0.0
      %1940 = vmatprep.mubr.f32.mxu0 0.0
      %1941 = vmatmul.mubr.f32.gmra.mxu0 %v1871
      %v1942 = vpop.f32.mrf.mxu0
      %v1943 = vadd.f32 0.0, %v1942
      %v1944 = vpop.f32.mrf.mxu0
      %1945 = vmatprep.mubr.f32.mxu0 0.0
      %1946 = vmatmul.mubr.f32.gmra.mxu0 %v1874
      %v1947 = vpop.f32.mrf.mxu0
      %v1948 = vadd.f32 0.0, %v1947
      %v1949 = vpop.f32.mrf.mxu0
      %1950 = vdwg.mxu0
      %1953 = vrot.lane.b32.xlu0 %v1535, 8
      %v1954 = vpop.permute.xlu0 %1953
      %1955 = vrot.lane.b32.xlu0 %v1540, 8
      %v1956 = vpop.permute.xlu0 %1955
      %1961 = vrot.lane.b32.xlu0 %v1739, 16
      %v1962 = vpop.permute.xlu0 %1961
      %1963 = vrot.lane.b32.xlu0 %v1744, 16
      %v1964 = vpop.permute.xlu0 %1963
      %1969 = vrot.lane.b32.xlu0 %v1943, 24
      %v1970 = vpop.permute.xlu0 %1969
      %1971 = vrot.lane.b32.xlu0 %v1948, 24
      %v1972 = vpop.permute.xlu0 %1971
      %v1975 = vsel %vm1141, %v1329, %v1954
      %v1976 = vsel %vm1141, %v1334, %v1956
      %v1977 = vsel %vm1233, %v1975, %v1962
      %v1978 = vsel %vm1233, %v1976, %v1964
      %vm1979 = vcmask 195584
      %v1980 = vsel %vm1979, %v1977, %v1970
      %v1981 = vsel %vm1979, %v1978, %v1972
      %1983 = vset.pattern.permute.xlu0 0
      %1984 = vperm.xlu0 %1983, %v1119
      %v1985 = vpop.permute.xlu0 %1984
      %1988 = vset.pattern.permute.xlu0 0
      %1989 = vperm.xlu0 %1988, %v1120
      %v1990 = vpop.permute.xlu0 %1989
      %v1992 = vlaneseq
      %v1993 = vshrl.u32 %v1992, 7
      %v1994 = vsub.s32 1, %v1993
      %v1995 = vrot.slane %v1121, %v1994
      %vm1996 = vcmp.gt.f32.partialorder %v1985, 0.0
      %vm1997 = vcmp.gt.f32.partialorder %v1990, 0.0
      %vm1998 = vcmp.gt.f32.partialorder %v1995, 0.0
      %vm1999 = vmand %vm1996, %vm1998
      %vm2000 = vmand %vm1997, %vm1998
      %v2002 = vsel %vm1141, %v905, 0
      %v2005 = vsel %vm1141, %v910, 0
      %v2008 = vsel %vm1141, %v1013, 0
      %v2011 = vsel %vm1141, %v1018, 0
      %2013 = vmatprep.subr.mxu0 0.0
      %2014 = vmatpush1.xpose.msra.mxu0 0.0
      %2015 = vmatprep.subr.mxu0 0.0
      %2016 = vmatpush1.xpose.msra.mxu0 0.0
      %2017 = vmatprep.subr.mxu0 0.0
      %2018 = vmatpush1.xpose.msra.mxu0 0.0
      %2019 = vmatprep.subr.mxu0 0.0
      %2020 = vmatpush1.xpose.msra.mxu0 0.0
      %2021 = vmatprep.subr.mxu0 0.0
      %2022 = vmatpush1.xpose.msra.mxu0 0.0
      %2023 = vmatprep.subr.mxu0 0.0
      %2024 = vmatpush1.xpose.msra.mxu0 0.0
      %2025 = vmatprep.subr.mxu0 0.0
      %2026 = vmatpush1.xpose.msra.mxu0 0.0
      %2027 = vmatprep.subr.mxu0 0.0
      %2028 = vmatpush1.xpose.msra.mxu0 0.0
      %2029 = vmatprep.subr.mxu0 0.0
      %2030 = vmatpush1.xpose.msra.mxu0 0.0
      %2031 = vmatprep.subr.mxu0 0.0
      %2032 = vmatpush1.xpose.msra.mxu0 0.0
      %2033 = vmatprep.subr.mxu0 0.0
      %2034 = vmatpush1.xpose.msra.mxu0 0.0
      %2035 = vmatprep.subr.mxu0 0.0
      %2036 = vmatpush1.xpose.msra.mxu0 0.0
      %2037 = vmatprep.subr.mxu0 0.0
      %2038 = vmatpush1.xpose.msra.mxu0 0.0
      %2039 = vmatprep.subr.mxu0 0.0
      %2040 = vmatpush1.xpose.msra.mxu0 0.0
      %2041 = vmatprep.subr.mxu0 0.0
      %2042 = vmatpush1.xpose.msra.mxu0 %v2011
      %2043 = vmatprep.subr.mxu0 0.0
      %2044 = vmatpush1.xpose.msra.mxu0 %v2008
      %2045 = vmatprep.subr.mxu0 0.0
      %2046 = vmatpush2.xpose.msra.mxu0 0.0
      %2047 = vmatprep.subr.mxu0 0.0
      %2048 = vmatpush2.xpose.msra.mxu0 0.0
      %2049 = vmatprep.subr.mxu0 0.0
      %2050 = vmatpush2.xpose.msra.mxu0 0.0
      %2051 = vmatprep.subr.mxu0 0.0
      %2052 = vmatpush2.xpose.msra.mxu0 0.0
      %2053 = vmatprep.subr.mxu0 0.0
      %2054 = vmatpush2.xpose.msra.mxu0 0.0
      %2055 = vmatprep.subr.mxu0 0.0
      %2056 = vmatpush2.xpose.msra.mxu0 0.0
      %2057 = vmatprep.subr.mxu0 0.0
      %2058 = vmatpush2.xpose.msra.mxu0 0.0
      %2059 = vmatprep.subr.mxu0 0.0
      %2060 = vmatpush2.xpose.msra.mxu0 0.0
      %2061 = vmatprep.subr.mxu0 0.0
      %2062 = vmatpush2.xpose.msra.mxu0 0.0
      %2063 = vmatprep.subr.mxu0 0.0
      %2064 = vmatpush2.xpose.msra.mxu0 0.0
      %2065 = vmatprep.subr.mxu0 0.0
      %2066 = vmatpush2.xpose.msra.mxu0 0.0
      %2067 = vmatprep.subr.mxu0 0.0
      %2068 = vmatpush2.xpose.msra.mxu0 0.0
      %2069 = vmatprep.subr.mxu0 0.0
      %2070 = vmatpush2.xpose.msra.mxu0 0.0
      %2071 = vmatprep.subr.mxu0 0.0
      %2072 = vmatpush2.xpose.msra.mxu0 0.0
      %2073 = vmatprep.subr.mxu0 0.0
      %2074 = vmatpush2.xpose.msra.mxu0 0.0
      %2075 = vmatprep.subr.mxu0 0.0
      %2076 = vmatpush2.xpose.msra.mxu0 0.0
      %2077 = vmatprep.mubr.f32.mxu0 0.0
      %2078 = vmatmul.mubr.f32.gmra.mxu0 %v2002
      %v2079 = vpop.f32.mrf.mxu0
      %v2080 = vadd.f32 0.0, %v2079
      %v2081 = vpop.f32.mrf.mxu0
      %2082 = vmatprep.mubr.f32.mxu0 0.0
      %2083 = vmatmul.mubr.f32.gmra.mxu0 %v2005
      %v2084 = vpop.f32.mrf.mxu0
      %v2085 = vadd.f32 0.0, %v2084
      %v2086 = vpop.f32.mrf.mxu0
      %2087 = vdwg.mxu0
      %v2088 = vmul.f32 %v2080, 0.35355338
      %v2089 = vmul.f32 %v2085, 0.35355338
      %v2090 = vsel %vm1999, %v2088, -1e+09
      %v2091 = vsel %vm2000, %v2089, -1e+09
      %v2092 = vsel %vm1233, %v2090, -inf
      %2093 = vmax.xlane.f32.xlu0 %v2092
      %v2094 = vpop.xlane.xlu0 %2093
      %v2095 = vsel %vm1233, %v2091, -inf
      %2096 = vmax.xlane.f32.xlu0 %v2095
      %v2097 = vpop.xlane.xlu0 %2096
      %v2098 = vsub.f32 %v2090, %v2094
      %v2099 = vsub.f32 %v2091, %v2097
      %v2100 = vmul.f32 %v2098, 1.442695
      %v2101 = vpow.pop %v2100
      %v2102 = vmul.f32 %v2099, 1.442695
      %v2103 = vpow.pop %v2102
      %v2104 = vsel %vm1233, %v2101, 0.0
      %2105 = vadd.xlane.f32.xlu0 %v2104
      %v2106 = vpop.xlane.xlu0 %2105
      %v2107 = vsel %vm1233, %v2103, 0.0
      %2108 = vadd.xlane.f32.xlu0 %v2107
      %v2109 = vpop.xlane.xlu0 %2108
      %v2110 = vrcp.pop %v2106
      %v2111 = vmul.f32 %v2101, %v2110
      %v2112 = vrcp.pop %v2109
      %v2113 = vmul.f32 %v2103, %v2112
      %v2115 = vsel %vm1233, %v2111, 0
      %v2118 = vsel %vm1233, %v2113, 0
      %2120 = vmatprep.subr.mxu0 0.0
      %2121 = vmatpush1.msra.mxu0 0.0
      %2122 = vmatprep.subr.mxu0 0.0
      %2123 = vmatpush1.msra.mxu0 0.0
      %2124 = vmatprep.subr.mxu0 0.0
      %2125 = vmatpush1.msra.mxu0 0.0
      %2126 = vmatprep.subr.mxu0 0.0
      %2127 = vmatpush1.msra.mxu0 0.0
      %2128 = vmatprep.subr.mxu0 0.0
      %2129 = vmatpush1.msra.mxu0 0.0
      %2130 = vmatprep.subr.mxu0 0.0
      %2131 = vmatpush1.msra.mxu0 0.0
      %2132 = vmatprep.subr.mxu0 0.0
      %2133 = vmatpush1.msra.mxu0 0.0
      %2134 = vmatprep.subr.mxu0 0.0
      %2135 = vmatpush1.msra.mxu0 0.0
      %2136 = vmatprep.subr.mxu0 0.0
      %2137 = vmatpush1.msra.mxu0 0.0
      %2138 = vmatprep.subr.mxu0 0.0
      %2139 = vmatpush1.msra.mxu0 0.0
      %2140 = vmatprep.subr.mxu0 0.0
      %2141 = vmatpush1.msra.mxu0 0.0
      %2142 = vmatprep.subr.mxu0 0.0
      %2143 = vmatpush1.msra.mxu0 0.0
      %2144 = vmatprep.subr.mxu0 0.0
      %2145 = vmatpush1.msra.mxu0 0.0
      %2146 = vmatprep.subr.mxu0 0.0
      %2147 = vmatpush1.msra.mxu0 0.0
      %2148 = vmatprep.subr.mxu0 0.0
      %2149 = vmatpush1.msra.mxu0 %v1114
      %2150 = vmatprep.subr.mxu0 0.0
      %2151 = vmatpush1.msra.mxu0 %v1109
      %2152 = vmatprep.subr.mxu0 0.0
      %2153 = vmatpush2.msra.mxu0 0.0
      %2154 = vmatprep.subr.mxu0 0.0
      %2155 = vmatpush2.msra.mxu0 0.0
      %2156 = vmatprep.subr.mxu0 0.0
      %2157 = vmatpush2.msra.mxu0 0.0
      %2158 = vmatprep.subr.mxu0 0.0
      %2159 = vmatpush2.msra.mxu0 0.0
      %2160 = vmatprep.subr.mxu0 0.0
      %2161 = vmatpush2.msra.mxu0 0.0
      %2162 = vmatprep.subr.mxu0 0.0
      %2163 = vmatpush2.msra.mxu0 0.0
      %2164 = vmatprep.subr.mxu0 0.0
      %2165 = vmatpush2.msra.mxu0 0.0
      %2166 = vmatprep.subr.mxu0 0.0
      %2167 = vmatpush2.msra.mxu0 0.0
      %2168 = vmatprep.subr.mxu0 0.0
      %2169 = vmatpush2.msra.mxu0 0.0
      %2170 = vmatprep.subr.mxu0 0.0
      %2171 = vmatpush2.msra.mxu0 0.0
      %2172 = vmatprep.subr.mxu0 0.0
      %2173 = vmatpush2.msra.mxu0 0.0
      %2174 = vmatprep.subr.mxu0 0.0
      %2175 = vmatpush2.msra.mxu0 0.0
      %2176 = vmatprep.subr.mxu0 0.0
      %2177 = vmatpush2.msra.mxu0 0.0
      %2178 = vmatprep.subr.mxu0 0.0
      %2179 = vmatpush2.msra.mxu0 0.0
      %2180 = vmatprep.subr.mxu0 0.0
      %2181 = vmatpush2.msra.mxu0 0.0
      %2182 = vmatprep.subr.mxu0 0.0
      %2183 = vmatpush2.msra.mxu0 0.0
      %2184 = vmatprep.mubr.f32.mxu0 0.0
      %2185 = vmatmul.mubr.f32.gmra.mxu0 %v2115
      %v2186 = vpop.f32.mrf.mxu0
      %v2187 = vadd.f32 0.0, %v2186
      %v2188 = vpop.f32.mrf.mxu0
      %2189 = vmatprep.mubr.f32.mxu0 0.0
      %2190 = vmatmul.mubr.f32.gmra.mxu0 %v2118
      %v2191 = vpop.f32.mrf.mxu0
      %v2192 = vadd.f32 0.0, %v2191
      %v2193 = vpop.f32.mrf.mxu0
      %2194 = vdwg.mxu0
      %2195 = vrot.lane.b32.xlu0 %v905, 120
      %v2196 = vpop.permute.xlu0 %2195
      %2197 = vrot.lane.b32.xlu0 %v910, 120
      %v2198 = vpop.permute.xlu0 %2197
      %2199 = vrot.lane.b32.xlu0 %v1013, 120
      %v2200 = vpop.permute.xlu0 %2199
      %2201 = vrot.lane.b32.xlu0 %v1018, 120
      %v2202 = vpop.permute.xlu0 %2201
      %v2203 = vsel %vm1141, %v2196, 0
      %v2205 = vsel %vm1141, %v2198, 0
      %v2207 = vsel %vm1141, %v2200, 0
      %v2209 = vsel %vm1141, %v2202, 0
      %2211 = vmatprep.subr.mxu0 0.0
      %2212 = vmatpush1.xpose.msra.mxu0 0.0
      %2213 = vmatprep.subr.mxu0 0.0
      %2214 = vmatpush1.xpose.msra.mxu0 0.0
      %2215 = vmatprep.subr.mxu0 0.0
      %2216 = vmatpush1.xpose.msra.mxu0 0.0
      %2217 = vmatprep.subr.mxu0 0.0
      %2218 = vmatpush1.xpose.msra.mxu0 0.0
      %2219 = vmatprep.subr.mxu0 0.0
      %2220 = vmatpush1.xpose.msra.mxu0 0.0
      %2221 = vmatprep.subr.mxu0 0.0
      %2222 = vmatpush1.xpose.msra.mxu0 0.0
      %2223 = vmatprep.subr.mxu0 0.0
      %2224 = vmatpush1.xpose.msra.mxu0 0.0
      %2225 = vmatprep.subr.mxu0 0.0
      %2226 = vmatpush1.xpose.msra.mxu0 0.0
      %2227 = vmatprep.subr.mxu0 0.0
      %2228 = vmatpush1.xpose.msra.mxu0 0.0
      %2229 = vmatprep.subr.mxu0 0.0
      %2230 = vmatpush1.xpose.msra.mxu0 0.0
      %2231 = vmatprep.subr.mxu0 0.0
      %2232 = vmatpush1.xpose.msra.mxu0 0.0
      %2233 = vmatprep.subr.mxu0 0.0
      %2234 = vmatpush1.xpose.msra.mxu0 0.0
      %2235 = vmatprep.subr.mxu0 0.0
      %2236 = vmatpush1.xpose.msra.mxu0 0.0
      %2237 = vmatprep.subr.mxu0 0.0
      %2238 = vmatpush1.xpose.msra.mxu0 0.0
      %2239 = vmatprep.subr.mxu0 0.0
      %2240 = vmatpush1.xpose.msra.mxu0 %v2209
      %2241 = vmatprep.subr.mxu0 0.0
      %2242 = vmatpush1.xpose.msra.mxu0 %v2207
      %2243 = vmatprep.subr.mxu0 0.0
      %2244 = vmatpush2.xpose.msra.mxu0 0.0
      %2245 = vmatprep.subr.mxu0 0.0
      %2246 = vmatpush2.xpose.msra.mxu0 0.0
      %2247 = vmatprep.subr.mxu0 0.0
      %2248 = vmatpush2.xpose.msra.mxu0 0.0
      %2249 = vmatprep.subr.mxu0 0.0
      %2250 = vmatpush2.xpose.msra.mxu0 0.0
      %2251 = vmatprep.subr.mxu0 0.0
      %2252 = vmatpush2.xpose.msra.mxu0 0.0
      %2253 = vmatprep.subr.mxu0 0.0
      %2254 = vmatpush2.xpose.msra.mxu0 0.0
      %2255 = vmatprep.subr.mxu0 0.0
      %2256 = vmatpush2.xpose.msra.mxu0 0.0
      %2257 = vmatprep.subr.mxu0 0.0
      %2258 = vmatpush2.xpose.msra.mxu0 0.0
      %2259 = vmatprep.subr.mxu0 0.0
      %2260 = vmatpush2.xpose.msra.mxu0 0.0
      %2261 = vmatprep.subr.mxu0 0.0
      %2262 = vmatpush2.xpose.msra.mxu0 0.0
      %2263 = vmatprep.subr.mxu0 0.0
      %2264 = vmatpush2.xpose.msra.mxu0 0.0
      %2265 = vmatprep.subr.mxu0 0.0
      %2266 = vmatpush2.xpose.msra.mxu0 0.0
      %2267 = vmatprep.subr.mxu0 0.0
      %2268 = vmatpush2.xpose.msra.mxu0 0.0
      %2269 = vmatprep.subr.mxu0 0.0
      %2270 = vmatpush2.xpose.msra.mxu0 0.0
      %2271 = vmatprep.subr.mxu0 0.0
      %2272 = vmatpush2.xpose.msra.mxu0 0.0
      %2273 = vmatprep.subr.mxu0 0.0
      %2274 = vmatpush2.xpose.msra.mxu0 0.0
      %2275 = vmatprep.mubr.f32.mxu0 0.0
      %2276 = vmatmul.mubr.f32.gmra.mxu0 %v2203
      %v2277 = vpop.f32.mrf.mxu0
      %v2278 = vadd.f32 0.0, %v2277
      %v2279 = vpop.f32.mrf.mxu0
      %2280 = vmatprep.mubr.f32.mxu0 0.0
      %2281 = vmatmul.mubr.f32.gmra.mxu0 %v2205
      %v2282 = vpop.f32.mrf.mxu0
      %v2283 = vadd.f32 0.0, %v2282
      %v2284 = vpop.f32.mrf.mxu0
      %2285 = vdwg.mxu0
      %v2286 = vmul.f32 %v2278, 0.35355338
      %v2287 = vmul.f32 %v2283, 0.35355338
      %v2288 = vsel %vm1999, %v2286, -1e+09
      %v2289 = vsel %vm2000, %v2287, -1e+09
      %v2290 = vsel %vm1233, %v2288, -inf
      %2291 = vmax.xlane.f32.xlu0 %v2290
      %v2292 = vpop.xlane.xlu0 %2291
      %v2293 = vsel %vm1233, %v2289, -inf
      %2294 = vmax.xlane.f32.xlu0 %v2293
      %v2295 = vpop.xlane.xlu0 %2294
      %v2296 = vsub.f32 %v2288, %v2292
      %v2297 = vsub.f32 %v2289, %v2295
      %v2298 = vmul.f32 %v2296, 1.442695
      %v2299 = vpow.pop %v2298
      %v2300 = vmul.f32 %v2297, 1.442695
      %v2301 = vpow.pop %v2300
      %v2302 = vsel %vm1233, %v2299, 0.0
      %2303 = vadd.xlane.f32.xlu0 %v2302
      %v2304 = vpop.xlane.xlu0 %2303
      %v2305 = vsel %vm1233, %v2301, 0.0
      %2306 = vadd.xlane.f32.xlu0 %v2305
      %v2307 = vpop.xlane.xlu0 %2306
      %v2308 = vrcp.pop %v2304
      %v2309 = vmul.f32 %v2299, %v2308
      %v2310 = vrcp.pop %v2307
      %v2311 = vmul.f32 %v2301, %v2310
      %2314 = vrot.lane.b32.xlu0 %v1109, 120
      %v2315 = vpop.permute.xlu0 %2314
      %2316 = vrot.lane.b32.xlu0 %v1114, 120
      %v2317 = vpop.permute.xlu0 %2316
      %v2321 = vsel %vm1233, %v2309, 0
      %v2324 = vsel %vm1233, %v2311, 0
      %2326 = vmatprep.subr.mxu0 0.0
      %2327 = vmatpush1.msra.mxu0 0.0
      %2328 = vmatprep.subr.mxu0 0.0
      %2329 = vmatpush1.msra.mxu0 0.0
      %2330 = vmatprep.subr.mxu0 0.0
      %2331 = vmatpush1.msra.mxu0 0.0
      %2332 = vmatprep.subr.mxu0 0.0
      %2333 = vmatpush1.msra.mxu0 0.0
      %2334 = vmatprep.subr.mxu0 0.0
      %2335 = vmatpush1.msra.mxu0 0.0
      %2336 = vmatprep.subr.mxu0 0.0
      %2337 = vmatpush1.msra.mxu0 0.0
      %2338 = vmatprep.subr.mxu0 0.0
      %2339 = vmatpush1.msra.mxu0 0.0
      %2340 = vmatprep.subr.mxu0 0.0
      %2341 = vmatpush1.msra.mxu0 0.0
      %2342 = vmatprep.subr.mxu0 0.0
      %2343 = vmatpush1.msra.mxu0 0.0
      %2344 = vmatprep.subr.mxu0 0.0
      %2345 = vmatpush1.msra.mxu0 0.0
      %2346 = vmatprep.subr.mxu0 0.0
      %2347 = vmatpush1.msra.mxu0 0.0
      %2348 = vmatprep.subr.mxu0 0.0
      %2349 = vmatpush1.msra.mxu0 0.0
      %2350 = vmatprep.subr.mxu0 0.0
      %2351 = vmatpush1.msra.mxu0 0.0
      %2352 = vmatprep.subr.mxu0 0.0
      %2353 = vmatpush1.msra.mxu0 0.0
      %2354 = vmatprep.subr.mxu0 0.0
      %2355 = vmatpush1.msra.mxu0 %v2317
      %2356 = vmatprep.subr.mxu0 0.0
      %2357 = vmatpush1.msra.mxu0 %v2315
      %2358 = vmatprep.subr.mxu0 0.0
      %2359 = vmatpush2.msra.mxu0 0.0
      %2360 = vmatprep.subr.mxu0 0.0
      %2361 = vmatpush2.msra.mxu0 0.0
      %2362 = vmatprep.subr.mxu0 0.0
      %2363 = vmatpush2.msra.mxu0 0.0
      %2364 = vmatprep.subr.mxu0 0.0
      %2365 = vmatpush2.msra.mxu0 0.0
      %2366 = vmatprep.subr.mxu0 0.0
      %2367 = vmatpush2.msra.mxu0 0.0
      %2368 = vmatprep.subr.mxu0 0.0
      %2369 = vmatpush2.msra.mxu0 0.0
      %2370 = vmatprep.subr.mxu0 0.0
      %2371 = vmatpush2.msra.mxu0 0.0
      %2372 = vmatprep.subr.mxu0 0.0
      %2373 = vmatpush2.msra.mxu0 0.0
      %2374 = vmatprep.subr.mxu0 0.0
      %2375 = vmatpush2.msra.mxu0 0.0
      %2376 = vmatprep.subr.mxu0 0.0
      %2377 = vmatpush2.msra.mxu0 0.0
      %2378 = vmatprep.subr.mxu0 0.0
      %2379 = vmatpush2.msra.mxu0 0.0
      %2380 = vmatprep.subr.mxu0 0.0
      %2381 = vmatpush2.msra.mxu0 0.0
      %2382 = vmatprep.subr.mxu0 0.0
      %2383 = vmatpush2.msra.mxu0 0.0
      %2384 = vmatprep.subr.mxu0 0.0
      %2385 = vmatpush2.msra.mxu0 0.0
      %2386 = vmatprep.subr.mxu0 0.0
      %2387 = vmatpush2.msra.mxu0 0.0
      %2388 = vmatprep.subr.mxu0 0.0
      %2389 = vmatpush2.msra.mxu0 0.0
      %2390 = vmatprep.mubr.f32.mxu0 0.0
      %2391 = vmatmul.mubr.f32.gmra.mxu0 %v2321
      %v2392 = vpop.f32.mrf.mxu0
      %v2393 = vadd.f32 0.0, %v2392
      %v2394 = vpop.f32.mrf.mxu0
      %2395 = vmatprep.mubr.f32.mxu0 0.0
      %2396 = vmatmul.mubr.f32.gmra.mxu0 %v2324
      %v2397 = vpop.f32.mrf.mxu0
      %v2398 = vadd.f32 0.0, %v2397
      %v2399 = vpop.f32.mrf.mxu0
      %2400 = vdwg.mxu0
      %2401 = vrot.lane.b32.xlu0 %v905, 112
      %v2402 = vpop.permute.xlu0 %2401
      %2403 = vrot.lane.b32.xlu0 %v910, 112
      %v2404 = vpop.permute.xlu0 %2403
      %2405 = vrot.lane.b32.xlu0 %v1013, 112
      %v2406 = vpop.permute.xlu0 %2405
      %2407 = vrot.lane.b32.xlu0 %v1018, 112
      %v2408 = vpop.permute.xlu0 %2407
      %v2409 = vsel %vm1141, %v2402, 0
      %v2411 = vsel %vm1141, %v2404, 0
      %v2413 = vsel %vm1141, %v2406, 0
      %v2415 = vsel %vm1141, %v2408, 0
      %2417 = vmatprep.subr.mxu0 0.0
      %2418 = vmatpush1.xpose.msra.mxu0 0.0
      %2419 = vmatprep.subr.mxu0 0.0
      %2420 = vmatpush1.xpose.msra.mxu0 0.0
      %2421 = vmatprep.subr.mxu0 0.0
      %2422 = vmatpush1.xpose.msra.mxu0 0.0
      %2423 = vmatprep.subr.mxu0 0.0
      %2424 = vmatpush1.xpose.msra.mxu0 0.0
      %2425 = vmatprep.subr.mxu0 0.0
      %2426 = vmatpush1.xpose.msra.mxu0 0.0
      %2427 = vmatprep.subr.mxu0 0.0
      %2428 = vmatpush1.xpose.msra.mxu0 0.0
      %2429 = vmatprep.subr.mxu0 0.0
      %2430 = vmatpush1.xpose.msra.mxu0 0.0
      %2431 = vmatprep.subr.mxu0 0.0
      %2432 = vmatpush1.xpose.msra.mxu0 0.0
      %2433 = vmatprep.subr.mxu0 0.0
      %2434 = vmatpush1.xpose.msra.mxu0 0.0
      %2435 = vmatprep.subr.mxu0 0.0
      %2436 = vmatpush1.xpose.msra.mxu0 0.0
      %2437 = vmatprep.subr.mxu0 0.0
      %2438 = vmatpush1.xpose.msra.mxu0 0.0
      %2439 = vmatprep.subr.mxu0 0.0
      %2440 = vmatpush1.xpose.msra.mxu0 0.0
      %2441 = vmatprep.subr.mxu0 0.0
      %2442 = vmatpush1.xpose.msra.mxu0 0.0
      %2443 = vmatprep.subr.mxu0 0.0
      %2444 = vmatpush1.xpose.msra.mxu0 0.0
      %2445 = vmatprep.subr.mxu0 0.0
      %2446 = vmatpush1.xpose.msra.mxu0 %v2415
      %2447 = vmatprep.subr.mxu0 0.0
      %2448 = vmatpush1.xpose.msra.mxu0 %v2413
      %2449 = vmatprep.subr.mxu0 0.0
      %2450 = vmatpush2.xpose.msra.mxu0 0.0
      %2451 = vmatprep.subr.mxu0 0.0
      %2452 = vmatpush2.xpose.msra.mxu0 0.0
      %2453 = vmatprep.subr.mxu0 0.0
      %2454 = vmatpush2.xpose.msra.mxu0 0.0
      %2455 = vmatprep.subr.mxu0 0.0
      %2456 = vmatpush2.xpose.msra.mxu0 0.0
      %2457 = vmatprep.subr.mxu0 0.0
      %2458 = vmatpush2.xpose.msra.mxu0 0.0
      %2459 = vmatprep.subr.mxu0 0.0
      %2460 = vmatpush2.xpose.msra.mxu0 0.0
      %2461 = vmatprep.subr.mxu0 0.0
      %2462 = vmatpush2.xpose.msra.mxu0 0.0
      %2463 = vmatprep.subr.mxu0 0.0
      %2464 = vmatpush2.xpose.msra.mxu0 0.0
      %2465 = vmatprep.subr.mxu0 0.0
      %2466 = vmatpush2.xpose.msra.mxu0 0.0
      %2467 = vmatprep.subr.mxu0 0.0
      %2468 = vmatpush2.xpose.msra.mxu0 0.0
      %2469 = vmatprep.subr.mxu0 0.0
      %2470 = vmatpush2.xpose.msra.mxu0 0.0
      %2471 = vmatprep.subr.mxu0 0.0
      %2472 = vmatpush2.xpose.msra.mxu0 0.0
      %2473 = vmatprep.subr.mxu0 0.0
      %2474 = vmatpush2.xpose.msra.mxu0 0.0
      %2475 = vmatprep.subr.mxu0 0.0
      %2476 = vmatpush2.xpose.msra.mxu0 0.0
      %2477 = vmatprep.subr.mxu0 0.0
      %2478 = vmatpush2.xpose.msra.mxu0 0.0
      %2479 = vmatprep.subr.mxu0 0.0
      %2480 = vmatpush2.xpose.msra.mxu0 0.0
      %2481 = vmatprep.mubr.f32.mxu0 0.0
      %2482 = vmatmul.mubr.f32.gmra.mxu0 %v2409
      %v2483 = vpop.f32.mrf.mxu0
      %v2484 = vadd.f32 0.0, %v2483
      %v2485 = vpop.f32.mrf.mxu0
      %2486 = vmatprep.mubr.f32.mxu0 0.0
      %2487 = vmatmul.mubr.f32.gmra.mxu0 %v2411
      %v2488 = vpop.f32.mrf.mxu0
      %v2489 = vadd.f32 0.0, %v2488
      %v2490 = vpop.f32.mrf.mxu0
      %2491 = vdwg.mxu0
      %v2492 = vmul.f32 %v2484, 0.35355338
      %v2493 = vmul.f32 %v2489, 0.35355338
      %v2494 = vsel %vm1999, %v2492, -1e+09
      %v2495 = vsel %vm2000, %v2493, -1e+09
      %v2496 = vsel %vm1233, %v2494, -inf
      %2497 = vmax.xlane.f32.xlu0 %v2496
      %v2498 = vpop.xlane.xlu0 %2497
      %v2499 = vsel %vm1233, %v2495, -inf
      %2500 = vmax.xlane.f32.xlu0 %v2499
      %v2501 = vpop.xlane.xlu0 %2500
      %v2502 = vsub.f32 %v2494, %v2498
      %v2503 = vsub.f32 %v2495, %v2501
      %v2504 = vmul.f32 %v2502, 1.442695
      %v2505 = vpow.pop %v2504
      %v2506 = vmul.f32 %v2503, 1.442695
      %v2507 = vpow.pop %v2506
      %v2508 = vsel %vm1233, %v2505, 0.0
      %2509 = vadd.xlane.f32.xlu0 %v2508
      %v2510 = vpop.xlane.xlu0 %2509
      %v2511 = vsel %vm1233, %v2507, 0.0
      %2512 = vadd.xlane.f32.xlu0 %v2511
      %v2513 = vpop.xlane.xlu0 %2512
      %v2514 = vrcp.pop %v2510
      %v2515 = vmul.f32 %v2505, %v2514
      %v2516 = vrcp.pop %v2513
      %v2517 = vmul.f32 %v2507, %v2516
      %2518 = vrot.lane.b32.xlu0 %v1109, 112
      %v2519 = vpop.permute.xlu0 %2518
      %2520 = vrot.lane.b32.xlu0 %v1114, 112
      %v2521 = vpop.permute.xlu0 %2520
      %v2525 = vsel %vm1233, %v2515, 0
      %v2528 = vsel %vm1233, %v2517, 0
      %2530 = vmatprep.subr.mxu0 0.0
      %2531 = vmatpush1.msra.mxu0 0.0
      %2532 = vmatprep.subr.mxu0 0.0
      %2533 = vmatpush1.msra.mxu0 0.0
      %2534 = vmatprep.subr.mxu0 0.0
      %2535 = vmatpush1.msra.mxu0 0.0
      %2536 = vmatprep.subr.mxu0 0.0
      %2537 = vmatpush1.msra.mxu0 0.0
      %2538 = vmatprep.subr.mxu0 0.0
      %2539 = vmatpush1.msra.mxu0 0.0
      %2540 = vmatprep.subr.mxu0 0.0
      %2541 = vmatpush1.msra.mxu0 0.0
      %2542 = vmatprep.subr.mxu0 0.0
      %2543 = vmatpush1.msra.mxu0 0.0
      %2544 = vmatprep.subr.mxu0 0.0
      %2545 = vmatpush1.msra.mxu0 0.0
      %2546 = vmatprep.subr.mxu0 0.0
      %2547 = vmatpush1.msra.mxu0 0.0
      %2548 = vmatprep.subr.mxu0 0.0
      %2549 = vmatpush1.msra.mxu0 0.0
      %2550 = vmatprep.subr.mxu0 0.0
      %2551 = vmatpush1.msra.mxu0 0.0
      %2552 = vmatprep.subr.mxu0 0.0
      %2553 = vmatpush1.msra.mxu0 0.0
      %2554 = vmatprep.subr.mxu0 0.0
      %2555 = vmatpush1.msra.mxu0 0.0
      %2556 = vmatprep.subr.mxu0 0.0
      %2557 = vmatpush1.msra.mxu0 0.0
      %2558 = vmatprep.subr.mxu0 0.0
      %2559 = vmatpush1.msra.mxu0 %v2521
      %2560 = vmatprep.subr.mxu0 0.0
      %2561 = vmatpush1.msra.mxu0 %v2519
      %2562 = vmatprep.subr.mxu0 0.0
      %2563 = vmatpush2.msra.mxu0 0.0
      %2564 = vmatprep.subr.mxu0 0.0
      %2565 = vmatpush2.msra.mxu0 0.0
      %2566 = vmatprep.subr.mxu0 0.0
      %2567 = vmatpush2.msra.mxu0 0.0
      %2568 = vmatprep.subr.mxu0 0.0
      %2569 = vmatpush2.msra.mxu0 0.0
      %2570 = vmatprep.subr.mxu0 0.0
      %2571 = vmatpush2.msra.mxu0 0.0
      %2572 = vmatprep.subr.mxu0 0.0
      %2573 = vmatpush2.msra.mxu0 0.0
      %2574 = vmatprep.subr.mxu0 0.0
      %2575 = vmatpush2.msra.mxu0 0.0
      %2576 = vmatprep.subr.mxu0 0.0
      %2577 = vmatpush2.msra.mxu0 0.0
      %2578 = vmatprep.subr.mxu0 0.0
      %2579 = vmatpush2.msra.mxu0 0.0
      %2580 = vmatprep.subr.mxu0 0.0
      %2581 = vmatpush2.msra.mxu0 0.0
      %2582 = vmatprep.subr.mxu0 0.0
      %2583 = vmatpush2.msra.mxu0 0.0
      %2584 = vmatprep.subr.mxu0 0.0
      %2585 = vmatpush2.msra.mxu0 0.0
      %2586 = vmatprep.subr.mxu0 0.0
      %2587 = vmatpush2.msra.mxu0 0.0
      %2588 = vmatprep.subr.mxu0 0.0
      %2589 = vmatpush2.msra.mxu0 0.0
      %2590 = vmatprep.subr.mxu0 0.0
      %2591 = vmatpush2.msra.mxu0 0.0
      %2592 = vmatprep.subr.mxu0 0.0
      %2593 = vmatpush2.msra.mxu0 0.0
      %2594 = vmatprep.mubr.f32.mxu0 0.0
      %2595 = vmatmul.mubr.f32.gmra.mxu0 %v2525
      %v2596 = vpop.f32.mrf.mxu0
      %v2597 = vadd.f32 0.0, %v2596
      %v2598 = vpop.f32.mrf.mxu0
      %2599 = vmatprep.mubr.f32.mxu0 0.0
      %2600 = vmatmul.mubr.f32.gmra.mxu0 %v2528
      %v2601 = vpop.f32.mrf.mxu0
      %v2602 = vadd.f32 0.0, %v2601
      %v2603 = vpop.f32.mrf.mxu0
      %2604 = vdwg.mxu0
      %2605 = vrot.lane.b32.xlu0 %v905, 104
      %v2606 = vpop.permute.xlu0 %2605
      %2607 = vrot.lane.b32.xlu0 %v910, 104
      %v2608 = vpop.permute.xlu0 %2607
      %2609 = vrot.lane.b32.xlu0 %v1013, 104
      %v2610 = vpop.permute.xlu0 %2609
      %2611 = vrot.lane.b32.xlu0 %v1018, 104
      %v2612 = vpop.permute.xlu0 %2611
      %v2613 = vsel %vm1141, %v2606, 0
      %v2615 = vsel %vm1141, %v2608, 0
      %v2617 = vsel %vm1141, %v2610, 0
      %v2619 = vsel %vm1141, %v2612, 0
      %2621 = vmatprep.subr.mxu0 0.0
      %2622 = vmatpush1.xpose.msra.mxu0 0.0
      %2623 = vmatprep.subr.mxu0 0.0
      %2624 = vmatpush1.xpose.msra.mxu0 0.0
      %2625 = vmatprep.subr.mxu0 0.0
      %2626 = vmatpush1.xpose.msra.mxu0 0.0
      %2627 = vmatprep.subr.mxu0 0.0
      %2628 = vmatpush1.xpose.msra.mxu0 0.0
      %2629 = vmatprep.subr.mxu0 0.0
      %2630 = vmatpush1.xpose.msra.mxu0 0.0
      %2631 = vmatprep.subr.mxu0 0.0
      %2632 = vmatpush1.xpose.msra.mxu0 0.0
      %2633 = vmatprep.subr.mxu0 0.0
      %2634 = vmatpush1.xpose.msra.mxu0 0.0
      %2635 = vmatprep.subr.mxu0 0.0
      %2636 = vmatpush1.xpose.msra.mxu0 0.0
      %2637 = vmatprep.subr.mxu0 0.0
      %2638 = vmatpush1.xpose.msra.mxu0 0.0
      %2639 = vmatprep.subr.mxu0 0.0
      %2640 = vmatpush1.xpose.msra.mxu0 0.0
      %2641 = vmatprep.subr.mxu0 0.0
      %2642 = vmatpush1.xpose.msra.mxu0 0.0
      %2643 = vmatprep.subr.mxu0 0.0
      %2644 = vmatpush1.xpose.msra.mxu0 0.0
      %2645 = vmatprep.subr.mxu0 0.0
      %2646 = vmatpush1.xpose.msra.mxu0 0.0
      %2647 = vmatprep.subr.mxu0 0.0
      %2648 = vmatpush1.xpose.msra.mxu0 0.0
      %2649 = vmatprep.subr.mxu0 0.0
      %2650 = vmatpush1.xpose.msra.mxu0 %v2619
      %2651 = vmatprep.subr.mxu0 0.0
      %2652 = vmatpush1.xpose.msra.mxu0 %v2617
      %2653 = vmatprep.subr.mxu0 0.0
      %2654 = vmatpush2.xpose.msra.mxu0 0.0
      %2655 = vmatprep.subr.mxu0 0.0
      %2656 = vmatpush2.xpose.msra.mxu0 0.0
      %2657 = vmatprep.subr.mxu0 0.0
      %2658 = vmatpush2.xpose.msra.mxu0 0.0
      %2659 = vmatprep.subr.mxu0 0.0
      %2660 = vmatpush2.xpose.msra.mxu0 0.0
      %2661 = vmatprep.subr.mxu0 0.0
      %2662 = vmatpush2.xpose.msra.mxu0 0.0
      %2663 = vmatprep.subr.mxu0 0.0
      %2664 = vmatpush2.xpose.msra.mxu0 0.0
      %2665 = vmatprep.subr.mxu0 0.0
      %2666 = vmatpush2.xpose.msra.mxu0 0.0
      %2667 = vmatprep.subr.mxu0 0.0
      %2668 = vmatpush2.xpose.msra.mxu0 0.0
      %2669 = vmatprep.subr.mxu0 0.0
      %2670 = vmatpush2.xpose.msra.mxu0 0.0
      %2671 = vmatprep.subr.mxu0 0.0
      %2672 = vmatpush2.xpose.msra.mxu0 0.0
      %2673 = vmatprep.subr.mxu0 0.0
      %2674 = vmatpush2.xpose.msra.mxu0 0.0
      %2675 = vmatprep.subr.mxu0 0.0
      %2676 = vmatpush2.xpose.msra.mxu0 0.0
      %2677 = vmatprep.subr.mxu0 0.0
      %2678 = vmatpush2.xpose.msra.mxu0 0.0
      %2679 = vmatprep.subr.mxu0 0.0
      %2680 = vmatpush2.xpose.msra.mxu0 0.0
      %2681 = vmatprep.subr.mxu0 0.0
      %2682 = vmatpush2.xpose.msra.mxu0 0.0
      %2683 = vmatprep.subr.mxu0 0.0
      %2684 = vmatpush2.xpose.msra.mxu0 0.0
      %2685 = vmatprep.mubr.f32.mxu0 0.0
      %2686 = vmatmul.mubr.f32.gmra.mxu0 %v2613
      %v2687 = vpop.f32.mrf.mxu0
      %v2688 = vadd.f32 0.0, %v2687
      %v2689 = vpop.f32.mrf.mxu0
      %2690 = vmatprep.mubr.f32.mxu0 0.0
      %2691 = vmatmul.mubr.f32.gmra.mxu0 %v2615
      %v2692 = vpop.f32.mrf.mxu0
      %v2693 = vadd.f32 0.0, %v2692
      %v2694 = vpop.f32.mrf.mxu0
      %2695 = vdwg.mxu0
      %v2696 = vmul.f32 %v2688, 0.35355338
      %v2697 = vmul.f32 %v2693, 0.35355338
      %v2698 = vsel %vm1999, %v2696, -1e+09
      %v2699 = vsel %vm2000, %v2697, -1e+09
      %v2700 = vsel %vm1233, %v2698, -inf
      %2701 = vmax.xlane.f32.xlu0 %v2700
      %v2702 = vpop.xlane.xlu0 %2701
      %v2703 = vsel %vm1233, %v2699, -inf
      %2704 = vmax.xlane.f32.xlu0 %v2703
      %v2705 = vpop.xlane.xlu0 %2704
      %v2706 = vsub.f32 %v2698, %v2702
      %v2707 = vsub.f32 %v2699, %v2705
      %v2708 = vmul.f32 %v2706, 1.442695
      %v2709 = vpow.pop %v2708
      %v2710 = vmul.f32 %v2707, 1.442695
      %v2711 = vpow.pop %v2710
      %v2712 = vsel %vm1233, %v2709, 0.0
      %2713 = vadd.xlane.f32.xlu0 %v2712
      %v2714 = vpop.xlane.xlu0 %2713
      %v2715 = vsel %vm1233, %v2711, 0.0
      %2716 = vadd.xlane.f32.xlu0 %v2715
      %v2717 = vpop.xlane.xlu0 %2716
      %v2718 = vrcp.pop %v2714
      %v2719 = vmul.f32 %v2709, %v2718
      %v2720 = vrcp.pop %v2717
      %v2721 = vmul.f32 %v2711, %v2720
      %2722 = vrot.lane.b32.xlu0 %v1109, 104
      %v2723 = vpop.permute.xlu0 %2722
      %2724 = vrot.lane.b32.xlu0 %v1114, 104
      %v2725 = vpop.permute.xlu0 %2724
      %v2729 = vsel %vm1233, %v2719, 0
      %v2732 = vsel %vm1233, %v2721, 0
      %2734 = vmatprep.subr.mxu0 0.0
      %2735 = vmatpush1.msra.mxu0 0.0
      %2736 = vmatprep.subr.mxu0 0.0
      %2737 = vmatpush1.msra.mxu0 0.0
      %2738 = vmatprep.subr.mxu0 0.0
      %2739 = vmatpush1.msra.mxu0 0.0
      %2740 = vmatprep.subr.mxu0 0.0
      %2741 = vmatpush1.msra.mxu0 0.0
      %2742 = vmatprep.subr.mxu0 0.0
      %2743 = vmatpush1.msra.mxu0 0.0
      %2744 = vmatprep.subr.mxu0 0.0
      %2745 = vmatpush1.msra.mxu0 0.0
      %2746 = vmatprep.subr.mxu0 0.0
      %2747 = vmatpush1.msra.mxu0 0.0
      %2748 = vmatprep.subr.mxu0 0.0
      %2749 = vmatpush1.msra.mxu0 0.0
      %2750 = vmatprep.subr.mxu0 0.0
      %2751 = vmatpush1.msra.mxu0 0.0
      %2752 = vmatprep.subr.mxu0 0.0
      %2753 = vmatpush1.msra.mxu0 0.0
      %2754 = vmatprep.subr.mxu0 0.0
      %2755 = vmatpush1.msra.mxu0 0.0
      %2756 = vmatprep.subr.mxu0 0.0
      %2757 = vmatpush1.msra.mxu0 0.0
      %2758 = vmatprep.subr.mxu0 0.0
      %2759 = vmatpush1.msra.mxu0 0.0
      %2760 = vmatprep.subr.mxu0 0.0
      %2761 = vmatpush1.msra.mxu0 0.0
      %2762 = vmatprep.subr.mxu0 0.0
      %2763 = vmatpush1.msra.mxu0 %v2725
      %2764 = vmatprep.subr.mxu0 0.0
      %2765 = vmatpush1.msra.mxu0 %v2723
      %2766 = vmatprep.subr.mxu0 0.0
      %2767 = vmatpush2.msra.mxu0 0.0
      %2768 = vmatprep.subr.mxu0 0.0
      %2769 = vmatpush2.msra.mxu0 0.0
      %2770 = vmatprep.subr.mxu0 0.0
      %2771 = vmatpush2.msra.mxu0 0.0
      %2772 = vmatprep.subr.mxu0 0.0
      %2773 = vmatpush2.msra.mxu0 0.0
      %2774 = vmatprep.subr.mxu0 0.0
      %2775 = vmatpush2.msra.mxu0 0.0
      %2776 = vmatprep.subr.mxu0 0.0
      %2777 = vmatpush2.msra.mxu0 0.0
      %2778 = vmatprep.subr.mxu0 0.0
      %2779 = vmatpush2.msra.mxu0 0.0
      %2780 = vmatprep.subr.mxu0 0.0
      %2781 = vmatpush2.msra.mxu0 0.0
      %2782 = vmatprep.subr.mxu0 0.0
      %2783 = vmatpush2.msra.mxu0 0.0
      %2784 = vmatprep.subr.mxu0 0.0
      %2785 = vmatpush2.msra.mxu0 0.0
      %2786 = vmatprep.subr.mxu0 0.0
      %2787 = vmatpush2.msra.mxu0 0.0
      %2788 = vmatprep.subr.mxu0 0.0
      %2789 = vmatpush2.msra.mxu0 0.0
      %2790 = vmatprep.subr.mxu0 0.0
      %2791 = vmatpush2.msra.mxu0 0.0
      %2792 = vmatprep.subr.mxu0 0.0
      %2793 = vmatpush2.msra.mxu0 0.0
      %2794 = vmatprep.subr.mxu0 0.0
      %2795 = vmatpush2.msra.mxu0 0.0
      %2796 = vmatprep.subr.mxu0 0.0
      %2797 = vmatpush2.msra.mxu0 0.0
      %2798 = vmatprep.mubr.f32.mxu0 0.0
      %2799 = vmatmul.mubr.f32.gmra.mxu0 %v2729
      %v2800 = vpop.f32.mrf.mxu0
      %v2801 = vadd.f32 0.0, %v2800
      %v2802 = vpop.f32.mrf.mxu0
      %2803 = vmatprep.mubr.f32.mxu0 0.0
      %2804 = vmatmul.mubr.f32.gmra.mxu0 %v2732
      %v2805 = vpop.f32.mrf.mxu0
      %v2806 = vadd.f32 0.0, %v2805
      %v2807 = vpop.f32.mrf.mxu0
      %2808 = vdwg.mxu0
      %2811 = vrot.lane.b32.xlu0 %v2393, 8
      %v2812 = vpop.permute.xlu0 %2811
      %2813 = vrot.lane.b32.xlu0 %v2398, 8
      %v2814 = vpop.permute.xlu0 %2813
      %2819 = vrot.lane.b32.xlu0 %v2597, 16
      %v2820 = vpop.permute.xlu0 %2819
      %2821 = vrot.lane.b32.xlu0 %v2602, 16
      %v2822 = vpop.permute.xlu0 %2821
      %2827 = vrot.lane.b32.xlu0 %v2801, 24
      %v2828 = vpop.permute.xlu0 %2827
      %2829 = vrot.lane.b32.xlu0 %v2806, 24
      %v2830 = vpop.permute.xlu0 %2829
      %v2833 = vsel %vm1141, %v2187, %v2812
      %v2834 = vsel %vm1141, %v2192, %v2814
      %v2835 = vsel %vm1233, %v2833, %v2820
      %v2836 = vsel %vm1233, %v2834, %v2822
      %v2837 = vsel %vm1979, %v2835, %v2828
      %v2838 = vsel %vm1979, %v2836, %v2830
      %v2839 = vld [vmem:[%s766] sm:$0xff]
      %v2840 = vld [vmem:[%s766 + $0x8] sm:$0xff]
      %v2841 = vld [vmem:[%s766 + $0x10] sm:$0xff]
      %v2842 = vld [vmem:[%s766 + $0x18] sm:$0xff]
      %v2843 = vld [vmem:[%s769] sm:$0x1]
      %v2845 = vlaneseq
      %v2846 = vshrl.u32 %v2845, 7
      %v2847 = vsub.s32 0, %v2846
      %v2848 = vrot.slane %v2843, %v2847
      %v2851 = vsel %vm815, %v1980, 0
      %v2854 = vsel %vm815, %v1981, 0
      %v2857 = vsel %vm815, %v2837, 0
      %v2860 = vsel %vm815, %v2838, 0
      %2862 = vmatprep.subr.mxu0 0.0
      %2863 = vmatpush1.msra.mxu0 0.0
      %2864 = vmatprep.subr.mxu0 0.0
      %2865 = vmatpush1.msra.mxu0 0.0
      %2866 = vmatprep.subr.mxu0 0.0
      %2867 = vmatpush1.msra.mxu0 0.0
      %2868 = vmatprep.subr.mxu0 0.0
      %2869 = vmatpush1.msra.mxu0 0.0
      %2870 = vmatprep.subr.mxu0 0.0
      %2871 = vmatpush1.msra.mxu0 0.0
      %2872 = vmatprep.subr.mxu0 0.0
      %2873 = vmatpush1.msra.mxu0 0.0
      %2874 = vmatprep.subr.mxu0 0.0
      %2875 = vmatpush1.msra.mxu0 0.0
      %2876 = vmatprep.subr.mxu0 0.0
      %2877 = vmatpush1.msra.mxu0 0.0
      %2878 = vmatprep.subr.mxu0 0.0
      %2879 = vmatpush1.msra.mxu0 0.0
      %2880 = vmatprep.subr.mxu0 0.0
      %2881 = vmatpush1.msra.mxu0 0.0
      %2882 = vmatprep.subr.mxu0 0.0
      %2883 = vmatpush1.msra.mxu0 0.0
      %2884 = vmatprep.subr.mxu0 0.0
      %2885 = vmatpush1.msra.mxu0 0.0
      %2886 = vmatprep.subr.mxu0 0.0
      %2887 = vmatpush1.msra.mxu0 %v2842
      %2888 = vmatprep.subr.mxu0 0.0
      %2889 = vmatpush1.msra.mxu0 %v2841
      %2890 = vmatprep.subr.mxu0 0.0
      %2891 = vmatpush1.msra.mxu0 %v2840
      %2892 = vmatprep.subr.mxu0 0.0
      %2893 = vmatpush1.msra.mxu0 %v2839
      %2894 = vmatprep.subr.mxu0 0.0
      %2895 = vmatpush2.msra.mxu0 0.0
      %2896 = vmatprep.subr.mxu0 0.0
      %2897 = vmatpush2.msra.mxu0 0.0
      %2898 = vmatprep.subr.mxu0 0.0
      %2899 = vmatpush2.msra.mxu0 0.0
      %2900 = vmatprep.subr.mxu0 0.0
      %2901 = vmatpush2.msra.mxu0 0.0
      %2902 = vmatprep.subr.mxu0 0.0
      %2903 = vmatpush2.msra.mxu0 0.0
      %2904 = vmatprep.subr.mxu0 0.0
      %2905 = vmatpush2.msra.mxu0 0.0
      %2906 = vmatprep.subr.mxu0 0.0
      %2907 = vmatpush2.msra.mxu0 0.0
      %2908 = vmatprep.subr.mxu0 0.0
      %2909 = vmatpush2.msra.mxu0 0.0
      %2910 = vmatprep.subr.mxu0 0.0
      %2911 = vmatpush2.msra.mxu0 0.0
      %2912 = vmatprep.subr.mxu0 0.0
      %2913 = vmatpush2.msra.mxu0 0.0
      %2914 = vmatprep.subr.mxu0 0.0
      %2915 = vmatpush2.msra.mxu0 0.0
      %2916 = vmatprep.subr.mxu0 0.0
      %2917 = vmatpush2.msra.mxu0 0.0
      %2918 = vmatprep.subr.mxu0 0.0
      %2919 = vmatpush2.msra.mxu0 0.0
      %2920 = vmatprep.subr.mxu0 0.0
      %2921 = vmatpush2.msra.mxu0 0.0
      %2922 = vmatprep.subr.mxu0 0.0
      %2923 = vmatpush2.msra.mxu0 0.0
      %2924 = vmatprep.subr.mxu0 0.0
      %2925 = vmatpush2.msra.mxu0 0.0
      %2926 = vmatprep.mubr.f32.mxu0 0.0
      %2927 = vmatmul.mubr.f32.gmra.mxu0 %v2851
      %v2928 = vpop.f32.mrf.mxu0
      %v2929 = vadd.f32 %v2848, %v2928
      %v2930 = vpop.f32.mrf.mxu0
      %2931 = vmatprep.mubr.f32.mxu0 0.0
      %2932 = vmatmul.mubr.f32.gmra.mxu0 %v2854
      %v2933 = vpop.f32.mrf.mxu0
      %v2934 = vadd.f32 %v2848, %v2933
      %v2935 = vpop.f32.mrf.mxu0
      %2936 = vmatprep.mubr.f32.mxu0 0.0
      %2937 = vmatmul.mubr.f32.gmra.mxu0 %v2857
      %v2938 = vpop.f32.mrf.mxu0
      %v2939 = vadd.f32 %v2848, %v2938
      %v2940 = vpop.f32.mrf.mxu0
      %2941 = vmatprep.mubr.f32.mxu0 0.0
      %2942 = vmatmul.mubr.f32.gmra.mxu0 %v2860
      %v2943 = vpop.f32.mrf.mxu0
      %v2944 = vadd.f32 %v2848, %v2943
      %v2945 = vpop.f32.mrf.mxu0
      %2946 = vdwg.mxu0
      %v2947 = vld [vmem:[%s774] sm:$0xff]
      %v2948 = vld [vmem:[%s774 + $0x8] sm:$0xff]
      %v2949 = vld [vmem:[%s774 + $0x10] sm:$0xff]
      %v2950 = vld [vmem:[%s774 + $0x18] sm:$0xff]
      %v2951 = vld [vmem:[%s779] sm:$0xff]
      %v2952 = vld [vmem:[%s779 + $0x8] sm:$0xff]
      %v2953 = vld [vmem:[%s779 + $0x10] sm:$0xff]
      %v2954 = vld [vmem:[%s779 + $0x18] sm:$0xff]
      %2955 = vmatprep.subr.mxu0 0.0
      %2956 = vmatpush1.msra.mxu0 0.0
      %2957 = vmatprep.subr.mxu0 0.0
      %2958 = vmatpush1.msra.mxu0 0.0
      %2959 = vmatprep.subr.mxu0 0.0
      %2960 = vmatpush1.msra.mxu0 0.0
      %2961 = vmatprep.subr.mxu0 0.0
      %2962 = vmatpush1.msra.mxu0 0.0
      %2963 = vmatprep.subr.mxu0 0.0
      %2964 = vmatpush1.msra.mxu0 0.0
      %2965 = vmatprep.subr.mxu0 0.0
      %2966 = vmatpush1.msra.mxu0 0.0
      %2967 = vmatprep.subr.mxu0 0.0
      %2968 = vmatpush1.msra.mxu0 0.0
      %2969 = vmatprep.subr.mxu0 0.0
      %2970 = vmatpush1.msra.mxu0 0.0
      %2971 = vmatprep.subr.mxu0 0.0
      %2972 = vmatpush1.msra.mxu0 0.0
      %2973 = vmatprep.subr.mxu0 0.0
      %2974 = vmatpush1.msra.mxu0 0.0
      %2975 = vmatprep.subr.mxu0 0.0
      %2976 = vmatpush1.msra.mxu0 0.0
      %2977 = vmatprep.subr.mxu0 0.0
      %2978 = vmatpush1.msra.mxu0 0.0
      %2979 = vmatprep.subr.mxu0 0.0
      %2980 = vmatpush1.msra.mxu0 %v2954
      %2981 = vmatprep.subr.mxu0 0.0
      %2982 = vmatpush1.msra.mxu0 %v2953
      %2983 = vmatprep.subr.mxu0 0.0
      %2984 = vmatpush1.msra.mxu0 %v2952
      %2985 = vmatprep.subr.mxu0 0.0
      %2986 = vmatpush1.msra.mxu0 %v2951
      %2987 = vmatprep.subr.mxu0 0.0
      %2988 = vmatpush2.msra.mxu0 0.0
      %2989 = vmatprep.subr.mxu0 0.0
      %2990 = vmatpush2.msra.mxu0 0.0
      %2991 = vmatprep.subr.mxu0 0.0
      %2992 = vmatpush2.msra.mxu0 0.0
      %2993 = vmatprep.subr.mxu0 0.0
      %2994 = vmatpush2.msra.mxu0 0.0
      %2995 = vmatprep.subr.mxu0 0.0
      %2996 = vmatpush2.msra.mxu0 0.0
      %2997 = vmatprep.subr.mxu0 0.0
      %2998 = vmatpush2.msra.mxu0 0.0
      %2999 = vmatprep.subr.mxu0 0.0
      %3000 = vmatpush2.msra.mxu0 0.0
      %3001 = vmatprep.subr.mxu0 0.0
      %3002 = vmatpush2.msra.mxu0 0.0
      %3003 = vmatprep.subr.mxu0 0.0
      %3004 = vmatpush2.msra.mxu0 0.0
      %3005 = vmatprep.subr.mxu0 0.0
      %3006 = vmatpush2.msra.mxu0 0.0
      %3007 = vmatprep.subr.mxu0 0.0
      %3008 = vmatpush2.msra.mxu0 0.0
      %3009 = vmatprep.subr.mxu0 0.0
      %3010 = vmatpush2.msra.mxu0 0.0
      %3011 = vmatprep.subr.mxu0 0.0
      %3012 = vmatpush2.msra.mxu0 0.0
      %3013 = vmatprep.subr.mxu0 0.0
      %3014 = vmatpush2.msra.mxu0 0.0
      %3015 = vmatprep.subr.mxu0 0.0
      %3016 = vmatpush2.msra.mxu0 0.0
      %3017 = vmatprep.subr.mxu0 0.0
      %3018 = vmatpush2.msra.mxu0 0.0
      %3019 = vmatprep.mubr.f32.mxu0 0.0
      %3020 = vmatmul.mubr.f32.gmra.mxu0 %v817
      %v3021 = vpop.f32.mrf.mxu0
      %v3022 = vadd.f32 0.0, %v3021
      %v3023 = vpop.f32.mrf.mxu0
      %3024 = vmatprep.mubr.f32.mxu0 0.0
      %3025 = vmatmul.mubr.f32.gmra.mxu0 %v820
      %v3026 = vpop.f32.mrf.mxu0
      %v3027 = vadd.f32 0.0, %v3026
      %v3028 = vpop.f32.mrf.mxu0
      %3029 = vmatprep.mubr.f32.mxu0 0.0
      %3030 = vmatmul.mubr.f32.gmra.mxu0 %v823
      %v3031 = vpop.f32.mrf.mxu0
      %v3032 = vadd.f32 0.0, %v3031
      %v3033 = vpop.f32.mrf.mxu0
      %3034 = vmatprep.mubr.f32.mxu0 0.0
      %3035 = vmatmul.mubr.f32.gmra.mxu0 %v826
      %v3036 = vpop.f32.mrf.mxu0
      %v3037 = vadd.f32 0.0, %v3036
      %v3038 = vpop.f32.mrf.mxu0
      %3039 = vdwg.mxu0
      %v3041 = vsel %vm815, %v2929, 0
      %v3044 = vsel %vm815, %v2934, 0
      %v3047 = vsel %vm815, %v2939, 0
      %v3050 = vsel %vm815, %v2944, 0
      %3052 = vmatprep.subr.mxu0 0.0
      %3053 = vmatpush1.msra.mxu0 0.0
      %3054 = vmatprep.subr.mxu0 0.0
      %3055 = vmatpush1.msra.mxu0 0.0
      %3056 = vmatprep.subr.mxu0 0.0
      %3057 = vmatpush1.msra.mxu0 0.0
      %3058 = vmatprep.subr.mxu0 0.0
      %3059 = vmatpush1.msra.mxu0 0.0
      %3060 = vmatprep.subr.mxu0 0.0
      %3061 = vmatpush1.msra.mxu0 0.0
      %3062 = vmatprep.subr.mxu0 0.0
      %3063 = vmatpush1.msra.mxu0 0.0
      %3064 = vmatprep.subr.mxu0 0.0
      %3065 = vmatpush1.msra.mxu0 0.0
      %3066 = vmatprep.subr.mxu0 0.0
      %3067 = vmatpush1.msra.mxu0 0.0
      %3068 = vmatprep.subr.mxu0 0.0
      %3069 = vmatpush1.msra.mxu0 0.0
      %3070 = vmatprep.subr.mxu0 0.0
      %3071 = vmatpush1.msra.mxu0 0.0
      %3072 = vmatprep.subr.mxu0 0.0
      %3073 = vmatpush1.msra.mxu0 0.0
      %3074 = vmatprep.subr.mxu0 0.0
      %3075 = vmatpush1.msra.mxu0 0.0
      %3076 = vmatprep.subr.mxu0 0.0
      %3077 = vmatpush1.msra.mxu0 %v2950
      %3078 = vmatprep.subr.mxu0 0.0
      %3079 = vmatpush1.msra.mxu0 %v2949
      %3080 = vmatprep.subr.mxu0 0.0
      %3081 = vmatpush1.msra.mxu0 %v2948
      %3082 = vmatprep.subr.mxu0 0.0
      %3083 = vmatpush1.msra.mxu0 %v2947
      %3084 = vmatprep.subr.mxu0 0.0
      %3085 = vmatpush2.msra.mxu0 0.0
      %3086 = vmatprep.subr.mxu0 0.0
      %3087 = vmatpush2.msra.mxu0 0.0
      %3088 = vmatprep.subr.mxu0 0.0
      %3089 = vmatpush2.msra.mxu0 0.0
      %3090 = vmatprep.subr.mxu0 0.0
      %3091 = vmatpush2.msra.mxu0 0.0
      %3092 = vmatprep.subr.mxu0 0.0
      %3093 = vmatpush2.msra.mxu0 0.0
      %3094 = vmatprep.subr.mxu0 0.0
      %3095 = vmatpush2.msra.mxu0 0.0
      %3096 = vmatprep.subr.mxu0 0.0
      %3097 = vmatpush2.msra.mxu0 0.0
      %3098 = vmatprep.subr.mxu0 0.0
      %3099 = vmatpush2.msra.mxu0 0.0
      %3100 = vmatprep.subr.mxu0 0.0
      %3101 = vmatpush2.msra.mxu0 0.0
      %3102 = vmatprep.subr.mxu0 0.0
      %3103 = vmatpush2.msra.mxu0 0.0
      %3104 = vmatprep.subr.mxu0 0.0
      %3105 = vmatpush2.msra.mxu0 0.0
      %3106 = vmatprep.subr.mxu0 0.0
      %3107 = vmatpush2.msra.mxu0 0.0
      %3108 = vmatprep.subr.mxu0 0.0
      %3109 = vmatpush2.msra.mxu0 0.0
      %3110 = vmatprep.subr.mxu0 0.0
      %3111 = vmatpush2.msra.mxu0 0.0
      %3112 = vmatprep.subr.mxu0 0.0
      %3113 = vmatpush2.msra.mxu0 0.0
      %3114 = vmatprep.subr.mxu0 0.0
      %3115 = vmatpush2.msra.mxu0 0.0
      %3116 = vmatprep.mubr.f32.mxu0 0.0
      %3117 = vmatmul.mubr.f32.gmra.mxu0 %v3041
      %v3118 = vpop.f32.mrf.mxu0
      %v3119 = vadd.f32 %v3022, %v3118
      %v3120 = vpop.f32.mrf.mxu0
      %3121 = vmatprep.mubr.f32.mxu0 0.0
      %3122 = vmatmul.mubr.f32.gmra.mxu0 %v3044
      %v3123 = vpop.f32.mrf.mxu0
      %v3124 = vadd.f32 %v3027, %v3123
      %v3125 = vpop.f32.mrf.mxu0
      %3126 = vmatprep.mubr.f32.mxu0 0.0
      %3127 = vmatmul.mubr.f32.gmra.mxu0 %v3047
      %v3128 = vpop.f32.mrf.mxu0
      %v3129 = vadd.f32 %v3032, %v3128
      %v3130 = vpop.f32.mrf.mxu0
      %3131 = vmatprep.mubr.f32.mxu0 0.0
      %3132 = vmatmul.mubr.f32.gmra.mxu0 %v3050
      %v3133 = vpop.f32.mrf.mxu0
      %v3134 = vadd.f32 %v3037, %v3133
      %v3135 = vpop.f32.mrf.mxu0
      %3136 = vdwg.mxu0
      %v3137 = vld [vmem:[%s782] sm:$0x1]
      %v3139 = vlaneseq
      %v3140 = vshrl.u32 %v3139, 7
      %v3141 = vsub.s32 0, %v3140
      %v3142 = vrot.slane %v3137, %v3141
      %v3144 = vadd.f32 %v3119, %v3142
      %v3145 = vadd.f32 %v3124, %v3142
      %v3146 = vadd.f32 %v3129, %v3142
      %v3147 = vadd.f32 %v3134, %v3142
      %v3148 = vmax.f32 %v3144, 0.0
      %v3149 = vmax.f32 %v3145, 0.0
      %v3150 = vmax.f32 %v3146, 0.0
      %v3151 = vmax.f32 %v3147, 0.0
      %v3152 = vld [vmem:[%s787] sm:$0xff]
      %v3153 = vld [vmem:[%s787 + $0x8] sm:$0xff]
      %v3154 = vld [vmem:[%s787 + $0x10] sm:$0xff]
      %v3155 = vld [vmem:[%s787 + $0x18] sm:$0xff]
      %v3156 = vld [vmem:[%s787 + $0x20] sm:$0xff]
      %v3157 = vld [vmem:[%s787 + $0x28] sm:$0xff]
      %v3158 = vld [vmem:[%s787 + $0x30] sm:$0xff]
      %v3159 = vld [vmem:[%s787 + $0x38] sm:$0xff]
      %v3160 = vld [vmem:[%s790] sm:$0x1]
      %v3162 = vlaneseq
      %v3163 = vshrl.u32 %v3162, 7
      %v3164 = vsub.s32 0, %v3163
      %v3165 = vrot.slane %v3160, %v3164
      %vm3167 = vcmask 523264
      %v3169 = vsel %vm3167, %v3148, 0
      %v3172 = vsel %vm3167, %v3149, 0
      %v3175 = vsel %vm3167, %v3150, 0
      %v3178 = vsel %vm3167, %v3151, 0
      %3180 = vmatprep.subr.mxu0 0.0
      %3181 = vmatpush1.msra.mxu0 0.0
      %3182 = vmatprep.subr.mxu0 0.0
      %3183 = vmatpush1.msra.mxu0 0.0
      %3184 = vmatprep.subr.mxu0 0.0
      %3185 = vmatpush1.msra.mxu0 0.0
      %3186 = vmatprep.subr.mxu0 0.0
      %3187 = vmatpush1.msra.mxu0 0.0
      %3188 = vmatprep.subr.mxu0 0.0
      %3189 = vmatpush1.msra.mxu0 0.0
      %3190 = vmatprep.subr.mxu0 0.0
      %3191 = vmatpush1.msra.mxu0 0.0
      %3192 = vmatprep.subr.mxu0 0.0
      %3193 = vmatpush1.msra.mxu0 0.0
      %3194 = vmatprep.subr.mxu0 0.0
      %3195 = vmatpush1.msra.mxu0 0.0
      %3196 = vmatprep.subr.mxu0 0.0
      %3197 = vmatpush1.msra.mxu0 %v3159
      %3198 = vmatprep.subr.mxu0 0.0
      %3199 = vmatpush1.msra.mxu0 %v3158
      %3200 = vmatprep.subr.mxu0 0.0
      %3201 = vmatpush1.msra.mxu0 %v3157
      %3202 = vmatprep.subr.mxu0 0.0
      %3203 = vmatpush1.msra.mxu0 %v3156
      %3204 = vmatprep.subr.mxu0 0.0
      %3205 = vmatpush1.msra.mxu0 %v3155
      %3206 = vmatprep.subr.mxu0 0.0
      %3207 = vmatpush1.msra.mxu0 %v3154
      %3208 = vmatprep.subr.mxu0 0.0
      %3209 = vmatpush1.msra.mxu0 %v3153
      %3210 = vmatprep.subr.mxu0 0.0
      %3211 = vmatpush1.msra.mxu0 %v3152
      %3212 = vmatprep.subr.mxu0 0.0
      %3213 = vmatpush2.msra.mxu0 0.0
      %3214 = vmatprep.subr.mxu0 0.0
      %3215 = vmatpush2.msra.mxu0 0.0
      %3216 = vmatprep.subr.mxu0 0.0
      %3217 = vmatpush2.msra.mxu0 0.0
      %3218 = vmatprep.subr.mxu0 0.0
      %3219 = vmatpush2.msra.mxu0 0.0
      %3220 = vmatprep.subr.mxu0 0.0
      %3221 = vmatpush2.msra.mxu0 0.0
      %3222 = vmatprep.subr.mxu0 0.0
      %3223 = vmatpush2.msra.mxu0 0.0
      %3224 = vmatprep.subr.mxu0 0.0
      %3225 = vmatpush2.msra.mxu0 0.0
      %3226 = vmatprep.subr.mxu0 0.0
      %3227 = vmatpush2.msra.mxu0 0.0
      %3228 = vmatprep.subr.mxu0 0.0
      %3229 = vmatpush2.msra.mxu0 0.0
      %3230 = vmatprep.subr.mxu0 0.0
      %3231 = vmatpush2.msra.mxu0 0.0
      %3232 = vmatprep.subr.mxu0 0.0
      %3233 = vmatpush2.msra.mxu0 0.0
      %3234 = vmatprep.subr.mxu0 0.0
      %3235 = vmatpush2.msra.mxu0 0.0
      %3236 = vmatprep.subr.mxu0 0.0
      %3237 = vmatpush2.msra.mxu0 0.0
      %3238 = vmatprep.subr.mxu0 0.0
      %3239 = vmatpush2.msra.mxu0 0.0
      %3240 = vmatprep.subr.mxu0 0.0
      %3241 = vmatpush2.msra.mxu0 0.0
      %3242 = vmatprep.subr.mxu0 0.0
      %3243 = vmatpush2.msra.mxu0 0.0
      %3244 = vmatprep.mubr.f32.mxu0 0.0
      %3245 = vmatmul.mubr.f32.gmra.mxu0 %v3169
      %v3246 = vpop.f32.mrf.mxu0
      %v3247 = vadd.f32 %v3165, %v3246
      %v3248 = vpop.f32.mrf.mxu0
      %3249 = vmatprep.mubr.f32.mxu0 0.0
      %3250 = vmatmul.mubr.f32.gmra.mxu0 %v3172
      %v3251 = vpop.f32.mrf.mxu0
      %v3252 = vadd.f32 %v3165, %v3251
      %v3253 = vpop.f32.mrf.mxu0
      %3254 = vmatprep.mubr.f32.mxu0 0.0
      %3255 = vmatmul.mubr.f32.gmra.mxu0 %v3175
      %v3256 = vpop.f32.mrf.mxu0
      %v3257 = vadd.f32 %v3165, %v3256
      %v3258 = vpop.f32.mrf.mxu0
      %3259 = vmatprep.mubr.f32.mxu0 0.0
      %3260 = vmatmul.mubr.f32.gmra.mxu0 %v3178
      %v3261 = vpop.f32.mrf.mxu0
      %v3262 = vadd.f32 %v3165, %v3261
      %v3263 = vpop.f32.mrf.mxu0
      %3264 = vdwg.mxu0
      %3265 = vst.msk [vmem:[%s795] sm:$0xff] %vm815, %v3247
      %3266 = vst.msk [vmem:[%s795 + $0x8] sm:$0xff] %vm815, %v3252
      %3267 = vst.msk [vmem:[%s795 + $0x10] sm:$0xff] %vm815, %v3257
      %3268 = vst.msk [vmem:[%s795 + $0x18] sm:$0xff] %vm815, %v3262
      %p3269 = scmp.lt.s32.totalorder %s28, 2
      %s3270 = scalar_select %p3269, %s28, 2
      %s3271 = smul.addr %s3270, 4
      %s3272 = smul.addr %s3271, 8
      %s3273 = scalar_lea.vmem %s17, %s3272
      // Predicated region
      $region89: #{layered_mixed_attention_forward.3} parent=87 // pred_check
        %p3274 = pneg %p478
      $region90: #{layered_mixed_attention_forward.3} parent=87 // pred_check_branch
        %3276 = sbr.rel (%p3274) target = $region92
      $region91: #{layered_mixed_attention_forward.3} parent=87 // pred_region
        _
      $region92: #{layered_mixed_attention_forward.3} parent=87 // pred_fallthru
        _
    $region88: #{layered_mixed_attention_forward.3} parent=5 // pred_fallthru
      _
    %p3277 = scmp.le.s32.totalorder 2, %s23
    // Predicated region
    $region93: #{layered_mixed_attention_forward.3} parent=5 // pred_check
      %p3278 = pneg %p3277
    $region94: #{layered_mixed_attention_forward.3} parent=5 // pred_check_branch
      %3280 = sbr.rel (%p3278) target = $region96
    $region95: #{layered_mixed_attention_forward.3} parent=5 // pred_region
      %s3281 = ssub.s32 %s23, 2
      // Predicated region
      $region97: #{layered_mixed_attention_forward.3} parent=95 // pred_check
        %p3282 = pneg %p484
      $region98: #{layered_mixed_attention_forward.3} parent=95 // pred_check_branch
        %3284 = sbr.rel (%p3282) target = $region100
      $region99: #{layered_mixed_attention_forward.3} parent=95 // pred_region
        %p3285 = scmp.lt.s32.totalorder %s29, 2
        %s3286 = scalar_select %p3285, %s29, 2
        %s3287 = smul.addr %s3286, 4
        %s3288 = smul.addr %s3287, 8
        %s3289 = scalar_lea.vmem %s17, %s3288
      $region100: #{layered_mixed_attention_forward.3} parent=95 // pred_fallthru
        _
    $region96: #{layered_mixed_attention_forward.3} parent=5 // pred_fallthru
      _
  $region6: #{layered_mixed_attention_forward.3} parent=0 // loop_footer
    %s27 = sadd.s32 1, %s23
  $region7: #{layered_mixed_attention_forward.3} parent=0 // loop_footer_branch
    %22 = sbr.rel target = $region3
  $region8: #{layered_mixed_attention_forward.3} parent=0 // loop_exit
    _

</llo_original>
